<compile_context>
chip_gen: v7x
topology: tpu7x:2x2x1
jax: 0.10.0
libtpu: 0.0.40
codegen_flags: <defaults>
</compile_context>

<pallas_src>
import functools

import jax
import jax.numpy as jnp
from jax import lax
from jax.experimental import pallas as pl
from jax.experimental.pallas import tpu as pltpu

CH_ALIGN = 16  # pad every channel dim to a multiple of 16 (bf16 sublane pack)


def _ceil_to(x, m):
    return ((x + m - 1) // m) * m


def _fused_cnn_kernel(x_ref, *refs, H, W, n_layers):
    """All conv layers for one image, fully VMEM/vreg resident.

    x_ref : (1, Cin_pad, H*W)              f32   channel-major, spatial flattened
    refs  : w_0, b_0, ..., w_{L-1}, b_{L-1}, o_ref
      w_l : (9, Cout_pad_l, Cin_pad_l)     bf16  per-tap weights, zero-padded
      b_l : (Cout_pad_l, 1)                f32   bias, zero-padded
      o_ref: (1, Cout_pad_last, H*W)       f32
    """
    o_ref = refs[-1]
    wb = refs[:-1]
    HW = H * W

    # (1, HW) edge masks over the flattened spatial (lane) axis; broadcast over
    # the small channel (sublane) axis inside jnp.where.
    lane = lax.broadcasted_iota(jnp.int32, (1, HW), 1)
    if (W & (W - 1)) == 0:
        col = jnp.bitwise_and(lane, W - 1)
    else:
        col = lane % W
    col_first = col == 0
    col_last = col == (W - 1)
    row_first = lane < W
    row_last = lane >= (HW - W)

    a = x_ref[0]  # (Cin_pad, HW) f32; padded channel rows are zero.

    for layer in range(n_layers):
        w_ref = wb[2 * layer]
        b_ref = wb[2 * layer + 1]
        cout_pad = w_ref.shape[1]

        # Accumulator initialized with the lane-broadcast bias (padded rows = 0).
        acc = jnp.broadcast_to(b_ref[...], (cout_pad, HW))

        # 9 replicate-padded taps, each fed straight into an MXU matmul:
        #   acc(Cout, HW) += W_tap(Cout, Cin) @ tap(Cin, HW)
        for rh in range(3):
            if rh == 1:
                r = a
            elif rh == 0:   # row i-1, clamped at the first row
                r = jnp.where(row_first, a, pltpu.roll(a, W, axis=1))
            else:           # row i+1, clamped at the last row
                r = jnp.where(row_last, a, pltpu.roll(a, HW - W, axis=1))
            for cw in range(3):
                if cw == 1:
                    t = r
                elif cw == 0:   # col j-1, clamped at the first column
                    t = jnp.where(col_first, r, pltpu.roll(r, 1, axis=1))
                else:           # col j+1 (shift -1 == +HW-1), clamped at last col
                    t = jnp.where(col_last, r, pltpu.roll(r, HW - 1, axis=1))
                k = rh * 3 + cw
                acc = acc + jnp.dot(w_ref[k], t.astype(jnp.bfloat16),
                                    preferred_element_type=jnp.float32)

        if layer == n_layers - 1:
            acc = jnp.maximum(acc, 0.0)          # single trailing ReLU
            o_ref[0] = acc.astype(o_ref.dtype)   # already (C, HW) == NCHW
        else:
            a = acc                              # stays f32; padded rows stay 0


def init_cnn_params(key, in_channels, out_channels,
                    filters_list=(32, 64, 128, 16, 8)):
    """Xavier-normal weights (gain=1), zero bias — mirrors CNN.reset_params().

    Weights are stored as (3, 3, Cin, Cout).  To load real PyTorch Conv2d
    weights (Cout, Cin, kH, kW), transpose them with w.transpose(2, 3, 1, 0).
    """
    params = []
    ins = in_channels
    n_layers = len(filters_list)
    for i in range(n_layers):
        outs = filters_list[i] if i != n_layers - 1 else out_channels
        key, sub = jax.random.split(key)
        fan_in = ins * 9
        fan_out = outs * 9
        std = jnp.sqrt(2.0 / (fan_in + fan_out)).astype(jnp.float32)
        w = jax.random.normal(sub, (3, 3, ins, outs), jnp.float32) * std
        b = jnp.zeros((outs,), jnp.float32)
        params.append((w, b))
        ins = outs
    return params


def _prep_params(params):
    """Per-layer (9, Cout_pad, Cin_pad) bf16 weights + (Cout_pad, 1) f32 bias."""
    flat = []
    for w, b in params:
        cin, cout = w.shape[2], w.shape[3]
        cin_p = _ceil_to(cin, CH_ALIGN)
        cout_p = _ceil_to(cout, CH_ALIGN)
        wt = jnp.transpose(w, (0, 1, 3, 2)).reshape(9, cout, cin)   # tap, Cout, Cin
        wp = jnp.zeros((9, cout_p, cin_p), jnp.float32)
        wp = wp.at[:, :cout, :cin].set(wt)
        bp = jnp.zeros((cout_p, 1), jnp.float32).at[:cout, 0].set(b)
        flat += [wp.astype(jnp.bfloat16), bp]
    return flat


@jax.jit
def cnn_forward(x_nchw, params):
    """Forward pass of CNN: chained conv3x3 (replicate pad, bias) then ReLU."""
    N, Cin, H, W = x_nchw.shape
    HW = H * W
    n_layers = len(params)
    c_out = params[-1][0].shape[-1]
    cin_p = _ceil_to(Cin, CH_ALIGN)
    cout_p = _ceil_to(c_out, CH_ALIGN)

    wb = _prep_params(params)

    # NCHW is already channel-major: flatten spatial dims, pad the (small)
    # channel axis to sublane alignment.  No transpose, no 128-lane inflation.
    x = x_nchw.reshape(N, Cin, HW)
    x = jnp.pad(x, ((0, 0), (0, cin_p - Cin), (0, 0)))

    kernel = functools.partial(_fused_cnn_kernel, H=H, W=W, n_layers=n_layers)

    in_specs = [pl.BlockSpec((1, cin_p, HW), lambda n: (n, 0, 0))]
    for arr in wb:                       # grid-invariant weights / biases
        zeros = (0,) * arr.ndim
        in_specs.append(pl.BlockSpec(arr.shape, lambda n, z=zeros: z))

    out = pl.pallas_call(
        kernel,
        out_shape=jax.ShapeDtypeStruct((N, cout_p, HW), x_nchw.dtype),
        grid=(N,),
        in_specs=in_specs,
        out_specs=pl.BlockSpec((1, cout_p, HW), lambda n: (n, 0, 0)),
        compiler_params=pltpu.CompilerParams(
            dimension_semantics=("parallel",)),
    )(x, *wb)

    # Drop the padded output channels; layout is already NCHW.
    return out[:, :c_out, :].reshape(N, c_out, H, W)


def cnn_reference(x_nchw, params):
    """Pure-JAX f32 reference (per-tap einsum, replicate padding)."""
    x = jnp.transpose(x_nchw, (0, 2, 3, 1))  # NHWC
    N, H, W, _ = x.shape
    for w, b in params:
        xp = jnp.pad(x, ((0, 0), (1, 1), (1, 1), (0, 0)), mode="edge")
        acc = jnp.zeros((N, H, W, w.shape[-1]), jnp.float32)
        for kh in range(3):
            for kw in range(3):
                acc = acc + jnp.einsum(
                    "nhwc,co->nhwo", xp[:, kh:kh + H, kw:kw + W, :], w[kh, kw],
                    precision=lax.Precision.HIGHEST)
        x = acc + b
    x = jnp.maximum(x, 0.0)
    return jnp.transpose(x, (0, 3, 1, 2))


if __name__ == "__main__":
    key = jax.random.PRNGKey(0)
    key, xkey = jax.random.split(key)

    # Small shapes: batch=2, in_channels=4, out_channels=4, spatial 16x16.
    N, Cin, H, W = 2, 4, 16, 16
    Cout = 4
    x = jax.random.normal(xkey, (N, Cin, H, W), jnp.float32)
    params = init_cnn_params(key, Cin, Cout)

    out = jax.block_until_ready(cnn_forward(x, params))
    assert out.shape == (N, Cout, H, W), out.shape
    assert bool(jnp.all(out >= 0.0))  # trailing ReLU

    # Loose-tolerance check vs. an f32 reference (kernel matmuls run in bf16;
    # 5 chained bf16 layers compound rounding error).
    ref = jax.block_until_ready(cnn_reference(x, params))
    max_err = float(jnp.max(jnp.abs(out - ref)))
    scale = float(jnp.max(jnp.abs(ref))) + 1e-6
    assert max_err <= 0.06 * scale + 2e-2, (max_err, scale)

    print("KERNEL_OK")
</pallas_src>

<mosaic_0001>
module attributes {stable_mosaic.version = 11 : i64} {
  func.func @_fused_cnn_kernel(%arg0: i32, %arg1: memref<1x16x256xf32, #tpu.memory_space<vmem>>, %arg2: memref<9x32x16xbf16, #tpu.memory_space<vmem>>, %arg3: memref<32x1xf32, #tpu.memory_space<vmem>>, %arg4: memref<9x64x32xbf16, #tpu.memory_space<vmem>>, %arg5: memref<64x1xf32, #tpu.memory_space<vmem>>, %arg6: memref<9x128x64xbf16, #tpu.memory_space<vmem>>, %arg7: memref<128x1xf32, #tpu.memory_space<vmem>>, %arg8: memref<9x16x128xbf16, #tpu.memory_space<vmem>>, %arg9: memref<16x1xf32, #tpu.memory_space<vmem>>, %arg10: memref<9x16x16xbf16, #tpu.memory_space<vmem>>, %arg11: memref<16x1xf32, #tpu.memory_space<vmem>>, %arg12: memref<1x16x256xf32, #tpu.memory_space<vmem>>) attributes {dimension_semantics = [#tpu.dimension_semantics<parallel>], iteration_bounds = array<i64: 2>, scalar_prefetch = 0 : i64, scratch_operands = 0 : i64, tpu.core_type = #tpu.core_type<tc>, window_params = [{transform_indices = @transform_0, window_bounds = array<i64: 1, 16, 256>}, {pipeline_mode = #tpu.pipeline_mode<synchronous>, transform_indices = @transform_1, window_bounds = array<i64: 9, 32, 16>}, {pipeline_mode = #tpu.pipeline_mode<synchronous>, transform_indices = @transform_2, window_bounds = array<i64: 32, 1>}, {pipeline_mode = #tpu.pipeline_mode<synchronous>, transform_indices = @transform_3, window_bounds = array<i64: 9, 64, 32>}, {pipeline_mode = #tpu.pipeline_mode<synchronous>, transform_indices = @transform_4, window_bounds = array<i64: 64, 1>}, {pipeline_mode = #tpu.pipeline_mode<synchronous>, transform_indices = @transform_5, window_bounds = array<i64: 9, 128, 64>}, {pipeline_mode = #tpu.pipeline_mode<synchronous>, transform_indices = @transform_6, window_bounds = array<i64: 128, 1>}, {pipeline_mode = #tpu.pipeline_mode<synchronous>, transform_indices = @transform_7, window_bounds = array<i64: 9, 16, 128>}, {pipeline_mode = #tpu.pipeline_mode<synchronous>, transform_indices = @transform_8, window_bounds = array<i64: 16, 1>}, {pipeline_mode = #tpu.pipeline_mode<synchronous>, transform_indices = @transform_9, window_bounds = array<i64: 9, 16, 16>}, {pipeline_mode = #tpu.pipeline_mode<synchronous>, transform_indices = @transform_10, window_bounds = array<i64: 16, 1>}, {transform_indices = @transform_11, window_bounds = array<i64: 1, 16, 256>}]} {
    %0 = tpu.iota {dimensions = array<i32: 1>} : vector<1x256xi32>
    %c15_i32 = arith.constant 15 : i32
    %1 = vector.broadcast %c15_i32 : i32 to vector<1x256xi32>
    %2 = arith.andi %0, %1 : vector<1x256xi32>
    %c0_i32 = arith.constant 0 : i32
    %3 = vector.broadcast %c0_i32 : i32 to vector<1x256xi32>
    %4 = arith.cmpi eq, %2, %3 : vector<1x256xi32>
    %c15_i32_0 = arith.constant 15 : i32
    %5 = vector.broadcast %c15_i32_0 : i32 to vector<1x256xi32>
    %6 = arith.cmpi eq, %2, %5 : vector<1x256xi32>
    %c16_i32 = arith.constant 16 : i32
    %7 = vector.broadcast %c16_i32 : i32 to vector<1x256xi32>
    %8 = arith.cmpi slt, %0, %7 : vector<1x256xi32>
    %c240_i32 = arith.constant 240 : i32
    %9 = vector.broadcast %c240_i32 : i32 to vector<1x256xi32>
    %10 = arith.cmpi sge, %0, %9 : vector<1x256xi32>
    %c0 = arith.constant 0 : index
    %c0_1 = arith.constant 0 : index
    %c0_2 = arith.constant 0 : index
    %11 = vector.load %arg1[%c0, %c0_1, %c0_2] : memref<1x16x256xf32, #tpu.memory_space<vmem>>, vector<1x16x256xf32>
    %12 = vector.shape_cast %11 : vector<1x16x256xf32> to vector<16x256xf32>
    %c0_3 = arith.constant 0 : index
    %c0_4 = arith.constant 0 : index
    %13 = vector.load %arg3[%c0_3, %c0_4] : memref<32x1xf32, #tpu.memory_space<vmem>>, vector<32x1xf32>
    %14 = vector.shape_cast %13 : vector<32x1xf32> to vector<32x1xf32>
    %15 = vector.broadcast %14 : vector<32x1xf32> to vector<32x256xf32>
    %c16_i32_5 = arith.constant 16 : i32
    %16 = tpu.dynamic_rotate %12 by %c16_i32_5 dim 1 : vector<16x256xf32>, i32 -> vector<16x256xf32>
    %17 = vector.shape_cast %8 : vector<1x256xi1> to vector<1x256xi1>
    %18 = vector.broadcast %17 : vector<1x256xi1> to vector<16x256xi1>
    %19 = arith.select %18, %12, %16 : vector<16x256xi1>, vector<16x256xf32>
    %c1_i32 = arith.constant 1 : i32
    %20 = tpu.dynamic_rotate %19 by %c1_i32 dim 1 : vector<16x256xf32>, i32 -> vector<16x256xf32>
    %21 = vector.shape_cast %4 : vector<1x256xi1> to vector<1x256xi1>
    %22 = vector.broadcast %21 : vector<1x256xi1> to vector<16x256xi1>
    %23 = arith.select %22, %19, %20 : vector<16x256xi1>, vector<16x256xf32>
    %c0_6 = arith.constant 0 : index
    %c0_7 = arith.constant 0 : index
    %c0_8 = arith.constant 0 : index
    %24 = vector.load %arg2[%c0_6, %c0_7, %c0_8] : memref<9x32x16xbf16, #tpu.memory_space<vmem>>, vector<1x32x16xbf16>
    %25 = vector.shape_cast %24 : vector<1x32x16xbf16> to vector<32x16xbf16>
    %26 = arith.truncf %23 : vector<16x256xf32> to vector<16x256xbf16>
    %cst = arith.constant dense<0.000000e+00> : vector<32x256xf32>
    %27 = tpu.matmul %25, %26, %cst {dimension_numbers = #tpu.dot_dimension_numbers<[1], [0], [0], [1], [0, 0, 1, 1], [], []>} : vector<32x16xbf16>, vector<16x256xbf16>, vector<32x256xf32> -> vector<32x256xf32>
    %28 = arith.addf %15, %27 : vector<32x256xf32>
    %c1 = arith.constant 1 : index
    %c0_9 = arith.constant 0 : index
    %c0_10 = arith.constant 0 : index
    %29 = vector.load %arg2[%c1, %c0_9, %c0_10] : memref<9x32x16xbf16, #tpu.memory_space<vmem>>, vector<1x32x16xbf16>
    %30 = vector.shape_cast %29 : vector<1x32x16xbf16> to vector<32x16xbf16>
    %31 = arith.truncf %19 : vector<16x256xf32> to vector<16x256xbf16>
    %cst_11 = arith.constant dense<0.000000e+00> : vector<32x256xf32>
    %32 = tpu.matmul %30, %31, %cst_11 {dimension_numbers = #tpu.dot_dimension_numbers<[1], [0], [0], [1], [0, 0, 1, 1], [], []>} : vector<32x16xbf16>, vector<16x256xbf16>, vector<32x256xf32> -> vector<32x256xf32>
    %33 = arith.addf %28, %32 : vector<32x256xf32>
    %c255_i32 = arith.constant 255 : i32
    %34 = tpu.dynamic_rotate %19 by %c255_i32 dim 1 : vector<16x256xf32>, i32 -> vector<16x256xf32>
    %35 = vector.shape_cast %6 : vector<1x256xi1> to vector<1x256xi1>
    %36 = vector.broadcast %35 : vector<1x256xi1> to vector<16x256xi1>
    %37 = arith.select %36, %19, %34 : vector<16x256xi1>, vector<16x256xf32>
    %c2 = arith.constant 2 : index
    %c0_12 = arith.constant 0 : index
    %c0_13 = arith.constant 0 : index
    %38 = vector.load %arg2[%c2, %c0_12, %c0_13] : memref<9x32x16xbf16, #tpu.memory_space<vmem>>, vector<1x32x16xbf16>
    %39 = vector.shape_cast %38 : vector<1x32x16xbf16> to vector<32x16xbf16>
    %40 = arith.truncf %37 : vector<16x256xf32> to vector<16x256xbf16>
    %cst_14 = arith.constant dense<0.000000e+00> : vector<32x256xf32>
    %41 = tpu.matmul %39, %40, %cst_14 {dimension_numbers = #tpu.dot_dimension_numbers<[1], [0], [0], [1], [0, 0, 1, 1], [], []>} : vector<32x16xbf16>, vector<16x256xbf16>, vector<32x256xf32> -> vector<32x256xf32>
    %42 = arith.addf %33, %41 : vector<32x256xf32>
    %c1_i32_15 = arith.constant 1 : i32
    %43 = tpu.dynamic_rotate %12 by %c1_i32_15 dim 1 : vector<16x256xf32>, i32 -> vector<16x256xf32>
    %44 = vector.shape_cast %4 : vector<1x256xi1> to vector<1x256xi1>
    %45 = vector.broadcast %44 : vector<1x256xi1> to vector<16x256xi1>
    %46 = arith.select %45, %12, %43 : vector<16x256xi1>, vector<16x256xf32>
    %c3 = arith.constant 3 : index
    %c0_16 = arith.constant 0 : index
    %c0_17 = arith.constant 0 : index
    %47 = vector.load %arg2[%c3, %c0_16, %c0_17] : memref<9x32x16xbf16, #tpu.memory_space<vmem>>, vector<1x32x16xbf16>
    %48 = vector.shape_cast %47 : vector<1x32x16xbf16> to vector<32x16xbf16>
    %49 = arith.truncf %46 : vector<16x256xf32> to vector<16x256xbf16>
    %cst_18 = arith.constant dense<0.000000e+00> : vector<32x256xf32>
    %50 = tpu.matmul %48, %49, %cst_18 {dimension_numbers = #tpu.dot_dimension_numbers<[1], [0], [0], [1], [0, 0, 1, 1], [], []>} : vector<32x16xbf16>, vector<16x256xbf16>, vector<32x256xf32> -> vector<32x256xf32>
    %51 = arith.addf %42, %50 : vector<32x256xf32>
    %c4 = arith.constant 4 : index
    %c0_19 = arith.constant 0 : index
    %c0_20 = arith.constant 0 : index
    %52 = vector.load %arg2[%c4, %c0_19, %c0_20] : memref<9x32x16xbf16, #tpu.memory_space<vmem>>, vector<1x32x16xbf16>
    %53 = vector.shape_cast %52 : vector<1x32x16xbf16> to vector<32x16xbf16>
    %54 = arith.truncf %12 : vector<16x256xf32> to vector<16x256xbf16>
    %cst_21 = arith.constant dense<0.000000e+00> : vector<32x256xf32>
    %55 = tpu.matmul %53, %54, %cst_21 {dimension_numbers = #tpu.dot_dimension_numbers<[1], [0], [0], [1], [0, 0, 1, 1], [], []>} : vector<32x16xbf16>, vector<16x256xbf16>, vector<32x256xf32> -> vector<32x256xf32>
    %56 = arith.addf %51, %55 : vector<32x256xf32>
    %c255_i32_22 = arith.constant 255 : i32
    %57 = tpu.dynamic_rotate %12 by %c255_i32_22 dim 1 : vector<16x256xf32>, i32 -> vector<16x256xf32>
    %58 = vector.shape_cast %6 : vector<1x256xi1> to vector<1x256xi1>
    %59 = vector.broadcast %58 : vector<1x256xi1> to vector<16x256xi1>
    %60 = arith.select %59, %12, %57 : vector<16x256xi1>, vector<16x256xf32>
    %c5 = arith.constant 5 : index
    %c0_23 = arith.constant 0 : index
    %c0_24 = arith.constant 0 : index
    %61 = vector.load %arg2[%c5, %c0_23, %c0_24] : memref<9x32x16xbf16, #tpu.memory_space<vmem>>, vector<1x32x16xbf16>
    %62 = vector.shape_cast %61 : vector<1x32x16xbf16> to vector<32x16xbf16>
    %63 = arith.truncf %60 : vector<16x256xf32> to vector<16x256xbf16>
    %cst_25 = arith.constant dense<0.000000e+00> : vector<32x256xf32>
    %64 = tpu.matmul %62, %63, %cst_25 {dimension_numbers = #tpu.dot_dimension_numbers<[1], [0], [0], [1], [0, 0, 1, 1], [], []>} : vector<32x16xbf16>, vector<16x256xbf16>, vector<32x256xf32> -> vector<32x256xf32>
    %65 = arith.addf %56, %64 : vector<32x256xf32>
    %c240_i32_26 = arith.constant 240 : i32
    %66 = tpu.dynamic_rotate %12 by %c240_i32_26 dim 1 : vector<16x256xf32>, i32 -> vector<16x256xf32>
    %67 = vector.shape_cast %10 : vector<1x256xi1> to vector<1x256xi1>
    %68 = vector.broadcast %67 : vector<1x256xi1> to vector<16x256xi1>
    %69 = arith.select %68, %12, %66 : vector<16x256xi1>, vector<16x256xf32>
    %c1_i32_27 = arith.constant 1 : i32
    %70 = tpu.dynamic_rotate %69 by %c1_i32_27 dim 1 : vector<16x256xf32>, i32 -> vector<16x256xf32>
    %71 = vector.shape_cast %4 : vector<1x256xi1> to vector<1x256xi1>
    %72 = vector.broadcast %71 : vector<1x256xi1> to vector<16x256xi1>
    %73 = arith.select %72, %69, %70 : vector<16x256xi1>, vector<16x256xf32>
    %c6 = arith.constant 6 : index
    %c0_28 = arith.constant 0 : index
    %c0_29 = arith.constant 0 : index
    %74 = vector.load %arg2[%c6, %c0_28, %c0_29] : memref<9x32x16xbf16, #tpu.memory_space<vmem>>, vector<1x32x16xbf16>
    %75 = vector.shape_cast %74 : vector<1x32x16xbf16> to vector<32x16xbf16>
    %76 = arith.truncf %73 : vector<16x256xf32> to vector<16x256xbf16>
    %cst_30 = arith.constant dense<0.000000e+00> : vector<32x256xf32>
    %77 = tpu.matmul %75, %76, %cst_30 {dimension_numbers = #tpu.dot_dimension_numbers<[1], [0], [0], [1], [0, 0, 1, 1], [], []>} : vector<32x16xbf16>, vector<16x256xbf16>, vector<32x256xf32> -> vector<32x256xf32>
    %78 = arith.addf %65, %77 : vector<32x256xf32>
    %c7 = arith.constant 7 : index
    %c0_31 = arith.constant 0 : index
    %c0_32 = arith.constant 0 : index
    %79 = vector.load %arg2[%c7, %c0_31, %c0_32] : memref<9x32x16xbf16, #tpu.memory_space<vmem>>, vector<1x32x16xbf16>
    %80 = vector.shape_cast %79 : vector<1x32x16xbf16> to vector<32x16xbf16>
    %81 = arith.truncf %69 : vector<16x256xf32> to vector<16x256xbf16>
    %cst_33 = arith.constant dense<0.000000e+00> : vector<32x256xf32>
    %82 = tpu.matmul %80, %81, %cst_33 {dimension_numbers = #tpu.dot_dimension_numbers<[1], [0], [0], [1], [0, 0, 1, 1], [], []>} : vector<32x16xbf16>, vector<16x256xbf16>, vector<32x256xf32> -> vector<32x256xf32>
    %83 = arith.addf %78, %82 : vector<32x256xf32>
    %c255_i32_34 = arith.constant 255 : i32
    %84 = tpu.dynamic_rotate %69 by %c255_i32_34 dim 1 : vector<16x256xf32>, i32 -> vector<16x256xf32>
    %85 = vector.shape_cast %6 : vector<1x256xi1> to vector<1x256xi1>
    %86 = vector.broadcast %85 : vector<1x256xi1> to vector<16x256xi1>
    %87 = arith.select %86, %69, %84 : vector<16x256xi1>, vector<16x256xf32>
    %c8 = arith.constant 8 : index
    %c0_35 = arith.constant 0 : index
    %c0_36 = arith.constant 0 : index
    %88 = vector.load %arg2[%c8, %c0_35, %c0_36] : memref<9x32x16xbf16, #tpu.memory_space<vmem>>, vector<1x32x16xbf16>
    %89 = vector.shape_cast %88 : vector<1x32x16xbf16> to vector<32x16xbf16>
    %90 = arith.truncf %87 : vector<16x256xf32> to vector<16x256xbf16>
    %cst_37 = arith.constant dense<0.000000e+00> : vector<32x256xf32>
    %91 = tpu.matmul %89, %90, %cst_37 {dimension_numbers = #tpu.dot_dimension_numbers<[1], [0], [0], [1], [0, 0, 1, 1], [], []>} : vector<32x16xbf16>, vector<16x256xbf16>, vector<32x256xf32> -> vector<32x256xf32>
    %92 = arith.addf %83, %91 : vector<32x256xf32>
    %c0_38 = arith.constant 0 : index
    %c0_39 = arith.constant 0 : index
    %93 = vector.load %arg5[%c0_38, %c0_39] : memref<64x1xf32, #tpu.memory_space<vmem>>, vector<64x1xf32>
    %94 = vector.shape_cast %93 : vector<64x1xf32> to vector<64x1xf32>
    %95 = vector.broadcast %94 : vector<64x1xf32> to vector<64x256xf32>
    %c16_i32_40 = arith.constant 16 : i32
    %96 = tpu.dynamic_rotate %92 by %c16_i32_40 dim 1 : vector<32x256xf32>, i32 -> vector<32x256xf32>
    %97 = vector.shape_cast %8 : vector<1x256xi1> to vector<1x256xi1>
    %98 = vector.broadcast %97 : vector<1x256xi1> to vector<32x256xi1>
    %99 = arith.select %98, %92, %96 : vector<32x256xi1>, vector<32x256xf32>
    %c1_i32_41 = arith.constant 1 : i32
    %100 = tpu.dynamic_rotate %99 by %c1_i32_41 dim 1 : vector<32x256xf32>, i32 -> vector<32x256xf32>
    %101 = vector.shape_cast %4 : vector<1x256xi1> to vector<1x256xi1>
    %102 = vector.broadcast %101 : vector<1x256xi1> to vector<32x256xi1>
    %103 = arith.select %102, %99, %100 : vector<32x256xi1>, vector<32x256xf32>
    %c0_42 = arith.constant 0 : index
    %c0_43 = arith.constant 0 : index
    %c0_44 = arith.constant 0 : index
    %104 = vector.load %arg4[%c0_42, %c0_43, %c0_44] : memref<9x64x32xbf16, #tpu.memory_space<vmem>>, vector<1x64x32xbf16>
    %105 = vector.shape_cast %104 : vector<1x64x32xbf16> to vector<64x32xbf16>
    %106 = arith.truncf %103 : vector<32x256xf32> to vector<32x256xbf16>
    %cst_45 = arith.constant dense<0.000000e+00> : vector<64x256xf32>
    %107 = tpu.matmul %105, %106, %cst_45 {dimension_numbers = #tpu.dot_dimension_numbers<[1], [0], [0], [1], [0, 0, 1, 1], [], []>} : vector<64x32xbf16>, vector<32x256xbf16>, vector<64x256xf32> -> vector<64x256xf32>
    %108 = arith.addf %95, %107 : vector<64x256xf32>
    %c1_46 = arith.constant 1 : index
    %c0_47 = arith.constant 0 : index
    %c0_48 = arith.constant 0 : index
    %109 = vector.load %arg4[%c1_46, %c0_47, %c0_48] : memref<9x64x32xbf16, #tpu.memory_space<vmem>>, vector<1x64x32xbf16>
    %110 = vector.shape_cast %109 : vector<1x64x32xbf16> to vector<64x32xbf16>
    %111 = arith.truncf %99 : vector<32x256xf32> to vector<32x256xbf16>
    %cst_49 = arith.constant dense<0.000000e+00> : vector<64x256xf32>
    %112 = tpu.matmul %110, %111, %cst_49 {dimension_numbers = #tpu.dot_dimension_numbers<[1], [0], [0], [1], [0, 0, 1, 1], [], []>} : vector<64x32xbf16>, vector<32x256xbf16>, vector<64x256xf32> -> vector<64x256xf32>
    %113 = arith.addf %108, %112 : vector<64x256xf32>
    %c255_i32_50 = arith.constant 255 : i32
    %114 = tpu.dynamic_rotate %99 by %c255_i32_50 dim 1 : vector<32x256xf32>, i32 -> vector<32x256xf32>
    %115 = vector.shape_cast %6 : vector<1x256xi1> to vector<1x256xi1>
    %116 = vector.broadcast %115 : vector<1x256xi1> to vector<32x256xi1>
    %117 = arith.select %116, %99, %114 : vector<32x256xi1>, vector<32x256xf32>
    %c2_51 = arith.constant 2 : index
    %c0_52 = arith.constant 0 : index
    %c0_53 = arith.constant 0 : index
    %118 = vector.load %arg4[%c2_51, %c0_52, %c0_53] : memref<9x64x32xbf16, #tpu.memory_space<vmem>>, vector<1x64x32xbf16>
    %119 = vector.shape_cast %118 : vector<1x64x32xbf16> to vector<64x32xbf16>
    %120 = arith.truncf %117 : vector<32x256xf32> to vector<32x256xbf16>
    %cst_54 = arith.constant dense<0.000000e+00> : vector<64x256xf32>
    %121 = tpu.matmul %119, %120, %cst_54 {dimension_numbers = #tpu.dot_dimension_numbers<[1], [0], [0], [1], [0, 0, 1, 1], [], []>} : vector<64x32xbf16>, vector<32x256xbf16>, vector<64x256xf32> -> vector<64x256xf32>
    %122 = arith.addf %113, %121 : vector<64x256xf32>
    %c1_i32_55 = arith.constant 1 : i32
    %123 = tpu.dynamic_rotate %92 by %c1_i32_55 dim 1 : vector<32x256xf32>, i32 -> vector<32x256xf32>
    %124 = vector.shape_cast %4 : vector<1x256xi1> to vector<1x256xi1>
    %125 = vector.broadcast %124 : vector<1x256xi1> to vector<32x256xi1>
    %126 = arith.select %125, %92, %123 : vector<32x256xi1>, vector<32x256xf32>
    %c3_56 = arith.constant 3 : index
    %c0_57 = arith.constant 0 : index
    %c0_58 = arith.constant 0 : index
    %127 = vector.load %arg4[%c3_56, %c0_57, %c0_58] : memref<9x64x32xbf16, #tpu.memory_space<vmem>>, vector<1x64x32xbf16>
    %128 = vector.shape_cast %127 : vector<1x64x32xbf16> to vector<64x32xbf16>
    %129 = arith.truncf %126 : vector<32x256xf32> to vector<32x256xbf16>
    %cst_59 = arith.constant dense<0.000000e+00> : vector<64x256xf32>
    %130 = tpu.matmul %128, %129, %cst_59 {dimension_numbers = #tpu.dot_dimension_numbers<[1], [0], [0], [1], [0, 0, 1, 1], [], []>} : vector<64x32xbf16>, vector<32x256xbf16>, vector<64x256xf32> -> vector<64x256xf32>
    %131 = arith.addf %122, %130 : vector<64x256xf32>
    %c4_60 = arith.constant 4 : index
    %c0_61 = arith.constant 0 : index
    %c0_62 = arith.constant 0 : index
    %132 = vector.load %arg4[%c4_60, %c0_61, %c0_62] : memref<9x64x32xbf16, #tpu.memory_space<vmem>>, vector<1x64x32xbf16>
    %133 = vector.shape_cast %132 : vector<1x64x32xbf16> to vector<64x32xbf16>
    %134 = arith.truncf %92 : vector<32x256xf32> to vector<32x256xbf16>
    %cst_63 = arith.constant dense<0.000000e+00> : vector<64x256xf32>
    %135 = tpu.matmul %133, %134, %cst_63 {dimension_numbers = #tpu.dot_dimension_numbers<[1], [0], [0], [1], [0, 0, 1, 1], [], []>} : vector<64x32xbf16>, vector<32x256xbf16>, vector<64x256xf32> -> vector<64x256xf32>
    %136 = arith.addf %131, %135 : vector<64x256xf32>
    %c255_i32_64 = arith.constant 255 : i32
    %137 = tpu.dynamic_rotate %92 by %c255_i32_64 dim 1 : vector<32x256xf32>, i32 -> vector<32x256xf32>
    %138 = vector.shape_cast %6 : vector<1x256xi1> to vector<1x256xi1>
    %139 = vector.broadcast %138 : vector<1x256xi1> to vector<32x256xi1>
    %140 = arith.select %139, %92, %137 : vector<32x256xi1>, vector<32x256xf32>
    %c5_65 = arith.constant 5 : index
    %c0_66 = arith.constant 0 : index
    %c0_67 = arith.constant 0 : index
    %141 = vector.load %arg4[%c5_65, %c0_66, %c0_67] : memref<9x64x32xbf16, #tpu.memory_space<vmem>>, vector<1x64x32xbf16>
    %142 = vector.shape_cast %141 : vector<1x64x32xbf16> to vector<64x32xbf16>
    %143 = arith.truncf %140 : vector<32x256xf32> to vector<32x256xbf16>
    %cst_68 = arith.constant dense<0.000000e+00> : vector<64x256xf32>
    %144 = tpu.matmul %142, %143, %cst_68 {dimension_numbers = #tpu.dot_dimension_numbers<[1], [0], [0], [1], [0, 0, 1, 1], [], []>} : vector<64x32xbf16>, vector<32x256xbf16>, vector<64x256xf32> -> vector<64x256xf32>
    %145 = arith.addf %136, %144 : vector<64x256xf32>
    %c240_i32_69 = arith.constant 240 : i32
    %146 = tpu.dynamic_rotate %92 by %c240_i32_69 dim 1 : vector<32x256xf32>, i32 -> vector<32x256xf32>
    %147 = vector.shape_cast %10 : vector<1x256xi1> to vector<1x256xi1>
    %148 = vector.broadcast %147 : vector<1x256xi1> to vector<32x256xi1>
    %149 = arith.select %148, %92, %146 : vector<32x256xi1>, vector<32x256xf32>
    %c1_i32_70 = arith.constant 1 : i32
    %150 = tpu.dynamic_rotate %149 by %c1_i32_70 dim 1 : vector<32x256xf32>, i32 -> vector<32x256xf32>
    %151 = vector.shape_cast %4 : vector<1x256xi1> to vector<1x256xi1>
    %152 = vector.broadcast %151 : vector<1x256xi1> to vector<32x256xi1>
    %153 = arith.select %152, %149, %150 : vector<32x256xi1>, vector<32x256xf32>
    %c6_71 = arith.constant 6 : index
    %c0_72 = arith.constant 0 : index
    %c0_73 = arith.constant 0 : index
    %154 = vector.load %arg4[%c6_71, %c0_72, %c0_73] : memref<9x64x32xbf16, #tpu.memory_space<vmem>>, vector<1x64x32xbf16>
    %155 = vector.shape_cast %154 : vector<1x64x32xbf16> to vector<64x32xbf16>
    %156 = arith.truncf %153 : vector<32x256xf32> to vector<32x256xbf16>
    %cst_74 = arith.constant dense<0.000000e+00> : vector<64x256xf32>
    %157 = tpu.matmul %155, %156, %cst_74 {dimension_numbers = #tpu.dot_dimension_numbers<[1], [0], [0], [1], [0, 0, 1, 1], [], []>} : vector<64x32xbf16>, vector<32x256xbf16>, vector<64x256xf32> -> vector<64x256xf32>
    %158 = arith.addf %145, %157 : vector<64x256xf32>
    %c7_75 = arith.constant 7 : index
    %c0_76 = arith.constant 0 : index
    %c0_77 = arith.constant 0 : index
    %159 = vector.load %arg4[%c7_75, %c0_76, %c0_77] : memref<9x64x32xbf16, #tpu.memory_space<vmem>>, vector<1x64x32xbf16>
    %160 = vector.shape_cast %159 : vector<1x64x32xbf16> to vector<64x32xbf16>
    %161 = arith.truncf %149 : vector<32x256xf32> to vector<32x256xbf16>
    %cst_78 = arith.constant dense<0.000000e+00> : vector<64x256xf32>
    %162 = tpu.matmul %160, %161, %cst_78 {dimension_numbers = #tpu.dot_dimension_numbers<[1], [0], [0], [1], [0, 0, 1, 1], [], []>} : vector<64x32xbf16>, vector<32x256xbf16>, vector<64x256xf32> -> vector<64x256xf32>
    %163 = arith.addf %158, %162 : vector<64x256xf32>
    %c255_i32_79 = arith.constant 255 : i32
    %164 = tpu.dynamic_rotate %149 by %c255_i32_79 dim 1 : vector<32x256xf32>, i32 -> vector<32x256xf32>
    %165 = vector.shape_cast %6 : vector<1x256xi1> to vector<1x256xi1>
    %166 = vector.broadcast %165 : vector<1x256xi1> to vector<32x256xi1>
    %167 = arith.select %166, %149, %164 : vector<32x256xi1>, vector<32x256xf32>
    %c8_80 = arith.constant 8 : index
    %c0_81 = arith.constant 0 : index
    %c0_82 = arith.constant 0 : index
    %168 = vector.load %arg4[%c8_80, %c0_81, %c0_82] : memref<9x64x32xbf16, #tpu.memory_space<vmem>>, vector<1x64x32xbf16>
    %169 = vector.shape_cast %168 : vector<1x64x32xbf16> to vector<64x32xbf16>
    %170 = arith.truncf %167 : vector<32x256xf32> to vector<32x256xbf16>
    %cst_83 = arith.constant dense<0.000000e+00> : vector<64x256xf32>
    %171 = tpu.matmul %169, %170, %cst_83 {dimension_numbers = #tpu.dot_dimension_numbers<[1], [0], [0], [1], [0, 0, 1, 1], [], []>} : vector<64x32xbf16>, vector<32x256xbf16>, vector<64x256xf32> -> vector<64x256xf32>
    %172 = arith.addf %163, %171 : vector<64x256xf32>
    %c0_84 = arith.constant 0 : index
    %c0_85 = arith.constant 0 : index
    %173 = vector.load %arg7[%c0_84, %c0_85] : memref<128x1xf32, #tpu.memory_space<vmem>>, vector<128x1xf32>
    %174 = vector.shape_cast %173 : vector<128x1xf32> to vector<128x1xf32>
    %175 = vector.broadcast %174 : vector<128x1xf32> to vector<128x256xf32>
    %c16_i32_86 = arith.constant 16 : i32
    %176 = tpu.dynamic_rotate %172 by %c16_i32_86 dim 1 : vector<64x256xf32>, i32 -> vector<64x256xf32>
    %177 = vector.shape_cast %8 : vector<1x256xi1> to vector<1x256xi1>
    %178 = vector.broadcast %177 : vector<1x256xi1> to vector<64x256xi1>
    %179 = arith.select %178, %172, %176 : vector<64x256xi1>, vector<64x256xf32>
    %c1_i32_87 = arith.constant 1 : i32
    %180 = tpu.dynamic_rotate %179 by %c1_i32_87 dim 1 : vector<64x256xf32>, i32 -> vector<64x256xf32>
    %181 = vector.shape_cast %4 : vector<1x256xi1> to vector<1x256xi1>
    %182 = vector.broadcast %181 : vector<1x256xi1> to vector<64x256xi1>
    %183 = arith.select %182, %179, %180 : vector<64x256xi1>, vector<64x256xf32>
    %c0_88 = arith.constant 0 : index
    %c0_89 = arith.constant 0 : index
    %c0_90 = arith.constant 0 : index
    %184 = vector.load %arg6[%c0_88, %c0_89, %c0_90] : memref<9x128x64xbf16, #tpu.memory_space<vmem>>, vector<1x128x64xbf16>
    %185 = vector.shape_cast %184 : vector<1x128x64xbf16> to vector<128x64xbf16>
    %186 = arith.truncf %183 : vector<64x256xf32> to vector<64x256xbf16>
    %cst_91 = arith.constant dense<0.000000e+00> : vector<128x256xf32>
    %187 = tpu.matmul %185, %186, %cst_91 {dimension_numbers = #tpu.dot_dimension_numbers<[1], [0], [0], [1], [0, 0, 1, 1], [], []>} : vector<128x64xbf16>, vector<64x256xbf16>, vector<128x256xf32> -> vector<128x256xf32>
    %188 = arith.addf %175, %187 : vector<128x256xf32>
    %c1_92 = arith.constant 1 : index
    %c0_93 = arith.constant 0 : index
    %c0_94 = arith.constant 0 : index
    %189 = vector.load %arg6[%c1_92, %c0_93, %c0_94] : memref<9x128x64xbf16, #tpu.memory_space<vmem>>, vector<1x128x64xbf16>
    %190 = vector.shape_cast %189 : vector<1x128x64xbf16> to vector<128x64xbf16>
    %191 = arith.truncf %179 : vector<64x256xf32> to vector<64x256xbf16>
    %cst_95 = arith.constant dense<0.000000e+00> : vector<128x256xf32>
    %192 = tpu.matmul %190, %191, %cst_95 {dimension_numbers = #tpu.dot_dimension_numbers<[1], [0], [0], [1], [0, 0, 1, 1], [], []>} : vector<128x64xbf16>, vector<64x256xbf16>, vector<128x256xf32> -> vector<128x256xf32>
    %193 = arith.addf %188, %192 : vector<128x256xf32>
    %c255_i32_96 = arith.constant 255 : i32
    %194 = tpu.dynamic_rotate %179 by %c255_i32_96 dim 1 : vector<64x256xf32>, i32 -> vector<64x256xf32>
    %195 = vector.shape_cast %6 : vector<1x256xi1> to vector<1x256xi1>
    %196 = vector.broadcast %195 : vector<1x256xi1> to vector<64x256xi1>
    %197 = arith.select %196, %179, %194 : vector<64x256xi1>, vector<64x256xf32>
    %c2_97 = arith.constant 2 : index
    %c0_98 = arith.constant 0 : index
    %c0_99 = arith.constant 0 : index
    %198 = vector.load %arg6[%c2_97, %c0_98, %c0_99] : memref<9x128x64xbf16, #tpu.memory_space<vmem>>, vector<1x128x64xbf16>
    %199 = vector.shape_cast %198 : vector<1x128x64xbf16> to vector<128x64xbf16>
    %200 = arith.truncf %197 : vector<64x256xf32> to vector<64x256xbf16>
    %cst_100 = arith.constant dense<0.000000e+00> : vector<128x256xf32>
    %201 = tpu.matmul %199, %200, %cst_100 {dimension_numbers = #tpu.dot_dimension_numbers<[1], [0], [0], [1], [0, 0, 1, 1], [], []>} : vector<128x64xbf16>, vector<64x256xbf16>, vector<128x256xf32> -> vector<128x256xf32>
    %202 = arith.addf %193, %201 : vector<128x256xf32>
    %c1_i32_101 = arith.constant 1 : i32
    %203 = tpu.dynamic_rotate %172 by %c1_i32_101 dim 1 : vector<64x256xf32>, i32 -> vector<64x256xf32>
    %204 = vector.shape_cast %4 : vector<1x256xi1> to vector<1x256xi1>
    %205 = vector.broadcast %204 : vector<1x256xi1> to vector<64x256xi1>
    %206 = arith.select %205, %172, %203 : vector<64x256xi1>, vector<64x256xf32>
    %c3_102 = arith.constant 3 : index
    %c0_103 = arith.constant 0 : index
    %c0_104 = arith.constant 0 : index
    %207 = vector.load %arg6[%c3_102, %c0_103, %c0_104] : memref<9x128x64xbf16, #tpu.memory_space<vmem>>, vector<1x128x64xbf16>
    %208 = vector.shape_cast %207 : vector<1x128x64xbf16> to vector<128x64xbf16>
    %209 = arith.truncf %206 : vector<64x256xf32> to vector<64x256xbf16>
    %cst_105 = arith.constant dense<0.000000e+00> : vector<128x256xf32>
    %210 = tpu.matmul %208, %209, %cst_105 {dimension_numbers = #tpu.dot_dimension_numbers<[1], [0], [0], [1], [0, 0, 1, 1], [], []>} : vector<128x64xbf16>, vector<64x256xbf16>, vector<128x256xf32> -> vector<128x256xf32>
    %211 = arith.addf %202, %210 : vector<128x256xf32>
    %c4_106 = arith.constant 4 : index
    %c0_107 = arith.constant 0 : index
    %c0_108 = arith.constant 0 : index
    %212 = vector.load %arg6[%c4_106, %c0_107, %c0_108] : memref<9x128x64xbf16, #tpu.memory_space<vmem>>, vector<1x128x64xbf16>
    %213 = vector.shape_cast %212 : vector<1x128x64xbf16> to vector<128x64xbf16>
    %214 = arith.truncf %172 : vector<64x256xf32> to vector<64x256xbf16>
    %cst_109 = arith.constant dense<0.000000e+00> : vector<128x256xf32>
    %215 = tpu.matmul %213, %214, %cst_109 {dimension_numbers = #tpu.dot_dimension_numbers<[1], [0], [0], [1], [0, 0, 1, 1], [], []>} : vector<128x64xbf16>, vector<64x256xbf16>, vector<128x256xf32> -> vector<128x256xf32>
    %216 = arith.addf %211, %215 : vector<128x256xf32>
    %c255_i32_110 = arith.constant 255 : i32
    %217 = tpu.dynamic_rotate %172 by %c255_i32_110 dim 1 : vector<64x256xf32>, i32 -> vector<64x256xf32>
    %218 = vector.shape_cast %6 : vector<1x256xi1> to vector<1x256xi1>
    %219 = vector.broadcast %218 : vector<1x256xi1> to vector<64x256xi1>
    %220 = arith.select %219, %172, %217 : vector<64x256xi1>, vector<64x256xf32>
    %c5_111 = arith.constant 5 : index
    %c0_112 = arith.constant 0 : index
    %c0_113 = arith.constant 0 : index
    %221 = vector.load %arg6[%c5_111, %c0_112, %c0_113] : memref<9x128x64xbf16, #tpu.memory_space<vmem>>, vector<1x128x64xbf16>
    %222 = vector.shape_cast %221 : vector<1x128x64xbf16> to vector<128x64xbf16>
    %223 = arith.truncf %220 : vector<64x256xf32> to vector<64x256xbf16>
    %cst_114 = arith.constant dense<0.000000e+00> : vector<128x256xf32>
    %224 = tpu.matmul %222, %223, %cst_114 {dimension_numbers = #tpu.dot_dimension_numbers<[1], [0], [0], [1], [0, 0, 1, 1], [], []>} : vector<128x64xbf16>, vector<64x256xbf16>, vector<128x256xf32> -> vector<128x256xf32>
    %225 = arith.addf %216, %224 : vector<128x256xf32>
    %c240_i32_115 = arith.constant 240 : i32
    %226 = tpu.dynamic_rotate %172 by %c240_i32_115 dim 1 : vector<64x256xf32>, i32 -> vector<64x256xf32>
    %227 = vector.shape_cast %10 : vector<1x256xi1> to vector<1x256xi1>
    %228 = vector.broadcast %227 : vector<1x256xi1> to vector<64x256xi1>
    %229 = arith.select %228, %172, %226 : vector<64x256xi1>, vector<64x256xf32>
    %c1_i32_116 = arith.constant 1 : i32
    %230 = tpu.dynamic_rotate %229 by %c1_i32_116 dim 1 : vector<64x256xf32>, i32 -> vector<64x256xf32>
    %231 = vector.shape_cast %4 : vector<1x256xi1> to vector<1x256xi1>
    %232 = vector.broadcast %231 : vector<1x256xi1> to vector<64x256xi1>
    %233 = arith.select %232, %229, %230 : vector<64x256xi1>, vector<64x256xf32>
    %c6_117 = arith.constant 6 : index
    %c0_118 = arith.constant 0 : index
    %c0_119 = arith.constant 0 : index
    %234 = vector.load %arg6[%c6_117, %c0_118, %c0_119] : memref<9x128x64xbf16, #tpu.memory_space<vmem>>, vector<1x128x64xbf16>
    %235 = vector.shape_cast %234 : vector<1x128x64xbf16> to vector<128x64xbf16>
    %236 = arith.truncf %233 : vector<64x256xf32> to vector<64x256xbf16>
    %cst_120 = arith.constant dense<0.000000e+00> : vector<128x256xf32>
    %237 = tpu.matmul %235, %236, %cst_120 {dimension_numbers = #tpu.dot_dimension_numbers<[1], [0], [0], [1], [0, 0, 1, 1], [], []>} : vector<128x64xbf16>, vector<64x256xbf16>, vector<128x256xf32> -> vector<128x256xf32>
    %238 = arith.addf %225, %237 : vector<128x256xf32>
    %c7_121 = arith.constant 7 : index
    %c0_122 = arith.constant 0 : index
    %c0_123 = arith.constant 0 : index
    %239 = vector.load %arg6[%c7_121, %c0_122, %c0_123] : memref<9x128x64xbf16, #tpu.memory_space<vmem>>, vector<1x128x64xbf16>
    %240 = vector.shape_cast %239 : vector<1x128x64xbf16> to vector<128x64xbf16>
    %241 = arith.truncf %229 : vector<64x256xf32> to vector<64x256xbf16>
    %cst_124 = arith.constant dense<0.000000e+00> : vector<128x256xf32>
    %242 = tpu.matmul %240, %241, %cst_124 {dimension_numbers = #tpu.dot_dimension_numbers<[1], [0], [0], [1], [0, 0, 1, 1], [], []>} : vector<128x64xbf16>, vector<64x256xbf16>, vector<128x256xf32> -> vector<128x256xf32>
    %243 = arith.addf %238, %242 : vector<128x256xf32>
    %c255_i32_125 = arith.constant 255 : i32
    %244 = tpu.dynamic_rotate %229 by %c255_i32_125 dim 1 : vector<64x256xf32>, i32 -> vector<64x256xf32>
    %245 = vector.shape_cast %6 : vector<1x256xi1> to vector<1x256xi1>
    %246 = vector.broadcast %245 : vector<1x256xi1> to vector<64x256xi1>
    %247 = arith.select %246, %229, %244 : vector<64x256xi1>, vector<64x256xf32>
    %c8_126 = arith.constant 8 : index
    %c0_127 = arith.constant 0 : index
    %c0_128 = arith.constant 0 : index
    %248 = vector.load %arg6[%c8_126, %c0_127, %c0_128] : memref<9x128x64xbf16, #tpu.memory_space<vmem>>, vector<1x128x64xbf16>
    %249 = vector.shape_cast %248 : vector<1x128x64xbf16> to vector<128x64xbf16>
    %250 = arith.truncf %247 : vector<64x256xf32> to vector<64x256xbf16>
    %cst_129 = arith.constant dense<0.000000e+00> : vector<128x256xf32>
    %251 = tpu.matmul %249, %250, %cst_129 {dimension_numbers = #tpu.dot_dimension_numbers<[1], [0], [0], [1], [0, 0, 1, 1], [], []>} : vector<128x64xbf16>, vector<64x256xbf16>, vector<128x256xf32> -> vector<128x256xf32>
    %252 = arith.addf %243, %251 : vector<128x256xf32>
    %c0_130 = arith.constant 0 : index
    %c0_131 = arith.constant 0 : index
    %253 = vector.load %arg9[%c0_130, %c0_131] : memref<16x1xf32, #tpu.memory_space<vmem>>, vector<16x1xf32>
    %254 = vector.shape_cast %253 : vector<16x1xf32> to vector<16x1xf32>
    %255 = vector.broadcast %254 : vector<16x1xf32> to vector<16x256xf32>
    %c16_i32_132 = arith.constant 16 : i32
    %256 = tpu.dynamic_rotate %252 by %c16_i32_132 dim 1 : vector<128x256xf32>, i32 -> vector<128x256xf32>
    %257 = vector.shape_cast %8 : vector<1x256xi1> to vector<1x256xi1>
    %258 = vector.broadcast %257 : vector<1x256xi1> to vector<128x256xi1>
    %259 = arith.select %258, %252, %256 : vector<128x256xi1>, vector<128x256xf32>
    %c1_i32_133 = arith.constant 1 : i32
    %260 = tpu.dynamic_rotate %259 by %c1_i32_133 dim 1 : vector<128x256xf32>, i32 -> vector<128x256xf32>
    %261 = vector.shape_cast %4 : vector<1x256xi1> to vector<1x256xi1>
    %262 = vector.broadcast %261 : vector<1x256xi1> to vector<128x256xi1>
    %263 = arith.select %262, %259, %260 : vector<128x256xi1>, vector<128x256xf32>
    %c0_134 = arith.constant 0 : index
    %c0_135 = arith.constant 0 : index
    %c0_136 = arith.constant 0 : index
    %264 = vector.load %arg8[%c0_134, %c0_135, %c0_136] : memref<9x16x128xbf16, #tpu.memory_space<vmem>>, vector<1x16x128xbf16>
    %265 = vector.shape_cast %264 : vector<1x16x128xbf16> to vector<16x128xbf16>
    %266 = arith.truncf %263 : vector<128x256xf32> to vector<128x256xbf16>
    %cst_137 = arith.constant dense<0.000000e+00> : vector<16x256xf32>
    %267 = tpu.matmul %265, %266, %cst_137 {dimension_numbers = #tpu.dot_dimension_numbers<[1], [0], [0], [1], [0, 0, 1, 1], [], []>} : vector<16x128xbf16>, vector<128x256xbf16>, vector<16x256xf32> -> vector<16x256xf32>
    %268 = arith.addf %255, %267 : vector<16x256xf32>
    %c1_138 = arith.constant 1 : index
    %c0_139 = arith.constant 0 : index
    %c0_140 = arith.constant 0 : index
    %269 = vector.load %arg8[%c1_138, %c0_139, %c0_140] : memref<9x16x128xbf16, #tpu.memory_space<vmem>>, vector<1x16x128xbf16>
    %270 = vector.shape_cast %269 : vector<1x16x128xbf16> to vector<16x128xbf16>
    %271 = arith.truncf %259 : vector<128x256xf32> to vector<128x256xbf16>
    %cst_141 = arith.constant dense<0.000000e+00> : vector<16x256xf32>
    %272 = tpu.matmul %270, %271, %cst_141 {dimension_numbers = #tpu.dot_dimension_numbers<[1], [0], [0], [1], [0, 0, 1, 1], [], []>} : vector<16x128xbf16>, vector<128x256xbf16>, vector<16x256xf32> -> vector<16x256xf32>
    %273 = arith.addf %268, %272 : vector<16x256xf32>
    %c255_i32_142 = arith.constant 255 : i32
    %274 = tpu.dynamic_rotate %259 by %c255_i32_142 dim 1 : vector<128x256xf32>, i32 -> vector<128x256xf32>
    %275 = vector.shape_cast %6 : vector<1x256xi1> to vector<1x256xi1>
    %276 = vector.broadcast %275 : vector<1x256xi1> to vector<128x256xi1>
    %277 = arith.select %276, %259, %274 : vector<128x256xi1>, vector<128x256xf32>
    %c2_143 = arith.constant 2 : index
    %c0_144 = arith.constant 0 : index
    %c0_145 = arith.constant 0 : index
    %278 = vector.load %arg8[%c2_143, %c0_144, %c0_145] : memref<9x16x128xbf16, #tpu.memory_space<vmem>>, vector<1x16x128xbf16>
    %279 = vector.shape_cast %278 : vector<1x16x128xbf16> to vector<16x128xbf16>
    %280 = arith.truncf %277 : vector<128x256xf32> to vector<128x256xbf16>
    %cst_146 = arith.constant dense<0.000000e+00> : vector<16x256xf32>
    %281 = tpu.matmul %279, %280, %cst_146 {dimension_numbers = #tpu.dot_dimension_numbers<[1], [0], [0], [1], [0, 0, 1, 1], [], []>} : vector<16x128xbf16>, vector<128x256xbf16>, vector<16x256xf32> -> vector<16x256xf32>
    %282 = arith.addf %273, %281 : vector<16x256xf32>
    %c1_i32_147 = arith.constant 1 : i32
    %283 = tpu.dynamic_rotate %252 by %c1_i32_147 dim 1 : vector<128x256xf32>, i32 -> vector<128x256xf32>
    %284 = vector.shape_cast %4 : vector<1x256xi1> to vector<1x256xi1>
    %285 = vector.broadcast %284 : vector<1x256xi1> to vector<128x256xi1>
    %286 = arith.select %285, %252, %283 : vector<128x256xi1>, vector<128x256xf32>
    %c3_148 = arith.constant 3 : index
    %c0_149 = arith.constant 0 : index
    %c0_150 = arith.constant 0 : index
    %287 = vector.load %arg8[%c3_148, %c0_149, %c0_150] : memref<9x16x128xbf16, #tpu.memory_space<vmem>>, vector<1x16x128xbf16>
    %288 = vector.shape_cast %287 : vector<1x16x128xbf16> to vector<16x128xbf16>
    %289 = arith.truncf %286 : vector<128x256xf32> to vector<128x256xbf16>
    %cst_151 = arith.constant dense<0.000000e+00> : vector<16x256xf32>
    %290 = tpu.matmul %288, %289, %cst_151 {dimension_numbers = #tpu.dot_dimension_numbers<[1], [0], [0], [1], [0, 0, 1, 1], [], []>} : vector<16x128xbf16>, vector<128x256xbf16>, vector<16x256xf32> -> vector<16x256xf32>
    %291 = arith.addf %282, %290 : vector<16x256xf32>
    %c4_152 = arith.constant 4 : index
    %c0_153 = arith.constant 0 : index
    %c0_154 = arith.constant 0 : index
    %292 = vector.load %arg8[%c4_152, %c0_153, %c0_154] : memref<9x16x128xbf16, #tpu.memory_space<vmem>>, vector<1x16x128xbf16>
    %293 = vector.shape_cast %292 : vector<1x16x128xbf16> to vector<16x128xbf16>
    %294 = arith.truncf %252 : vector<128x256xf32> to vector<128x256xbf16>
    %cst_155 = arith.constant dense<0.000000e+00> : vector<16x256xf32>
    %295 = tpu.matmul %293, %294, %cst_155 {dimension_numbers = #tpu.dot_dimension_numbers<[1], [0], [0], [1], [0, 0, 1, 1], [], []>} : vector<16x128xbf16>, vector<128x256xbf16>, vector<16x256xf32> -> vector<16x256xf32>
    %296 = arith.addf %291, %295 : vector<16x256xf32>
    %c255_i32_156 = arith.constant 255 : i32
    %297 = tpu.dynamic_rotate %252 by %c255_i32_156 dim 1 : vector<128x256xf32>, i32 -> vector<128x256xf32>
    %298 = vector.shape_cast %6 : vector<1x256xi1> to vector<1x256xi1>
    %299 = vector.broadcast %298 : vector<1x256xi1> to vector<128x256xi1>
    %300 = arith.select %299, %252, %297 : vector<128x256xi1>, vector<128x256xf32>
    %c5_157 = arith.constant 5 : index
    %c0_158 = arith.constant 0 : index
    %c0_159 = arith.constant 0 : index
    %301 = vector.load %arg8[%c5_157, %c0_158, %c0_159] : memref<9x16x128xbf16, #tpu.memory_space<vmem>>, vector<1x16x128xbf16>
    %302 = vector.shape_cast %301 : vector<1x16x128xbf16> to vector<16x128xbf16>
    %303 = arith.truncf %300 : vector<128x256xf32> to vector<128x256xbf16>
    %cst_160 = arith.constant dense<0.000000e+00> : vector<16x256xf32>
    %304 = tpu.matmul %302, %303, %cst_160 {dimension_numbers = #tpu.dot_dimension_numbers<[1], [0], [0], [1], [0, 0, 1, 1], [], []>} : vector<16x128xbf16>, vector<128x256xbf16>, vector<16x256xf32> -> vector<16x256xf32>
    %305 = arith.addf %296, %304 : vector<16x256xf32>
    %c240_i32_161 = arith.constant 240 : i32
    %306 = tpu.dynamic_rotate %252 by %c240_i32_161 dim 1 : vector<128x256xf32>, i32 -> vector<128x256xf32>
    %307 = vector.shape_cast %10 : vector<1x256xi1> to vector<1x256xi1>
    %308 = vector.broadcast %307 : vector<1x256xi1> to vector<128x256xi1>
    %309 = arith.select %308, %252, %306 : vector<128x256xi1>, vector<128x256xf32>
    %c1_i32_162 = arith.constant 1 : i32
    %310 = tpu.dynamic_rotate %309 by %c1_i32_162 dim 1 : vector<128x256xf32>, i32 -> vector<128x256xf32>
    %311 = vector.shape_cast %4 : vector<1x256xi1> to vector<1x256xi1>
    %312 = vector.broadcast %311 : vector<1x256xi1> to vector<128x256xi1>
    %313 = arith.select %312, %309, %310 : vector<128x256xi1>, vector<128x256xf32>
    %c6_163 = arith.constant 6 : index
    %c0_164 = arith.constant 0 : index
    %c0_165 = arith.constant 0 : index
    %314 = vector.load %arg8[%c6_163, %c0_164, %c0_165] : memref<9x16x128xbf16, #tpu.memory_space<vmem>>, vector<1x16x128xbf16>
    %315 = vector.shape_cast %314 : vector<1x16x128xbf16> to vector<16x128xbf16>
    %316 = arith.truncf %313 : vector<128x256xf32> to vector<128x256xbf16>
    %cst_166 = arith.constant dense<0.000000e+00> : vector<16x256xf32>
    %317 = tpu.matmul %315, %316, %cst_166 {dimension_numbers = #tpu.dot_dimension_numbers<[1], [0], [0], [1], [0, 0, 1, 1], [], []>} : vector<16x128xbf16>, vector<128x256xbf16>, vector<16x256xf32> -> vector<16x256xf32>
    %318 = arith.addf %305, %317 : vector<16x256xf32>
    %c7_167 = arith.constant 7 : index
    %c0_168 = arith.constant 0 : index
    %c0_169 = arith.constant 0 : index
    %319 = vector.load %arg8[%c7_167, %c0_168, %c0_169] : memref<9x16x128xbf16, #tpu.memory_space<vmem>>, vector<1x16x128xbf16>
    %320 = vector.shape_cast %319 : vector<1x16x128xbf16> to vector<16x128xbf16>
    %321 = arith.truncf %309 : vector<128x256xf32> to vector<128x256xbf16>
    %cst_170 = arith.constant dense<0.000000e+00> : vector<16x256xf32>
    %322 = tpu.matmul %320, %321, %cst_170 {dimension_numbers = #tpu.dot_dimension_numbers<[1], [0], [0], [1], [0, 0, 1, 1], [], []>} : vector<16x128xbf16>, vector<128x256xbf16>, vector<16x256xf32> -> vector<16x256xf32>
    %323 = arith.addf %318, %322 : vector<16x256xf32>
    %c255_i32_171 = arith.constant 255 : i32
    %324 = tpu.dynamic_rotate %309 by %c255_i32_171 dim 1 : vector<128x256xf32>, i32 -> vector<128x256xf32>
    %325 = vector.shape_cast %6 : vector<1x256xi1> to vector<1x256xi1>
    %326 = vector.broadcast %325 : vector<1x256xi1> to vector<128x256xi1>
    %327 = arith.select %326, %309, %324 : vector<128x256xi1>, vector<128x256xf32>
    %c8_172 = arith.constant 8 : index
    %c0_173 = arith.constant 0 : index
    %c0_174 = arith.constant 0 : index
    %328 = vector.load %arg8[%c8_172, %c0_173, %c0_174] : memref<9x16x128xbf16, #tpu.memory_space<vmem>>, vector<1x16x128xbf16>
    %329 = vector.shape_cast %328 : vector<1x16x128xbf16> to vector<16x128xbf16>
    %330 = arith.truncf %327 : vector<128x256xf32> to vector<128x256xbf16>
    %cst_175 = arith.constant dense<0.000000e+00> : vector<16x256xf32>
    %331 = tpu.matmul %329, %330, %cst_175 {dimension_numbers = #tpu.dot_dimension_numbers<[1], [0], [0], [1], [0, 0, 1, 1], [], []>} : vector<16x128xbf16>, vector<128x256xbf16>, vector<16x256xf32> -> vector<16x256xf32>
    %332 = arith.addf %323, %331 : vector<16x256xf32>
    %c0_176 = arith.constant 0 : index
    %c0_177 = arith.constant 0 : index
    %333 = vector.load %arg11[%c0_176, %c0_177] : memref<16x1xf32, #tpu.memory_space<vmem>>, vector<16x1xf32>
    %334 = vector.shape_cast %333 : vector<16x1xf32> to vector<16x1xf32>
    %335 = vector.broadcast %334 : vector<16x1xf32> to vector<16x256xf32>
    %c16_i32_178 = arith.constant 16 : i32
    %336 = tpu.dynamic_rotate %332 by %c16_i32_178 dim 1 : vector<16x256xf32>, i32 -> vector<16x256xf32>
    %337 = vector.shape_cast %8 : vector<1x256xi1> to vector<1x256xi1>
    %338 = vector.broadcast %337 : vector<1x256xi1> to vector<16x256xi1>
    %339 = arith.select %338, %332, %336 : vector<16x256xi1>, vector<16x256xf32>
    %c1_i32_179 = arith.constant 1 : i32
    %340 = tpu.dynamic_rotate %339 by %c1_i32_179 dim 1 : vector<16x256xf32>, i32 -> vector<16x256xf32>
    %341 = vector.shape_cast %4 : vector<1x256xi1> to vector<1x256xi1>
    %342 = vector.broadcast %341 : vector<1x256xi1> to vector<16x256xi1>
    %343 = arith.select %342, %339, %340 : vector<16x256xi1>, vector<16x256xf32>
    %c0_180 = arith.constant 0 : index
    %c0_181 = arith.constant 0 : index
    %c0_182 = arith.constant 0 : index
    %344 = vector.load %arg10[%c0_180, %c0_181, %c0_182] : memref<9x16x16xbf16, #tpu.memory_space<vmem>>, vector<1x16x16xbf16>
    %345 = vector.shape_cast %344 : vector<1x16x16xbf16> to vector<16x16xbf16>
    %346 = arith.truncf %343 : vector<16x256xf32> to vector<16x256xbf16>
    %cst_183 = arith.constant dense<0.000000e+00> : vector<16x256xf32>
    %347 = tpu.matmul %345, %346, %cst_183 {dimension_numbers = #tpu.dot_dimension_numbers<[1], [0], [0], [1], [0, 0, 1, 1], [], []>} : vector<16x16xbf16>, vector<16x256xbf16>, vector<16x256xf32> -> vector<16x256xf32>
    %348 = arith.addf %335, %347 : vector<16x256xf32>
    %c1_184 = arith.constant 1 : index
    %c0_185 = arith.constant 0 : index
    %c0_186 = arith.constant 0 : index
    %349 = vector.load %arg10[%c1_184, %c0_185, %c0_186] : memref<9x16x16xbf16, #tpu.memory_space<vmem>>, vector<1x16x16xbf16>
    %350 = vector.shape_cast %349 : vector<1x16x16xbf16> to vector<16x16xbf16>
    %351 = arith.truncf %339 : vector<16x256xf32> to vector<16x256xbf16>
    %cst_187 = arith.constant dense<0.000000e+00> : vector<16x256xf32>
    %352 = tpu.matmul %350, %351, %cst_187 {dimension_numbers = #tpu.dot_dimension_numbers<[1], [0], [0], [1], [0, 0, 1, 1], [], []>} : vector<16x16xbf16>, vector<16x256xbf16>, vector<16x256xf32> -> vector<16x256xf32>
    %353 = arith.addf %348, %352 : vector<16x256xf32>
    %c255_i32_188 = arith.constant 255 : i32
    %354 = tpu.dynamic_rotate %339 by %c255_i32_188 dim 1 : vector<16x256xf32>, i32 -> vector<16x256xf32>
    %355 = vector.shape_cast %6 : vector<1x256xi1> to vector<1x256xi1>
    %356 = vector.broadcast %355 : vector<1x256xi1> to vector<16x256xi1>
    %357 = arith.select %356, %339, %354 : vector<16x256xi1>, vector<16x256xf32>
    %c2_189 = arith.constant 2 : index
    %c0_190 = arith.constant 0 : index
    %c0_191 = arith.constant 0 : index
    %358 = vector.load %arg10[%c2_189, %c0_190, %c0_191] : memref<9x16x16xbf16, #tpu.memory_space<vmem>>, vector<1x16x16xbf16>
    %359 = vector.shape_cast %358 : vector<1x16x16xbf16> to vector<16x16xbf16>
    %360 = arith.truncf %357 : vector<16x256xf32> to vector<16x256xbf16>
    %cst_192 = arith.constant dense<0.000000e+00> : vector<16x256xf32>
    %361 = tpu.matmul %359, %360, %cst_192 {dimension_numbers = #tpu.dot_dimension_numbers<[1], [0], [0], [1], [0, 0, 1, 1], [], []>} : vector<16x16xbf16>, vector<16x256xbf16>, vector<16x256xf32> -> vector<16x256xf32>
    %362 = arith.addf %353, %361 : vector<16x256xf32>
    %c1_i32_193 = arith.constant 1 : i32
    %363 = tpu.dynamic_rotate %332 by %c1_i32_193 dim 1 : vector<16x256xf32>, i32 -> vector<16x256xf32>
    %364 = vector.shape_cast %4 : vector<1x256xi1> to vector<1x256xi1>
    %365 = vector.broadcast %364 : vector<1x256xi1> to vector<16x256xi1>
    %366 = arith.select %365, %332, %363 : vector<16x256xi1>, vector<16x256xf32>
    %c3_194 = arith.constant 3 : index
    %c0_195 = arith.constant 0 : index
    %c0_196 = arith.constant 0 : index
    %367 = vector.load %arg10[%c3_194, %c0_195, %c0_196] : memref<9x16x16xbf16, #tpu.memory_space<vmem>>, vector<1x16x16xbf16>
    %368 = vector.shape_cast %367 : vector<1x16x16xbf16> to vector<16x16xbf16>
    %369 = arith.truncf %366 : vector<16x256xf32> to vector<16x256xbf16>
    %cst_197 = arith.constant dense<0.000000e+00> : vector<16x256xf32>
    %370 = tpu.matmul %368, %369, %cst_197 {dimension_numbers = #tpu.dot_dimension_numbers<[1], [0], [0], [1], [0, 0, 1, 1], [], []>} : vector<16x16xbf16>, vector<16x256xbf16>, vector<16x256xf32> -> vector<16x256xf32>
    %371 = arith.addf %362, %370 : vector<16x256xf32>
    %c4_198 = arith.constant 4 : index
    %c0_199 = arith.constant 0 : index
    %c0_200 = arith.constant 0 : index
    %372 = vector.load %arg10[%c4_198, %c0_199, %c0_200] : memref<9x16x16xbf16, #tpu.memory_space<vmem>>, vector<1x16x16xbf16>
    %373 = vector.shape_cast %372 : vector<1x16x16xbf16> to vector<16x16xbf16>
    %374 = arith.truncf %332 : vector<16x256xf32> to vector<16x256xbf16>
    %cst_201 = arith.constant dense<0.000000e+00> : vector<16x256xf32>
    %375 = tpu.matmul %373, %374, %cst_201 {dimension_numbers = #tpu.dot_dimension_numbers<[1], [0], [0], [1], [0, 0, 1, 1], [], []>} : vector<16x16xbf16>, vector<16x256xbf16>, vector<16x256xf32> -> vector<16x256xf32>
    %376 = arith.addf %371, %375 : vector<16x256xf32>
    %c255_i32_202 = arith.constant 255 : i32
    %377 = tpu.dynamic_rotate %332 by %c255_i32_202 dim 1 : vector<16x256xf32>, i32 -> vector<16x256xf32>
    %378 = vector.shape_cast %6 : vector<1x256xi1> to vector<1x256xi1>
    %379 = vector.broadcast %378 : vector<1x256xi1> to vector<16x256xi1>
    %380 = arith.select %379, %332, %377 : vector<16x256xi1>, vector<16x256xf32>
    %c5_203 = arith.constant 5 : index
    %c0_204 = arith.constant 0 : index
    %c0_205 = arith.constant 0 : index
    %381 = vector.load %arg10[%c5_203, %c0_204, %c0_205] : memref<9x16x16xbf16, #tpu.memory_space<vmem>>, vector<1x16x16xbf16>
    %382 = vector.shape_cast %381 : vector<1x16x16xbf16> to vector<16x16xbf16>
    %383 = arith.truncf %380 : vector<16x256xf32> to vector<16x256xbf16>
    %cst_206 = arith.constant dense<0.000000e+00> : vector<16x256xf32>
    %384 = tpu.matmul %382, %383, %cst_206 {dimension_numbers = #tpu.dot_dimension_numbers<[1], [0], [0], [1], [0, 0, 1, 1], [], []>} : vector<16x16xbf16>, vector<16x256xbf16>, vector<16x256xf32> -> vector<16x256xf32>
    %385 = arith.addf %376, %384 : vector<16x256xf32>
    %c240_i32_207 = arith.constant 240 : i32
    %386 = tpu.dynamic_rotate %332 by %c240_i32_207 dim 1 : vector<16x256xf32>, i32 -> vector<16x256xf32>
    %387 = vector.shape_cast %10 : vector<1x256xi1> to vector<1x256xi1>
    %388 = vector.broadcast %387 : vector<1x256xi1> to vector<16x256xi1>
    %389 = arith.select %388, %332, %386 : vector<16x256xi1>, vector<16x256xf32>
    %c1_i32_208 = arith.constant 1 : i32
    %390 = tpu.dynamic_rotate %389 by %c1_i32_208 dim 1 : vector<16x256xf32>, i32 -> vector<16x256xf32>
    %391 = vector.shape_cast %4 : vector<1x256xi1> to vector<1x256xi1>
    %392 = vector.broadcast %391 : vector<1x256xi1> to vector<16x256xi1>
    %393 = arith.select %392, %389, %390 : vector<16x256xi1>, vector<16x256xf32>
    %c6_209 = arith.constant 6 : index
    %c0_210 = arith.constant 0 : index
    %c0_211 = arith.constant 0 : index
    %394 = vector.load %arg10[%c6_209, %c0_210, %c0_211] : memref<9x16x16xbf16, #tpu.memory_space<vmem>>, vector<1x16x16xbf16>
    %395 = vector.shape_cast %394 : vector<1x16x16xbf16> to vector<16x16xbf16>
    %396 = arith.truncf %393 : vector<16x256xf32> to vector<16x256xbf16>
    %cst_212 = arith.constant dense<0.000000e+00> : vector<16x256xf32>
    %397 = tpu.matmul %395, %396, %cst_212 {dimension_numbers = #tpu.dot_dimension_numbers<[1], [0], [0], [1], [0, 0, 1, 1], [], []>} : vector<16x16xbf16>, vector<16x256xbf16>, vector<16x256xf32> -> vector<16x256xf32>
    %398 = arith.addf %385, %397 : vector<16x256xf32>
    %c7_213 = arith.constant 7 : index
    %c0_214 = arith.constant 0 : index
    %c0_215 = arith.constant 0 : index
    %399 = vector.load %arg10[%c7_213, %c0_214, %c0_215] : memref<9x16x16xbf16, #tpu.memory_space<vmem>>, vector<1x16x16xbf16>
    %400 = vector.shape_cast %399 : vector<1x16x16xbf16> to vector<16x16xbf16>
    %401 = arith.truncf %389 : vector<16x256xf32> to vector<16x256xbf16>
    %cst_216 = arith.constant dense<0.000000e+00> : vector<16x256xf32>
    %402 = tpu.matmul %400, %401, %cst_216 {dimension_numbers = #tpu.dot_dimension_numbers<[1], [0], [0], [1], [0, 0, 1, 1], [], []>} : vector<16x16xbf16>, vector<16x256xbf16>, vector<16x256xf32> -> vector<16x256xf32>
    %403 = arith.addf %398, %402 : vector<16x256xf32>
    %c255_i32_217 = arith.constant 255 : i32
    %404 = tpu.dynamic_rotate %389 by %c255_i32_217 dim 1 : vector<16x256xf32>, i32 -> vector<16x256xf32>
    %405 = vector.shape_cast %6 : vector<1x256xi1> to vector<1x256xi1>
    %406 = vector.broadcast %405 : vector<1x256xi1> to vector<16x256xi1>
    %407 = arith.select %406, %389, %404 : vector<16x256xi1>, vector<16x256xf32>
    %c8_218 = arith.constant 8 : index
    %c0_219 = arith.constant 0 : index
    %c0_220 = arith.constant 0 : index
    %408 = vector.load %arg10[%c8_218, %c0_219, %c0_220] : memref<9x16x16xbf16, #tpu.memory_space<vmem>>, vector<1x16x16xbf16>
    %409 = vector.shape_cast %408 : vector<1x16x16xbf16> to vector<16x16xbf16>
    %410 = arith.truncf %407 : vector<16x256xf32> to vector<16x256xbf16>
    %cst_221 = arith.constant dense<0.000000e+00> : vector<16x256xf32>
    %411 = tpu.matmul %409, %410, %cst_221 {dimension_numbers = #tpu.dot_dimension_numbers<[1], [0], [0], [1], [0, 0, 1, 1], [], []>} : vector<16x16xbf16>, vector<16x256xbf16>, vector<16x256xf32> -> vector<16x256xf32>
    %412 = arith.addf %403, %411 : vector<16x256xf32>
    %cst_222 = arith.constant 0.000000e+00 : f32
    %413 = vector.broadcast %cst_222 : f32 to vector<16x256xf32>
    %414 = arith.maximumf %412, %413 : vector<16x256xf32>
    %c0_223 = arith.constant 0 : index
    %c0_224 = arith.constant 0 : index
    %c0_225 = arith.constant 0 : index
    %415 = vector.load %arg12[%c0_223, %c0_224, %c0_225] : memref<1x16x256xf32, #tpu.memory_space<vmem>>, vector<1x16x256xf32>
    %416 = vector.shape_cast %415 : vector<1x16x256xf32> to vector<16x256xf32>
    %417 = vector.shape_cast %414 : vector<16x256xf32> to vector<1x16x256xf32>
    tpu.vector_store %arg12[%c0_223, %c0_224, %c0_225], %417 {strides = array<i32>} : memref<1x16x256xf32, #tpu.memory_space<vmem>>, vector<1x16x256xf32>,
    return
  }
  func.func @transform_0(%arg0: i32) -> (i32, i32, i32) {
    %c0_i32 = arith.constant 0 : i32
    %c0_i32_0 = arith.constant 0 : i32
    %c0_i32_1 = arith.constant 0 : i32
    return %arg0, %c0_i32, %c0_i32_0 : i32, i32, i32
  }
  func.func @transform_1(%arg0: i32) -> (i32, i32, i32) {
    %c0_i32 = arith.constant 0 : i32
    %c0_i32_0 = arith.constant 0 : i32
    %c0_i32_1 = arith.constant 0 : i32
    %c0_i32_2 = arith.constant 0 : i32
    return %c0_i32, %c0_i32_0, %c0_i32_1 : i32, i32, i32
  }
  func.func @transform_2(%arg0: i32) -> (i32, i32) {
    %c0_i32 = arith.constant 0 : i32
    %c0_i32_0 = arith.constant 0 : i32
    %c0_i32_1 = arith.constant 0 : i32
    return %c0_i32, %c0_i32_0 : i32, i32
  }
  func.func @transform_3(%arg0: i32) -> (i32, i32, i32) {
    %c0_i32 = arith.constant 0 : i32
    %c0_i32_0 = arith.constant 0 : i32
    %c0_i32_1 = arith.constant 0 : i32
    %c0_i32_2 = arith.constant 0 : i32
    return %c0_i32, %c0_i32_0, %c0_i32_1 : i32, i32, i32
  }
  func.func @transform_4(%arg0: i32) -> (i32, i32) {
    %c0_i32 = arith.constant 0 : i32
    %c0_i32_0 = arith.constant 0 : i32
    %c0_i32_1 = arith.constant 0 : i32
    return %c0_i32, %c0_i32_0 : i32, i32
  }
  func.func @transform_5(%arg0: i32) -> (i32, i32, i32) {
    %c0_i32 = arith.constant 0 : i32
    %c0_i32_0 = arith.constant 0 : i32
    %c0_i32_1 = arith.constant 0 : i32
    %c0_i32_2 = arith.constant 0 : i32
    return %c0_i32, %c0_i32_0, %c0_i32_1 : i32, i32, i32
  }
  func.func @transform_6(%arg0: i32) -> (i32, i32) {
    %c0_i32 = arith.constant 0 : i32
    %c0_i32_0 = arith.constant 0 : i32
    %c0_i32_1 = arith.constant 0 : i32
    return %c0_i32, %c0_i32_0 : i32, i32
  }
  func.func @transform_7(%arg0: i32) -> (i32, i32, i32) {
    %c0_i32 = arith.constant 0 : i32
    %c0_i32_0 = arith.constant 0 : i32
    %c0_i32_1 = arith.constant 0 : i32
    %c0_i32_2 = arith.constant 0 : i32
    return %c0_i32, %c0_i32_0, %c0_i32_1 : i32, i32, i32
  }
  func.func @transform_8(%arg0: i32) -> (i32, i32) {
    %c0_i32 = arith.constant 0 : i32
    %c0_i32_0 = arith.constant 0 : i32
    %c0_i32_1 = arith.constant 0 : i32
    return %c0_i32, %c0_i32_0 : i32, i32
  }
  func.func @transform_9(%arg0: i32) -> (i32, i32, i32) {
    %c0_i32 = arith.constant 0 : i32
    %c0_i32_0 = arith.constant 0 : i32
    %c0_i32_1 = arith.constant 0 : i32
    %c0_i32_2 = arith.constant 0 : i32
    return %c0_i32, %c0_i32_0, %c0_i32_1 : i32, i32, i32
  }
  func.func @transform_10(%arg0: i32) -> (i32, i32) {
    %c0_i32 = arith.constant 0 : i32
    %c0_i32_0 = arith.constant 0 : i32
    %c0_i32_1 = arith.constant 0 : i32
    return %c0_i32, %c0_i32_0 : i32, i32
  }
  func.func @transform_11(%arg0: i32) -> (i32, i32, i32) {
    %c0_i32 = arith.constant 0 : i32
    %c0_i32_0 = arith.constant 0 : i32
    %c0_i32_1 = arith.constant 0 : i32
    return %arg0, %c0_i32, %c0_i32_0 : i32, i32, i32
  }
}

</mosaic_0001>

<llo_original>
// kernel: cnn_forward.1
$region0: #{cnn_forward.1}
  #allocation0 [shape = 'u32[]', space=smem, size = 0x4, offset = 0x4, fixed_abs, tag = 'smem constant byte address 0x4 - core index']
  #allocation1 [shape = 'u32[144,128]{1,0:T(1,128)}', space=vmem, size = 0x12000, scoped, tag = 'internal scratch']
  %s0 = inlined_call_operand.vmem [shape: f32[2,16,256], index: 0, kind: input, shape index: {}]
  %s1 = inlined_call_operand.vmem [shape: bf16[9,32,16], index: 1, kind: input, shape index: {}]
  %s2 = inlined_call_operand.vmem [shape: f32[32,1], index: 2, kind: input, shape index: {}]
  %s3 = inlined_call_operand.vmem [shape: bf16[9,64,32], index: 3, kind: input, shape index: {}]
  %s4 = inlined_call_operand.vmem [shape: f32[64,1], index: 4, kind: input, shape index: {}]
  %s5 = inlined_call_operand.vmem [shape: bf16[9,128,64], index: 5, kind: input, shape index: {}]
  %s6 = inlined_call_operand.vmem [shape: f32[128,1], index: 6, kind: input, shape index: {}]
  %s7 = inlined_call_operand.vmem [shape: bf16[9,16,128], index: 7, kind: input, shape index: {}]
  %s8 = inlined_call_operand.vmem [shape: f32[16,1], index: 8, kind: input, shape index: {}]
  %s9 = inlined_call_operand.vmem [shape: bf16[9,16,16], index: 9, kind: input, shape index: {}]
  %s10 = inlined_call_operand.vmem [shape: f32[16,1], index: 10, kind: input, shape index: {}]
  %s11 = inlined_call_operand.vmem [shape: f32[2,16,256], index: 11, kind: output, shape index: {}]
  %s12 = sld [smem:[#allocation0]]
  $region77: #{cnn_forward.1} parent=0
    _
  %s14 = ssub.s32 1, %s12
  %s15 = scalar_select 0, %s14, %s12
  loop: start=0, step=1, limit=4
  $region2: #{cnn_forward.1} parent=0 // loop_pre_header
    _
  $region3: #{cnn_forward.1} parent=0 // loop_header
    %s17 = sphi 0, %s21
    %p18 = scmp.ge.s32.totalorder %s17, 4
    %s27 = sphi 0, %s29
    %s30 = sphi 0, %s27
    %s31 = sphi 0, %s30
    %s47 = sphi 0, %s31
    %s51 = sphi 0, %s51
    %s53 = sphi 0, %s51
    %s54 = sphi 0, %s53
    %s68 = sphi 0, %s54
    %s72 = sphi 0, %s72
    %s74 = sphi 0, %s72
    %s75 = sphi 0, %s74
    %s89 = sphi 0, %s75
    %s93 = sphi 0, %s93
    %s95 = sphi 0, %s93
    %s96 = sphi 0, %s95
    %s110 = sphi 0, %s96
    %s114 = sphi 0, %s114
    %s116 = sphi 0, %s114
    %s117 = sphi 0, %s116
    %s131 = sphi 0, %s117
    %s135 = sphi 0, %s135
    %s137 = sphi 0, %s135
    %s138 = sphi 0, %s137
    %s152 = sphi 0, %s138
    %s156 = sphi 0, %s156
    %s158 = sphi 0, %s156
    %s159 = sphi 0, %s158
    %s173 = sphi 0, %s159
    %s177 = sphi 0, %s177
    %s179 = sphi 0, %s177
    %s180 = sphi 0, %s179
    %s194 = sphi 0, %s180
    %s198 = sphi 0, %s198
    %s200 = sphi 0, %s198
    %s201 = sphi 0, %s200
    %s215 = sphi 0, %s201
    %s219 = sphi 0, %s219
    %s221 = sphi 0, %s219
    %s222 = sphi 0, %s221
    %s236 = sphi 0, %s222
    %s240 = sphi 0, %s240
    %s242 = sphi 0, %s240
    %s243 = sphi 0, %s242
    %s257 = sphi 0, %s243
    %s263 = sphi 0, %s265
    %s266 = sphi 0, %s263
    %s267 = sphi 0, %s266
    %s283 = sphi 0, %s267
  $region4: #{cnn_forward.1} parent=0 // loop_header_branch
    %20 = sbr.rel (%p18) target = $region8
  $region5: #{cnn_forward.1} parent=0 // loop_body
    %s22 = ssub.s32 %s17, 1
    %s23 = ssub.s32 %s17, 2
    %s24 = sadd.s32 %s17, 1
    %s25 = ssub.s32 %s17, %s24
    %p26 = scmp.eq.s32.totalorder %s25, 0
    %s28 = sadd.s32 %s27, 1
    %s29 = scalar_select %p26, %s27, %s28
    %p32 = pneg %p26
    %p33 = scmp.eq.s32.totalorder %s17, 1
    %p34 = por %p32, %p33
    %p35 = scmp.ne.s32.totalorder %s27, %s30
    %p36 = scmp.eq.s32.totalorder %s17, 0
    %p37 = por %p35, %p36
    %p38 = scmp.ne.s32.totalorder %s27, %s30
    %p39 = scmp.eq.s32.totalorder %s22, 1
    %p40 = por %p38, %p39
    %p41 = scmp.ne.s32.totalorder %s30, %s31
    %p42 = scmp.eq.s32.totalorder %s22, 0
    %p43 = por %p41, %p42
    %p44 = scmp.ne.s32.totalorder %s30, %s31
    %p45 = scmp.eq.s32.totalorder %s23, 1
    %p46 = por %p44, %p45
    %p48 = scmp.ne.s32.totalorder %s31, %s47
    %p49 = scmp.eq.s32.totalorder %s23, 0
    %p50 = por %p48, %p49
    %s52 = sadd.s32 %s51, 1
    %p55 = scmp.eq.s32.totalorder %s17, 1
    %p56 = scmp.ne.s32.totalorder %s51, %s53
    %p57 = scmp.eq.s32.totalorder %s17, 0
    %p58 = por %p56, %p57
    %p59 = scmp.ne.s32.totalorder %s51, %s53
    %p60 = scmp.eq.s32.totalorder %s22, 1
    %p61 = por %p59, %p60
    %p62 = scmp.ne.s32.totalorder %s53, %s54
    %p63 = scmp.eq.s32.totalorder %s22, 0
    %p64 = por %p62, %p63
    %p65 = scmp.ne.s32.totalorder %s53, %s54
    %p66 = scmp.eq.s32.totalorder %s23, 1
    %p67 = por %p65, %p66
    %p69 = scmp.ne.s32.totalorder %s54, %s68
    %p70 = scmp.eq.s32.totalorder %s23, 0
    %p71 = por %p69, %p70
    %s73 = sadd.s32 %s72, 1
    %p76 = scmp.eq.s32.totalorder %s17, 1
    %p77 = scmp.ne.s32.totalorder %s72, %s74
    %p78 = scmp.eq.s32.totalorder %s17, 0
    %p79 = por %p77, %p78
    %p80 = scmp.ne.s32.totalorder %s72, %s74
    %p81 = scmp.eq.s32.totalorder %s22, 1
    %p82 = por %p80, %p81
    %p83 = scmp.ne.s32.totalorder %s74, %s75
    %p84 = scmp.eq.s32.totalorder %s22, 0
    %p85 = por %p83, %p84
    %p86 = scmp.ne.s32.totalorder %s74, %s75
    %p87 = scmp.eq.s32.totalorder %s23, 1
    %p88 = por %p86, %p87
    %p90 = scmp.ne.s32.totalorder %s75, %s89
    %p91 = scmp.eq.s32.totalorder %s23, 0
    %p92 = por %p90, %p91
    %s94 = sadd.s32 %s93, 1
    %p97 = scmp.eq.s32.totalorder %s17, 1
    %p98 = scmp.ne.s32.totalorder %s93, %s95
    %p99 = scmp.eq.s32.totalorder %s17, 0
    %p100 = por %p98, %p99
    %p101 = scmp.ne.s32.totalorder %s93, %s95
    %p102 = scmp.eq.s32.totalorder %s22, 1
    %p103 = por %p101, %p102
    %p104 = scmp.ne.s32.totalorder %s95, %s96
    %p105 = scmp.eq.s32.totalorder %s22, 0
    %p106 = por %p104, %p105
    %p107 = scmp.ne.s32.totalorder %s95, %s96
    %p108 = scmp.eq.s32.totalorder %s23, 1
    %p109 = por %p107, %p108
    %p111 = scmp.ne.s32.totalorder %s96, %s110
    %p112 = scmp.eq.s32.totalorder %s23, 0
    %p113 = por %p111, %p112
    %s115 = sadd.s32 %s114, 1
    %p118 = scmp.eq.s32.totalorder %s17, 1
    %p119 = scmp.ne.s32.totalorder %s114, %s116
    %p120 = scmp.eq.s32.totalorder %s17, 0
    %p121 = por %p119, %p120
    %p122 = scmp.ne.s32.totalorder %s114, %s116
    %p123 = scmp.eq.s32.totalorder %s22, 1
    %p124 = por %p122, %p123
    %p125 = scmp.ne.s32.totalorder %s116, %s117
    %p126 = scmp.eq.s32.totalorder %s22, 0
    %p127 = por %p125, %p126
    %p128 = scmp.ne.s32.totalorder %s116, %s117
    %p129 = scmp.eq.s32.totalorder %s23, 1
    %p130 = por %p128, %p129
    %p132 = scmp.ne.s32.totalorder %s117, %s131
    %p133 = scmp.eq.s32.totalorder %s23, 0
    %p134 = por %p132, %p133
    %s136 = sadd.s32 %s135, 1
    %p139 = scmp.eq.s32.totalorder %s17, 1
    %p140 = scmp.ne.s32.totalorder %s135, %s137
    %p141 = scmp.eq.s32.totalorder %s17, 0
    %p142 = por %p140, %p141
    %p143 = scmp.ne.s32.totalorder %s135, %s137
    %p144 = scmp.eq.s32.totalorder %s22, 1
    %p145 = por %p143, %p144
    %p146 = scmp.ne.s32.totalorder %s137, %s138
    %p147 = scmp.eq.s32.totalorder %s22, 0
    %p148 = por %p146, %p147
    %p149 = scmp.ne.s32.totalorder %s137, %s138
    %p150 = scmp.eq.s32.totalorder %s23, 1
    %p151 = por %p149, %p150
    %p153 = scmp.ne.s32.totalorder %s138, %s152
    %p154 = scmp.eq.s32.totalorder %s23, 0
    %p155 = por %p153, %p154
    %s157 = sadd.s32 %s156, 1
    %p160 = scmp.eq.s32.totalorder %s17, 1
    %p161 = scmp.ne.s32.totalorder %s156, %s158
    %p162 = scmp.eq.s32.totalorder %s17, 0
    %p163 = por %p161, %p162
    %p164 = scmp.ne.s32.totalorder %s156, %s158
    %p165 = scmp.eq.s32.totalorder %s22, 1
    %p166 = por %p164, %p165
    %p167 = scmp.ne.s32.totalorder %s158, %s159
    %p168 = scmp.eq.s32.totalorder %s22, 0
    %p169 = por %p167, %p168
    %p170 = scmp.ne.s32.totalorder %s158, %s159
    %p171 = scmp.eq.s32.totalorder %s23, 1
    %p172 = por %p170, %p171
    %p174 = scmp.ne.s32.totalorder %s159, %s173
    %p175 = scmp.eq.s32.totalorder %s23, 0
    %p176 = por %p174, %p175
    %s178 = sadd.s32 %s177, 1
    %p181 = scmp.eq.s32.totalorder %s17, 1
    %p182 = scmp.ne.s32.totalorder %s177, %s179
    %p183 = scmp.eq.s32.totalorder %s17, 0
    %p184 = por %p182, %p183
    %p185 = scmp.ne.s32.totalorder %s177, %s179
    %p186 = scmp.eq.s32.totalorder %s22, 1
    %p187 = por %p185, %p186
    %p188 = scmp.ne.s32.totalorder %s179, %s180
    %p189 = scmp.eq.s32.totalorder %s22, 0
    %p190 = por %p188, %p189
    %p191 = scmp.ne.s32.totalorder %s179, %s180
    %p192 = scmp.eq.s32.totalorder %s23, 1
    %p193 = por %p191, %p192
    %p195 = scmp.ne.s32.totalorder %s180, %s194
    %p196 = scmp.eq.s32.totalorder %s23, 0
    %p197 = por %p195, %p196
    %s199 = sadd.s32 %s198, 1
    %p202 = scmp.eq.s32.totalorder %s17, 1
    %p203 = scmp.ne.s32.totalorder %s198, %s200
    %p204 = scmp.eq.s32.totalorder %s17, 0
    %p205 = por %p203, %p204
    %p206 = scmp.ne.s32.totalorder %s198, %s200
    %p207 = scmp.eq.s32.totalorder %s22, 1
    %p208 = por %p206, %p207
    %p209 = scmp.ne.s32.totalorder %s200, %s201
    %p210 = scmp.eq.s32.totalorder %s22, 0
    %p211 = por %p209, %p210
    %p212 = scmp.ne.s32.totalorder %s200, %s201
    %p213 = scmp.eq.s32.totalorder %s23, 1
    %p214 = por %p212, %p213
    %p216 = scmp.ne.s32.totalorder %s201, %s215
    %p217 = scmp.eq.s32.totalorder %s23, 0
    %p218 = por %p216, %p217
    %s220 = sadd.s32 %s219, 1
    %p223 = scmp.eq.s32.totalorder %s17, 1
    %p224 = scmp.ne.s32.totalorder %s219, %s221
    %p225 = scmp.eq.s32.totalorder %s17, 0
    %p226 = por %p224, %p225
    %p227 = scmp.ne.s32.totalorder %s219, %s221
    %p228 = scmp.eq.s32.totalorder %s22, 1
    %p229 = por %p227, %p228
    %p230 = scmp.ne.s32.totalorder %s221, %s222
    %p231 = scmp.eq.s32.totalorder %s22, 0
    %p232 = por %p230, %p231
    %p233 = scmp.ne.s32.totalorder %s221, %s222
    %p234 = scmp.eq.s32.totalorder %s23, 1
    %p235 = por %p233, %p234
    %p237 = scmp.ne.s32.totalorder %s222, %s236
    %p238 = scmp.eq.s32.totalorder %s23, 0
    %p239 = por %p237, %p238
    %s241 = sadd.s32 %s240, 1
    %p244 = scmp.eq.s32.totalorder %s17, 1
    %p245 = scmp.ne.s32.totalorder %s240, %s242
    %p246 = scmp.eq.s32.totalorder %s17, 0
    %p247 = por %p245, %p246
    %p248 = scmp.ne.s32.totalorder %s240, %s242
    %p249 = scmp.eq.s32.totalorder %s22, 1
    %p250 = por %p248, %p249
    %p251 = scmp.ne.s32.totalorder %s242, %s243
    %p252 = scmp.eq.s32.totalorder %s22, 0
    %p253 = por %p251, %p252
    %p254 = scmp.ne.s32.totalorder %s242, %s243
    %p255 = scmp.eq.s32.totalorder %s23, 1
    %p256 = por %p254, %p255
    %p258 = scmp.ne.s32.totalorder %s243, %s257
    %p259 = scmp.eq.s32.totalorder %s23, 0
    %p260 = por %p258, %p259
    %s261 = ssub.s32 %s17, %s24
    %p262 = scmp.eq.s32.totalorder %s261, 0
    %s264 = sadd.s32 %s263, 1
    %s265 = scalar_select %p262, %s263, %s264
    %p268 = pneg %p262
    %p269 = scmp.eq.s32.totalorder %s17, 1
    %p270 = por %p268, %p269
    %p271 = scmp.ne.s32.totalorder %s263, %s266
    %p272 = scmp.eq.s32.totalorder %s17, 0
    %p273 = por %p271, %p272
    %p274 = scmp.ne.s32.totalorder %s263, %s266
    %p275 = scmp.eq.s32.totalorder %s22, 1
    %p276 = por %p274, %p275
    %p277 = scmp.ne.s32.totalorder %s266, %s267
    %p278 = scmp.eq.s32.totalorder %s22, 0
    %p279 = por %p277, %p278
    %p280 = scmp.ne.s32.totalorder %s266, %s267
    %p281 = scmp.eq.s32.totalorder %s23, 1
    %p282 = por %p280, %p281
    %p284 = scmp.ne.s32.totalorder %s267, %s283
    %p285 = scmp.eq.s32.totalorder %s23, 0
    %p286 = por %p284, %p285
    %p287 = scmp.le.s32.totalorder 1, %s17
    %p288 = scmp.lt.s32.totalorder %s17, 3
    %p289 = pnand %p287, %p288
    %p290 = pneg %p289
    // Predicated region
    $region9: #{cnn_forward.1} parent=5 // pred_check
      _
    $region10: #{cnn_forward.1} parent=5 // pred_check_branch
      %292 = sbr.rel (%p289) target = $region12
    $region11: #{cnn_forward.1} parent=5 // pred_region
      %s293 = ssub.s32 %s17, 1
      // Predicated region
      $region13: #{cnn_forward.1} parent=11 // pred_check
        %p294 = pneg %p64
      $region14: #{cnn_forward.1} parent=11 // pred_check_branch
        %296 = sbr.rel (%p294) target = $region16
      $region15: #{cnn_forward.1} parent=11 // pred_region
        _
      $region16: #{cnn_forward.1} parent=11 // pred_fallthru
        _
      // Predicated region
      $region17: #{cnn_forward.1} parent=11 // pred_check
        %p297 = pneg %p85
      $region18: #{cnn_forward.1} parent=11 // pred_check_branch
        %299 = sbr.rel (%p297) target = $region20
      $region19: #{cnn_forward.1} parent=11 // pred_region
        _
      $region20: #{cnn_forward.1} parent=11 // pred_fallthru
        _
      // Predicated region
      $region21: #{cnn_forward.1} parent=11 // pred_check
        %p300 = pneg %p106
      $region22: #{cnn_forward.1} parent=11 // pred_check_branch
        %302 = sbr.rel (%p300) target = $region24
      $region23: #{cnn_forward.1} parent=11 // pred_region
        _
      $region24: #{cnn_forward.1} parent=11 // pred_fallthru
        _
      // Predicated region
      $region25: #{cnn_forward.1} parent=11 // pred_check
        %p303 = pneg %p127
      $region26: #{cnn_forward.1} parent=11 // pred_check_branch
        %305 = sbr.rel (%p303) target = $region28
      $region27: #{cnn_forward.1} parent=11 // pred_region
        _
      $region28: #{cnn_forward.1} parent=11 // pred_fallthru
        _
      // Predicated region
      $region29: #{cnn_forward.1} parent=11 // pred_check
        %p306 = pneg %p148
      $region30: #{cnn_forward.1} parent=11 // pred_check_branch
        %308 = sbr.rel (%p306) target = $region32
      $region31: #{cnn_forward.1} parent=11 // pred_region
        _
      $region32: #{cnn_forward.1} parent=11 // pred_fallthru
        _
      // Predicated region
      $region33: #{cnn_forward.1} parent=11 // pred_check
        %p309 = pneg %p169
      $region34: #{cnn_forward.1} parent=11 // pred_check_branch
        %311 = sbr.rel (%p309) target = $region36
      $region35: #{cnn_forward.1} parent=11 // pred_region
        _
      $region36: #{cnn_forward.1} parent=11 // pred_fallthru
        _
      // Predicated region
      $region37: #{cnn_forward.1} parent=11 // pred_check
        %p312 = pneg %p190
      $region38: #{cnn_forward.1} parent=11 // pred_check_branch
        %314 = sbr.rel (%p312) target = $region40
      $region39: #{cnn_forward.1} parent=11 // pred_region
        _
      $region40: #{cnn_forward.1} parent=11 // pred_fallthru
        _
      // Predicated region
      $region41: #{cnn_forward.1} parent=11 // pred_check
        %p315 = pneg %p211
      $region42: #{cnn_forward.1} parent=11 // pred_check_branch
        %317 = sbr.rel (%p315) target = $region44
      $region43: #{cnn_forward.1} parent=11 // pred_region
        _
      $region44: #{cnn_forward.1} parent=11 // pred_fallthru
        _
      // Predicated region
      $region45: #{cnn_forward.1} parent=11 // pred_check
        %p318 = pneg %p232
      $region46: #{cnn_forward.1} parent=11 // pred_check_branch
        %320 = sbr.rel (%p318) target = $region48
      $region47: #{cnn_forward.1} parent=11 // pred_region
        _
      $region48: #{cnn_forward.1} parent=11 // pred_fallthru
        _
      // Predicated region
      $region49: #{cnn_forward.1} parent=11 // pred_check
        %p321 = pneg %p253
      $region50: #{cnn_forward.1} parent=11 // pred_check_branch
        %323 = sbr.rel (%p321) target = $region52
      $region51: #{cnn_forward.1} parent=11 // pred_region
        _
      $region52: #{cnn_forward.1} parent=11 // pred_fallthru
        _
    $region12: #{cnn_forward.1} parent=5 // pred_fallthru
      _
    %p324 = scmp.lt.s32.totalorder %s17, 2
    // Predicated region
    $region53: #{cnn_forward.1} parent=5 // pred_check
      %p325 = pneg %p324
    $region54: #{cnn_forward.1} parent=5 // pred_check_branch
      %327 = sbr.rel (%p325) target = $region56
    $region55: #{cnn_forward.1} parent=5 // pred_region
      // Predicated region
      $region57: #{cnn_forward.1} parent=55 // pred_check
        %p328 = pneg %p37
      $region58: #{cnn_forward.1} parent=55 // pred_check_branch
        %330 = sbr.rel (%p328) target = $region60
      $region59: #{cnn_forward.1} parent=55 // pred_region
        %p331 = scmp.lt.s32.totalorder %s17, 1
        %s332 = scalar_select %p331, %s17, 1
        %s333 = smul.addr %s332, 4
        %s334 = smul.addr %s333, 8
        %s335 = scalar_lea.vmem %s0, %s334
      $region60: #{cnn_forward.1} parent=55 // pred_fallthru
        _
    $region56: #{cnn_forward.1} parent=5 // pred_fallthru
      _
    %p336 = scmp.le.s32.totalorder 1, %s17
    %p337 = scmp.lt.s32.totalorder %s17, 3
    %p338 = pnand %p336, %p337
    %p339 = pneg %p338
    // Predicated region
    $region61: #{cnn_forward.1} parent=5 // pred_check
      _
    $region62: #{cnn_forward.1} parent=5 // pred_check_branch
      %341 = sbr.rel (%p338) target = $region64
    $region63: #{cnn_forward.1} parent=5 // pred_region
      %s342 = ssub.s32 %s17, 1
      %p343 = scmp.lt.s32.totalorder %s22, 1
      %s344 = scalar_select %p343, %s22, 1
      %s345 = smul.addr %s344, 4
      %s346 = smul.addr %s345, 8
      %s347 = scalar_lea.vmem %s0, %s346
      %p348 = pneg %p43
      %p349 = pneg %p40
      %p350 = pneg %p64
      %p351 = pneg %p61
      %p352 = pneg %p85
      %p353 = pneg %p82
      %p354 = pneg %p106
      %p355 = pneg %p103
      %p356 = pneg %p127
      %p357 = pneg %p124
      %p358 = pneg %p148
      %p359 = pneg %p145
      %p360 = pneg %p169
      %p361 = pneg %p166
      %p362 = pneg %p190
      %p363 = pneg %p187
      %p364 = pneg %p211
      %p365 = pneg %p208
      %p366 = pneg %p232
      %p367 = pneg %p229
      %p368 = pneg %p253
      %p369 = pneg %p250
      %p370 = pneg %p279
      %p371 = pneg %p276
      %p372 = scmp.lt.s32.totalorder %s22, 1
      %s373 = scalar_select %p372, %s22, 1
      %s374 = smul.addr %s373, 4
      %s375 = smul.addr %s374, 8
      %s376 = scalar_lea.vmem %s11, %s375
      %p377 = scmp.lt.s32.totalorder %s22, 1
      %s378 = scalar_select %p377, %s22, 1
      %s379 = smul.addr %s378, 4
      %s380 = smul.addr %s379, 8
      %s381 = scalar_lea.vmem %s0, %s380
      %p382 = scmp.lt.s32.totalorder %s22, 1
      %s383 = scalar_select %p382, %s22, 1
      %s384 = smul.addr %s383, 4
      %s385 = smul.addr %s384, 8
      %s386 = scalar_lea.vmem %s11, %s385
      %v388 = vlaneseq
      %v389 = vand.u32 %v388, 127
      %v390 = vadd.s32 %v389, 128
      %v391 = vand.u32 %v389, 15
      %v392 = vand.u32 %v390, 15
      %vm393 = vcmp.eq.s32.totalorder %v391, 0
      %vm394 = vcmp.eq.s32.totalorder %v392, 0
      %vm395 = vcmp.eq.s32.totalorder %v391, 15
      %vm396 = vcmp.eq.s32.totalorder %v392, 15
      %vm397 = vcmp.lt.s32.totalorder %v389, 16
      %vm398 = vcmp.lt.s32.totalorder %v390, 16
      %vm399 = vcmp.ge.s32.totalorder %v389, 240
      %vm400 = vcmp.ge.s32.totalorder %v390, 240
      %v401 = vld [vmem:[%s381] sm:$0xff]
      %v402 = vld [vmem:[%s381 + $0x8] sm:$0xff]
      %v403 = vld [vmem:[%s381 + $0x10] sm:$0xff]
      %v404 = vld [vmem:[%s381 + $0x18] sm:$0xff]
      %v405 = vld [vmem:[%s2] sm:$0xff]
      %v406 = vld [vmem:[%s2 + $0x8] sm:$0xff]
      %v407 = vld [vmem:[%s2 + $0x10] sm:$0xff]
      %v408 = vld [vmem:[%s2 + $0x18] sm:$0xff]
      %410 = vset.pattern.permute.xlu0 0
      %411 = vperm.xlu0 %410, %v405
      %v412 = vpop.permute.xlu0 %411
      %415 = vset.pattern.permute.xlu0 0
      %416 = vperm.xlu0 %415, %v406
      %v417 = vpop.permute.xlu0 %416
      %420 = vset.pattern.permute.xlu0 0
      %421 = vperm.xlu0 %420, %v407
      %v422 = vpop.permute.xlu0 %421
      %425 = vset.pattern.permute.xlu0 0
      %426 = vperm.xlu0 %425, %v408
      %v427 = vpop.permute.xlu0 %426
      %429 = vrot.lane.b32.xlu0 %v401, 16
      %v430 = vpop.permute.xlu0 %429
      %431 = vrot.lane.b32.xlu0 %v403, 16
      %v432 = vpop.permute.xlu0 %431
      %433 = vrot.lane.b32.xlu0 %v402, 16
      %v434 = vpop.permute.xlu0 %433
      %435 = vrot.lane.b32.xlu0 %v404, 16
      %v436 = vpop.permute.xlu0 %435
      %v437 = vsel %vm397, %v430, %v434
      %v438 = vsel %vm397, %v432, %v436
      %v439 = vsel %vm397, %v434, %v430
      %v440 = vsel %vm397, %v436, %v432
      %v441 = vsel %vm397, 1, 0
      %v442 = vsel %vm398, 1, 0
      %vm443 = vcmp.eq.s32.totalorder %v441, 1
      %vm444 = vcmp.eq.s32.totalorder %v442, 1
      %v445 = vsel %vm443, %v401, %v439
      %v446 = vsel %vm444, %v402, %v437
      %v447 = vsel %vm443, %v403, %v440
      %v448 = vsel %vm444, %v404, %v438
      %449 = vrot.lane.b32.xlu0 %v445, 1
      %v450 = vpop.permute.xlu0 %449
      %451 = vrot.lane.b32.xlu0 %v447, 1
      %v452 = vpop.permute.xlu0 %451
      %453 = vrot.lane.b32.xlu0 %v446, 1
      %v454 = vpop.permute.xlu0 %453
      %455 = vrot.lane.b32.xlu0 %v448, 1
      %v456 = vpop.permute.xlu0 %455
      %vm457 = vcmp.lt.s32.totalorder %v389, 1
      %v458 = vsel %vm457, %v450, %v454
      %v459 = vsel %vm457, %v452, %v456
      %v460 = vsel %vm457, %v454, %v450
      %v461 = vsel %vm457, %v456, %v452
      %v462 = vsel %vm393, 1, 0
      %v463 = vsel %vm394, 1, 0
      %vm464 = vcmp.eq.s32.totalorder %v462, 1
      %vm465 = vcmp.eq.s32.totalorder %v463, 1
      %v466 = vsel %vm464, %v445, %v460
      %v467 = vsel %vm465, %v446, %v458
      %v468 = vsel %vm464, %v447, %v461
      %v469 = vsel %vm465, %v448, %v459
      %v470 = vld [vmem:[%s1] sm:$0xf]
      %v471 = vld [vmem:[%s1 + $0x4] sm:$0xf]
      %v472 = vld [vmem:[%s1 + $0x8] sm:$0xf]
      %v473 = vld [vmem:[%s1 + $0xc] sm:$0xf]
      %v474 = vpack.c.bf16 %v468, %v466
      %v475 = vpack.c.bf16 %v469, %v467
      %v480 = vunpack.c.l.b16 %v470
      %v481 = vunpack.c.l.b16 %v471
      %v482 = vunpack.c.l.b16 %v472
      %v483 = vunpack.c.l.b16 %v473
      %v484 = vpack.c.b16 %v481, %v480
      %v485 = vpack.c.b16 %v483, %v482
      %vm486 = vcmask 130048
      %v488 = vsel %vm486, %v484, 0
      %v491 = vsel %vm486, %v485, 0
      %493 = vmatprep.subr.bf16.mxu0 %v475
      %494 = vmatpush1.bf16.msra.mxu0 %v474
      %495 = vmatprep.subr.bf16.mxu0 0
      %496 = vmatpush1.bf16.msra.mxu0 0
      %497 = vmatprep.subr.bf16.mxu0 0
      %498 = vmatpush1.bf16.msra.mxu0 0
      %499 = vmatprep.subr.bf16.mxu0 0
      %500 = vmatpush1.bf16.msra.mxu0 0
      %501 = vmatprep.subr.bf16.mxu0 0
      %502 = vmatpush1.bf16.msra.mxu0 0
      %503 = vmatprep.subr.bf16.mxu0 0
      %504 = vmatpush1.bf16.msra.mxu0 0
      %505 = vmatprep.subr.bf16.mxu0 0
      %506 = vmatpush1.bf16.msra.mxu0 0
      %507 = vmatprep.subr.bf16.mxu0 0
      %508 = vmatpush1.bf16.msra.mxu0 0
      %509 = vmatprep.subr.bf16.mxu0 0
      %510 = vmatpush1.bf16.msra.mxu0 0
      %511 = vmatprep.subr.bf16.mxu0 0
      %512 = vmatpush1.bf16.msra.mxu0 0
      %513 = vmatprep.subr.bf16.mxu0 0
      %514 = vmatpush1.bf16.msra.mxu0 0
      %515 = vmatprep.subr.bf16.mxu0 0
      %516 = vmatpush1.bf16.msra.mxu0 0
      %517 = vmatprep.subr.bf16.mxu0 0
      %518 = vmatpush1.bf16.msra.mxu0 0
      %519 = vmatprep.subr.bf16.mxu0 0
      %520 = vmatpush1.bf16.msra.mxu0 0
      %521 = vmatprep.subr.bf16.mxu0 0
      %522 = vmatpush1.bf16.msra.mxu0 0
      %523 = vmatprep.subr.bf16.mxu0 0
      %524 = vmatpush1.bf16.msra.mxu0 0
      %525 = vmatprep.mubr.bf16.mxu0 0
      %526 = vmatmul.mubr.bf16.gmra.mrb[0].mxu0 %v488
      %v527 = vpop.f32.mrb[0].mxu0
      %v528 = vadd.f32 0.0, %v527
      %v529 = vpop.f32.mrb[0].mxu0
      %v530 = vadd.f32 0.0, %v529
      %v531 = vpop.f32.mrb[0].mxu0
      %v532 = vadd.f32 0.0, %v531
      %v533 = vpop.f32.mrb[0].mxu0
      %v534 = vadd.f32 0.0, %v533
      %535 = vmatprep.mubr.bf16.mxu0 0
      %536 = vmatmul.mubr.bf16.gmra.mrb[0].mxu0 %v491
      %v537 = vpop.f32.mrb[0].mxu0
      %v538 = vadd.f32 0.0, %v537
      %v539 = vpop.f32.mrb[0].mxu0
      %v540 = vadd.f32 0.0, %v539
      %v541 = vpop.f32.mrb[0].mxu0
      %v542 = vadd.f32 0.0, %v541
      %v543 = vpop.f32.mrb[0].mxu0
      %v544 = vadd.f32 0.0, %v543
      %545 = vdwg.mxu0
      %v546 = vadd.f32 %v412, %v528
      %v547 = vadd.f32 %v412, %v530
      %v548 = vadd.f32 %v417, %v532
      %v549 = vadd.f32 %v417, %v534
      %v550 = vadd.f32 %v422, %v538
      %v551 = vadd.f32 %v422, %v540
      %v552 = vadd.f32 %v427, %v542
      %v553 = vadd.f32 %v427, %v544
      %s554 = scalar_lea.vmem %s1, 16
      %v555 = vld [vmem:[%s554] sm:$0xf]
      %v556 = vld [vmem:[%s554 + $0x4] sm:$0xf]
      %v557 = vld [vmem:[%s554 + $0x8] sm:$0xf]
      %v558 = vld [vmem:[%s554 + $0xc] sm:$0xf]
      %v559 = vpack.c.bf16 %v447, %v445
      %v560 = vpack.c.bf16 %v448, %v446
      %v565 = vunpack.c.l.b16 %v555
      %v566 = vunpack.c.l.b16 %v556
      %v567 = vunpack.c.l.b16 %v557
      %v568 = vunpack.c.l.b16 %v558
      %v569 = vpack.c.b16 %v566, %v565
      %v570 = vpack.c.b16 %v568, %v567
      %v572 = vsel %vm486, %v569, 0
      %v575 = vsel %vm486, %v570, 0
      %577 = vmatprep.subr.bf16.mxu0 %v560
      %578 = vmatpush1.bf16.msra.mxu0 %v559
      %579 = vmatprep.subr.bf16.mxu0 0
      %580 = vmatpush1.bf16.msra.mxu0 0
      %581 = vmatprep.subr.bf16.mxu0 0
      %582 = vmatpush1.bf16.msra.mxu0 0
      %583 = vmatprep.subr.bf16.mxu0 0
      %584 = vmatpush1.bf16.msra.mxu0 0
      %585 = vmatprep.subr.bf16.mxu0 0
      %586 = vmatpush1.bf16.msra.mxu0 0
      %587 = vmatprep.subr.bf16.mxu0 0
      %588 = vmatpush1.bf16.msra.mxu0 0
      %589 = vmatprep.subr.bf16.mxu0 0
      %590 = vmatpush1.bf16.msra.mxu0 0
      %591 = vmatprep.subr.bf16.mxu0 0
      %592 = vmatpush1.bf16.msra.mxu0 0
      %593 = vmatprep.subr.bf16.mxu0 0
      %594 = vmatpush1.bf16.msra.mxu0 0
      %595 = vmatprep.subr.bf16.mxu0 0
      %596 = vmatpush1.bf16.msra.mxu0 0
      %597 = vmatprep.subr.bf16.mxu0 0
      %598 = vmatpush1.bf16.msra.mxu0 0
      %599 = vmatprep.subr.bf16.mxu0 0
      %600 = vmatpush1.bf16.msra.mxu0 0
      %601 = vmatprep.subr.bf16.mxu0 0
      %602 = vmatpush1.bf16.msra.mxu0 0
      %603 = vmatprep.subr.bf16.mxu0 0
      %604 = vmatpush1.bf16.msra.mxu0 0
      %605 = vmatprep.subr.bf16.mxu0 0
      %606 = vmatpush1.bf16.msra.mxu0 0
      %607 = vmatprep.subr.bf16.mxu0 0
      %608 = vmatpush1.bf16.msra.mxu0 0
      %609 = vmatprep.mubr.bf16.mxu0 0
      %610 = vmatmul.mubr.bf16.gmra.mrb[0].mxu0 %v572
      %v611 = vpop.f32.mrb[0].mxu0
      %v612 = vadd.f32 0.0, %v611
      %v613 = vpop.f32.mrb[0].mxu0
      %v614 = vadd.f32 0.0, %v613
      %v615 = vpop.f32.mrb[0].mxu0
      %v616 = vadd.f32 0.0, %v615
      %v617 = vpop.f32.mrb[0].mxu0
      %v618 = vadd.f32 0.0, %v617
      %619 = vmatprep.mubr.bf16.mxu0 0
      %620 = vmatmul.mubr.bf16.gmra.mrb[0].mxu0 %v575
      %v621 = vpop.f32.mrb[0].mxu0
      %v622 = vadd.f32 0.0, %v621
      %v623 = vpop.f32.mrb[0].mxu0
      %v624 = vadd.f32 0.0, %v623
      %v625 = vpop.f32.mrb[0].mxu0
      %v626 = vadd.f32 0.0, %v625
      %v627 = vpop.f32.mrb[0].mxu0
      %v628 = vadd.f32 0.0, %v627
      %629 = vdwg.mxu0
      %v630 = vadd.f32 %v546, %v612
      %v631 = vadd.f32 %v547, %v614
      %v632 = vadd.f32 %v548, %v616
      %v633 = vadd.f32 %v549, %v618
      %v634 = vadd.f32 %v550, %v622
      %v635 = vadd.f32 %v551, %v624
      %v636 = vadd.f32 %v552, %v626
      %v637 = vadd.f32 %v553, %v628
      %638 = vrot.lane.b32.xlu0 %v445, 127
      %v639 = vpop.permute.xlu0 %638
      %640 = vrot.lane.b32.xlu0 %v447, 127
      %v641 = vpop.permute.xlu0 %640
      %642 = vrot.lane.b32.xlu0 %v446, 127
      %v643 = vpop.permute.xlu0 %642
      %644 = vrot.lane.b32.xlu0 %v448, 127
      %v645 = vpop.permute.xlu0 %644
      %vm646 = vcmp.lt.s32.totalorder %v389, 127
      %v647 = vsel %vm646, %v639, %v643
      %v648 = vsel %vm646, %v641, %v645
      %v649 = vsel %vm646, %v643, %v639
      %v650 = vsel %vm646, %v645, %v641
      %v651 = vsel %vm395, 1, 0
      %v652 = vsel %vm396, 1, 0
      %vm653 = vcmp.eq.s32.totalorder %v651, 1
      %vm654 = vcmp.eq.s32.totalorder %v652, 1
      %v655 = vsel %vm653, %v445, %v647
      %v656 = vsel %vm654, %v446, %v649
      %v657 = vsel %vm653, %v447, %v648
      %v658 = vsel %vm654, %v448, %v650
      %s659 = scalar_lea.vmem %s1, 32
      %v660 = vld [vmem:[%s659] sm:$0xf]
      %v661 = vld [vmem:[%s659 + $0x4] sm:$0xf]
      %v662 = vld [vmem:[%s659 + $0x8] sm:$0xf]
      %v663 = vld [vmem:[%s659 + $0xc] sm:$0xf]
      %v664 = vpack.c.bf16 %v657, %v655
      %v665 = vpack.c.bf16 %v658, %v656
      %v670 = vunpack.c.l.b16 %v660
      %v671 = vunpack.c.l.b16 %v661
      %v672 = vunpack.c.l.b16 %v662
      %v673 = vunpack.c.l.b16 %v663
      %v674 = vpack.c.b16 %v671, %v670
      %v675 = vpack.c.b16 %v673, %v672
      %v677 = vsel %vm486, %v674, 0
      %v680 = vsel %vm486, %v675, 0
      %682 = vmatprep.subr.bf16.mxu0 %v665
      %683 = vmatpush1.bf16.msra.mxu0 %v664
      %684 = vmatprep.subr.bf16.mxu0 0
      %685 = vmatpush1.bf16.msra.mxu0 0
      %686 = vmatprep.subr.bf16.mxu0 0
      %687 = vmatpush1.bf16.msra.mxu0 0
      %688 = vmatprep.subr.bf16.mxu0 0
      %689 = vmatpush1.bf16.msra.mxu0 0
      %690 = vmatprep.subr.bf16.mxu0 0
      %691 = vmatpush1.bf16.msra.mxu0 0
      %692 = vmatprep.subr.bf16.mxu0 0
      %693 = vmatpush1.bf16.msra.mxu0 0
      %694 = vmatprep.subr.bf16.mxu0 0
      %695 = vmatpush1.bf16.msra.mxu0 0
      %696 = vmatprep.subr.bf16.mxu0 0
      %697 = vmatpush1.bf16.msra.mxu0 0
      %698 = vmatprep.subr.bf16.mxu0 0
      %699 = vmatpush1.bf16.msra.mxu0 0
      %700 = vmatprep.subr.bf16.mxu0 0
      %701 = vmatpush1.bf16.msra.mxu0 0
      %702 = vmatprep.subr.bf16.mxu0 0
      %703 = vmatpush1.bf16.msra.mxu0 0
      %704 = vmatprep.subr.bf16.mxu0 0
      %705 = vmatpush1.bf16.msra.mxu0 0
      %706 = vmatprep.subr.bf16.mxu0 0
      %707 = vmatpush1.bf16.msra.mxu0 0
      %708 = vmatprep.subr.bf16.mxu0 0
      %709 = vmatpush1.bf16.msra.mxu0 0
      %710 = vmatprep.subr.bf16.mxu0 0
      %711 = vmatpush1.bf16.msra.mxu0 0
      %712 = vmatprep.subr.bf16.mxu0 0
      %713 = vmatpush1.bf16.msra.mxu0 0
      %714 = vmatprep.mubr.bf16.mxu0 0
      %715 = vmatmul.mubr.bf16.gmra.mrb[0].mxu0 %v677
      %v716 = vpop.f32.mrb[0].mxu0
      %v717 = vadd.f32 0.0, %v716
      %v718 = vpop.f32.mrb[0].mxu0
      %v719 = vadd.f32 0.0, %v718
      %v720 = vpop.f32.mrb[0].mxu0
      %v721 = vadd.f32 0.0, %v720
      %v722 = vpop.f32.mrb[0].mxu0
      %v723 = vadd.f32 0.0, %v722
      %724 = vmatprep.mubr.bf16.mxu0 0
      %725 = vmatmul.mubr.bf16.gmra.mrb[0].mxu0 %v680
      %v726 = vpop.f32.mrb[0].mxu0
      %v727 = vadd.f32 0.0, %v726
      %v728 = vpop.f32.mrb[0].mxu0
      %v729 = vadd.f32 0.0, %v728
      %v730 = vpop.f32.mrb[0].mxu0
      %v731 = vadd.f32 0.0, %v730
      %v732 = vpop.f32.mrb[0].mxu0
      %v733 = vadd.f32 0.0, %v732
      %734 = vdwg.mxu0
      %v735 = vadd.f32 %v630, %v717
      %v736 = vadd.f32 %v631, %v719
      %v737 = vadd.f32 %v632, %v721
      %v738 = vadd.f32 %v633, %v723
      %v739 = vadd.f32 %v634, %v727
      %v740 = vadd.f32 %v635, %v729
      %v741 = vadd.f32 %v636, %v731
      %v742 = vadd.f32 %v637, %v733
      %743 = vrot.lane.b32.xlu0 %v401, 1
      %v744 = vpop.permute.xlu0 %743
      %745 = vrot.lane.b32.xlu0 %v403, 1
      %v746 = vpop.permute.xlu0 %745
      %747 = vrot.lane.b32.xlu0 %v402, 1
      %v748 = vpop.permute.xlu0 %747
      %749 = vrot.lane.b32.xlu0 %v404, 1
      %v750 = vpop.permute.xlu0 %749
      %v751 = vsel %vm457, %v744, %v748
      %v752 = vsel %vm457, %v746, %v750
      %v753 = vsel %vm457, %v748, %v744
      %v754 = vsel %vm457, %v750, %v746
      %v755 = vsel %vm464, %v401, %v753
      %v756 = vsel %vm465, %v402, %v751
      %v757 = vsel %vm464, %v403, %v754
      %v758 = vsel %vm465, %v404, %v752
      %s759 = scalar_lea.vmem %s1, 48
      %v760 = vld [vmem:[%s759] sm:$0xf]
      %v761 = vld [vmem:[%s759 + $0x4] sm:$0xf]
      %v762 = vld [vmem:[%s759 + $0x8] sm:$0xf]
      %v763 = vld [vmem:[%s759 + $0xc] sm:$0xf]
      %v764 = vpack.c.bf16 %v757, %v755
      %v765 = vpack.c.bf16 %v758, %v756
      %v770 = vunpack.c.l.b16 %v760
      %v771 = vunpack.c.l.b16 %v761
      %v772 = vunpack.c.l.b16 %v762
      %v773 = vunpack.c.l.b16 %v763
      %v774 = vpack.c.b16 %v771, %v770
      %v775 = vpack.c.b16 %v773, %v772
      %v777 = vsel %vm486, %v774, 0
      %v780 = vsel %vm486, %v775, 0
      %782 = vmatprep.subr.bf16.mxu0 %v765
      %783 = vmatpush1.bf16.msra.mxu0 %v764
      %784 = vmatprep.subr.bf16.mxu0 0
      %785 = vmatpush1.bf16.msra.mxu0 0
      %786 = vmatprep.subr.bf16.mxu0 0
      %787 = vmatpush1.bf16.msra.mxu0 0
      %788 = vmatprep.subr.bf16.mxu0 0
      %789 = vmatpush1.bf16.msra.mxu0 0
      %790 = vmatprep.subr.bf16.mxu0 0
      %791 = vmatpush1.bf16.msra.mxu0 0
      %792 = vmatprep.subr.bf16.mxu0 0
      %793 = vmatpush1.bf16.msra.mxu0 0
      %794 = vmatprep.subr.bf16.mxu0 0
      %795 = vmatpush1.bf16.msra.mxu0 0
      %796 = vmatprep.subr.bf16.mxu0 0
      %797 = vmatpush1.bf16.msra.mxu0 0
      %798 = vmatprep.subr.bf16.mxu0 0
      %799 = vmatpush1.bf16.msra.mxu0 0
      %800 = vmatprep.subr.bf16.mxu0 0
      %801 = vmatpush1.bf16.msra.mxu0 0
      %802 = vmatprep.subr.bf16.mxu0 0
      %803 = vmatpush1.bf16.msra.mxu0 0
      %804 = vmatprep.subr.bf16.mxu0 0
      %805 = vmatpush1.bf16.msra.mxu0 0
      %806 = vmatprep.subr.bf16.mxu0 0
      %807 = vmatpush1.bf16.msra.mxu0 0
      %808 = vmatprep.subr.bf16.mxu0 0
      %809 = vmatpush1.bf16.msra.mxu0 0
      %810 = vmatprep.subr.bf16.mxu0 0
      %811 = vmatpush1.bf16.msra.mxu0 0
      %812 = vmatprep.subr.bf16.mxu0 0
      %813 = vmatpush1.bf16.msra.mxu0 0
      %814 = vmatprep.mubr.bf16.mxu0 0
      %815 = vmatmul.mubr.bf16.gmra.mrb[0].mxu0 %v777
      %v816 = vpop.f32.mrb[0].mxu0
      %v817 = vadd.f32 0.0, %v816
      %v818 = vpop.f32.mrb[0].mxu0
      %v819 = vadd.f32 0.0, %v818
      %v820 = vpop.f32.mrb[0].mxu0
      %v821 = vadd.f32 0.0, %v820
      %v822 = vpop.f32.mrb[0].mxu0
      %v823 = vadd.f32 0.0, %v822
      %824 = vmatprep.mubr.bf16.mxu0 0
      %825 = vmatmul.mubr.bf16.gmra.mrb[0].mxu0 %v780
      %v826 = vpop.f32.mrb[0].mxu0
      %v827 = vadd.f32 0.0, %v826
      %v828 = vpop.f32.mrb[0].mxu0
      %v829 = vadd.f32 0.0, %v828
      %v830 = vpop.f32.mrb[0].mxu0
      %v831 = vadd.f32 0.0, %v830
      %v832 = vpop.f32.mrb[0].mxu0
      %v833 = vadd.f32 0.0, %v832
      %834 = vdwg.mxu0
      %v835 = vadd.f32 %v735, %v817
      %v836 = vadd.f32 %v736, %v819
      %v837 = vadd.f32 %v737, %v821
      %v838 = vadd.f32 %v738, %v823
      %v839 = vadd.f32 %v739, %v827
      %v840 = vadd.f32 %v740, %v829
      %v841 = vadd.f32 %v741, %v831
      %v842 = vadd.f32 %v742, %v833
      %s843 = scalar_lea.vmem %s1, 64
      %v844 = vld [vmem:[%s843] sm:$0xf]
      %v845 = vld [vmem:[%s843 + $0x4] sm:$0xf]
      %v846 = vld [vmem:[%s843 + $0x8] sm:$0xf]
      %v847 = vld [vmem:[%s843 + $0xc] sm:$0xf]
      %v848 = vpack.c.bf16 %v403, %v401
      %v849 = vpack.c.bf16 %v404, %v402
      %v854 = vunpack.c.l.b16 %v844
      %v855 = vunpack.c.l.b16 %v845
      %v856 = vunpack.c.l.b16 %v846
      %v857 = vunpack.c.l.b16 %v847
      %v858 = vpack.c.b16 %v855, %v854
      %v859 = vpack.c.b16 %v857, %v856
      %v861 = vsel %vm486, %v858, 0
      %v864 = vsel %vm486, %v859, 0
      %866 = vmatprep.subr.bf16.mxu0 %v849
      %867 = vmatpush1.bf16.msra.mxu0 %v848
      %868 = vmatprep.subr.bf16.mxu0 0
      %869 = vmatpush1.bf16.msra.mxu0 0
      %870 = vmatprep.subr.bf16.mxu0 0
      %871 = vmatpush1.bf16.msra.mxu0 0
      %872 = vmatprep.subr.bf16.mxu0 0
      %873 = vmatpush1.bf16.msra.mxu0 0
      %874 = vmatprep.subr.bf16.mxu0 0
      %875 = vmatpush1.bf16.msra.mxu0 0
      %876 = vmatprep.subr.bf16.mxu0 0
      %877 = vmatpush1.bf16.msra.mxu0 0
      %878 = vmatprep.subr.bf16.mxu0 0
      %879 = vmatpush1.bf16.msra.mxu0 0
      %880 = vmatprep.subr.bf16.mxu0 0
      %881 = vmatpush1.bf16.msra.mxu0 0
      %882 = vmatprep.subr.bf16.mxu0 0
      %883 = vmatpush1.bf16.msra.mxu0 0
      %884 = vmatprep.subr.bf16.mxu0 0
      %885 = vmatpush1.bf16.msra.mxu0 0
      %886 = vmatprep.subr.bf16.mxu0 0
      %887 = vmatpush1.bf16.msra.mxu0 0
      %888 = vmatprep.subr.bf16.mxu0 0
      %889 = vmatpush1.bf16.msra.mxu0 0
      %890 = vmatprep.subr.bf16.mxu0 0
      %891 = vmatpush1.bf16.msra.mxu0 0
      %892 = vmatprep.subr.bf16.mxu0 0
      %893 = vmatpush1.bf16.msra.mxu0 0
      %894 = vmatprep.subr.bf16.mxu0 0
      %895 = vmatpush1.bf16.msra.mxu0 0
      %896 = vmatprep.subr.bf16.mxu0 0
      %897 = vmatpush1.bf16.msra.mxu0 0
      %898 = vmatprep.mubr.bf16.mxu0 0
      %899 = vmatmul.mubr.bf16.gmra.mrb[0].mxu0 %v861
      %v900 = vpop.f32.mrb[0].mxu0
      %v901 = vadd.f32 0.0, %v900
      %v902 = vpop.f32.mrb[0].mxu0
      %v903 = vadd.f32 0.0, %v902
      %v904 = vpop.f32.mrb[0].mxu0
      %v905 = vadd.f32 0.0, %v904
      %v906 = vpop.f32.mrb[0].mxu0
      %v907 = vadd.f32 0.0, %v906
      %908 = vmatprep.mubr.bf16.mxu0 0
      %909 = vmatmul.mubr.bf16.gmra.mrb[0].mxu0 %v864
      %v910 = vpop.f32.mrb[0].mxu0
      %v911 = vadd.f32 0.0, %v910
      %v912 = vpop.f32.mrb[0].mxu0
      %v913 = vadd.f32 0.0, %v912
      %v914 = vpop.f32.mrb[0].mxu0
      %v915 = vadd.f32 0.0, %v914
      %v916 = vpop.f32.mrb[0].mxu0
      %v917 = vadd.f32 0.0, %v916
      %918 = vdwg.mxu0
      %v919 = vadd.f32 %v835, %v901
      %v920 = vadd.f32 %v836, %v903
      %v921 = vadd.f32 %v837, %v905
      %v922 = vadd.f32 %v838, %v907
      %v923 = vadd.f32 %v839, %v911
      %v924 = vadd.f32 %v840, %v913
      %v925 = vadd.f32 %v841, %v915
      %v926 = vadd.f32 %v842, %v917
      %927 = vrot.lane.b32.xlu0 %v401, 127
      %v928 = vpop.permute.xlu0 %927
      %929 = vrot.lane.b32.xlu0 %v403, 127
      %v930 = vpop.permute.xlu0 %929
      %931 = vrot.lane.b32.xlu0 %v402, 127
      %v932 = vpop.permute.xlu0 %931
      %933 = vrot.lane.b32.xlu0 %v404, 127
      %v934 = vpop.permute.xlu0 %933
      %v935 = vsel %vm646, %v928, %v932
      %v936 = vsel %vm646, %v930, %v934
      %v937 = vsel %vm646, %v932, %v928
      %v938 = vsel %vm646, %v934, %v930
      %v939 = vsel %vm653, %v401, %v935
      %v940 = vsel %vm654, %v402, %v937
      %v941 = vsel %vm653, %v403, %v936
      %v942 = vsel %vm654, %v404, %v938
      %s943 = scalar_lea.vmem %s1, 80
      %v944 = vld [vmem:[%s943] sm:$0xf]
      %v945 = vld [vmem:[%s943 + $0x4] sm:$0xf]
      %v946 = vld [vmem:[%s943 + $0x8] sm:$0xf]
      %v947 = vld [vmem:[%s943 + $0xc] sm:$0xf]
      %v948 = vpack.c.bf16 %v941, %v939
      %v949 = vpack.c.bf16 %v942, %v940
      %v954 = vunpack.c.l.b16 %v944
      %v955 = vunpack.c.l.b16 %v945
      %v956 = vunpack.c.l.b16 %v946
      %v957 = vunpack.c.l.b16 %v947
      %v958 = vpack.c.b16 %v955, %v954
      %v959 = vpack.c.b16 %v957, %v956
      %v961 = vsel %vm486, %v958, 0
      %v964 = vsel %vm486, %v959, 0
      %966 = vmatprep.subr.bf16.mxu0 %v949
      %967 = vmatpush1.bf16.msra.mxu0 %v948
      %968 = vmatprep.subr.bf16.mxu0 0
      %969 = vmatpush1.bf16.msra.mxu0 0
      %970 = vmatprep.subr.bf16.mxu0 0
      %971 = vmatpush1.bf16.msra.mxu0 0
      %972 = vmatprep.subr.bf16.mxu0 0
      %973 = vmatpush1.bf16.msra.mxu0 0
      %974 = vmatprep.subr.bf16.mxu0 0
      %975 = vmatpush1.bf16.msra.mxu0 0
      %976 = vmatprep.subr.bf16.mxu0 0
      %977 = vmatpush1.bf16.msra.mxu0 0
      %978 = vmatprep.subr.bf16.mxu0 0
      %979 = vmatpush1.bf16.msra.mxu0 0
      %980 = vmatprep.subr.bf16.mxu0 0
      %981 = vmatpush1.bf16.msra.mxu0 0
      %982 = vmatprep.subr.bf16.mxu0 0
      %983 = vmatpush1.bf16.msra.mxu0 0
      %984 = vmatprep.subr.bf16.mxu0 0
      %985 = vmatpush1.bf16.msra.mxu0 0
      %986 = vmatprep.subr.bf16.mxu0 0
      %987 = vmatpush1.bf16.msra.mxu0 0
      %988 = vmatprep.subr.bf16.mxu0 0
      %989 = vmatpush1.bf16.msra.mxu0 0
      %990 = vmatprep.subr.bf16.mxu0 0
      %991 = vmatpush1.bf16.msra.mxu0 0
      %992 = vmatprep.subr.bf16.mxu0 0
      %993 = vmatpush1.bf16.msra.mxu0 0
      %994 = vmatprep.subr.bf16.mxu0 0
      %995 = vmatpush1.bf16.msra.mxu0 0
      %996 = vmatprep.subr.bf16.mxu0 0
      %997 = vmatpush1.bf16.msra.mxu0 0
      %998 = vmatprep.mubr.bf16.mxu0 0
      %999 = vmatmul.mubr.bf16.gmra.mrb[0].mxu0 %v961
      %v1000 = vpop.f32.mrb[0].mxu0
      %v1001 = vadd.f32 0.0, %v1000
      %v1002 = vpop.f32.mrb[0].mxu0
      %v1003 = vadd.f32 0.0, %v1002
      %v1004 = vpop.f32.mrb[0].mxu0
      %v1005 = vadd.f32 0.0, %v1004
      %v1006 = vpop.f32.mrb[0].mxu0
      %v1007 = vadd.f32 0.0, %v1006
      %1008 = vmatprep.mubr.bf16.mxu0 0
      %1009 = vmatmul.mubr.bf16.gmra.mrb[0].mxu0 %v964
      %v1010 = vpop.f32.mrb[0].mxu0
      %v1011 = vadd.f32 0.0, %v1010
      %v1012 = vpop.f32.mrb[0].mxu0
      %v1013 = vadd.f32 0.0, %v1012
      %v1014 = vpop.f32.mrb[0].mxu0
      %v1015 = vadd.f32 0.0, %v1014
      %v1016 = vpop.f32.mrb[0].mxu0
      %v1017 = vadd.f32 0.0, %v1016
      %1018 = vdwg.mxu0
      %v1019 = vadd.f32 %v919, %v1001
      %v1020 = vadd.f32 %v920, %v1003
      %v1021 = vadd.f32 %v921, %v1005
      %v1022 = vadd.f32 %v922, %v1007
      %v1023 = vadd.f32 %v923, %v1011
      %v1024 = vadd.f32 %v924, %v1013
      %v1025 = vadd.f32 %v925, %v1015
      %v1026 = vadd.f32 %v926, %v1017
      %1027 = vrot.lane.b32.xlu0 %v401, 112
      %v1028 = vpop.permute.xlu0 %1027
      %1029 = vrot.lane.b32.xlu0 %v403, 112
      %v1030 = vpop.permute.xlu0 %1029
      %1031 = vrot.lane.b32.xlu0 %v402, 112
      %v1032 = vpop.permute.xlu0 %1031
      %1033 = vrot.lane.b32.xlu0 %v404, 112
      %v1034 = vpop.permute.xlu0 %1033
      %vm1035 = vcmp.lt.s32.totalorder %v389, 112
      %v1036 = vsel %vm1035, %v1028, %v1032
      %v1037 = vsel %vm1035, %v1030, %v1034
      %v1038 = vsel %vm1035, %v1032, %v1028
      %v1039 = vsel %vm1035, %v1034, %v1030
      %v1040 = vsel %vm399, 1, 0
      %v1041 = vsel %vm400, 1, 0
      %vm1042 = vcmp.eq.s32.totalorder %v1040, 1
      %vm1043 = vcmp.eq.s32.totalorder %v1041, 1
      %v1044 = vsel %vm1042, %v401, %v1036
      %v1045 = vsel %vm1043, %v402, %v1038
      %v1046 = vsel %vm1042, %v403, %v1037
      %v1047 = vsel %vm1043, %v404, %v1039
      %1048 = vrot.lane.b32.xlu0 %v1044, 1
      %v1049 = vpop.permute.xlu0 %1048
      %1050 = vrot.lane.b32.xlu0 %v1046, 1
      %v1051 = vpop.permute.xlu0 %1050
      %1052 = vrot.lane.b32.xlu0 %v1045, 1
      %v1053 = vpop.permute.xlu0 %1052
      %1054 = vrot.lane.b32.xlu0 %v1047, 1
      %v1055 = vpop.permute.xlu0 %1054
      %v1056 = vsel %vm457, %v1049, %v1053
      %v1057 = vsel %vm457, %v1051, %v1055
      %v1058 = vsel %vm457, %v1053, %v1049
      %v1059 = vsel %vm457, %v1055, %v1051
      %v1060 = vsel %vm464, %v1044, %v1058
      %v1061 = vsel %vm465, %v1045, %v1056
      %v1062 = vsel %vm464, %v1046, %v1059
      %v1063 = vsel %vm465, %v1047, %v1057
      %s1064 = scalar_lea.vmem %s1, 96
      %v1065 = vld [vmem:[%s1064] sm:$0xf]
      %v1066 = vld [vmem:[%s1064 + $0x4] sm:$0xf]
      %v1067 = vld [vmem:[%s1064 + $0x8] sm:$0xf]
      %v1068 = vld [vmem:[%s1064 + $0xc] sm:$0xf]
      %v1069 = vpack.c.bf16 %v1062, %v1060
      %v1070 = vpack.c.bf16 %v1063, %v1061
      %v1075 = vunpack.c.l.b16 %v1065
      %v1076 = vunpack.c.l.b16 %v1066
      %v1077 = vunpack.c.l.b16 %v1067
      %v1078 = vunpack.c.l.b16 %v1068
      %v1079 = vpack.c.b16 %v1076, %v1075
      %v1080 = vpack.c.b16 %v1078, %v1077
      %v1082 = vsel %vm486, %v1079, 0
      %v1085 = vsel %vm486, %v1080, 0
      %1087 = vmatprep.subr.bf16.mxu0 %v1070
      %1088 = vmatpush1.bf16.msra.mxu0 %v1069
      %1089 = vmatprep.subr.bf16.mxu0 0
      %1090 = vmatpush1.bf16.msra.mxu0 0
      %1091 = vmatprep.subr.bf16.mxu0 0
      %1092 = vmatpush1.bf16.msra.mxu0 0
      %1093 = vmatprep.subr.bf16.mxu0 0
      %1094 = vmatpush1.bf16.msra.mxu0 0
      %1095 = vmatprep.subr.bf16.mxu0 0
      %1096 = vmatpush1.bf16.msra.mxu0 0
      %1097 = vmatprep.subr.bf16.mxu0 0
      %1098 = vmatpush1.bf16.msra.mxu0 0
      %1099 = vmatprep.subr.bf16.mxu0 0
      %1100 = vmatpush1.bf16.msra.mxu0 0
      %1101 = vmatprep.subr.bf16.mxu0 0
      %1102 = vmatpush1.bf16.msra.mxu0 0
      %1103 = vmatprep.subr.bf16.mxu0 0
      %1104 = vmatpush1.bf16.msra.mxu0 0
      %1105 = vmatprep.subr.bf16.mxu0 0
      %1106 = vmatpush1.bf16.msra.mxu0 0
      %1107 = vmatprep.subr.bf16.mxu0 0
      %1108 = vmatpush1.bf16.msra.mxu0 0
      %1109 = vmatprep.subr.bf16.mxu0 0
      %1110 = vmatpush1.bf16.msra.mxu0 0
      %1111 = vmatprep.subr.bf16.mxu0 0
      %1112 = vmatpush1.bf16.msra.mxu0 0
      %1113 = vmatprep.subr.bf16.mxu0 0
      %1114 = vmatpush1.bf16.msra.mxu0 0
      %1115 = vmatprep.subr.bf16.mxu0 0
      %1116 = vmatpush1.bf16.msra.mxu0 0
      %1117 = vmatprep.subr.bf16.mxu0 0
      %1118 = vmatpush1.bf16.msra.mxu0 0
      %1119 = vmatprep.mubr.bf16.mxu0 0
      %1120 = vmatmul.mubr.bf16.gmra.mrb[0].mxu0 %v1082
      %v1121 = vpop.f32.mrb[0].mxu0
      %v1122 = vadd.f32 0.0, %v1121
      %v1123 = vpop.f32.mrb[0].mxu0
      %v1124 = vadd.f32 0.0, %v1123
      %v1125 = vpop.f32.mrb[0].mxu0
      %v1126 = vadd.f32 0.0, %v1125
      %v1127 = vpop.f32.mrb[0].mxu0
      %v1128 = vadd.f32 0.0, %v1127
      %1129 = vmatprep.mubr.bf16.mxu0 0
      %1130 = vmatmul.mubr.bf16.gmra.mrb[0].mxu0 %v1085
      %v1131 = vpop.f32.mrb[0].mxu0
      %v1132 = vadd.f32 0.0, %v1131
      %v1133 = vpop.f32.mrb[0].mxu0
      %v1134 = vadd.f32 0.0, %v1133
      %v1135 = vpop.f32.mrb[0].mxu0
      %v1136 = vadd.f32 0.0, %v1135
      %v1137 = vpop.f32.mrb[0].mxu0
      %v1138 = vadd.f32 0.0, %v1137
      %1139 = vdwg.mxu0
      %v1140 = vadd.f32 %v1019, %v1122
      %v1141 = vadd.f32 %v1020, %v1124
      %v1142 = vadd.f32 %v1021, %v1126
      %v1143 = vadd.f32 %v1022, %v1128
      %v1144 = vadd.f32 %v1023, %v1132
      %v1145 = vadd.f32 %v1024, %v1134
      %v1146 = vadd.f32 %v1025, %v1136
      %v1147 = vadd.f32 %v1026, %v1138
      %s1148 = scalar_lea.vmem %s1, 112
      %v1149 = vld [vmem:[%s1148] sm:$0xf]
      %v1150 = vld [vmem:[%s1148 + $0x4] sm:$0xf]
      %v1151 = vld [vmem:[%s1148 + $0x8] sm:$0xf]
      %v1152 = vld [vmem:[%s1148 + $0xc] sm:$0xf]
      %v1153 = vpack.c.bf16 %v1046, %v1044
      %v1154 = vpack.c.bf16 %v1047, %v1045
      %v1159 = vunpack.c.l.b16 %v1149
      %v1160 = vunpack.c.l.b16 %v1150
      %v1161 = vunpack.c.l.b16 %v1151
      %v1162 = vunpack.c.l.b16 %v1152
      %v1163 = vpack.c.b16 %v1160, %v1159
      %v1164 = vpack.c.b16 %v1162, %v1161
      %v1166 = vsel %vm486, %v1163, 0
      %v1169 = vsel %vm486, %v1164, 0
      %1171 = vmatprep.subr.bf16.mxu0 %v1154
      %1172 = vmatpush1.bf16.msra.mxu0 %v1153
      %1173 = vmatprep.subr.bf16.mxu0 0
      %1174 = vmatpush1.bf16.msra.mxu0 0
      %1175 = vmatprep.subr.bf16.mxu0 0
      %1176 = vmatpush1.bf16.msra.mxu0 0
      %1177 = vmatprep.subr.bf16.mxu0 0
      %1178 = vmatpush1.bf16.msra.mxu0 0
      %1179 = vmatprep.subr.bf16.mxu0 0
      %1180 = vmatpush1.bf16.msra.mxu0 0
      %1181 = vmatprep.subr.bf16.mxu0 0
      %1182 = vmatpush1.bf16.msra.mxu0 0
      %1183 = vmatprep.subr.bf16.mxu0 0
      %1184 = vmatpush1.bf16.msra.mxu0 0
      %1185 = vmatprep.subr.bf16.mxu0 0
      %1186 = vmatpush1.bf16.msra.mxu0 0
      %1187 = vmatprep.subr.bf16.mxu0 0
      %1188 = vmatpush1.bf16.msra.mxu0 0
      %1189 = vmatprep.subr.bf16.mxu0 0
      %1190 = vmatpush1.bf16.msra.mxu0 0
      %1191 = vmatprep.subr.bf16.mxu0 0
      %1192 = vmatpush1.bf16.msra.mxu0 0
      %1193 = vmatprep.subr.bf16.mxu0 0
      %1194 = vmatpush1.bf16.msra.mxu0 0
      %1195 = vmatprep.subr.bf16.mxu0 0
      %1196 = vmatpush1.bf16.msra.mxu0 0
      %1197 = vmatprep.subr.bf16.mxu0 0
      %1198 = vmatpush1.bf16.msra.mxu0 0
      %1199 = vmatprep.subr.bf16.mxu0 0
      %1200 = vmatpush1.bf16.msra.mxu0 0
      %1201 = vmatprep.subr.bf16.mxu0 0
      %1202 = vmatpush1.bf16.msra.mxu0 0
      %1203 = vmatprep.mubr.bf16.mxu0 0
      %1204 = vmatmul.mubr.bf16.gmra.mrb[0].mxu0 %v1166
      %v1205 = vpop.f32.mrb[0].mxu0
      %v1206 = vadd.f32 0.0, %v1205
      %v1207 = vpop.f32.mrb[0].mxu0
      %v1208 = vadd.f32 0.0, %v1207
      %v1209 = vpop.f32.mrb[0].mxu0
      %v1210 = vadd.f32 0.0, %v1209
      %v1211 = vpop.f32.mrb[0].mxu0
      %v1212 = vadd.f32 0.0, %v1211
      %1213 = vmatprep.mubr.bf16.mxu0 0
      %1214 = vmatmul.mubr.bf16.gmra.mrb[0].mxu0 %v1169
      %v1215 = vpop.f32.mrb[0].mxu0
      %v1216 = vadd.f32 0.0, %v1215
      %v1217 = vpop.f32.mrb[0].mxu0
      %v1218 = vadd.f32 0.0, %v1217
      %v1219 = vpop.f32.mrb[0].mxu0
      %v1220 = vadd.f32 0.0, %v1219
      %v1221 = vpop.f32.mrb[0].mxu0
      %v1222 = vadd.f32 0.0, %v1221
      %1223 = vdwg.mxu0
      %v1224 = vadd.f32 %v1140, %v1206
      %v1225 = vadd.f32 %v1141, %v1208
      %v1226 = vadd.f32 %v1142, %v1210
      %v1227 = vadd.f32 %v1143, %v1212
      %v1228 = vadd.f32 %v1144, %v1216
      %v1229 = vadd.f32 %v1145, %v1218
      %v1230 = vadd.f32 %v1146, %v1220
      %v1231 = vadd.f32 %v1147, %v1222
      %1232 = vrot.lane.b32.xlu0 %v1044, 127
      %v1233 = vpop.permute.xlu0 %1232
      %1234 = vrot.lane.b32.xlu0 %v1046, 127
      %v1235 = vpop.permute.xlu0 %1234
      %1236 = vrot.lane.b32.xlu0 %v1045, 127
      %v1237 = vpop.permute.xlu0 %1236
      %1238 = vrot.lane.b32.xlu0 %v1047, 127
      %v1239 = vpop.permute.xlu0 %1238
      %v1240 = vsel %vm646, %v1233, %v1237
      %v1241 = vsel %vm646, %v1235, %v1239
      %v1242 = vsel %vm646, %v1237, %v1233
      %v1243 = vsel %vm646, %v1239, %v1235
      %v1244 = vsel %vm653, %v1044, %v1240
      %v1245 = vsel %vm654, %v1045, %v1242
      %v1246 = vsel %vm653, %v1046, %v1241
      %v1247 = vsel %vm654, %v1047, %v1243
      %s1248 = scalar_lea.vmem %s1, 128
      %v1249 = vld [vmem:[%s1248] sm:$0xf]
      %v1250 = vld [vmem:[%s1248 + $0x4] sm:$0xf]
      %v1251 = vld [vmem:[%s1248 + $0x8] sm:$0xf]
      %v1252 = vld [vmem:[%s1248 + $0xc] sm:$0xf]
      %v1253 = vpack.c.bf16 %v1246, %v1244
      %v1254 = vpack.c.bf16 %v1247, %v1245
      %v1259 = vunpack.c.l.b16 %v1249
      %v1260 = vunpack.c.l.b16 %v1250
      %v1261 = vunpack.c.l.b16 %v1251
      %v1262 = vunpack.c.l.b16 %v1252
      %v1263 = vpack.c.b16 %v1260, %v1259
      %v1264 = vpack.c.b16 %v1262, %v1261
      %v1266 = vsel %vm486, %v1263, 0
      %v1269 = vsel %vm486, %v1264, 0
      %1271 = vmatprep.subr.bf16.mxu0 %v1254
      %1272 = vmatpush1.bf16.msra.mxu0 %v1253
      %1273 = vmatprep.subr.bf16.mxu0 0
      %1274 = vmatpush1.bf16.msra.mxu0 0
      %1275 = vmatprep.subr.bf16.mxu0 0
      %1276 = vmatpush1.bf16.msra.mxu0 0
      %1277 = vmatprep.subr.bf16.mxu0 0
      %1278 = vmatpush1.bf16.msra.mxu0 0
      %1279 = vmatprep.subr.bf16.mxu0 0
      %1280 = vmatpush1.bf16.msra.mxu0 0
      %1281 = vmatprep.subr.bf16.mxu0 0
      %1282 = vmatpush1.bf16.msra.mxu0 0
      %1283 = vmatprep.subr.bf16.mxu0 0
      %1284 = vmatpush1.bf16.msra.mxu0 0
      %1285 = vmatprep.subr.bf16.mxu0 0
      %1286 = vmatpush1.bf16.msra.mxu0 0
      %1287 = vmatprep.subr.bf16.mxu0 0
      %1288 = vmatpush1.bf16.msra.mxu0 0
      %1289 = vmatprep.subr.bf16.mxu0 0
      %1290 = vmatpush1.bf16.msra.mxu0 0
      %1291 = vmatprep.subr.bf16.mxu0 0
      %1292 = vmatpush1.bf16.msra.mxu0 0
      %1293 = vmatprep.subr.bf16.mxu0 0
      %1294 = vmatpush1.bf16.msra.mxu0 0
      %1295 = vmatprep.subr.bf16.mxu0 0
      %1296 = vmatpush1.bf16.msra.mxu0 0
      %1297 = vmatprep.subr.bf16.mxu0 0
      %1298 = vmatpush1.bf16.msra.mxu0 0
      %1299 = vmatprep.subr.bf16.mxu0 0
      %1300 = vmatpush1.bf16.msra.mxu0 0
      %1301 = vmatprep.subr.bf16.mxu0 0
      %1302 = vmatpush1.bf16.msra.mxu0 0
      %1303 = vmatprep.mubr.bf16.mxu0 0
      %1304 = vmatmul.mubr.bf16.gmra.mrb[0].mxu0 %v1266
      %v1305 = vpop.f32.mrb[0].mxu0
      %v1306 = vadd.f32 0.0, %v1305
      %v1307 = vpop.f32.mrb[0].mxu0
      %v1308 = vadd.f32 0.0, %v1307
      %v1309 = vpop.f32.mrb[0].mxu0
      %v1310 = vadd.f32 0.0, %v1309
      %v1311 = vpop.f32.mrb[0].mxu0
      %v1312 = vadd.f32 0.0, %v1311
      %1313 = vmatprep.mubr.bf16.mxu0 0
      %1314 = vmatmul.mubr.bf16.gmra.mrb[0].mxu0 %v1269
      %v1315 = vpop.f32.mrb[0].mxu0
      %v1316 = vadd.f32 0.0, %v1315
      %v1317 = vpop.f32.mrb[0].mxu0
      %v1318 = vadd.f32 0.0, %v1317
      %v1319 = vpop.f32.mrb[0].mxu0
      %v1320 = vadd.f32 0.0, %v1319
      %v1321 = vpop.f32.mrb[0].mxu0
      %v1322 = vadd.f32 0.0, %v1321
      %1323 = vdwg.mxu0
      %v1324 = vadd.f32 %v1224, %v1306
      %v1325 = vadd.f32 %v1225, %v1308
      %v1326 = vadd.f32 %v1226, %v1310
      %v1327 = vadd.f32 %v1227, %v1312
      %v1328 = vadd.f32 %v1228, %v1316
      %v1329 = vadd.f32 %v1229, %v1318
      %v1330 = vadd.f32 %v1230, %v1320
      %v1331 = vadd.f32 %v1231, %v1322
      %v1332 = vld [vmem:[%s4] sm:$0xff]
      %v1333 = vld [vmem:[%s4 + $0x8] sm:$0xff]
      %v1334 = vld [vmem:[%s4 + $0x10] sm:$0xff]
      %v1335 = vld [vmem:[%s4 + $0x18] sm:$0xff]
      %v1336 = vld [vmem:[%s4 + $0x20] sm:$0xff]
      %v1337 = vld [vmem:[%s4 + $0x28] sm:$0xff]
      %v1338 = vld [vmem:[%s4 + $0x30] sm:$0xff]
      %v1339 = vld [vmem:[%s4 + $0x38] sm:$0xff]
      %1341 = vset.pattern.permute.xlu0 0
      %1342 = vperm.xlu0 %1341, %v1332
      %v1343 = vpop.permute.xlu0 %1342
      %1346 = vset.pattern.permute.xlu0 0
      %1347 = vperm.xlu0 %1346, %v1333
      %v1348 = vpop.permute.xlu0 %1347
      %1351 = vset.pattern.permute.xlu0 0
      %1352 = vperm.xlu0 %1351, %v1334
      %v1353 = vpop.permute.xlu0 %1352
      %1356 = vset.pattern.permute.xlu0 0
      %1357 = vperm.xlu0 %1356, %v1335
      %v1358 = vpop.permute.xlu0 %1357
      %1361 = vset.pattern.permute.xlu0 0
      %1362 = vperm.xlu0 %1361, %v1336
      %v1363 = vpop.permute.xlu0 %1362
      %1366 = vset.pattern.permute.xlu0 0
      %1367 = vperm.xlu0 %1366, %v1337
      %v1368 = vpop.permute.xlu0 %1367
      %1371 = vset.pattern.permute.xlu0 0
      %1372 = vperm.xlu0 %1371, %v1338
      %v1373 = vpop.permute.xlu0 %1372
      %1376 = vset.pattern.permute.xlu0 0
      %1377 = vperm.xlu0 %1376, %v1339
      %v1378 = vpop.permute.xlu0 %1377
      %1380 = vrot.lane.b32.xlu0 %v1324, 16
      %v1381 = vpop.permute.xlu0 %1380
      %1382 = vrot.lane.b32.xlu0 %v1326, 16
      %v1383 = vpop.permute.xlu0 %1382
      %1384 = vrot.lane.b32.xlu0 %v1328, 16
      %v1385 = vpop.permute.xlu0 %1384
      %1386 = vrot.lane.b32.xlu0 %v1330, 16
      %v1387 = vpop.permute.xlu0 %1386
      %1388 = vrot.lane.b32.xlu0 %v1325, 16
      %v1389 = vpop.permute.xlu0 %1388
      %1390 = vrot.lane.b32.xlu0 %v1327, 16
      %v1391 = vpop.permute.xlu0 %1390
      %1392 = vrot.lane.b32.xlu0 %v1329, 16
      %v1393 = vpop.permute.xlu0 %1392
      %1394 = vrot.lane.b32.xlu0 %v1331, 16
      %v1395 = vpop.permute.xlu0 %1394
      %v1396 = vsel %vm397, %v1381, %v1389
      %v1397 = vsel %vm397, %v1383, %v1391
      %v1398 = vsel %vm397, %v1385, %v1393
      %v1399 = vsel %vm397, %v1387, %v1395
      %v1400 = vsel %vm397, %v1389, %v1381
      %v1401 = vsel %vm397, %v1391, %v1383
      %v1402 = vsel %vm397, %v1393, %v1385
      %v1403 = vsel %vm397, %v1395, %v1387
      %v1404 = vsel %vm443, %v1324, %v1400
      %v1405 = vsel %vm444, %v1325, %v1396
      %v1406 = vsel %vm443, %v1326, %v1401
      %v1407 = vsel %vm444, %v1327, %v1397
      %v1408 = vsel %vm443, %v1328, %v1402
      %v1409 = vsel %vm444, %v1329, %v1398
      %v1410 = vsel %vm443, %v1330, %v1403
      %v1411 = vsel %vm444, %v1331, %v1399
      %1412 = vrot.lane.b32.xlu0 %v1404, 1
      %v1413 = vpop.permute.xlu0 %1412
      %1414 = vrot.lane.b32.xlu0 %v1406, 1
      %v1415 = vpop.permute.xlu0 %1414
      %1416 = vrot.lane.b32.xlu0 %v1408, 1
      %v1417 = vpop.permute.xlu0 %1416
      %1418 = vrot.lane.b32.xlu0 %v1410, 1
      %v1419 = vpop.permute.xlu0 %1418
      %1420 = vrot.lane.b32.xlu0 %v1405, 1
      %v1421 = vpop.permute.xlu0 %1420
      %1422 = vrot.lane.b32.xlu0 %v1407, 1
      %v1423 = vpop.permute.xlu0 %1422
      %1424 = vrot.lane.b32.xlu0 %v1409, 1
      %v1425 = vpop.permute.xlu0 %1424
      %1426 = vrot.lane.b32.xlu0 %v1411, 1
      %v1427 = vpop.permute.xlu0 %1426
      %v1428 = vsel %vm457, %v1413, %v1421
      %v1429 = vsel %vm457, %v1415, %v1423
      %v1430 = vsel %vm457, %v1417, %v1425
      %v1431 = vsel %vm457, %v1419, %v1427
      %v1432 = vsel %vm457, %v1421, %v1413
      %v1433 = vsel %vm457, %v1423, %v1415
      %v1434 = vsel %vm457, %v1425, %v1417
      %v1435 = vsel %vm457, %v1427, %v1419
      %v1436 = vsel %vm464, %v1404, %v1432
      %v1437 = vsel %vm465, %v1405, %v1428
      %v1438 = vsel %vm464, %v1406, %v1433
      %v1439 = vsel %vm465, %v1407, %v1429
      %v1440 = vsel %vm464, %v1408, %v1434
      %v1441 = vsel %vm465, %v1409, %v1430
      %v1442 = vsel %vm464, %v1410, %v1435
      %v1443 = vsel %vm465, %v1411, %v1431
      %v1444 = vld [vmem:[%s3] sm:$0xf]
      %v1445 = vld [vmem:[%s3 + $0x4] sm:$0xf]
      %v1446 = vld [vmem:[%s3 + $0x8] sm:$0xf]
      %v1447 = vld [vmem:[%s3 + $0xc] sm:$0xf]
      %v1448 = vld [vmem:[%s3 + $0x10] sm:$0xf]
      %v1449 = vld [vmem:[%s3 + $0x14] sm:$0xf]
      %v1450 = vld [vmem:[%s3 + $0x18] sm:$0xf]
      %v1451 = vld [vmem:[%s3 + $0x1c] sm:$0xf]
      %v1452 = vpack.c.bf16 %v1438, %v1436
      %v1453 = vpack.c.bf16 %v1439, %v1437
      %v1454 = vpack.c.bf16 %v1442, %v1440
      %v1455 = vpack.c.bf16 %v1443, %v1441
      %v1464 = vunpack.c.l.b16 %v1444
      %v1465 = vunpack.c.l.b16 %v1445
      %v1466 = vunpack.c.l.b16 %v1446
      %v1467 = vunpack.c.l.b16 %v1447
      %v1468 = vunpack.c.l.b16 %v1448
      %v1469 = vunpack.c.l.b16 %v1449
      %v1470 = vunpack.c.l.b16 %v1450
      %v1471 = vunpack.c.l.b16 %v1451
      %v1472 = vpack.c.b16 %v1465, %v1464
      %v1473 = vpack.c.b16 %v1467, %v1466
      %v1474 = vpack.c.b16 %v1469, %v1468
      %v1475 = vpack.c.b16 %v1471, %v1470
      %vm1476 = vcmask 261120
      %v1478 = vsel %vm1476, %v1472, 0
      %v1481 = vsel %vm1476, %v1473, 0
      %v1484 = vsel %vm1476, %v1474, 0
      %v1487 = vsel %vm1476, %v1475, 0
      %1489 = vmatprep.subr.bf16.mxu0 %v1453
      %1490 = vmatpush1.bf16.msra.mxu0 %v1452
      %1491 = vmatprep.subr.bf16.mxu0 %v1455
      %1492 = vmatpush1.bf16.msra.mxu0 %v1454
      %1493 = vmatprep.subr.bf16.mxu0 0
      %1494 = vmatpush1.bf16.msra.mxu0 0
      %1495 = vmatprep.subr.bf16.mxu0 0
      %1496 = vmatpush1.bf16.msra.mxu0 0
      %1497 = vmatprep.subr.bf16.mxu0 0
      %1498 = vmatpush1.bf16.msra.mxu0 0
      %1499 = vmatprep.subr.bf16.mxu0 0
      %1500 = vmatpush1.bf16.msra.mxu0 0
      %1501 = vmatprep.subr.bf16.mxu0 0
      %1502 = vmatpush1.bf16.msra.mxu0 0
      %1503 = vmatprep.subr.bf16.mxu0 0
      %1504 = vmatpush1.bf16.msra.mxu0 0
      %1505 = vmatprep.subr.bf16.mxu0 0
      %1506 = vmatpush1.bf16.msra.mxu0 0
      %1507 = vmatprep.subr.bf16.mxu0 0
      %1508 = vmatpush1.bf16.msra.mxu0 0
      %1509 = vmatprep.subr.bf16.mxu0 0
      %1510 = vmatpush1.bf16.msra.mxu0 0
      %1511 = vmatprep.subr.bf16.mxu0 0
      %1512 = vmatpush1.bf16.msra.mxu0 0
      %1513 = vmatprep.subr.bf16.mxu0 0
      %1514 = vmatpush1.bf16.msra.mxu0 0
      %1515 = vmatprep.subr.bf16.mxu0 0
      %1516 = vmatpush1.bf16.msra.mxu0 0
      %1517 = vmatprep.subr.bf16.mxu0 0
      %1518 = vmatpush1.bf16.msra.mxu0 0
      %1519 = vmatprep.subr.bf16.mxu0 0
      %1520 = vmatpush1.bf16.msra.mxu0 0
      %1521 = vmatprep.mubr.bf16.mxu0 0
      %1522 = vmatmul.mubr.bf16.gmra.mrb[0].mxu0 %v1478
      %v1523 = vpop.f32.mrb[0].mxu0
      %v1524 = vadd.f32 0.0, %v1523
      %v1525 = vpop.f32.mrb[0].mxu0
      %v1526 = vadd.f32 0.0, %v1525
      %v1527 = vpop.f32.mrb[0].mxu0
      %v1528 = vadd.f32 0.0, %v1527
      %v1529 = vpop.f32.mrb[0].mxu0
      %v1530 = vadd.f32 0.0, %v1529
      %1531 = vmatprep.mubr.bf16.mxu0 0
      %1532 = vmatmul.mubr.bf16.gmra.mrb[0].mxu0 %v1481
      %v1533 = vpop.f32.mrb[0].mxu0
      %v1534 = vadd.f32 0.0, %v1533
      %v1535 = vpop.f32.mrb[0].mxu0
      %v1536 = vadd.f32 0.0, %v1535
      %v1537 = vpop.f32.mrb[0].mxu0
      %v1538 = vadd.f32 0.0, %v1537
      %v1539 = vpop.f32.mrb[0].mxu0
      %v1540 = vadd.f32 0.0, %v1539
      %1541 = vmatprep.mubr.bf16.mxu0 0
      %1542 = vmatmul.mubr.bf16.gmra.mrb[0].mxu0 %v1484
      %v1543 = vpop.f32.mrb[0].mxu0
      %v1544 = vadd.f32 0.0, %v1543
      %v1545 = vpop.f32.mrb[0].mxu0
      %v1546 = vadd.f32 0.0, %v1545
      %v1547 = vpop.f32.mrb[0].mxu0
      %v1548 = vadd.f32 0.0, %v1547
      %v1549 = vpop.f32.mrb[0].mxu0
      %v1550 = vadd.f32 0.0, %v1549
      %1551 = vmatprep.mubr.bf16.mxu0 0
      %1552 = vmatmul.mubr.bf16.gmra.mrb[0].mxu0 %v1487
      %v1553 = vpop.f32.mrb[0].mxu0
      %v1554 = vadd.f32 0.0, %v1553
      %v1555 = vpop.f32.mrb[0].mxu0
      %v1556 = vadd.f32 0.0, %v1555
      %v1557 = vpop.f32.mrb[0].mxu0
      %v1558 = vadd.f32 0.0, %v1557
      %v1559 = vpop.f32.mrb[0].mxu0
      %v1560 = vadd.f32 0.0, %v1559
      %1561 = vdwg.mxu0
      %v1562 = vadd.f32 %v1343, %v1524
      %v1563 = vadd.f32 %v1343, %v1526
      %v1564 = vadd.f32 %v1348, %v1528
      %v1565 = vadd.f32 %v1348, %v1530
      %v1566 = vadd.f32 %v1353, %v1534
      %v1567 = vadd.f32 %v1353, %v1536
      %v1568 = vadd.f32 %v1358, %v1538
      %v1569 = vadd.f32 %v1358, %v1540
      %v1570 = vadd.f32 %v1363, %v1544
      %v1571 = vadd.f32 %v1363, %v1546
      %v1572 = vadd.f32 %v1368, %v1548
      %v1573 = vadd.f32 %v1368, %v1550
      %v1574 = vadd.f32 %v1373, %v1554
      %v1575 = vadd.f32 %v1373, %v1556
      %v1576 = vadd.f32 %v1378, %v1558
      %v1577 = vadd.f32 %v1378, %v1560
      %s1578 = scalar_lea.vmem %s3, 32
      %v1579 = vld [vmem:[%s1578] sm:$0xf]
      %v1580 = vld [vmem:[%s1578 + $0x4] sm:$0xf]
      %v1581 = vld [vmem:[%s1578 + $0x8] sm:$0xf]
      %v1582 = vld [vmem:[%s1578 + $0xc] sm:$0xf]
      %v1583 = vld [vmem:[%s1578 + $0x10] sm:$0xf]
      %v1584 = vld [vmem:[%s1578 + $0x14] sm:$0xf]
      %v1585 = vld [vmem:[%s1578 + $0x18] sm:$0xf]
      %v1586 = vld [vmem:[%s1578 + $0x1c] sm:$0xf]
      %v1587 = vpack.c.bf16 %v1406, %v1404
      %v1588 = vpack.c.bf16 %v1407, %v1405
      %v1589 = vpack.c.bf16 %v1410, %v1408
      %v1590 = vpack.c.bf16 %v1411, %v1409
      %v1599 = vunpack.c.l.b16 %v1579
      %v1600 = vunpack.c.l.b16 %v1580
      %v1601 = vunpack.c.l.b16 %v1581
      %v1602 = vunpack.c.l.b16 %v1582
      %v1603 = vunpack.c.l.b16 %v1583
      %v1604 = vunpack.c.l.b16 %v1584
      %v1605 = vunpack.c.l.b16 %v1585
      %v1606 = vunpack.c.l.b16 %v1586
      %v1607 = vpack.c.b16 %v1600, %v1599
      %v1608 = vpack.c.b16 %v1602, %v1601
      %v1609 = vpack.c.b16 %v1604, %v1603
      %v1610 = vpack.c.b16 %v1606, %v1605
      %v1612 = vsel %vm1476, %v1607, 0
      %v1615 = vsel %vm1476, %v1608, 0
      %v1618 = vsel %vm1476, %v1609, 0
      %v1621 = vsel %vm1476, %v1610, 0
      %1623 = vmatprep.subr.bf16.mxu0 %v1588
      %1624 = vmatpush1.bf16.msra.mxu0 %v1587
      %1625 = vmatprep.subr.bf16.mxu0 %v1590
      %1626 = vmatpush1.bf16.msra.mxu0 %v1589
      %1627 = vmatprep.subr.bf16.mxu0 0
      %1628 = vmatpush1.bf16.msra.mxu0 0
      %1629 = vmatprep.subr.bf16.mxu0 0
      %1630 = vmatpush1.bf16.msra.mxu0 0
      %1631 = vmatprep.subr.bf16.mxu0 0
      %1632 = vmatpush1.bf16.msra.mxu0 0
      %1633 = vmatprep.subr.bf16.mxu0 0
      %1634 = vmatpush1.bf16.msra.mxu0 0
      %1635 = vmatprep.subr.bf16.mxu0 0
      %1636 = vmatpush1.bf16.msra.mxu0 0
      %1637 = vmatprep.subr.bf16.mxu0 0
      %1638 = vmatpush1.bf16.msra.mxu0 0
      %1639 = vmatprep.subr.bf16.mxu0 0
      %1640 = vmatpush1.bf16.msra.mxu0 0
      %1641 = vmatprep.subr.bf16.mxu0 0
      %1642 = vmatpush1.bf16.msra.mxu0 0
      %1643 = vmatprep.subr.bf16.mxu0 0
      %1644 = vmatpush1.bf16.msra.mxu0 0
      %1645 = vmatprep.subr.bf16.mxu0 0
      %1646 = vmatpush1.bf16.msra.mxu0 0
      %1647 = vmatprep.subr.bf16.mxu0 0
      %1648 = vmatpush1.bf16.msra.mxu0 0
      %1649 = vmatprep.subr.bf16.mxu0 0
      %1650 = vmatpush1.bf16.msra.mxu0 0
      %1651 = vmatprep.subr.bf16.mxu0 0
      %1652 = vmatpush1.bf16.msra.mxu0 0
      %1653 = vmatprep.subr.bf16.mxu0 0
      %1654 = vmatpush1.bf16.msra.mxu0 0
      %1655 = vmatprep.mubr.bf16.mxu0 0
      %1656 = vmatmul.mubr.bf16.gmra.mrb[0].mxu0 %v1612
      %v1657 = vpop.f32.mrb[0].mxu0
      %v1658 = vadd.f32 0.0, %v1657
      %v1659 = vpop.f32.mrb[0].mxu0
      %v1660 = vadd.f32 0.0, %v1659
      %v1661 = vpop.f32.mrb[0].mxu0
      %v1662 = vadd.f32 0.0, %v1661
      %v1663 = vpop.f32.mrb[0].mxu0
      %v1664 = vadd.f32 0.0, %v1663
      %1665 = vmatprep.mubr.bf16.mxu0 0
      %1666 = vmatmul.mubr.bf16.gmra.mrb[0].mxu0 %v1615
      %v1667 = vpop.f32.mrb[0].mxu0
      %v1668 = vadd.f32 0.0, %v1667
      %v1669 = vpop.f32.mrb[0].mxu0
      %v1670 = vadd.f32 0.0, %v1669
      %v1671 = vpop.f32.mrb[0].mxu0
      %v1672 = vadd.f32 0.0, %v1671
      %v1673 = vpop.f32.mrb[0].mxu0
      %v1674 = vadd.f32 0.0, %v1673
      %1675 = vmatprep.mubr.bf16.mxu0 0
      %1676 = vmatmul.mubr.bf16.gmra.mrb[0].mxu0 %v1618
      %v1677 = vpop.f32.mrb[0].mxu0
      %v1678 = vadd.f32 0.0, %v1677
      %v1679 = vpop.f32.mrb[0].mxu0
      %v1680 = vadd.f32 0.0, %v1679
      %v1681 = vpop.f32.mrb[0].mxu0
      %v1682 = vadd.f32 0.0, %v1681
      %v1683 = vpop.f32.mrb[0].mxu0
      %v1684 = vadd.f32 0.0, %v1683
      %1685 = vmatprep.mubr.bf16.mxu0 0
      %1686 = vmatmul.mubr.bf16.gmra.mrb[0].mxu0 %v1621
      %v1687 = vpop.f32.mrb[0].mxu0
      %v1688 = vadd.f32 0.0, %v1687
      %v1689 = vpop.f32.mrb[0].mxu0
      %v1690 = vadd.f32 0.0, %v1689
      %v1691 = vpop.f32.mrb[0].mxu0
      %v1692 = vadd.f32 0.0, %v1691
      %v1693 = vpop.f32.mrb[0].mxu0
      %v1694 = vadd.f32 0.0, %v1693
      %1695 = vdwg.mxu0
      %v1696 = vadd.f32 %v1562, %v1658
      %v1697 = vadd.f32 %v1563, %v1660
      %v1698 = vadd.f32 %v1564, %v1662
      %v1699 = vadd.f32 %v1565, %v1664
      %v1700 = vadd.f32 %v1566, %v1668
      %v1701 = vadd.f32 %v1567, %v1670
      %v1702 = vadd.f32 %v1568, %v1672
      %v1703 = vadd.f32 %v1569, %v1674
      %v1704 = vadd.f32 %v1570, %v1678
      %v1705 = vadd.f32 %v1571, %v1680
      %v1706 = vadd.f32 %v1572, %v1682
      %v1707 = vadd.f32 %v1573, %v1684
      %v1708 = vadd.f32 %v1574, %v1688
      %v1709 = vadd.f32 %v1575, %v1690
      %v1710 = vadd.f32 %v1576, %v1692
      %v1711 = vadd.f32 %v1577, %v1694
      %1712 = vrot.lane.b32.xlu0 %v1404, 127
      %v1713 = vpop.permute.xlu0 %1712
      %1714 = vrot.lane.b32.xlu0 %v1406, 127
      %v1715 = vpop.permute.xlu0 %1714
      %1716 = vrot.lane.b32.xlu0 %v1408, 127
      %v1717 = vpop.permute.xlu0 %1716
      %1718 = vrot.lane.b32.xlu0 %v1410, 127
      %v1719 = vpop.permute.xlu0 %1718
      %1720 = vrot.lane.b32.xlu0 %v1405, 127
      %v1721 = vpop.permute.xlu0 %1720
      %1722 = vrot.lane.b32.xlu0 %v1407, 127
      %v1723 = vpop.permute.xlu0 %1722
      %1724 = vrot.lane.b32.xlu0 %v1409, 127
      %v1725 = vpop.permute.xlu0 %1724
      %1726 = vrot.lane.b32.xlu0 %v1411, 127
      %v1727 = vpop.permute.xlu0 %1726
      %v1728 = vsel %vm646, %v1713, %v1721
      %v1729 = vsel %vm646, %v1715, %v1723
      %v1730 = vsel %vm646, %v1717, %v1725
      %v1731 = vsel %vm646, %v1719, %v1727
      %v1732 = vsel %vm646, %v1721, %v1713
      %v1733 = vsel %vm646, %v1723, %v1715
      %v1734 = vsel %vm646, %v1725, %v1717
      %v1735 = vsel %vm646, %v1727, %v1719
      %v1736 = vsel %vm653, %v1404, %v1728
      %v1737 = vsel %vm654, %v1405, %v1732
      %v1738 = vsel %vm653, %v1406, %v1729
      %v1739 = vsel %vm654, %v1407, %v1733
      %v1740 = vsel %vm653, %v1408, %v1730
      %v1741 = vsel %vm654, %v1409, %v1734
      %v1742 = vsel %vm653, %v1410, %v1731
      %v1743 = vsel %vm654, %v1411, %v1735
      %s1744 = scalar_lea.vmem %s3, 64
      %v1745 = vld [vmem:[%s1744] sm:$0xf]
      %v1746 = vld [vmem:[%s1744 + $0x4] sm:$0xf]
      %v1747 = vld [vmem:[%s1744 + $0x8] sm:$0xf]
      %v1748 = vld [vmem:[%s1744 + $0xc] sm:$0xf]
      %v1749 = vld [vmem:[%s1744 + $0x10] sm:$0xf]
      %v1750 = vld [vmem:[%s1744 + $0x14] sm:$0xf]
      %v1751 = vld [vmem:[%s1744 + $0x18] sm:$0xf]
      %v1752 = vld [vmem:[%s1744 + $0x1c] sm:$0xf]
      %v1753 = vpack.c.bf16 %v1738, %v1736
      %v1754 = vpack.c.bf16 %v1739, %v1737
      %v1755 = vpack.c.bf16 %v1742, %v1740
      %v1756 = vpack.c.bf16 %v1743, %v1741
      %v1765 = vunpack.c.l.b16 %v1745
      %v1766 = vunpack.c.l.b16 %v1746
      %v1767 = vunpack.c.l.b16 %v1747
      %v1768 = vunpack.c.l.b16 %v1748
      %v1769 = vunpack.c.l.b16 %v1749
      %v1770 = vunpack.c.l.b16 %v1750
      %v1771 = vunpack.c.l.b16 %v1751
      %v1772 = vunpack.c.l.b16 %v1752
      %v1773 = vpack.c.b16 %v1766, %v1765
      %v1774 = vpack.c.b16 %v1768, %v1767
      %v1775 = vpack.c.b16 %v1770, %v1769
      %v1776 = vpack.c.b16 %v1772, %v1771
      %v1778 = vsel %vm1476, %v1773, 0
      %v1781 = vsel %vm1476, %v1774, 0
      %v1784 = vsel %vm1476, %v1775, 0
      %v1787 = vsel %vm1476, %v1776, 0
      %1789 = vmatprep.subr.bf16.mxu0 %v1754
      %1790 = vmatpush1.bf16.msra.mxu0 %v1753
      %1791 = vmatprep.subr.bf16.mxu0 %v1756
      %1792 = vmatpush1.bf16.msra.mxu0 %v1755
      %1793 = vmatprep.subr.bf16.mxu0 0
      %1794 = vmatpush1.bf16.msra.mxu0 0
      %1795 = vmatprep.subr.bf16.mxu0 0
      %1796 = vmatpush1.bf16.msra.mxu0 0
      %1797 = vmatprep.subr.bf16.mxu0 0
      %1798 = vmatpush1.bf16.msra.mxu0 0
      %1799 = vmatprep.subr.bf16.mxu0 0
      %1800 = vmatpush1.bf16.msra.mxu0 0
      %1801 = vmatprep.subr.bf16.mxu0 0
      %1802 = vmatpush1.bf16.msra.mxu0 0
      %1803 = vmatprep.subr.bf16.mxu0 0
      %1804 = vmatpush1.bf16.msra.mxu0 0
      %1805 = vmatprep.subr.bf16.mxu0 0
      %1806 = vmatpush1.bf16.msra.mxu0 0
      %1807 = vmatprep.subr.bf16.mxu0 0
      %1808 = vmatpush1.bf16.msra.mxu0 0
      %1809 = vmatprep.subr.bf16.mxu0 0
      %1810 = vmatpush1.bf16.msra.mxu0 0
      %1811 = vmatprep.subr.bf16.mxu0 0
      %1812 = vmatpush1.bf16.msra.mxu0 0
      %1813 = vmatprep.subr.bf16.mxu0 0
      %1814 = vmatpush1.bf16.msra.mxu0 0
      %1815 = vmatprep.subr.bf16.mxu0 0
      %1816 = vmatpush1.bf16.msra.mxu0 0
      %1817 = vmatprep.subr.bf16.mxu0 0
      %1818 = vmatpush1.bf16.msra.mxu0 0
      %1819 = vmatprep.subr.bf16.mxu0 0
      %1820 = vmatpush1.bf16.msra.mxu0 0
      %1821 = vmatprep.mubr.bf16.mxu0 0
      %1822 = vmatmul.mubr.bf16.gmra.mrb[0].mxu0 %v1778
      %v1823 = vpop.f32.mrb[0].mxu0
      %v1824 = vadd.f32 0.0, %v1823
      %v1825 = vpop.f32.mrb[0].mxu0
      %v1826 = vadd.f32 0.0, %v1825
      %v1827 = vpop.f32.mrb[0].mxu0
      %v1828 = vadd.f32 0.0, %v1827
      %v1829 = vpop.f32.mrb[0].mxu0
      %v1830 = vadd.f32 0.0, %v1829
      %1831 = vmatprep.mubr.bf16.mxu0 0
      %1832 = vmatmul.mubr.bf16.gmra.mrb[0].mxu0 %v1781
      %v1833 = vpop.f32.mrb[0].mxu0
      %v1834 = vadd.f32 0.0, %v1833
      %v1835 = vpop.f32.mrb[0].mxu0
      %v1836 = vadd.f32 0.0, %v1835
      %v1837 = vpop.f32.mrb[0].mxu0
      %v1838 = vadd.f32 0.0, %v1837
      %v1839 = vpop.f32.mrb[0].mxu0
      %v1840 = vadd.f32 0.0, %v1839
      %1841 = vmatprep.mubr.bf16.mxu0 0
      %1842 = vmatmul.mubr.bf16.gmra.mrb[0].mxu0 %v1784
      %v1843 = vpop.f32.mrb[0].mxu0
      %v1844 = vadd.f32 0.0, %v1843
      %v1845 = vpop.f32.mrb[0].mxu0
      %v1846 = vadd.f32 0.0, %v1845
      %v1847 = vpop.f32.mrb[0].mxu0
      %v1848 = vadd.f32 0.0, %v1847
      %v1849 = vpop.f32.mrb[0].mxu0
      %v1850 = vadd.f32 0.0, %v1849
      %1851 = vmatprep.mubr.bf16.mxu0 0
      %1852 = vmatmul.mubr.bf16.gmra.mrb[0].mxu0 %v1787
      %v1853 = vpop.f32.mrb[0].mxu0
      %v1854 = vadd.f32 0.0, %v1853
      %v1855 = vpop.f32.mrb[0].mxu0
      %v1856 = vadd.f32 0.0, %v1855
      %v1857 = vpop.f32.mrb[0].mxu0
      %v1858 = vadd.f32 0.0, %v1857
      %v1859 = vpop.f32.mrb[0].mxu0
      %v1860 = vadd.f32 0.0, %v1859
      %1861 = vdwg.mxu0
      %v1862 = vadd.f32 %v1696, %v1824
      %v1863 = vadd.f32 %v1697, %v1826
      %v1864 = vadd.f32 %v1698, %v1828
      %v1865 = vadd.f32 %v1699, %v1830
      %v1866 = vadd.f32 %v1700, %v1834
      %v1867 = vadd.f32 %v1701, %v1836
      %v1868 = vadd.f32 %v1702, %v1838
      %v1869 = vadd.f32 %v1703, %v1840
      %v1870 = vadd.f32 %v1704, %v1844
      %v1871 = vadd.f32 %v1705, %v1846
      %v1872 = vadd.f32 %v1706, %v1848
      %v1873 = vadd.f32 %v1707, %v1850
      %v1874 = vadd.f32 %v1708, %v1854
      %v1875 = vadd.f32 %v1709, %v1856
      %v1876 = vadd.f32 %v1710, %v1858
      %v1877 = vadd.f32 %v1711, %v1860
      %1878 = vrot.lane.b32.xlu0 %v1324, 1
      %v1879 = vpop.permute.xlu0 %1878
      %1880 = vrot.lane.b32.xlu0 %v1326, 1
      %v1881 = vpop.permute.xlu0 %1880
      %1882 = vrot.lane.b32.xlu0 %v1328, 1
      %v1883 = vpop.permute.xlu0 %1882
      %1884 = vrot.lane.b32.xlu0 %v1330, 1
      %v1885 = vpop.permute.xlu0 %1884
      %1886 = vrot.lane.b32.xlu0 %v1325, 1
      %v1887 = vpop.permute.xlu0 %1886
      %1888 = vrot.lane.b32.xlu0 %v1327, 1
      %v1889 = vpop.permute.xlu0 %1888
      %1890 = vrot.lane.b32.xlu0 %v1329, 1
      %v1891 = vpop.permute.xlu0 %1890
      %1892 = vrot.lane.b32.xlu0 %v1331, 1
      %v1893 = vpop.permute.xlu0 %1892
      %v1894 = vsel %vm457, %v1879, %v1887
      %v1895 = vsel %vm457, %v1881, %v1889
      %v1896 = vsel %vm457, %v1883, %v1891
      %v1897 = vsel %vm457, %v1885, %v1893
      %v1898 = vsel %vm457, %v1887, %v1879
      %v1899 = vsel %vm457, %v1889, %v1881
      %v1900 = vsel %vm457, %v1891, %v1883
      %v1901 = vsel %vm457, %v1893, %v1885
      %v1902 = vsel %vm464, %v1324, %v1898
      %v1903 = vsel %vm465, %v1325, %v1894
      %v1904 = vsel %vm464, %v1326, %v1899
      %v1905 = vsel %vm465, %v1327, %v1895
      %v1906 = vsel %vm464, %v1328, %v1900
      %v1907 = vsel %vm465, %v1329, %v1896
      %v1908 = vsel %vm464, %v1330, %v1901
      %v1909 = vsel %vm465, %v1331, %v1897
      %s1910 = scalar_lea.vmem %s3, 96
      %v1911 = vld [vmem:[%s1910] sm:$0xf]
      %v1912 = vld [vmem:[%s1910 + $0x4] sm:$0xf]
      %v1913 = vld [vmem:[%s1910 + $0x8] sm:$0xf]
      %v1914 = vld [vmem:[%s1910 + $0xc] sm:$0xf]
      %v1915 = vld [vmem:[%s1910 + $0x10] sm:$0xf]
      %v1916 = vld [vmem:[%s1910 + $0x14] sm:$0xf]
      %v1917 = vld [vmem:[%s1910 + $0x18] sm:$0xf]
      %v1918 = vld [vmem:[%s1910 + $0x1c] sm:$0xf]
      %v1919 = vpack.c.bf16 %v1904, %v1902
      %v1920 = vpack.c.bf16 %v1905, %v1903
      %v1921 = vpack.c.bf16 %v1908, %v1906
      %v1922 = vpack.c.bf16 %v1909, %v1907
      %v1931 = vunpack.c.l.b16 %v1911
      %v1932 = vunpack.c.l.b16 %v1912
      %v1933 = vunpack.c.l.b16 %v1913
      %v1934 = vunpack.c.l.b16 %v1914
      %v1935 = vunpack.c.l.b16 %v1915
      %v1936 = vunpack.c.l.b16 %v1916
      %v1937 = vunpack.c.l.b16 %v1917
      %v1938 = vunpack.c.l.b16 %v1918
      %v1939 = vpack.c.b16 %v1932, %v1931
      %v1940 = vpack.c.b16 %v1934, %v1933
      %v1941 = vpack.c.b16 %v1936, %v1935
      %v1942 = vpack.c.b16 %v1938, %v1937
      %v1944 = vsel %vm1476, %v1939, 0
      %v1947 = vsel %vm1476, %v1940, 0
      %v1950 = vsel %vm1476, %v1941, 0
      %v1953 = vsel %vm1476, %v1942, 0
      %1955 = vmatprep.subr.bf16.mxu0 %v1920
      %1956 = vmatpush1.bf16.msra.mxu0 %v1919
      %1957 = vmatprep.subr.bf16.mxu0 %v1922
      %1958 = vmatpush1.bf16.msra.mxu0 %v1921
      %1959 = vmatprep.subr.bf16.mxu0 0
      %1960 = vmatpush1.bf16.msra.mxu0 0
      %1961 = vmatprep.subr.bf16.mxu0 0
      %1962 = vmatpush1.bf16.msra.mxu0 0
      %1963 = vmatprep.subr.bf16.mxu0 0
      %1964 = vmatpush1.bf16.msra.mxu0 0
      %1965 = vmatprep.subr.bf16.mxu0 0
      %1966 = vmatpush1.bf16.msra.mxu0 0
      %1967 = vmatprep.subr.bf16.mxu0 0
      %1968 = vmatpush1.bf16.msra.mxu0 0
      %1969 = vmatprep.subr.bf16.mxu0 0
      %1970 = vmatpush1.bf16.msra.mxu0 0
      %1971 = vmatprep.subr.bf16.mxu0 0
      %1972 = vmatpush1.bf16.msra.mxu0 0
      %1973 = vmatprep.subr.bf16.mxu0 0
      %1974 = vmatpush1.bf16.msra.mxu0 0
      %1975 = vmatprep.subr.bf16.mxu0 0
      %1976 = vmatpush1.bf16.msra.mxu0 0
      %1977 = vmatprep.subr.bf16.mxu0 0
      %1978 = vmatpush1.bf16.msra.mxu0 0
      %1979 = vmatprep.subr.bf16.mxu0 0
      %1980 = vmatpush1.bf16.msra.mxu0 0
      %1981 = vmatprep.subr.bf16.mxu0 0
      %1982 = vmatpush1.bf16.msra.mxu0 0
      %1983 = vmatprep.subr.bf16.mxu0 0
      %1984 = vmatpush1.bf16.msra.mxu0 0
      %1985 = vmatprep.subr.bf16.mxu0 0
      %1986 = vmatpush1.bf16.msra.mxu0 0
      %1987 = vmatprep.mubr.bf16.mxu0 0
      %1988 = vmatmul.mubr.bf16.gmra.mrb[0].mxu0 %v1944
      %v1989 = vpop.f32.mrb[0].mxu0
      %v1990 = vadd.f32 0.0, %v1989
      %v1991 = vpop.f32.mrb[0].mxu0
      %v1992 = vadd.f32 0.0, %v1991
      %v1993 = vpop.f32.mrb[0].mxu0
      %v1994 = vadd.f32 0.0, %v1993
      %v1995 = vpop.f32.mrb[0].mxu0
      %v1996 = vadd.f32 0.0, %v1995
      %1997 = vmatprep.mubr.bf16.mxu0 0
      %1998 = vmatmul.mubr.bf16.gmra.mrb[0].mxu0 %v1947
      %v1999 = vpop.f32.mrb[0].mxu0
      %v2000 = vadd.f32 0.0, %v1999
      %v2001 = vpop.f32.mrb[0].mxu0
      %v2002 = vadd.f32 0.0, %v2001
      %v2003 = vpop.f32.mrb[0].mxu0
      %v2004 = vadd.f32 0.0, %v2003
      %v2005 = vpop.f32.mrb[0].mxu0
      %v2006 = vadd.f32 0.0, %v2005
      %2007 = vmatprep.mubr.bf16.mxu0 0
      %2008 = vmatmul.mubr.bf16.gmra.mrb[0].mxu0 %v1950
      %v2009 = vpop.f32.mrb[0].mxu0
      %v2010 = vadd.f32 0.0, %v2009
      %v2011 = vpop.f32.mrb[0].mxu0
      %v2012 = vadd.f32 0.0, %v2011
      %v2013 = vpop.f32.mrb[0].mxu0
      %v2014 = vadd.f32 0.0, %v2013
      %v2015 = vpop.f32.mrb[0].mxu0
      %v2016 = vadd.f32 0.0, %v2015
      %2017 = vmatprep.mubr.bf16.mxu0 0
      %2018 = vmatmul.mubr.bf16.gmra.mrb[0].mxu0 %v1953
      %v2019 = vpop.f32.mrb[0].mxu0
      %v2020 = vadd.f32 0.0, %v2019
      %v2021 = vpop.f32.mrb[0].mxu0
      %v2022 = vadd.f32 0.0, %v2021
      %v2023 = vpop.f32.mrb[0].mxu0
      %v2024 = vadd.f32 0.0, %v2023
      %v2025 = vpop.f32.mrb[0].mxu0
      %v2026 = vadd.f32 0.0, %v2025
      %2027 = vdwg.mxu0
      %v2028 = vadd.f32 %v1862, %v1990
      %v2029 = vadd.f32 %v1863, %v1992
      %v2030 = vadd.f32 %v1864, %v1994
      %v2031 = vadd.f32 %v1865, %v1996
      %v2032 = vadd.f32 %v1866, %v2000
      %v2033 = vadd.f32 %v1867, %v2002
      %v2034 = vadd.f32 %v1868, %v2004
      %v2035 = vadd.f32 %v1869, %v2006
      %v2036 = vadd.f32 %v1870, %v2010
      %v2037 = vadd.f32 %v1871, %v2012
      %v2038 = vadd.f32 %v1872, %v2014
      %v2039 = vadd.f32 %v1873, %v2016
      %v2040 = vadd.f32 %v1874, %v2020
      %v2041 = vadd.f32 %v1875, %v2022
      %v2042 = vadd.f32 %v1876, %v2024
      %v2043 = vadd.f32 %v1877, %v2026
      %s2044 = scalar_lea.vmem %s3, 128
      %v2045 = vld [vmem:[%s2044] sm:$0xf]
      %v2046 = vld [vmem:[%s2044 + $0x4] sm:$0xf]
      %v2047 = vld [vmem:[%s2044 + $0x8] sm:$0xf]
      %v2048 = vld [vmem:[%s2044 + $0xc] sm:$0xf]
      %v2049 = vld [vmem:[%s2044 + $0x10] sm:$0xf]
      %v2050 = vld [vmem:[%s2044 + $0x14] sm:$0xf]
      %v2051 = vld [vmem:[%s2044 + $0x18] sm:$0xf]
      %v2052 = vld [vmem:[%s2044 + $0x1c] sm:$0xf]
      %v2053 = vpack.c.bf16 %v1326, %v1324
      %v2054 = vpack.c.bf16 %v1327, %v1325
      %v2055 = vpack.c.bf16 %v1330, %v1328
      %v2056 = vpack.c.bf16 %v1331, %v1329
      %v2065 = vunpack.c.l.b16 %v2045
      %v2066 = vunpack.c.l.b16 %v2046
      %v2067 = vunpack.c.l.b16 %v2047
      %v2068 = vunpack.c.l.b16 %v2048
      %v2069 = vunpack.c.l.b16 %v2049
      %v2070 = vunpack.c.l.b16 %v2050
      %v2071 = vunpack.c.l.b16 %v2051
      %v2072 = vunpack.c.l.b16 %v2052
      %v2073 = vpack.c.b16 %v2066, %v2065
      %v2074 = vpack.c.b16 %v2068, %v2067
      %v2075 = vpack.c.b16 %v2070, %v2069
      %v2076 = vpack.c.b16 %v2072, %v2071
      %v2078 = vsel %vm1476, %v2073, 0
      %v2081 = vsel %vm1476, %v2074, 0
      %v2084 = vsel %vm1476, %v2075, 0
      %v2087 = vsel %vm1476, %v2076, 0
      %2089 = vmatprep.subr.bf16.mxu0 %v2054
      %2090 = vmatpush1.bf16.msra.mxu0 %v2053
      %2091 = vmatprep.subr.bf16.mxu0 %v2056
      %2092 = vmatpush1.bf16.msra.mxu0 %v2055
      %2093 = vmatprep.subr.bf16.mxu0 0
      %2094 = vmatpush1.bf16.msra.mxu0 0
      %2095 = vmatprep.subr.bf16.mxu0 0
      %2096 = vmatpush1.bf16.msra.mxu0 0
      %2097 = vmatprep.subr.bf16.mxu0 0
      %2098 = vmatpush1.bf16.msra.mxu0 0
      %2099 = vmatprep.subr.bf16.mxu0 0
      %2100 = vmatpush1.bf16.msra.mxu0 0
      %2101 = vmatprep.subr.bf16.mxu0 0
      %2102 = vmatpush1.bf16.msra.mxu0 0
      %2103 = vmatprep.subr.bf16.mxu0 0
      %2104 = vmatpush1.bf16.msra.mxu0 0
      %2105 = vmatprep.subr.bf16.mxu0 0
      %2106 = vmatpush1.bf16.msra.mxu0 0
      %2107 = vmatprep.subr.bf16.mxu0 0
      %2108 = vmatpush1.bf16.msra.mxu0 0
      %2109 = vmatprep.subr.bf16.mxu0 0
      %2110 = vmatpush1.bf16.msra.mxu0 0
      %2111 = vmatprep.subr.bf16.mxu0 0
      %2112 = vmatpush1.bf16.msra.mxu0 0
      %2113 = vmatprep.subr.bf16.mxu0 0
      %2114 = vmatpush1.bf16.msra.mxu0 0
      %2115 = vmatprep.subr.bf16.mxu0 0
      %2116 = vmatpush1.bf16.msra.mxu0 0
      %2117 = vmatprep.subr.bf16.mxu0 0
      %2118 = vmatpush1.bf16.msra.mxu0 0
      %2119 = vmatprep.subr.bf16.mxu0 0
      %2120 = vmatpush1.bf16.msra.mxu0 0
      %2121 = vmatprep.mubr.bf16.mxu0 0
      %2122 = vmatmul.mubr.bf16.gmra.mrb[0].mxu0 %v2078
      %v2123 = vpop.f32.mrb[0].mxu0
      %v2124 = vadd.f32 0.0, %v2123
      %v2125 = vpop.f32.mrb[0].mxu0
      %v2126 = vadd.f32 0.0, %v2125
      %v2127 = vpop.f32.mrb[0].mxu0
      %v2128 = vadd.f32 0.0, %v2127
      %v2129 = vpop.f32.mrb[0].mxu0
      %v2130 = vadd.f32 0.0, %v2129
      %2131 = vmatprep.mubr.bf16.mxu0 0
      %2132 = vmatmul.mubr.bf16.gmra.mrb[0].mxu0 %v2081
      %v2133 = vpop.f32.mrb[0].mxu0
      %v2134 = vadd.f32 0.0, %v2133
      %v2135 = vpop.f32.mrb[0].mxu0
      %v2136 = vadd.f32 0.0, %v2135
      %v2137 = vpop.f32.mrb[0].mxu0
      %v2138 = vadd.f32 0.0, %v2137
      %v2139 = vpop.f32.mrb[0].mxu0
      %v2140 = vadd.f32 0.0, %v2139
      %2141 = vmatprep.mubr.bf16.mxu0 0
      %2142 = vmatmul.mubr.bf16.gmra.mrb[0].mxu0 %v2084
      %v2143 = vpop.f32.mrb[0].mxu0
      %v2144 = vadd.f32 0.0, %v2143
      %v2145 = vpop.f32.mrb[0].mxu0
      %v2146 = vadd.f32 0.0, %v2145
      %v2147 = vpop.f32.mrb[0].mxu0
      %v2148 = vadd.f32 0.0, %v2147
      %v2149 = vpop.f32.mrb[0].mxu0
      %v2150 = vadd.f32 0.0, %v2149
      %2151 = vmatprep.mubr.bf16.mxu0 0
      %2152 = vmatmul.mubr.bf16.gmra.mrb[0].mxu0 %v2087
      %v2153 = vpop.f32.mrb[0].mxu0
      %v2154 = vadd.f32 0.0, %v2153
      %v2155 = vpop.f32.mrb[0].mxu0
      %v2156 = vadd.f32 0.0, %v2155
      %v2157 = vpop.f32.mrb[0].mxu0
      %v2158 = vadd.f32 0.0, %v2157
      %v2159 = vpop.f32.mrb[0].mxu0
      %v2160 = vadd.f32 0.0, %v2159
      %2161 = vdwg.mxu0
      %v2162 = vadd.f32 %v2028, %v2124
      %v2163 = vadd.f32 %v2029, %v2126
      %v2164 = vadd.f32 %v2030, %v2128
      %v2165 = vadd.f32 %v2031, %v2130
      %v2166 = vadd.f32 %v2032, %v2134
      %v2167 = vadd.f32 %v2033, %v2136
      %v2168 = vadd.f32 %v2034, %v2138
      %v2169 = vadd.f32 %v2035, %v2140
      %v2170 = vadd.f32 %v2036, %v2144
      %v2171 = vadd.f32 %v2037, %v2146
      %v2172 = vadd.f32 %v2038, %v2148
      %v2173 = vadd.f32 %v2039, %v2150
      %v2174 = vadd.f32 %v2040, %v2154
      %v2175 = vadd.f32 %v2041, %v2156
      %v2176 = vadd.f32 %v2042, %v2158
      %v2177 = vadd.f32 %v2043, %v2160
      %2178 = vrot.lane.b32.xlu0 %v1324, 127
      %v2179 = vpop.permute.xlu0 %2178
      %2180 = vrot.lane.b32.xlu0 %v1326, 127
      %v2181 = vpop.permute.xlu0 %2180
      %2182 = vrot.lane.b32.xlu0 %v1328, 127
      %v2183 = vpop.permute.xlu0 %2182
      %2184 = vrot.lane.b32.xlu0 %v1330, 127
      %v2185 = vpop.permute.xlu0 %2184
      %2186 = vrot.lane.b32.xlu0 %v1325, 127
      %v2187 = vpop.permute.xlu0 %2186
      %2188 = vrot.lane.b32.xlu0 %v1327, 127
      %v2189 = vpop.permute.xlu0 %2188
      %2190 = vrot.lane.b32.xlu0 %v1329, 127
      %v2191 = vpop.permute.xlu0 %2190
      %2192 = vrot.lane.b32.xlu0 %v1331, 127
      %v2193 = vpop.permute.xlu0 %2192
      %v2194 = vsel %vm646, %v2179, %v2187
      %v2195 = vsel %vm646, %v2181, %v2189
      %v2196 = vsel %vm646, %v2183, %v2191
      %v2197 = vsel %vm646, %v2185, %v2193
      %v2198 = vsel %vm646, %v2187, %v2179
      %v2199 = vsel %vm646, %v2189, %v2181
      %v2200 = vsel %vm646, %v2191, %v2183
      %v2201 = vsel %vm646, %v2193, %v2185
      %v2202 = vsel %vm653, %v1324, %v2194
      %v2203 = vsel %vm654, %v1325, %v2198
      %v2204 = vsel %vm653, %v1326, %v2195
      %v2205 = vsel %vm654, %v1327, %v2199
      %v2206 = vsel %vm653, %v1328, %v2196
      %v2207 = vsel %vm654, %v1329, %v2200
      %v2208 = vsel %vm653, %v1330, %v2197
      %v2209 = vsel %vm654, %v1331, %v2201
      %s2210 = scalar_lea.vmem %s3, 160
      %v2211 = vld [vmem:[%s2210] sm:$0xf]
      %v2212 = vld [vmem:[%s2210 + $0x4] sm:$0xf]
      %v2213 = vld [vmem:[%s2210 + $0x8] sm:$0xf]
      %v2214 = vld [vmem:[%s2210 + $0xc] sm:$0xf]
      %v2215 = vld [vmem:[%s2210 + $0x10] sm:$0xf]
      %v2216 = vld [vmem:[%s2210 + $0x14] sm:$0xf]
      %v2217 = vld [vmem:[%s2210 + $0x18] sm:$0xf]
      %v2218 = vld [vmem:[%s2210 + $0x1c] sm:$0xf]
      %v2219 = vpack.c.bf16 %v2204, %v2202
      %v2220 = vpack.c.bf16 %v2205, %v2203
      %v2221 = vpack.c.bf16 %v2208, %v2206
      %v2222 = vpack.c.bf16 %v2209, %v2207
      %v2231 = vunpack.c.l.b16 %v2211
      %v2232 = vunpack.c.l.b16 %v2212
      %v2233 = vunpack.c.l.b16 %v2213
      %v2234 = vunpack.c.l.b16 %v2214
      %v2235 = vunpack.c.l.b16 %v2215
      %v2236 = vunpack.c.l.b16 %v2216
      %v2237 = vunpack.c.l.b16 %v2217
      %v2238 = vunpack.c.l.b16 %v2218
      %v2239 = vpack.c.b16 %v2232, %v2231
      %v2240 = vpack.c.b16 %v2234, %v2233
      %v2241 = vpack.c.b16 %v2236, %v2235
      %v2242 = vpack.c.b16 %v2238, %v2237
      %v2244 = vsel %vm1476, %v2239, 0
      %v2247 = vsel %vm1476, %v2240, 0
      %v2250 = vsel %vm1476, %v2241, 0
      %v2253 = vsel %vm1476, %v2242, 0
      %2255 = vmatprep.subr.bf16.mxu0 %v2220
      %2256 = vmatpush1.bf16.msra.mxu0 %v2219
      %2257 = vmatprep.subr.bf16.mxu0 %v2222
      %2258 = vmatpush1.bf16.msra.mxu0 %v2221
      %2259 = vmatprep.subr.bf16.mxu0 0
      %2260 = vmatpush1.bf16.msra.mxu0 0
      %2261 = vmatprep.subr.bf16.mxu0 0
      %2262 = vmatpush1.bf16.msra.mxu0 0
      %2263 = vmatprep.subr.bf16.mxu0 0
      %2264 = vmatpush1.bf16.msra.mxu0 0
      %2265 = vmatprep.subr.bf16.mxu0 0
      %2266 = vmatpush1.bf16.msra.mxu0 0
      %2267 = vmatprep.subr.bf16.mxu0 0
      %2268 = vmatpush1.bf16.msra.mxu0 0
      %2269 = vmatprep.subr.bf16.mxu0 0
      %2270 = vmatpush1.bf16.msra.mxu0 0
      %2271 = vmatprep.subr.bf16.mxu0 0
      %2272 = vmatpush1.bf16.msra.mxu0 0
      %2273 = vmatprep.subr.bf16.mxu0 0
      %2274 = vmatpush1.bf16.msra.mxu0 0
      %2275 = vmatprep.subr.bf16.mxu0 0
      %2276 = vmatpush1.bf16.msra.mxu0 0
      %2277 = vmatprep.subr.bf16.mxu0 0
      %2278 = vmatpush1.bf16.msra.mxu0 0
      %2279 = vmatprep.subr.bf16.mxu0 0
      %2280 = vmatpush1.bf16.msra.mxu0 0
      %2281 = vmatprep.subr.bf16.mxu0 0
      %2282 = vmatpush1.bf16.msra.mxu0 0
      %2283 = vmatprep.subr.bf16.mxu0 0
      %2284 = vmatpush1.bf16.msra.mxu0 0
      %2285 = vmatprep.subr.bf16.mxu0 0
      %2286 = vmatpush1.bf16.msra.mxu0 0
      %2287 = vmatprep.mubr.bf16.mxu0 0
      %2288 = vmatmul.mubr.bf16.gmra.mrb[0].mxu0 %v2244
      %v2289 = vpop.f32.mrb[0].mxu0
      %v2290 = vadd.f32 0.0, %v2289
      %v2291 = vpop.f32.mrb[0].mxu0
      %v2292 = vadd.f32 0.0, %v2291
      %v2293 = vpop.f32.mrb[0].mxu0
      %v2294 = vadd.f32 0.0, %v2293
      %v2295 = vpop.f32.mrb[0].mxu0
      %v2296 = vadd.f32 0.0, %v2295
      %2297 = vmatprep.mubr.bf16.mxu0 0
      %2298 = vmatmul.mubr.bf16.gmra.mrb[0].mxu0 %v2247
      %v2299 = vpop.f32.mrb[0].mxu0
      %v2300 = vadd.f32 0.0, %v2299
      %v2301 = vpop.f32.mrb[0].mxu0
      %v2302 = vadd.f32 0.0, %v2301
      %v2303 = vpop.f32.mrb[0].mxu0
      %v2304 = vadd.f32 0.0, %v2303
      %v2305 = vpop.f32.mrb[0].mxu0
      %v2306 = vadd.f32 0.0, %v2305
      %2307 = vmatprep.mubr.bf16.mxu0 0
      %2308 = vmatmul.mubr.bf16.gmra.mrb[0].mxu0 %v2250
      %v2309 = vpop.f32.mrb[0].mxu0
      %v2310 = vadd.f32 0.0, %v2309
      %v2311 = vpop.f32.mrb[0].mxu0
      %v2312 = vadd.f32 0.0, %v2311
      %v2313 = vpop.f32.mrb[0].mxu0
      %v2314 = vadd.f32 0.0, %v2313
      %v2315 = vpop.f32.mrb[0].mxu0
      %v2316 = vadd.f32 0.0, %v2315
      %2317 = vmatprep.mubr.bf16.mxu0 0
      %2318 = vmatmul.mubr.bf16.gmra.mrb[0].mxu0 %v2253
      %v2319 = vpop.f32.mrb[0].mxu0
      %v2320 = vadd.f32 0.0, %v2319
      %v2321 = vpop.f32.mrb[0].mxu0
      %v2322 = vadd.f32 0.0, %v2321
      %v2323 = vpop.f32.mrb[0].mxu0
      %v2324 = vadd.f32 0.0, %v2323
      %v2325 = vpop.f32.mrb[0].mxu0
      %v2326 = vadd.f32 0.0, %v2325
      %2327 = vdwg.mxu0
      %v2328 = vadd.f32 %v2162, %v2290
      %v2329 = vadd.f32 %v2163, %v2292
      %v2330 = vadd.f32 %v2164, %v2294
      %v2331 = vadd.f32 %v2165, %v2296
      %v2332 = vadd.f32 %v2166, %v2300
      %v2333 = vadd.f32 %v2167, %v2302
      %v2334 = vadd.f32 %v2168, %v2304
      %v2335 = vadd.f32 %v2169, %v2306
      %v2336 = vadd.f32 %v2170, %v2310
      %v2337 = vadd.f32 %v2171, %v2312
      %v2338 = vadd.f32 %v2172, %v2314
      %v2339 = vadd.f32 %v2173, %v2316
      %v2340 = vadd.f32 %v2174, %v2320
      %v2341 = vadd.f32 %v2175, %v2322
      %v2342 = vadd.f32 %v2176, %v2324
      %v2343 = vadd.f32 %v2177, %v2326
      %2344 = vrot.lane.b32.xlu0 %v1324, 112
      %v2345 = vpop.permute.xlu0 %2344
      %2346 = vrot.lane.b32.xlu0 %v1326, 112
      %v2347 = vpop.permute.xlu0 %2346
      %2348 = vrot.lane.b32.xlu0 %v1328, 112
      %v2349 = vpop.permute.xlu0 %2348
      %2350 = vrot.lane.b32.xlu0 %v1330, 112
      %v2351 = vpop.permute.xlu0 %2350
      %2352 = vrot.lane.b32.xlu0 %v1325, 112
      %v2353 = vpop.permute.xlu0 %2352
      %2354 = vrot.lane.b32.xlu0 %v1327, 112
      %v2355 = vpop.permute.xlu0 %2354
      %2356 = vrot.lane.b32.xlu0 %v1329, 112
      %v2357 = vpop.permute.xlu0 %2356
      %2358 = vrot.lane.b32.xlu0 %v1331, 112
      %v2359 = vpop.permute.xlu0 %2358
      %v2360 = vsel %vm1035, %v2345, %v2353
      %v2361 = vsel %vm1035, %v2347, %v2355
      %v2362 = vsel %vm1035, %v2349, %v2357
      %v2363 = vsel %vm1035, %v2351, %v2359
      %v2364 = vsel %vm1035, %v2353, %v2345
      %v2365 = vsel %vm1035, %v2355, %v2347
      %v2366 = vsel %vm1035, %v2357, %v2349
      %v2367 = vsel %vm1035, %v2359, %v2351
      %v2368 = vsel %vm1042, %v1324, %v2360
      %v2369 = vsel %vm1043, %v1325, %v2364
      %v2370 = vsel %vm1042, %v1326, %v2361
      %v2371 = vsel %vm1043, %v1327, %v2365
      %v2372 = vsel %vm1042, %v1328, %v2362
      %v2373 = vsel %vm1043, %v1329, %v2366
      %v2374 = vsel %vm1042, %v1330, %v2363
      %v2375 = vsel %vm1043, %v1331, %v2367
      %2376 = vrot.lane.b32.xlu0 %v2368, 1
      %v2377 = vpop.permute.xlu0 %2376
      %2378 = vrot.lane.b32.xlu0 %v2370, 1
      %v2379 = vpop.permute.xlu0 %2378
      %2380 = vrot.lane.b32.xlu0 %v2372, 1
      %v2381 = vpop.permute.xlu0 %2380
      %2382 = vrot.lane.b32.xlu0 %v2374, 1
      %v2383 = vpop.permute.xlu0 %2382
      %2384 = vrot.lane.b32.xlu0 %v2369, 1
      %v2385 = vpop.permute.xlu0 %2384
      %2386 = vrot.lane.b32.xlu0 %v2371, 1
      %v2387 = vpop.permute.xlu0 %2386
      %2388 = vrot.lane.b32.xlu0 %v2373, 1
      %v2389 = vpop.permute.xlu0 %2388
      %2390 = vrot.lane.b32.xlu0 %v2375, 1
      %v2391 = vpop.permute.xlu0 %2390
      %v2392 = vsel %vm457, %v2377, %v2385
      %v2393 = vsel %vm457, %v2379, %v2387
      %v2394 = vsel %vm457, %v2381, %v2389
      %v2395 = vsel %vm457, %v2383, %v2391
      %v2396 = vsel %vm457, %v2385, %v2377
      %v2397 = vsel %vm457, %v2387, %v2379
      %v2398 = vsel %vm457, %v2389, %v2381
      %v2399 = vsel %vm457, %v2391, %v2383
      %v2400 = vsel %vm464, %v2368, %v2396
      %v2401 = vsel %vm465, %v2369, %v2392
      %v2402 = vsel %vm464, %v2370, %v2397
      %v2403 = vsel %vm465, %v2371, %v2393
      %v2404 = vsel %vm464, %v2372, %v2398
      %v2405 = vsel %vm465, %v2373, %v2394
      %v2406 = vsel %vm464, %v2374, %v2399
      %v2407 = vsel %vm465, %v2375, %v2395
      %s2408 = scalar_lea.vmem %s3, 192
      %v2409 = vld [vmem:[%s2408] sm:$0xf]
      %v2410 = vld [vmem:[%s2408 + $0x4] sm:$0xf]
      %v2411 = vld [vmem:[%s2408 + $0x8] sm:$0xf]
      %v2412 = vld [vmem:[%s2408 + $0xc] sm:$0xf]
      %v2413 = vld [vmem:[%s2408 + $0x10] sm:$0xf]
      %v2414 = vld [vmem:[%s2408 + $0x14] sm:$0xf]
      %v2415 = vld [vmem:[%s2408 + $0x18] sm:$0xf]
      %v2416 = vld [vmem:[%s2408 + $0x1c] sm:$0xf]
      %v2417 = vpack.c.bf16 %v2402, %v2400
      %v2418 = vpack.c.bf16 %v2403, %v2401
      %v2419 = vpack.c.bf16 %v2406, %v2404
      %v2420 = vpack.c.bf16 %v2407, %v2405
      %v2429 = vunpack.c.l.b16 %v2409
      %v2430 = vunpack.c.l.b16 %v2410
      %v2431 = vunpack.c.l.b16 %v2411
      %v2432 = vunpack.c.l.b16 %v2412
      %v2433 = vunpack.c.l.b16 %v2413
      %v2434 = vunpack.c.l.b16 %v2414
      %v2435 = vunpack.c.l.b16 %v2415
      %v2436 = vunpack.c.l.b16 %v2416
      %v2437 = vpack.c.b16 %v2430, %v2429
      %v2438 = vpack.c.b16 %v2432, %v2431
      %v2439 = vpack.c.b16 %v2434, %v2433
      %v2440 = vpack.c.b16 %v2436, %v2435
      %v2442 = vsel %vm1476, %v2437, 0
      %v2445 = vsel %vm1476, %v2438, 0
      %v2448 = vsel %vm1476, %v2439, 0
      %v2451 = vsel %vm1476, %v2440, 0
      %2453 = vmatprep.subr.bf16.mxu0 %v2418
      %2454 = vmatpush1.bf16.msra.mxu0 %v2417
      %2455 = vmatprep.subr.bf16.mxu0 %v2420
      %2456 = vmatpush1.bf16.msra.mxu0 %v2419
      %2457 = vmatprep.subr.bf16.mxu0 0
      %2458 = vmatpush1.bf16.msra.mxu0 0
      %2459 = vmatprep.subr.bf16.mxu0 0
      %2460 = vmatpush1.bf16.msra.mxu0 0
      %2461 = vmatprep.subr.bf16.mxu0 0
      %2462 = vmatpush1.bf16.msra.mxu0 0
      %2463 = vmatprep.subr.bf16.mxu0 0
      %2464 = vmatpush1.bf16.msra.mxu0 0
      %2465 = vmatprep.subr.bf16.mxu0 0
      %2466 = vmatpush1.bf16.msra.mxu0 0
      %2467 = vmatprep.subr.bf16.mxu0 0
      %2468 = vmatpush1.bf16.msra.mxu0 0
      %2469 = vmatprep.subr.bf16.mxu0 0
      %2470 = vmatpush1.bf16.msra.mxu0 0
      %2471 = vmatprep.subr.bf16.mxu0 0
      %2472 = vmatpush1.bf16.msra.mxu0 0
      %2473 = vmatprep.subr.bf16.mxu0 0
      %2474 = vmatpush1.bf16.msra.mxu0 0
      %2475 = vmatprep.subr.bf16.mxu0 0
      %2476 = vmatpush1.bf16.msra.mxu0 0
      %2477 = vmatprep.subr.bf16.mxu0 0
      %2478 = vmatpush1.bf16.msra.mxu0 0
      %2479 = vmatprep.subr.bf16.mxu0 0
      %2480 = vmatpush1.bf16.msra.mxu0 0
      %2481 = vmatprep.subr.bf16.mxu0 0
      %2482 = vmatpush1.bf16.msra.mxu0 0
      %2483 = vmatprep.subr.bf16.mxu0 0
      %2484 = vmatpush1.bf16.msra.mxu0 0
      %2485 = vmatprep.mubr.bf16.mxu0 0
      %2486 = vmatmul.mubr.bf16.gmra.mrb[0].mxu0 %v2442
      %v2487 = vpop.f32.mrb[0].mxu0
      %v2488 = vadd.f32 0.0, %v2487
      %v2489 = vpop.f32.mrb[0].mxu0
      %v2490 = vadd.f32 0.0, %v2489
      %v2491 = vpop.f32.mrb[0].mxu0
      %v2492 = vadd.f32 0.0, %v2491
      %v2493 = vpop.f32.mrb[0].mxu0
      %v2494 = vadd.f32 0.0, %v2493
      %2495 = vmatprep.mubr.bf16.mxu0 0
      %2496 = vmatmul.mubr.bf16.gmra.mrb[0].mxu0 %v2445
      %v2497 = vpop.f32.mrb[0].mxu0
      %v2498 = vadd.f32 0.0, %v2497
      %v2499 = vpop.f32.mrb[0].mxu0
      %v2500 = vadd.f32 0.0, %v2499
      %v2501 = vpop.f32.mrb[0].mxu0
      %v2502 = vadd.f32 0.0, %v2501
      %v2503 = vpop.f32.mrb[0].mxu0
      %v2504 = vadd.f32 0.0, %v2503
      %2505 = vmatprep.mubr.bf16.mxu0 0
      %2506 = vmatmul.mubr.bf16.gmra.mrb[0].mxu0 %v2448
      %v2507 = vpop.f32.mrb[0].mxu0
      %v2508 = vadd.f32 0.0, %v2507
      %v2509 = vpop.f32.mrb[0].mxu0
      %v2510 = vadd.f32 0.0, %v2509
      %v2511 = vpop.f32.mrb[0].mxu0
      %v2512 = vadd.f32 0.0, %v2511
      %v2513 = vpop.f32.mrb[0].mxu0
      %v2514 = vadd.f32 0.0, %v2513
      %2515 = vmatprep.mubr.bf16.mxu0 0
      %2516 = vmatmul.mubr.bf16.gmra.mrb[0].mxu0 %v2451
      %v2517 = vpop.f32.mrb[0].mxu0
      %v2518 = vadd.f32 0.0, %v2517
      %v2519 = vpop.f32.mrb[0].mxu0
      %v2520 = vadd.f32 0.0, %v2519
      %v2521 = vpop.f32.mrb[0].mxu0
      %v2522 = vadd.f32 0.0, %v2521
      %v2523 = vpop.f32.mrb[0].mxu0
      %v2524 = vadd.f32 0.0, %v2523
      %2525 = vdwg.mxu0
      %v2526 = vadd.f32 %v2328, %v2488
      %v2527 = vadd.f32 %v2329, %v2490
      %v2528 = vadd.f32 %v2330, %v2492
      %v2529 = vadd.f32 %v2331, %v2494
      %v2530 = vadd.f32 %v2332, %v2498
      %v2531 = vadd.f32 %v2333, %v2500
      %v2532 = vadd.f32 %v2334, %v2502
      %v2533 = vadd.f32 %v2335, %v2504
      %v2534 = vadd.f32 %v2336, %v2508
      %v2535 = vadd.f32 %v2337, %v2510
      %v2536 = vadd.f32 %v2338, %v2512
      %v2537 = vadd.f32 %v2339, %v2514
      %v2538 = vadd.f32 %v2340, %v2518
      %v2539 = vadd.f32 %v2341, %v2520
      %v2540 = vadd.f32 %v2342, %v2522
      %v2541 = vadd.f32 %v2343, %v2524
      %s2542 = scalar_lea.vmem %s3, 224
      %v2543 = vld [vmem:[%s2542] sm:$0xf]
      %v2544 = vld [vmem:[%s2542 + $0x4] sm:$0xf]
      %v2545 = vld [vmem:[%s2542 + $0x8] sm:$0xf]
      %v2546 = vld [vmem:[%s2542 + $0xc] sm:$0xf]
      %v2547 = vld [vmem:[%s2542 + $0x10] sm:$0xf]
      %v2548 = vld [vmem:[%s2542 + $0x14] sm:$0xf]
      %v2549 = vld [vmem:[%s2542 + $0x18] sm:$0xf]
      %v2550 = vld [vmem:[%s2542 + $0x1c] sm:$0xf]
      %v2551 = vpack.c.bf16 %v2370, %v2368
      %v2552 = vpack.c.bf16 %v2371, %v2369
      %v2553 = vpack.c.bf16 %v2374, %v2372
      %v2554 = vpack.c.bf16 %v2375, %v2373
      %v2563 = vunpack.c.l.b16 %v2543
      %v2564 = vunpack.c.l.b16 %v2544
      %v2565 = vunpack.c.l.b16 %v2545
      %v2566 = vunpack.c.l.b16 %v2546
      %v2567 = vunpack.c.l.b16 %v2547
      %v2568 = vunpack.c.l.b16 %v2548
      %v2569 = vunpack.c.l.b16 %v2549
      %v2570 = vunpack.c.l.b16 %v2550
      %v2571 = vpack.c.b16 %v2564, %v2563
      %v2572 = vpack.c.b16 %v2566, %v2565
      %v2573 = vpack.c.b16 %v2568, %v2567
      %v2574 = vpack.c.b16 %v2570, %v2569
      %v2576 = vsel %vm1476, %v2571, 0
      %v2579 = vsel %vm1476, %v2572, 0
      %v2582 = vsel %vm1476, %v2573, 0
      %v2585 = vsel %vm1476, %v2574, 0
      %2587 = vmatprep.subr.bf16.mxu0 %v2552
      %2588 = vmatpush1.bf16.msra.mxu0 %v2551
      %2589 = vmatprep.subr.bf16.mxu0 %v2554
      %2590 = vmatpush1.bf16.msra.mxu0 %v2553
      %2591 = vmatprep.subr.bf16.mxu0 0
      %2592 = vmatpush1.bf16.msra.mxu0 0
      %2593 = vmatprep.subr.bf16.mxu0 0
      %2594 = vmatpush1.bf16.msra.mxu0 0
      %2595 = vmatprep.subr.bf16.mxu0 0
      %2596 = vmatpush1.bf16.msra.mxu0 0
      %2597 = vmatprep.subr.bf16.mxu0 0
      %2598 = vmatpush1.bf16.msra.mxu0 0
      %2599 = vmatprep.subr.bf16.mxu0 0
      %2600 = vmatpush1.bf16.msra.mxu0 0
      %2601 = vmatprep.subr.bf16.mxu0 0
      %2602 = vmatpush1.bf16.msra.mxu0 0
      %2603 = vmatprep.subr.bf16.mxu0 0
      %2604 = vmatpush1.bf16.msra.mxu0 0
      %2605 = vmatprep.subr.bf16.mxu0 0
      %2606 = vmatpush1.bf16.msra.mxu0 0
      %2607 = vmatprep.subr.bf16.mxu0 0
      %2608 = vmatpush1.bf16.msra.mxu0 0
      %2609 = vmatprep.subr.bf16.mxu0 0
      %2610 = vmatpush1.bf16.msra.mxu0 0
      %2611 = vmatprep.subr.bf16.mxu0 0
      %2612 = vmatpush1.bf16.msra.mxu0 0
      %2613 = vmatprep.subr.bf16.mxu0 0
      %2614 = vmatpush1.bf16.msra.mxu0 0
      %2615 = vmatprep.subr.bf16.mxu0 0
      %2616 = vmatpush1.bf16.msra.mxu0 0
      %2617 = vmatprep.subr.bf16.mxu0 0
      %2618 = vmatpush1.bf16.msra.mxu0 0
      %2619 = vmatprep.mubr.bf16.mxu0 0
      %2620 = vmatmul.mubr.bf16.gmra.mrb[0].mxu0 %v2576
      %v2621 = vpop.f32.mrb[0].mxu0
      %v2622 = vadd.f32 0.0, %v2621
      %v2623 = vpop.f32.mrb[0].mxu0
      %v2624 = vadd.f32 0.0, %v2623
      %v2625 = vpop.f32.mrb[0].mxu0
      %v2626 = vadd.f32 0.0, %v2625
      %v2627 = vpop.f32.mrb[0].mxu0
      %v2628 = vadd.f32 0.0, %v2627
      %2629 = vmatprep.mubr.bf16.mxu0 0
      %2630 = vmatmul.mubr.bf16.gmra.mrb[0].mxu0 %v2579
      %v2631 = vpop.f32.mrb[0].mxu0
      %v2632 = vadd.f32 0.0, %v2631
      %v2633 = vpop.f32.mrb[0].mxu0
      %v2634 = vadd.f32 0.0, %v2633
      %v2635 = vpop.f32.mrb[0].mxu0
      %v2636 = vadd.f32 0.0, %v2635
      %v2637 = vpop.f32.mrb[0].mxu0
      %v2638 = vadd.f32 0.0, %v2637
      %2639 = vmatprep.mubr.bf16.mxu0 0
      %2640 = vmatmul.mubr.bf16.gmra.mrb[0].mxu0 %v2582
      %v2641 = vpop.f32.mrb[0].mxu0
      %v2642 = vadd.f32 0.0, %v2641
      %v2643 = vpop.f32.mrb[0].mxu0
      %v2644 = vadd.f32 0.0, %v2643
      %v2645 = vpop.f32.mrb[0].mxu0
      %v2646 = vadd.f32 0.0, %v2645
      %v2647 = vpop.f32.mrb[0].mxu0
      %v2648 = vadd.f32 0.0, %v2647
      %2649 = vmatprep.mubr.bf16.mxu0 0
      %2650 = vmatmul.mubr.bf16.gmra.mrb[0].mxu0 %v2585
      %v2651 = vpop.f32.mrb[0].mxu0
      %v2652 = vadd.f32 0.0, %v2651
      %v2653 = vpop.f32.mrb[0].mxu0
      %v2654 = vadd.f32 0.0, %v2653
      %v2655 = vpop.f32.mrb[0].mxu0
      %v2656 = vadd.f32 0.0, %v2655
      %v2657 = vpop.f32.mrb[0].mxu0
      %v2658 = vadd.f32 0.0, %v2657
      %2659 = vdwg.mxu0
      %v2660 = vadd.f32 %v2526, %v2622
      %v2661 = vadd.f32 %v2527, %v2624
      %v2662 = vadd.f32 %v2528, %v2626
      %v2663 = vadd.f32 %v2529, %v2628
      %v2664 = vadd.f32 %v2530, %v2632
      %v2665 = vadd.f32 %v2531, %v2634
      %v2666 = vadd.f32 %v2532, %v2636
      %v2667 = vadd.f32 %v2533, %v2638
      %v2668 = vadd.f32 %v2534, %v2642
      %v2669 = vadd.f32 %v2535, %v2644
      %v2670 = vadd.f32 %v2536, %v2646
      %v2671 = vadd.f32 %v2537, %v2648
      %v2672 = vadd.f32 %v2538, %v2652
      %v2673 = vadd.f32 %v2539, %v2654
      %v2674 = vadd.f32 %v2540, %v2656
      %v2675 = vadd.f32 %v2541, %v2658
      %2676 = vrot.lane.b32.xlu0 %v2368, 127
      %v2677 = vpop.permute.xlu0 %2676
      %2678 = vrot.lane.b32.xlu0 %v2370, 127
      %v2679 = vpop.permute.xlu0 %2678
      %2680 = vrot.lane.b32.xlu0 %v2372, 127
      %v2681 = vpop.permute.xlu0 %2680
      %2682 = vrot.lane.b32.xlu0 %v2374, 127
      %v2683 = vpop.permute.xlu0 %2682
      %2684 = vrot.lane.b32.xlu0 %v2369, 127
      %v2685 = vpop.permute.xlu0 %2684
      %2686 = vrot.lane.b32.xlu0 %v2371, 127
      %v2687 = vpop.permute.xlu0 %2686
      %2688 = vrot.lane.b32.xlu0 %v2373, 127
      %v2689 = vpop.permute.xlu0 %2688
      %2690 = vrot.lane.b32.xlu0 %v2375, 127
      %v2691 = vpop.permute.xlu0 %2690
      %v2692 = vsel %vm646, %v2677, %v2685
      %v2693 = vsel %vm646, %v2679, %v2687
      %v2694 = vsel %vm646, %v2681, %v2689
      %v2695 = vsel %vm646, %v2683, %v2691
      %v2696 = vsel %vm646, %v2685, %v2677
      %v2697 = vsel %vm646, %v2687, %v2679
      %v2698 = vsel %vm646, %v2689, %v2681
      %v2699 = vsel %vm646, %v2691, %v2683
      %v2700 = vsel %vm653, %v2368, %v2692
      %v2701 = vsel %vm654, %v2369, %v2696
      %v2702 = vsel %vm653, %v2370, %v2693
      %v2703 = vsel %vm654, %v2371, %v2697
      %v2704 = vsel %vm653, %v2372, %v2694
      %v2705 = vsel %vm654, %v2373, %v2698
      %v2706 = vsel %vm653, %v2374, %v2695
      %v2707 = vsel %vm654, %v2375, %v2699
      %s2708 = scalar_lea.vmem %s3, 256
      %v2709 = vld [vmem:[%s2708] sm:$0xf]
      %v2710 = vld [vmem:[%s2708 + $0x4] sm:$0xf]
      %v2711 = vld [vmem:[%s2708 + $0x8] sm:$0xf]
      %v2712 = vld [vmem:[%s2708 + $0xc] sm:$0xf]
      %v2713 = vld [vmem:[%s2708 + $0x10] sm:$0xf]
      %v2714 = vld [vmem:[%s2708 + $0x14] sm:$0xf]
      %v2715 = vld [vmem:[%s2708 + $0x18] sm:$0xf]
      %v2716 = vld [vmem:[%s2708 + $0x1c] sm:$0xf]
      %v2717 = vpack.c.bf16 %v2702, %v2700
      %v2718 = vpack.c.bf16 %v2703, %v2701
      %v2719 = vpack.c.bf16 %v2706, %v2704
      %v2720 = vpack.c.bf16 %v2707, %v2705
      %v2729 = vunpack.c.l.b16 %v2709
      %v2730 = vunpack.c.l.b16 %v2710
      %v2731 = vunpack.c.l.b16 %v2711
      %v2732 = vunpack.c.l.b16 %v2712
      %v2733 = vunpack.c.l.b16 %v2713
      %v2734 = vunpack.c.l.b16 %v2714
      %v2735 = vunpack.c.l.b16 %v2715
      %v2736 = vunpack.c.l.b16 %v2716
      %v2737 = vpack.c.b16 %v2730, %v2729
      %v2738 = vpack.c.b16 %v2732, %v2731
      %v2739 = vpack.c.b16 %v2734, %v2733
      %v2740 = vpack.c.b16 %v2736, %v2735
      %v2742 = vsel %vm1476, %v2737, 0
      %v2745 = vsel %vm1476, %v2738, 0
      %v2748 = vsel %vm1476, %v2739, 0
      %v2751 = vsel %vm1476, %v2740, 0
      %2753 = vmatprep.subr.bf16.mxu0 %v2718
      %2754 = vmatpush1.bf16.msra.mxu0 %v2717
      %2755 = vmatprep.subr.bf16.mxu0 %v2720
      %2756 = vmatpush1.bf16.msra.mxu0 %v2719
      %2757 = vmatprep.subr.bf16.mxu0 0
      %2758 = vmatpush1.bf16.msra.mxu0 0
      %2759 = vmatprep.subr.bf16.mxu0 0
      %2760 = vmatpush1.bf16.msra.mxu0 0
      %2761 = vmatprep.subr.bf16.mxu0 0
      %2762 = vmatpush1.bf16.msra.mxu0 0
      %2763 = vmatprep.subr.bf16.mxu0 0
      %2764 = vmatpush1.bf16.msra.mxu0 0
      %2765 = vmatprep.subr.bf16.mxu0 0
      %2766 = vmatpush1.bf16.msra.mxu0 0
      %2767 = vmatprep.subr.bf16.mxu0 0
      %2768 = vmatpush1.bf16.msra.mxu0 0
      %2769 = vmatprep.subr.bf16.mxu0 0
      %2770 = vmatpush1.bf16.msra.mxu0 0
      %2771 = vmatprep.subr.bf16.mxu0 0
      %2772 = vmatpush1.bf16.msra.mxu0 0
      %2773 = vmatprep.subr.bf16.mxu0 0
      %2774 = vmatpush1.bf16.msra.mxu0 0
      %2775 = vmatprep.subr.bf16.mxu0 0
      %2776 = vmatpush1.bf16.msra.mxu0 0
      %2777 = vmatprep.subr.bf16.mxu0 0
      %2778 = vmatpush1.bf16.msra.mxu0 0
      %2779 = vmatprep.subr.bf16.mxu0 0
      %2780 = vmatpush1.bf16.msra.mxu0 0
      %2781 = vmatprep.subr.bf16.mxu0 0
      %2782 = vmatpush1.bf16.msra.mxu0 0
      %2783 = vmatprep.subr.bf16.mxu0 0
      %2784 = vmatpush1.bf16.msra.mxu0 0
      %2785 = vmatprep.mubr.bf16.mxu0 0
      %2786 = vmatmul.mubr.bf16.gmra.mrb[0].mxu0 %v2742
      %v2787 = vpop.f32.mrb[0].mxu0
      %v2788 = vadd.f32 0.0, %v2787
      %v2789 = vpop.f32.mrb[0].mxu0
      %v2790 = vadd.f32 0.0, %v2789
      %v2791 = vpop.f32.mrb[0].mxu0
      %v2792 = vadd.f32 0.0, %v2791
      %v2793 = vpop.f32.mrb[0].mxu0
      %v2794 = vadd.f32 0.0, %v2793
      %2795 = vmatprep.mubr.bf16.mxu0 0
      %2796 = vmatmul.mubr.bf16.gmra.mrb[0].mxu0 %v2745
      %v2797 = vpop.f32.mrb[0].mxu0
      %v2798 = vadd.f32 0.0, %v2797
      %v2799 = vpop.f32.mrb[0].mxu0
      %v2800 = vadd.f32 0.0, %v2799
      %v2801 = vpop.f32.mrb[0].mxu0
      %v2802 = vadd.f32 0.0, %v2801
      %v2803 = vpop.f32.mrb[0].mxu0
      %v2804 = vadd.f32 0.0, %v2803
      %2805 = vmatprep.mubr.bf16.mxu0 0
      %2806 = vmatmul.mubr.bf16.gmra.mrb[0].mxu0 %v2748
      %v2807 = vpop.f32.mrb[0].mxu0
      %v2808 = vadd.f32 0.0, %v2807
      %v2809 = vpop.f32.mrb[0].mxu0
      %v2810 = vadd.f32 0.0, %v2809
      %v2811 = vpop.f32.mrb[0].mxu0
      %v2812 = vadd.f32 0.0, %v2811
      %v2813 = vpop.f32.mrb[0].mxu0
      %v2814 = vadd.f32 0.0, %v2813
      %2815 = vmatprep.mubr.bf16.mxu0 0
      %2816 = vmatmul.mubr.bf16.gmra.mrb[0].mxu0 %v2751
      %v2817 = vpop.f32.mrb[0].mxu0
      %v2818 = vadd.f32 0.0, %v2817
      %v2819 = vpop.f32.mrb[0].mxu0
      %v2820 = vadd.f32 0.0, %v2819
      %v2821 = vpop.f32.mrb[0].mxu0
      %v2822 = vadd.f32 0.0, %v2821
      %v2823 = vpop.f32.mrb[0].mxu0
      %v2824 = vadd.f32 0.0, %v2823
      %2825 = vdwg.mxu0
      %v2826 = vadd.f32 %v2660, %v2788
      %v2827 = vadd.f32 %v2661, %v2790
      %v2828 = vadd.f32 %v2662, %v2792
      %v2829 = vadd.f32 %v2663, %v2794
      %v2830 = vadd.f32 %v2664, %v2798
      %v2831 = vadd.f32 %v2665, %v2800
      %v2832 = vadd.f32 %v2666, %v2802
      %v2833 = vadd.f32 %v2667, %v2804
      %v2834 = vadd.f32 %v2668, %v2808
      %v2835 = vadd.f32 %v2669, %v2810
      %v2836 = vadd.f32 %v2670, %v2812
      %v2837 = vadd.f32 %v2671, %v2814
      %v2838 = vadd.f32 %v2672, %v2818
      %v2839 = vadd.f32 %v2673, %v2820
      %v2840 = vadd.f32 %v2674, %v2822
      %v2841 = vadd.f32 %v2675, %v2824
      %v2842 = vld [vmem:[%s6] sm:$0xff]
      %v2843 = vld [vmem:[%s6 + $0x8] sm:$0xff]
      %v2844 = vld [vmem:[%s6 + $0x10] sm:$0xff]
      %v2845 = vld [vmem:[%s6 + $0x18] sm:$0xff]
      %v2846 = vld [vmem:[%s6 + $0x20] sm:$0xff]
      %v2847 = vld [vmem:[%s6 + $0x28] sm:$0xff]
      %v2848 = vld [vmem:[%s6 + $0x30] sm:$0xff]
      %v2849 = vld [vmem:[%s6 + $0x38] sm:$0xff]
      %v2850 = vld [vmem:[%s6 + $0x40] sm:$0xff]
      %v2851 = vld [vmem:[%s6 + $0x48] sm:$0xff]
      %v2852 = vld [vmem:[%s6 + $0x50] sm:$0xff]
      %v2853 = vld [vmem:[%s6 + $0x58] sm:$0xff]
      %v2854 = vld [vmem:[%s6 + $0x60] sm:$0xff]
      %v2855 = vld [vmem:[%s6 + $0x68] sm:$0xff]
      %v2856 = vld [vmem:[%s6 + $0x70] sm:$0xff]
      %v2857 = vld [vmem:[%s6 + $0x78] sm:$0xff]
      %2859 = vset.pattern.permute.xlu0 0
      %2860 = vperm.xlu0 %2859, %v2842
      %v2861 = vpop.permute.xlu0 %2860
      %2864 = vset.pattern.permute.xlu0 0
      %2865 = vperm.xlu0 %2864, %v2843
      %v2866 = vpop.permute.xlu0 %2865
      %2869 = vset.pattern.permute.xlu0 0
      %2870 = vperm.xlu0 %2869, %v2844
      %v2871 = vpop.permute.xlu0 %2870
      %2874 = vset.pattern.permute.xlu0 0
      %2875 = vperm.xlu0 %2874, %v2845
      %v2876 = vpop.permute.xlu0 %2875
      %2879 = vset.pattern.permute.xlu0 0
      %2880 = vperm.xlu0 %2879, %v2846
      %v2881 = vpop.permute.xlu0 %2880
      %2884 = vset.pattern.permute.xlu0 0
      %2885 = vperm.xlu0 %2884, %v2847
      %v2886 = vpop.permute.xlu0 %2885
      %2889 = vset.pattern.permute.xlu0 0
      %2890 = vperm.xlu0 %2889, %v2848
      %v2891 = vpop.permute.xlu0 %2890
      %2894 = vset.pattern.permute.xlu0 0
      %2895 = vperm.xlu0 %2894, %v2849
      %v2896 = vpop.permute.xlu0 %2895
      %2899 = vset.pattern.permute.xlu0 0
      %2900 = vperm.xlu0 %2899, %v2850
      %v2901 = vpop.permute.xlu0 %2900
      %2904 = vset.pattern.permute.xlu0 0
      %2905 = vperm.xlu0 %2904, %v2851
      %v2906 = vpop.permute.xlu0 %2905
      %2909 = vset.pattern.permute.xlu0 0
      %2910 = vperm.xlu0 %2909, %v2852
      %v2911 = vpop.permute.xlu0 %2910
      %2914 = vset.pattern.permute.xlu0 0
      %2915 = vperm.xlu0 %2914, %v2853
      %v2916 = vpop.permute.xlu0 %2915
      %2919 = vset.pattern.permute.xlu0 0
      %2920 = vperm.xlu0 %2919, %v2854
      %v2921 = vpop.permute.xlu0 %2920
      %2924 = vset.pattern.permute.xlu0 0
      %2925 = vperm.xlu0 %2924, %v2855
      %v2926 = vpop.permute.xlu0 %2925
      %2929 = vset.pattern.permute.xlu0 0
      %2930 = vperm.xlu0 %2929, %v2856
      %v2931 = vpop.permute.xlu0 %2930
      %2934 = vset.pattern.permute.xlu0 0
      %2935 = vperm.xlu0 %2934, %v2857
      %v2936 = vpop.permute.xlu0 %2935
      %2938 = vrot.lane.b32.xlu0 %v2826, 16
      %v2939 = vpop.permute.xlu0 %2938
      %2940 = vrot.lane.b32.xlu0 %v2828, 16
      %v2941 = vpop.permute.xlu0 %2940
      %2942 = vrot.lane.b32.xlu0 %v2830, 16
      %v2943 = vpop.permute.xlu0 %2942
      %2944 = vrot.lane.b32.xlu0 %v2832, 16
      %v2945 = vpop.permute.xlu0 %2944
      %2946 = vrot.lane.b32.xlu0 %v2834, 16
      %v2947 = vpop.permute.xlu0 %2946
      %2948 = vrot.lane.b32.xlu0 %v2836, 16
      %v2949 = vpop.permute.xlu0 %2948
      %2950 = vrot.lane.b32.xlu0 %v2838, 16
      %v2951 = vpop.permute.xlu0 %2950
      %2952 = vrot.lane.b32.xlu0 %v2840, 16
      %v2953 = vpop.permute.xlu0 %2952
      %2954 = vrot.lane.b32.xlu0 %v2827, 16
      %v2955 = vpop.permute.xlu0 %2954
      %2956 = vrot.lane.b32.xlu0 %v2829, 16
      %v2957 = vpop.permute.xlu0 %2956
      %2958 = vrot.lane.b32.xlu0 %v2831, 16
      %v2959 = vpop.permute.xlu0 %2958
      %2960 = vrot.lane.b32.xlu0 %v2833, 16
      %v2961 = vpop.permute.xlu0 %2960
      %2962 = vrot.lane.b32.xlu0 %v2835, 16
      %v2963 = vpop.permute.xlu0 %2962
      %2964 = vrot.lane.b32.xlu0 %v2837, 16
      %v2965 = vpop.permute.xlu0 %2964
      %2966 = vrot.lane.b32.xlu0 %v2839, 16
      %v2967 = vpop.permute.xlu0 %2966
      %2968 = vrot.lane.b32.xlu0 %v2841, 16
      %v2969 = vpop.permute.xlu0 %2968
      %v2970 = vsel %vm397, %v2939, %v2955
      %v2971 = vsel %vm397, %v2941, %v2957
      %v2972 = vsel %vm397, %v2943, %v2959
      %v2973 = vsel %vm397, %v2945, %v2961
      %v2974 = vsel %vm397, %v2947, %v2963
      %v2975 = vsel %vm397, %v2949, %v2965
      %v2976 = vsel %vm397, %v2951, %v2967
      %v2977 = vsel %vm397, %v2953, %v2969
      %v2978 = vsel %vm397, %v2955, %v2939
      %v2979 = vsel %vm397, %v2957, %v2941
      %v2980 = vsel %vm397, %v2959, %v2943
      %v2981 = vsel %vm397, %v2961, %v2945
      %v2982 = vsel %vm397, %v2963, %v2947
      %v2983 = vsel %vm397, %v2965, %v2949
      %v2984 = vsel %vm397, %v2967, %v2951
      %v2985 = vsel %vm397, %v2969, %v2953
      %v2986 = vsel %vm443, %v2826, %v2978
      %v2987 = vsel %vm444, %v2827, %v2970
      %v2988 = vsel %vm443, %v2828, %v2979
      %v2989 = vsel %vm444, %v2829, %v2971
      %v2990 = vsel %vm443, %v2830, %v2980
      %v2991 = vsel %vm444, %v2831, %v2972
      %v2992 = vsel %vm443, %v2832, %v2981
      %v2993 = vsel %vm444, %v2833, %v2973
      %v2994 = vsel %vm443, %v2834, %v2982
      %v2995 = vsel %vm444, %v2835, %v2974
      %v2996 = vsel %vm443, %v2836, %v2983
      %v2997 = vsel %vm444, %v2837, %v2975
      %v2998 = vsel %vm443, %v2838, %v2984
      %v2999 = vsel %vm444, %v2839, %v2976
      %v3000 = vsel %vm443, %v2840, %v2985
      %v3001 = vsel %vm444, %v2841, %v2977
      %3002 = vrot.lane.b32.xlu0 %v2986, 1
      %v3003 = vpop.permute.xlu0 %3002
      %3004 = vrot.lane.b32.xlu0 %v2988, 1
      %v3005 = vpop.permute.xlu0 %3004
      %3006 = vrot.lane.b32.xlu0 %v2990, 1
      %v3007 = vpop.permute.xlu0 %3006
      %3008 = vrot.lane.b32.xlu0 %v2992, 1
      %v3009 = vpop.permute.xlu0 %3008
      %3010 = vrot.lane.b32.xlu0 %v2994, 1
      %v3011 = vpop.permute.xlu0 %3010
      %3012 = vrot.lane.b32.xlu0 %v2996, 1
      %v3013 = vpop.permute.xlu0 %3012
      %3014 = vrot.lane.b32.xlu0 %v2998, 1
      %v3015 = vpop.permute.xlu0 %3014
      %3016 = vrot.lane.b32.xlu0 %v3000, 1
      %v3017 = vpop.permute.xlu0 %3016
      %3018 = vrot.lane.b32.xlu0 %v2987, 1
      %v3019 = vpop.permute.xlu0 %3018
      %3020 = vrot.lane.b32.xlu0 %v2989, 1
      %v3021 = vpop.permute.xlu0 %3020
      %3022 = vrot.lane.b32.xlu0 %v2991, 1
      %v3023 = vpop.permute.xlu0 %3022
      %3024 = vrot.lane.b32.xlu0 %v2993, 1
      %v3025 = vpop.permute.xlu0 %3024
      %3026 = vrot.lane.b32.xlu0 %v2995, 1
      %v3027 = vpop.permute.xlu0 %3026
      %3028 = vrot.lane.b32.xlu0 %v2997, 1
      %v3029 = vpop.permute.xlu0 %3028
      %3030 = vrot.lane.b32.xlu0 %v2999, 1
      %v3031 = vpop.permute.xlu0 %3030
      %3032 = vrot.lane.b32.xlu0 %v3001, 1
      %v3033 = vpop.permute.xlu0 %3032
      %v3034 = vsel %vm457, %v3003, %v3019
      %v3035 = vsel %vm457, %v3005, %v3021
      %v3036 = vsel %vm457, %v3007, %v3023
      %v3037 = vsel %vm457, %v3009, %v3025
      %v3038 = vsel %vm457, %v3011, %v3027
      %v3039 = vsel %vm457, %v3013, %v3029
      %v3040 = vsel %vm457, %v3015, %v3031
      %v3041 = vsel %vm457, %v3017, %v3033
      %v3042 = vsel %vm457, %v3019, %v3003
      %v3043 = vsel %vm457, %v3021, %v3005
      %v3044 = vsel %vm457, %v3023, %v3007
      %v3045 = vsel %vm457, %v3025, %v3009
      %v3046 = vsel %vm457, %v3027, %v3011
      %v3047 = vsel %vm457, %v3029, %v3013
      %v3048 = vsel %vm457, %v3031, %v3015
      %v3049 = vsel %vm457, %v3033, %v3017
      %v3050 = vsel %vm464, %v2986, %v3042
      %v3051 = vsel %vm465, %v2987, %v3034
      %v3052 = vsel %vm464, %v2988, %v3043
      %v3053 = vsel %vm465, %v2989, %v3035
      %v3054 = vsel %vm464, %v2990, %v3044
      %v3055 = vsel %vm465, %v2991, %v3036
      %v3056 = vsel %vm464, %v2992, %v3045
      %v3057 = vsel %vm465, %v2993, %v3037
      %v3058 = vsel %vm464, %v2994, %v3046
      %v3059 = vsel %vm465, %v2995, %v3038
      %v3060 = vsel %vm464, %v2996, %v3047
      %v3061 = vsel %vm465, %v2997, %v3039
      %v3062 = vsel %vm464, %v2998, %v3048
      %v3063 = vsel %vm465, %v2999, %v3040
      %v3064 = vsel %vm464, %v3000, %v3049
      %v3065 = vsel %vm465, %v3001, %v3041
      %v3066 = vld [vmem:[%s5] sm:$0xf]
      %v3067 = vld [vmem:[%s5 + $0x4] sm:$0xf]
      %v3068 = vld [vmem:[%s5 + $0x8] sm:$0xf]
      %v3069 = vld [vmem:[%s5 + $0xc] sm:$0xf]
      %v3070 = vld [vmem:[%s5 + $0x10] sm:$0xf]
      %v3071 = vld [vmem:[%s5 + $0x14] sm:$0xf]
      %v3072 = vld [vmem:[%s5 + $0x18] sm:$0xf]
      %v3073 = vld [vmem:[%s5 + $0x1c] sm:$0xf]
      %v3074 = vld [vmem:[%s5 + $0x20] sm:$0xf]
      %v3075 = vld [vmem:[%s5 + $0x24] sm:$0xf]
      %v3076 = vld [vmem:[%s5 + $0x28] sm:$0xf]
      %v3077 = vld [vmem:[%s5 + $0x2c] sm:$0xf]
      %v3078 = vld [vmem:[%s5 + $0x30] sm:$0xf]
      %v3079 = vld [vmem:[%s5 + $0x34] sm:$0xf]
      %v3080 = vld [vmem:[%s5 + $0x38] sm:$0xf]
      %v3081 = vld [vmem:[%s5 + $0x3c] sm:$0xf]
      %v3082 = vpack.c.bf16 %v3052, %v3050
      %v3083 = vpack.c.bf16 %v3053, %v3051
      %v3084 = vpack.c.bf16 %v3056, %v3054
      %v3085 = vpack.c.bf16 %v3057, %v3055
      %v3086 = vpack.c.bf16 %v3060, %v3058
      %v3087 = vpack.c.bf16 %v3061, %v3059
      %v3088 = vpack.c.bf16 %v3064, %v3062
      %v3089 = vpack.c.bf16 %v3065, %v3063
      %v3106 = vunpack.c.l.b16 %v3066
      %v3107 = vunpack.c.l.b16 %v3067
      %v3108 = vunpack.c.l.b16 %v3068
      %v3109 = vunpack.c.l.b16 %v3069
      %v3110 = vunpack.c.l.b16 %v3070
      %v3111 = vunpack.c.l.b16 %v3071
      %v3112 = vunpack.c.l.b16 %v3072
      %v3113 = vunpack.c.l.b16 %v3073
      %v3114 = vunpack.c.l.b16 %v3074
      %v3115 = vunpack.c.l.b16 %v3075
      %v3116 = vunpack.c.l.b16 %v3076
      %v3117 = vunpack.c.l.b16 %v3077
      %v3118 = vunpack.c.l.b16 %v3078
      %v3119 = vunpack.c.l.b16 %v3079
      %v3120 = vunpack.c.l.b16 %v3080
      %v3121 = vunpack.c.l.b16 %v3081
      %v3122 = vpack.c.b16 %v3107, %v3106
      %v3123 = vpack.c.b16 %v3109, %v3108
      %v3124 = vpack.c.b16 %v3111, %v3110
      %v3125 = vpack.c.b16 %v3113, %v3112
      %v3126 = vpack.c.b16 %v3115, %v3114
      %v3127 = vpack.c.b16 %v3117, %v3116
      %v3128 = vpack.c.b16 %v3119, %v3118
      %v3129 = vpack.c.b16 %v3121, %v3120
      %vm3130 = vcmask 523264
      %v3132 = vsel %vm3130, %v3122, 0
      %v3135 = vsel %vm3130, %v3123, 0
      %v3138 = vsel %vm3130, %v3124, 0
      %v3141 = vsel %vm3130, %v3125, 0
      %v3144 = vsel %vm3130, %v3126, 0
      %v3147 = vsel %vm3130, %v3127, 0
      %v3150 = vsel %vm3130, %v3128, 0
      %v3153 = vsel %vm3130, %v3129, 0
      %3155 = vmatprep.subr.bf16.mxu0 %v3083
      %3156 = vmatpush1.bf16.msra.mxu0 %v3082
      %3157 = vmatprep.subr.bf16.mxu0 %v3085
      %3158 = vmatpush1.bf16.msra.mxu0 %v3084
      %3159 = vmatprep.subr.bf16.mxu0 %v3087
      %3160 = vmatpush1.bf16.msra.mxu0 %v3086
      %3161 = vmatprep.subr.bf16.mxu0 %v3089
      %3162 = vmatpush1.bf16.msra.mxu0 %v3088
      %3163 = vmatprep.subr.bf16.mxu0 0
      %3164 = vmatpush1.bf16.msra.mxu0 0
      %3165 = vmatprep.subr.bf16.mxu0 0
      %3166 = vmatpush1.bf16.msra.mxu0 0
      %3167 = vmatprep.subr.bf16.mxu0 0
      %3168 = vmatpush1.bf16.msra.mxu0 0
      %3169 = vmatprep.subr.bf16.mxu0 0
      %3170 = vmatpush1.bf16.msra.mxu0 0
      %3171 = vmatprep.subr.bf16.mxu0 0
      %3172 = vmatpush1.bf16.msra.mxu0 0
      %3173 = vmatprep.subr.bf16.mxu0 0
      %3174 = vmatpush1.bf16.msra.mxu0 0
      %3175 = vmatprep.subr.bf16.mxu0 0
      %3176 = vmatpush1.bf16.msra.mxu0 0
      %3177 = vmatprep.subr.bf16.mxu0 0
      %3178 = vmatpush1.bf16.msra.mxu0 0
      %3179 = vmatprep.subr.bf16.mxu0 0
      %3180 = vmatpush1.bf16.msra.mxu0 0
      %3181 = vmatprep.subr.bf16.mxu0 0
      %3182 = vmatpush1.bf16.msra.mxu0 0
      %3183 = vmatprep.subr.bf16.mxu0 0
      %3184 = vmatpush1.bf16.msra.mxu0 0
      %3185 = vmatprep.subr.bf16.mxu0 0
      %3186 = vmatpush1.bf16.msra.mxu0 0
      %3187 = vmatprep.mubr.bf16.mxu0 0
      %3188 = vmatmul.mubr.bf16.gmra.mrb[0].mxu0 %v3132
      %v3189 = vpop.f32.mrb[0].mxu0
      %v3190 = vadd.f32 0.0, %v3189
      %v3191 = vpop.f32.mrb[0].mxu0
      %v3192 = vadd.f32 0.0, %v3191
      %v3193 = vpop.f32.mrb[0].mxu0
      %v3194 = vadd.f32 0.0, %v3193
      %v3195 = vpop.f32.mrb[0].mxu0
      %v3196 = vadd.f32 0.0, %v3195
      %3197 = vmatprep.mubr.bf16.mxu0 0
      %3198 = vmatmul.mubr.bf16.gmra.mrb[0].mxu0 %v3135
      %v3199 = vpop.f32.mrb[0].mxu0
      %v3200 = vadd.f32 0.0, %v3199
      %v3201 = vpop.f32.mrb[0].mxu0
      %v3202 = vadd.f32 0.0, %v3201
      %v3203 = vpop.f32.mrb[0].mxu0
      %v3204 = vadd.f32 0.0, %v3203
      %v3205 = vpop.f32.mrb[0].mxu0
      %v3206 = vadd.f32 0.0, %v3205
      %3207 = vmatprep.mubr.bf16.mxu0 0
      %3208 = vmatmul.mubr.bf16.gmra.mrb[0].mxu0 %v3138
      %v3209 = vpop.f32.mrb[0].mxu0
      %v3210 = vadd.f32 0.0, %v3209
      %v3211 = vpop.f32.mrb[0].mxu0
      %v3212 = vadd.f32 0.0, %v3211
      %v3213 = vpop.f32.mrb[0].mxu0
      %v3214 = vadd.f32 0.0, %v3213
      %v3215 = vpop.f32.mrb[0].mxu0
      %v3216 = vadd.f32 0.0, %v3215
      %3217 = vmatprep.mubr.bf16.mxu0 0
      %3218 = vmatmul.mubr.bf16.gmra.mrb[0].mxu0 %v3141
      %v3219 = vpop.f32.mrb[0].mxu0
      %v3220 = vadd.f32 0.0, %v3219
      %v3221 = vpop.f32.mrb[0].mxu0
      %v3222 = vadd.f32 0.0, %v3221
      %v3223 = vpop.f32.mrb[0].mxu0
      %v3224 = vadd.f32 0.0, %v3223
      %v3225 = vpop.f32.mrb[0].mxu0
      %v3226 = vadd.f32 0.0, %v3225
      %3227 = vmatprep.mubr.bf16.mxu0 0
      %3228 = vmatmul.mubr.bf16.gmra.mrb[0].mxu0 %v3144
      %v3229 = vpop.f32.mrb[0].mxu0
      %v3230 = vadd.f32 0.0, %v3229
      %v3231 = vpop.f32.mrb[0].mxu0
      %v3232 = vadd.f32 0.0, %v3231
      %v3233 = vpop.f32.mrb[0].mxu0
      %v3234 = vadd.f32 0.0, %v3233
      %v3235 = vpop.f32.mrb[0].mxu0
      %v3236 = vadd.f32 0.0, %v3235
      %3237 = vmatprep.mubr.bf16.mxu0 0
      %3238 = vmatmul.mubr.bf16.gmra.mrb[0].mxu0 %v3147
      %v3239 = vpop.f32.mrb[0].mxu0
      %v3240 = vadd.f32 0.0, %v3239
      %v3241 = vpop.f32.mrb[0].mxu0
      %v3242 = vadd.f32 0.0, %v3241
      %v3243 = vpop.f32.mrb[0].mxu0
      %v3244 = vadd.f32 0.0, %v3243
      %v3245 = vpop.f32.mrb[0].mxu0
      %v3246 = vadd.f32 0.0, %v3245
      %3247 = vmatprep.mubr.bf16.mxu0 0
      %3248 = vmatmul.mubr.bf16.gmra.mrb[0].mxu0 %v3150
      %v3249 = vpop.f32.mrb[0].mxu0
      %v3250 = vadd.f32 0.0, %v3249
      %v3251 = vpop.f32.mrb[0].mxu0
      %v3252 = vadd.f32 0.0, %v3251
      %v3253 = vpop.f32.mrb[0].mxu0
      %v3254 = vadd.f32 0.0, %v3253
      %v3255 = vpop.f32.mrb[0].mxu0
      %v3256 = vadd.f32 0.0, %v3255
      %3257 = vmatprep.mubr.bf16.mxu0 0
      %3258 = vmatmul.mubr.bf16.gmra.mrb[0].mxu0 %v3153
      %v3259 = vpop.f32.mrb[0].mxu0
      %v3260 = vadd.f32 0.0, %v3259
      %v3261 = vpop.f32.mrb[0].mxu0
      %v3262 = vadd.f32 0.0, %v3261
      %v3263 = vpop.f32.mrb[0].mxu0
      %v3264 = vadd.f32 0.0, %v3263
      %v3265 = vpop.f32.mrb[0].mxu0
      %v3266 = vadd.f32 0.0, %v3265
      %3267 = vdwg.mxu0
      %v3268 = vadd.f32 %v2861, %v3190
      %v3269 = vadd.f32 %v2861, %v3192
      %v3270 = vadd.f32 %v2866, %v3194
      %v3271 = vadd.f32 %v2866, %v3196
      %v3272 = vadd.f32 %v2871, %v3200
      %v3273 = vadd.f32 %v2871, %v3202
      %v3274 = vadd.f32 %v2876, %v3204
      %v3275 = vadd.f32 %v2876, %v3206
      %v3276 = vadd.f32 %v2881, %v3210
      %v3277 = vadd.f32 %v2881, %v3212
      %v3278 = vadd.f32 %v2886, %v3214
      %v3279 = vadd.f32 %v2886, %v3216
      %v3280 = vadd.f32 %v2891, %v3220
      %v3281 = vadd.f32 %v2891, %v3222
      %v3282 = vadd.f32 %v2896, %v3224
      %v3283 = vadd.f32 %v2896, %v3226
      %v3284 = vadd.f32 %v2901, %v3230
      %v3285 = vadd.f32 %v2901, %v3232
      %v3286 = vadd.f32 %v2906, %v3234
      %v3287 = vadd.f32 %v2906, %v3236
      %v3288 = vadd.f32 %v2911, %v3240
      %v3289 = vadd.f32 %v2911, %v3242
      %v3290 = vadd.f32 %v2916, %v3244
      %v3291 = vadd.f32 %v2916, %v3246
      %v3292 = vadd.f32 %v2921, %v3250
      %v3293 = vadd.f32 %v2921, %v3252
      %v3294 = vadd.f32 %v2926, %v3254
      %v3295 = vadd.f32 %v2926, %v3256
      %v3296 = vadd.f32 %v2931, %v3260
      %v3297 = vadd.f32 %v2931, %v3262
      %v3298 = vadd.f32 %v2936, %v3264
      %v3299 = vadd.f32 %v2936, %v3266
      %s3300 = scalar_lea.vmem %s5, 64
      %v3301 = vld [vmem:[%s3300] sm:$0xf]
      %v3302 = vld [vmem:[%s3300 + $0x4] sm:$0xf]
      %v3303 = vld [vmem:[%s3300 + $0x8] sm:$0xf]
      %v3304 = vld [vmem:[%s3300 + $0xc] sm:$0xf]
      %v3305 = vld [vmem:[%s3300 + $0x10] sm:$0xf]
      %v3306 = vld [vmem:[%s3300 + $0x14] sm:$0xf]
      %v3307 = vld [vmem:[%s3300 + $0x18] sm:$0xf]
      %v3308 = vld [vmem:[%s3300 + $0x1c] sm:$0xf]
      %v3309 = vld [vmem:[%s3300 + $0x20] sm:$0xf]
      %v3310 = vld [vmem:[%s3300 + $0x24] sm:$0xf]
      %v3311 = vld [vmem:[%s3300 + $0x28] sm:$0xf]
      %v3312 = vld [vmem:[%s3300 + $0x2c] sm:$0xf]
      %v3313 = vld [vmem:[%s3300 + $0x30] sm:$0xf]
      %v3314 = vld [vmem:[%s3300 + $0x34] sm:$0xf]
      %v3315 = vld [vmem:[%s3300 + $0x38] sm:$0xf]
      %v3316 = vld [vmem:[%s3300 + $0x3c] sm:$0xf]
      %v3317 = vpack.c.bf16 %v2988, %v2986
      %v3318 = vpack.c.bf16 %v2989, %v2987
      %v3319 = vpack.c.bf16 %v2992, %v2990
      %v3320 = vpack.c.bf16 %v2993, %v2991
      %v3321 = vpack.c.bf16 %v2996, %v2994
      %v3322 = vpack.c.bf16 %v2997, %v2995
      %v3323 = vpack.c.bf16 %v3000, %v2998
      %v3324 = vpack.c.bf16 %v3001, %v2999
      %v3341 = vunpack.c.l.b16 %v3301
      %v3342 = vunpack.c.l.b16 %v3302
      %v3343 = vunpack.c.l.b16 %v3303
      %v3344 = vunpack.c.l.b16 %v3304
      %v3345 = vunpack.c.l.b16 %v3305
      %v3346 = vunpack.c.l.b16 %v3306
      %v3347 = vunpack.c.l.b16 %v3307
      %v3348 = vunpack.c.l.b16 %v3308
      %v3349 = vunpack.c.l.b16 %v3309
      %v3350 = vunpack.c.l.b16 %v3310
      %v3351 = vunpack.c.l.b16 %v3311
      %v3352 = vunpack.c.l.b16 %v3312
      %v3353 = vunpack.c.l.b16 %v3313
      %v3354 = vunpack.c.l.b16 %v3314
      %v3355 = vunpack.c.l.b16 %v3315
      %v3356 = vunpack.c.l.b16 %v3316
      %v3357 = vpack.c.b16 %v3342, %v3341
      %v3358 = vpack.c.b16 %v3344, %v3343
      %v3359 = vpack.c.b16 %v3346, %v3345
      %v3360 = vpack.c.b16 %v3348, %v3347
      %v3361 = vpack.c.b16 %v3350, %v3349
      %v3362 = vpack.c.b16 %v3352, %v3351
      %v3363 = vpack.c.b16 %v3354, %v3353
      %v3364 = vpack.c.b16 %v3356, %v3355
      %v3366 = vsel %vm3130, %v3357, 0
      %v3369 = vsel %vm3130, %v3358, 0
      %v3372 = vsel %vm3130, %v3359, 0
      %v3375 = vsel %vm3130, %v3360, 0
      %v3378 = vsel %vm3130, %v3361, 0
      %v3381 = vsel %vm3130, %v3362, 0
      %v3384 = vsel %vm3130, %v3363, 0
      %v3387 = vsel %vm3130, %v3364, 0
      %3389 = vmatprep.subr.bf16.mxu0 %v3318
      %3390 = vmatpush1.bf16.msra.mxu0 %v3317
      %3391 = vmatprep.subr.bf16.mxu0 %v3320
      %3392 = vmatpush1.bf16.msra.mxu0 %v3319
      %3393 = vmatprep.subr.bf16.mxu0 %v3322
      %3394 = vmatpush1.bf16.msra.mxu0 %v3321
      %3395 = vmatprep.subr.bf16.mxu0 %v3324
      %3396 = vmatpush1.bf16.msra.mxu0 %v3323
      %3397 = vmatprep.subr.bf16.mxu0 0
      %3398 = vmatpush1.bf16.msra.mxu0 0
      %3399 = vmatprep.subr.bf16.mxu0 0
      %3400 = vmatpush1.bf16.msra.mxu0 0
      %3401 = vmatprep.subr.bf16.mxu0 0
      %3402 = vmatpush1.bf16.msra.mxu0 0
      %3403 = vmatprep.subr.bf16.mxu0 0
      %3404 = vmatpush1.bf16.msra.mxu0 0
      %3405 = vmatprep.subr.bf16.mxu0 0
      %3406 = vmatpush1.bf16.msra.mxu0 0
      %3407 = vmatprep.subr.bf16.mxu0 0
      %3408 = vmatpush1.bf16.msra.mxu0 0
      %3409 = vmatprep.subr.bf16.mxu0 0
      %3410 = vmatpush1.bf16.msra.mxu0 0
      %3411 = vmatprep.subr.bf16.mxu0 0
      %3412 = vmatpush1.bf16.msra.mxu0 0
      %3413 = vmatprep.subr.bf16.mxu0 0
      %3414 = vmatpush1.bf16.msra.mxu0 0
      %3415 = vmatprep.subr.bf16.mxu0 0
      %3416 = vmatpush1.bf16.msra.mxu0 0
      %3417 = vmatprep.subr.bf16.mxu0 0
      %3418 = vmatpush1.bf16.msra.mxu0 0
      %3419 = vmatprep.subr.bf16.mxu0 0
      %3420 = vmatpush1.bf16.msra.mxu0 0
      %3421 = vmatprep.mubr.bf16.mxu0 0
      %3422 = vmatmul.mubr.bf16.gmra.mrb[0].mxu0 %v3366
      %v3423 = vpop.f32.mrb[0].mxu0
      %v3424 = vadd.f32 0.0, %v3423
      %v3425 = vpop.f32.mrb[0].mxu0
      %v3426 = vadd.f32 0.0, %v3425
      %v3427 = vpop.f32.mrb[0].mxu0
      %v3428 = vadd.f32 0.0, %v3427
      %v3429 = vpop.f32.mrb[0].mxu0
      %v3430 = vadd.f32 0.0, %v3429
      %3431 = vmatprep.mubr.bf16.mxu0 0
      %3432 = vmatmul.mubr.bf16.gmra.mrb[0].mxu0 %v3369
      %v3433 = vpop.f32.mrb[0].mxu0
      %v3434 = vadd.f32 0.0, %v3433
      %v3435 = vpop.f32.mrb[0].mxu0
      %v3436 = vadd.f32 0.0, %v3435
      %v3437 = vpop.f32.mrb[0].mxu0
      %v3438 = vadd.f32 0.0, %v3437
      %v3439 = vpop.f32.mrb[0].mxu0
      %v3440 = vadd.f32 0.0, %v3439
      %3441 = vmatprep.mubr.bf16.mxu0 0
      %3442 = vmatmul.mubr.bf16.gmra.mrb[0].mxu0 %v3372
      %v3443 = vpop.f32.mrb[0].mxu0
      %v3444 = vadd.f32 0.0, %v3443
      %v3445 = vpop.f32.mrb[0].mxu0
      %v3446 = vadd.f32 0.0, %v3445
      %v3447 = vpop.f32.mrb[0].mxu0
      %v3448 = vadd.f32 0.0, %v3447
      %v3449 = vpop.f32.mrb[0].mxu0
      %v3450 = vadd.f32 0.0, %v3449
      %3451 = vmatprep.mubr.bf16.mxu0 0
      %3452 = vmatmul.mubr.bf16.gmra.mrb[0].mxu0 %v3375
      %v3453 = vpop.f32.mrb[0].mxu0
      %v3454 = vadd.f32 0.0, %v3453
      %v3455 = vpop.f32.mrb[0].mxu0
      %v3456 = vadd.f32 0.0, %v3455
      %v3457 = vpop.f32.mrb[0].mxu0
      %v3458 = vadd.f32 0.0, %v3457
      %v3459 = vpop.f32.mrb[0].mxu0
      %v3460 = vadd.f32 0.0, %v3459
      %3461 = vmatprep.mubr.bf16.mxu0 0
      %3462 = vmatmul.mubr.bf16.gmra.mrb[0].mxu0 %v3378
      %v3463 = vpop.f32.mrb[0].mxu0
      %v3464 = vadd.f32 0.0, %v3463
      %v3465 = vpop.f32.mrb[0].mxu0
      %v3466 = vadd.f32 0.0, %v3465
      %v3467 = vpop.f32.mrb[0].mxu0
      %v3468 = vadd.f32 0.0, %v3467
      %v3469 = vpop.f32.mrb[0].mxu0
      %v3470 = vadd.f32 0.0, %v3469
      %3471 = vmatprep.mubr.bf16.mxu0 0
      %3472 = vmatmul.mubr.bf16.gmra.mrb[0].mxu0 %v3381
      %v3473 = vpop.f32.mrb[0].mxu0
      %v3474 = vadd.f32 0.0, %v3473
      %v3475 = vpop.f32.mrb[0].mxu0
      %v3476 = vadd.f32 0.0, %v3475
      %v3477 = vpop.f32.mrb[0].mxu0
      %v3478 = vadd.f32 0.0, %v3477
      %v3479 = vpop.f32.mrb[0].mxu0
      %v3480 = vadd.f32 0.0, %v3479
      %3481 = vmatprep.mubr.bf16.mxu0 0
      %3482 = vmatmul.mubr.bf16.gmra.mrb[0].mxu0 %v3384
      %v3483 = vpop.f32.mrb[0].mxu0
      %v3484 = vadd.f32 0.0, %v3483
      %v3485 = vpop.f32.mrb[0].mxu0
      %v3486 = vadd.f32 0.0, %v3485
      %v3487 = vpop.f32.mrb[0].mxu0
      %v3488 = vadd.f32 0.0, %v3487
      %v3489 = vpop.f32.mrb[0].mxu0
      %v3490 = vadd.f32 0.0, %v3489
      %3491 = vmatprep.mubr.bf16.mxu0 0
      %3492 = vmatmul.mubr.bf16.gmra.mrb[0].mxu0 %v3387
      %v3493 = vpop.f32.mrb[0].mxu0
      %v3494 = vadd.f32 0.0, %v3493
      %v3495 = vpop.f32.mrb[0].mxu0
      %v3496 = vadd.f32 0.0, %v3495
      %v3497 = vpop.f32.mrb[0].mxu0
      %v3498 = vadd.f32 0.0, %v3497
      %v3499 = vpop.f32.mrb[0].mxu0
      %v3500 = vadd.f32 0.0, %v3499
      %3501 = vdwg.mxu0
      %v3502 = vadd.f32 %v3268, %v3424
      %v3503 = vadd.f32 %v3269, %v3426
      %v3504 = vadd.f32 %v3270, %v3428
      %v3505 = vadd.f32 %v3271, %v3430
      %v3506 = vadd.f32 %v3272, %v3434
      %v3507 = vadd.f32 %v3273, %v3436
      %v3508 = vadd.f32 %v3274, %v3438
      %v3509 = vadd.f32 %v3275, %v3440
      %v3510 = vadd.f32 %v3276, %v3444
      %v3511 = vadd.f32 %v3277, %v3446
      %v3512 = vadd.f32 %v3278, %v3448
      %v3513 = vadd.f32 %v3279, %v3450
      %v3514 = vadd.f32 %v3280, %v3454
      %v3515 = vadd.f32 %v3281, %v3456
      %v3516 = vadd.f32 %v3282, %v3458
      %v3517 = vadd.f32 %v3283, %v3460
      %v3518 = vadd.f32 %v3284, %v3464
      %v3519 = vadd.f32 %v3285, %v3466
      %v3520 = vadd.f32 %v3286, %v3468
      %v3521 = vadd.f32 %v3287, %v3470
      %v3522 = vadd.f32 %v3288, %v3474
      %v3523 = vadd.f32 %v3289, %v3476
      %v3524 = vadd.f32 %v3290, %v3478
      %v3525 = vadd.f32 %v3291, %v3480
      %v3526 = vadd.f32 %v3292, %v3484
      %v3527 = vadd.f32 %v3293, %v3486
      %v3528 = vadd.f32 %v3294, %v3488
      %v3529 = vadd.f32 %v3295, %v3490
      %v3530 = vadd.f32 %v3296, %v3494
      %v3531 = vadd.f32 %v3297, %v3496
      %v3532 = vadd.f32 %v3298, %v3498
      %v3533 = vadd.f32 %v3299, %v3500
      %3534 = vrot.lane.b32.xlu0 %v2986, 127
      %v3535 = vpop.permute.xlu0 %3534
      %3536 = vrot.lane.b32.xlu0 %v2988, 127
      %v3537 = vpop.permute.xlu0 %3536
      %3538 = vrot.lane.b32.xlu0 %v2990, 127
      %v3539 = vpop.permute.xlu0 %3538
      %3540 = vrot.lane.b32.xlu0 %v2992, 127
      %v3541 = vpop.permute.xlu0 %3540
      %3542 = vrot.lane.b32.xlu0 %v2994, 127
      %v3543 = vpop.permute.xlu0 %3542
      %3544 = vrot.lane.b32.xlu0 %v2996, 127
      %v3545 = vpop.permute.xlu0 %3544
      %3546 = vrot.lane.b32.xlu0 %v2998, 127
      %v3547 = vpop.permute.xlu0 %3546
      %3548 = vrot.lane.b32.xlu0 %v3000, 127
      %v3549 = vpop.permute.xlu0 %3548
      %3550 = vrot.lane.b32.xlu0 %v2987, 127
      %v3551 = vpop.permute.xlu0 %3550
      %3552 = vrot.lane.b32.xlu0 %v2989, 127
      %v3553 = vpop.permute.xlu0 %3552
      %3554 = vrot.lane.b32.xlu0 %v2991, 127
      %v3555 = vpop.permute.xlu0 %3554
      %3556 = vrot.lane.b32.xlu0 %v2993, 127
      %v3557 = vpop.permute.xlu0 %3556
      %3558 = vrot.lane.b32.xlu0 %v2995, 127
      %v3559 = vpop.permute.xlu0 %3558
      %3560 = vrot.lane.b32.xlu0 %v2997, 127
      %v3561 = vpop.permute.xlu0 %3560
      %3562 = vrot.lane.b32.xlu0 %v2999, 127
      %v3563 = vpop.permute.xlu0 %3562
      %3564 = vrot.lane.b32.xlu0 %v3001, 127
      %v3565 = vpop.permute.xlu0 %3564
      %v3566 = vsel %vm646, %v3535, %v3551
      %v3567 = vsel %vm646, %v3537, %v3553
      %v3568 = vsel %vm646, %v3539, %v3555
      %v3569 = vsel %vm646, %v3541, %v3557
      %v3570 = vsel %vm646, %v3543, %v3559
      %v3571 = vsel %vm646, %v3545, %v3561
      %v3572 = vsel %vm646, %v3547, %v3563
      %v3573 = vsel %vm646, %v3549, %v3565
      %v3574 = vsel %vm646, %v3551, %v3535
      %v3575 = vsel %vm646, %v3553, %v3537
      %v3576 = vsel %vm646, %v3555, %v3539
      %v3577 = vsel %vm646, %v3557, %v3541
      %v3578 = vsel %vm646, %v3559, %v3543
      %v3579 = vsel %vm646, %v3561, %v3545
      %v3580 = vsel %vm646, %v3563, %v3547
      %v3581 = vsel %vm646, %v3565, %v3549
      %v3582 = vsel %vm653, %v2986, %v3566
      %v3583 = vsel %vm654, %v2987, %v3574
      %v3584 = vsel %vm653, %v2988, %v3567
      %v3585 = vsel %vm654, %v2989, %v3575
      %v3586 = vsel %vm653, %v2990, %v3568
      %v3587 = vsel %vm654, %v2991, %v3576
      %v3588 = vsel %vm653, %v2992, %v3569
      %v3589 = vsel %vm654, %v2993, %v3577
      %v3590 = vsel %vm653, %v2994, %v3570
      %v3591 = vsel %vm654, %v2995, %v3578
      %v3592 = vsel %vm653, %v2996, %v3571
      %v3593 = vsel %vm654, %v2997, %v3579
      %v3594 = vsel %vm653, %v2998, %v3572
      %v3595 = vsel %vm654, %v2999, %v3580
      %v3596 = vsel %vm653, %v3000, %v3573
      %v3597 = vsel %vm654, %v3001, %v3581
      %s3598 = scalar_lea.vmem %s5, 128
      %v3599 = vld [vmem:[%s3598] sm:$0xf]
      %v3600 = vld [vmem:[%s3598 + $0x4] sm:$0xf]
      %v3601 = vld [vmem:[%s3598 + $0x8] sm:$0xf]
      %v3602 = vld [vmem:[%s3598 + $0xc] sm:$0xf]
      %v3603 = vld [vmem:[%s3598 + $0x10] sm:$0xf]
      %v3604 = vld [vmem:[%s3598 + $0x14] sm:$0xf]
      %v3605 = vld [vmem:[%s3598 + $0x18] sm:$0xf]
      %v3606 = vld [vmem:[%s3598 + $0x1c] sm:$0xf]
      %v3607 = vld [vmem:[%s3598 + $0x20] sm:$0xf]
      %v3608 = vld [vmem:[%s3598 + $0x24] sm:$0xf]
      %v3609 = vld [vmem:[%s3598 + $0x28] sm:$0xf]
      %v3610 = vld [vmem:[%s3598 + $0x2c] sm:$0xf]
      %v3611 = vld [vmem:[%s3598 + $0x30] sm:$0xf]
      %v3612 = vld [vmem:[%s3598 + $0x34] sm:$0xf]
      %v3613 = vld [vmem:[%s3598 + $0x38] sm:$0xf]
      %v3614 = vld [vmem:[%s3598 + $0x3c] sm:$0xf]
      %v3615 = vpack.c.bf16 %v3584, %v3582
      %v3616 = vpack.c.bf16 %v3585, %v3583
      %v3617 = vpack.c.bf16 %v3588, %v3586
      %v3618 = vpack.c.bf16 %v3589, %v3587
      %v3619 = vpack.c.bf16 %v3592, %v3590
      %v3620 = vpack.c.bf16 %v3593, %v3591
      %v3621 = vpack.c.bf16 %v3596, %v3594
      %v3622 = vpack.c.bf16 %v3597, %v3595
      %v3639 = vunpack.c.l.b16 %v3599
      %v3640 = vunpack.c.l.b16 %v3600
      %v3641 = vunpack.c.l.b16 %v3601
      %v3642 = vunpack.c.l.b16 %v3602
      %v3643 = vunpack.c.l.b16 %v3603
      %v3644 = vunpack.c.l.b16 %v3604
      %v3645 = vunpack.c.l.b16 %v3605
      %v3646 = vunpack.c.l.b16 %v3606
      %v3647 = vunpack.c.l.b16 %v3607
      %v3648 = vunpack.c.l.b16 %v3608
      %v3649 = vunpack.c.l.b16 %v3609
      %v3650 = vunpack.c.l.b16 %v3610
      %v3651 = vunpack.c.l.b16 %v3611
      %v3652 = vunpack.c.l.b16 %v3612
      %v3653 = vunpack.c.l.b16 %v3613
      %v3654 = vunpack.c.l.b16 %v3614
      %v3655 = vpack.c.b16 %v3640, %v3639
      %v3656 = vpack.c.b16 %v3642, %v3641
      %v3657 = vpack.c.b16 %v3644, %v3643
      %v3658 = vpack.c.b16 %v3646, %v3645
      %v3659 = vpack.c.b16 %v3648, %v3647
      %v3660 = vpack.c.b16 %v3650, %v3649
      %v3661 = vpack.c.b16 %v3652, %v3651
      %v3662 = vpack.c.b16 %v3654, %v3653
      %v3664 = vsel %vm3130, %v3655, 0
      %v3667 = vsel %vm3130, %v3656, 0
      %v3670 = vsel %vm3130, %v3657, 0
      %v3673 = vsel %vm3130, %v3658, 0
      %v3676 = vsel %vm3130, %v3659, 0
      %v3679 = vsel %vm3130, %v3660, 0
      %v3682 = vsel %vm3130, %v3661, 0
      %v3685 = vsel %vm3130, %v3662, 0
      %3687 = vmatprep.subr.bf16.mxu0 %v3616
      %3688 = vmatpush1.bf16.msra.mxu0 %v3615
      %3689 = vmatprep.subr.bf16.mxu0 %v3618
      %3690 = vmatpush1.bf16.msra.mxu0 %v3617
      %3691 = vmatprep.subr.bf16.mxu0 %v3620
      %3692 = vmatpush1.bf16.msra.mxu0 %v3619
      %3693 = vmatprep.subr.bf16.mxu0 %v3622
      %3694 = vmatpush1.bf16.msra.mxu0 %v3621
      %3695 = vmatprep.subr.bf16.mxu0 0
      %3696 = vmatpush1.bf16.msra.mxu0 0
      %3697 = vmatprep.subr.bf16.mxu0 0
      %3698 = vmatpush1.bf16.msra.mxu0 0
      %3699 = vmatprep.subr.bf16.mxu0 0
      %3700 = vmatpush1.bf16.msra.mxu0 0
      %3701 = vmatprep.subr.bf16.mxu0 0
      %3702 = vmatpush1.bf16.msra.mxu0 0
      %3703 = vmatprep.subr.bf16.mxu0 0
      %3704 = vmatpush1.bf16.msra.mxu0 0
      %3705 = vmatprep.subr.bf16.mxu0 0
      %3706 = vmatpush1.bf16.msra.mxu0 0
      %3707 = vmatprep.subr.bf16.mxu0 0
      %3708 = vmatpush1.bf16.msra.mxu0 0
      %3709 = vmatprep.subr.bf16.mxu0 0
      %3710 = vmatpush1.bf16.msra.mxu0 0
      %3711 = vmatprep.subr.bf16.mxu0 0
      %3712 = vmatpush1.bf16.msra.mxu0 0
      %3713 = vmatprep.subr.bf16.mxu0 0
      %3714 = vmatpush1.bf16.msra.mxu0 0
      %3715 = vmatprep.subr.bf16.mxu0 0
      %3716 = vmatpush1.bf16.msra.mxu0 0
      %3717 = vmatprep.subr.bf16.mxu0 0
      %3718 = vmatpush1.bf16.msra.mxu0 0
      %3719 = vmatprep.mubr.bf16.mxu0 0
      %3720 = vmatmul.mubr.bf16.gmra.mrb[0].mxu0 %v3664
      %v3721 = vpop.f32.mrb[0].mxu0
      %v3722 = vadd.f32 0.0, %v3721
      %v3723 = vpop.f32.mrb[0].mxu0
      %v3724 = vadd.f32 0.0, %v3723
      %v3725 = vpop.f32.mrb[0].mxu0
      %v3726 = vadd.f32 0.0, %v3725
      %v3727 = vpop.f32.mrb[0].mxu0
      %v3728 = vadd.f32 0.0, %v3727
      %3729 = vmatprep.mubr.bf16.mxu0 0
      %3730 = vmatmul.mubr.bf16.gmra.mrb[0].mxu0 %v3667
      %v3731 = vpop.f32.mrb[0].mxu0
      %v3732 = vadd.f32 0.0, %v3731
      %v3733 = vpop.f32.mrb[0].mxu0
      %v3734 = vadd.f32 0.0, %v3733
      %v3735 = vpop.f32.mrb[0].mxu0
      %v3736 = vadd.f32 0.0, %v3735
      %v3737 = vpop.f32.mrb[0].mxu0
      %v3738 = vadd.f32 0.0, %v3737
      %3739 = vmatprep.mubr.bf16.mxu0 0
      %3740 = vmatmul.mubr.bf16.gmra.mrb[0].mxu0 %v3670
      %v3741 = vpop.f32.mrb[0].mxu0
      %v3742 = vadd.f32 0.0, %v3741
      %v3743 = vpop.f32.mrb[0].mxu0
      %v3744 = vadd.f32 0.0, %v3743
      %v3745 = vpop.f32.mrb[0].mxu0
      %v3746 = vadd.f32 0.0, %v3745
      %v3747 = vpop.f32.mrb[0].mxu0
      %v3748 = vadd.f32 0.0, %v3747
      %3749 = vmatprep.mubr.bf16.mxu0 0
      %3750 = vmatmul.mubr.bf16.gmra.mrb[0].mxu0 %v3673
      %v3751 = vpop.f32.mrb[0].mxu0
      %v3752 = vadd.f32 0.0, %v3751
      %v3753 = vpop.f32.mrb[0].mxu0
      %v3754 = vadd.f32 0.0, %v3753
      %v3755 = vpop.f32.mrb[0].mxu0
      %v3756 = vadd.f32 0.0, %v3755
      %v3757 = vpop.f32.mrb[0].mxu0
      %v3758 = vadd.f32 0.0, %v3757
      %3759 = vmatprep.mubr.bf16.mxu0 0
      %3760 = vmatmul.mubr.bf16.gmra.mrb[0].mxu0 %v3676
      %v3761 = vpop.f32.mrb[0].mxu0
      %v3762 = vadd.f32 0.0, %v3761
      %v3763 = vpop.f32.mrb[0].mxu0
      %v3764 = vadd.f32 0.0, %v3763
      %v3765 = vpop.f32.mrb[0].mxu0
      %v3766 = vadd.f32 0.0, %v3765
      %v3767 = vpop.f32.mrb[0].mxu0
      %v3768 = vadd.f32 0.0, %v3767
      %3769 = vmatprep.mubr.bf16.mxu0 0
      %3770 = vmatmul.mubr.bf16.gmra.mrb[0].mxu0 %v3679
      %v3771 = vpop.f32.mrb[0].mxu0
      %v3772 = vadd.f32 0.0, %v3771
      %v3773 = vpop.f32.mrb[0].mxu0
      %v3774 = vadd.f32 0.0, %v3773
      %v3775 = vpop.f32.mrb[0].mxu0
      %v3776 = vadd.f32 0.0, %v3775
      %v3777 = vpop.f32.mrb[0].mxu0
      %v3778 = vadd.f32 0.0, %v3777
      %3779 = vmatprep.mubr.bf16.mxu0 0
      %3780 = vmatmul.mubr.bf16.gmra.mrb[0].mxu0 %v3682
      %v3781 = vpop.f32.mrb[0].mxu0
      %v3782 = vadd.f32 0.0, %v3781
      %v3783 = vpop.f32.mrb[0].mxu0
      %v3784 = vadd.f32 0.0, %v3783
      %v3785 = vpop.f32.mrb[0].mxu0
      %v3786 = vadd.f32 0.0, %v3785
      %v3787 = vpop.f32.mrb[0].mxu0
      %v3788 = vadd.f32 0.0, %v3787
      %3789 = vmatprep.mubr.bf16.mxu0 0
      %3790 = vmatmul.mubr.bf16.gmra.mrb[0].mxu0 %v3685
      %v3791 = vpop.f32.mrb[0].mxu0
      %v3792 = vadd.f32 0.0, %v3791
      %v3793 = vpop.f32.mrb[0].mxu0
      %v3794 = vadd.f32 0.0, %v3793
      %v3795 = vpop.f32.mrb[0].mxu0
      %v3796 = vadd.f32 0.0, %v3795
      %v3797 = vpop.f32.mrb[0].mxu0
      %v3798 = vadd.f32 0.0, %v3797
      %3799 = vdwg.mxu0
      %v3800 = vadd.f32 %v3502, %v3722
      %v3801 = vadd.f32 %v3503, %v3724
      %v3802 = vadd.f32 %v3504, %v3726
      %v3803 = vadd.f32 %v3505, %v3728
      %v3804 = vadd.f32 %v3506, %v3732
      %v3805 = vadd.f32 %v3507, %v3734
      %v3806 = vadd.f32 %v3508, %v3736
      %v3807 = vadd.f32 %v3509, %v3738
      %v3808 = vadd.f32 %v3510, %v3742
      %v3809 = vadd.f32 %v3511, %v3744
      %v3810 = vadd.f32 %v3512, %v3746
      %v3811 = vadd.f32 %v3513, %v3748
      %v3812 = vadd.f32 %v3514, %v3752
      %v3813 = vadd.f32 %v3515, %v3754
      %v3814 = vadd.f32 %v3516, %v3756
      %v3815 = vadd.f32 %v3517, %v3758
      %v3816 = vadd.f32 %v3518, %v3762
      %v3817 = vadd.f32 %v3519, %v3764
      %v3818 = vadd.f32 %v3520, %v3766
      %v3819 = vadd.f32 %v3521, %v3768
      %v3820 = vadd.f32 %v3522, %v3772
      %v3821 = vadd.f32 %v3523, %v3774
      %v3822 = vadd.f32 %v3524, %v3776
      %v3823 = vadd.f32 %v3525, %v3778
      %v3824 = vadd.f32 %v3526, %v3782
      %v3825 = vadd.f32 %v3527, %v3784
      %v3826 = vadd.f32 %v3528, %v3786
      %v3827 = vadd.f32 %v3529, %v3788
      %v3828 = vadd.f32 %v3530, %v3792
      %v3829 = vadd.f32 %v3531, %v3794
      %v3830 = vadd.f32 %v3532, %v3796
      %v3831 = vadd.f32 %v3533, %v3798
      %3832 = vrot.lane.b32.xlu0 %v2826, 1
      %v3833 = vpop.permute.xlu0 %3832
      %3834 = vrot.lane.b32.xlu0 %v2828, 1
      %v3835 = vpop.permute.xlu0 %3834
      %3836 = vrot.lane.b32.xlu0 %v2830, 1
      %v3837 = vpop.permute.xlu0 %3836
      %3838 = vrot.lane.b32.xlu0 %v2832, 1
      %v3839 = vpop.permute.xlu0 %3838
      %3840 = vrot.lane.b32.xlu0 %v2834, 1
      %v3841 = vpop.permute.xlu0 %3840
      %3842 = vrot.lane.b32.xlu0 %v2836, 1
      %v3843 = vpop.permute.xlu0 %3842
      %3844 = vrot.lane.b32.xlu0 %v2838, 1
      %v3845 = vpop.permute.xlu0 %3844
      %3846 = vrot.lane.b32.xlu0 %v2840, 1
      %v3847 = vpop.permute.xlu0 %3846
      %3848 = vrot.lane.b32.xlu0 %v2827, 1
      %v3849 = vpop.permute.xlu0 %3848
      %3850 = vrot.lane.b32.xlu0 %v2829, 1
      %v3851 = vpop.permute.xlu0 %3850
      %3852 = vrot.lane.b32.xlu0 %v2831, 1
      %v3853 = vpop.permute.xlu0 %3852
      %3854 = vrot.lane.b32.xlu0 %v2833, 1
      %v3855 = vpop.permute.xlu0 %3854
      %3856 = vrot.lane.b32.xlu0 %v2835, 1
      %v3857 = vpop.permute.xlu0 %3856
      %3858 = vrot.lane.b32.xlu0 %v2837, 1
      %v3859 = vpop.permute.xlu0 %3858
      %3860 = vrot.lane.b32.xlu0 %v2839, 1
      %v3861 = vpop.permute.xlu0 %3860
      %3862 = vrot.lane.b32.xlu0 %v2841, 1
      %v3863 = vpop.permute.xlu0 %3862
      %v3864 = vsel %vm457, %v3833, %v3849
      %v3865 = vsel %vm457, %v3835, %v3851
      %v3866 = vsel %vm457, %v3837, %v3853
      %v3867 = vsel %vm457, %v3839, %v3855
      %v3868 = vsel %vm457, %v3841, %v3857
      %v3869 = vsel %vm457, %v3843, %v3859
      %v3870 = vsel %vm457, %v3845, %v3861
      %v3871 = vsel %vm457, %v3847, %v3863
      %v3872 = vsel %vm457, %v3849, %v3833
      %v3873 = vsel %vm457, %v3851, %v3835
      %v3874 = vsel %vm457, %v3853, %v3837
      %v3875 = vsel %vm457, %v3855, %v3839
      %v3876 = vsel %vm457, %v3857, %v3841
      %v3877 = vsel %vm457, %v3859, %v3843
      %v3878 = vsel %vm457, %v3861, %v3845
      %v3879 = vsel %vm457, %v3863, %v3847
      %v3880 = vsel %vm464, %v2826, %v3872
      %v3881 = vsel %vm465, %v2827, %v3864
      %v3882 = vsel %vm464, %v2828, %v3873
      %v3883 = vsel %vm465, %v2829, %v3865
      %v3884 = vsel %vm464, %v2830, %v3874
      %v3885 = vsel %vm465, %v2831, %v3866
      %v3886 = vsel %vm464, %v2832, %v3875
      %v3887 = vsel %vm465, %v2833, %v3867
      %v3888 = vsel %vm464, %v2834, %v3876
      %v3889 = vsel %vm465, %v2835, %v3868
      %v3890 = vsel %vm464, %v2836, %v3877
      %v3891 = vsel %vm465, %v2837, %v3869
      %v3892 = vsel %vm464, %v2838, %v3878
      %v3893 = vsel %vm465, %v2839, %v3870
      %v3894 = vsel %vm464, %v2840, %v3879
      %v3895 = vsel %vm465, %v2841, %v3871
      %s3896 = scalar_lea.vmem %s5, 192
      %v3897 = vld [vmem:[%s3896] sm:$0xf]
      %v3898 = vld [vmem:[%s3896 + $0x4] sm:$0xf]
      %v3899 = vld [vmem:[%s3896 + $0x8] sm:$0xf]
      %v3900 = vld [vmem:[%s3896 + $0xc] sm:$0xf]
      %v3901 = vld [vmem:[%s3896 + $0x10] sm:$0xf]
      %v3902 = vld [vmem:[%s3896 + $0x14] sm:$0xf]
      %v3903 = vld [vmem:[%s3896 + $0x18] sm:$0xf]
      %v3904 = vld [vmem:[%s3896 + $0x1c] sm:$0xf]
      %v3905 = vld [vmem:[%s3896 + $0x20] sm:$0xf]
      %v3906 = vld [vmem:[%s3896 + $0x24] sm:$0xf]
      %v3907 = vld [vmem:[%s3896 + $0x28] sm:$0xf]
      %v3908 = vld [vmem:[%s3896 + $0x2c] sm:$0xf]
      %v3909 = vld [vmem:[%s3896 + $0x30] sm:$0xf]
      %v3910 = vld [vmem:[%s3896 + $0x34] sm:$0xf]
      %v3911 = vld [vmem:[%s3896 + $0x38] sm:$0xf]
      %v3912 = vld [vmem:[%s3896 + $0x3c] sm:$0xf]
      %v3913 = vpack.c.bf16 %v3882, %v3880
      %v3914 = vpack.c.bf16 %v3883, %v3881
      %v3915 = vpack.c.bf16 %v3886, %v3884
      %v3916 = vpack.c.bf16 %v3887, %v3885
      %v3917 = vpack.c.bf16 %v3890, %v3888
      %v3918 = vpack.c.bf16 %v3891, %v3889
      %v3919 = vpack.c.bf16 %v3894, %v3892
      %v3920 = vpack.c.bf16 %v3895, %v3893
      %v3937 = vunpack.c.l.b16 %v3897
      %v3938 = vunpack.c.l.b16 %v3898
      %v3939 = vunpack.c.l.b16 %v3899
      %v3940 = vunpack.c.l.b16 %v3900
      %v3941 = vunpack.c.l.b16 %v3901
      %v3942 = vunpack.c.l.b16 %v3902
      %v3943 = vunpack.c.l.b16 %v3903
      %v3944 = vunpack.c.l.b16 %v3904
      %v3945 = vunpack.c.l.b16 %v3905
      %v3946 = vunpack.c.l.b16 %v3906
      %v3947 = vunpack.c.l.b16 %v3907
      %v3948 = vunpack.c.l.b16 %v3908
      %v3949 = vunpack.c.l.b16 %v3909
      %v3950 = vunpack.c.l.b16 %v3910
      %v3951 = vunpack.c.l.b16 %v3911
      %v3952 = vunpack.c.l.b16 %v3912
      %v3953 = vpack.c.b16 %v3938, %v3937
      %v3954 = vpack.c.b16 %v3940, %v3939
      %v3955 = vpack.c.b16 %v3942, %v3941
      %v3956 = vpack.c.b16 %v3944, %v3943
      %v3957 = vpack.c.b16 %v3946, %v3945
      %v3958 = vpack.c.b16 %v3948, %v3947
      %v3959 = vpack.c.b16 %v3950, %v3949
      %v3960 = vpack.c.b16 %v3952, %v3951
      %v3962 = vsel %vm3130, %v3953, 0
      %v3965 = vsel %vm3130, %v3954, 0
      %v3968 = vsel %vm3130, %v3955, 0
      %v3971 = vsel %vm3130, %v3956, 0
      %v3974 = vsel %vm3130, %v3957, 0
      %v3977 = vsel %vm3130, %v3958, 0
      %v3980 = vsel %vm3130, %v3959, 0
      %v3983 = vsel %vm3130, %v3960, 0
      %3985 = vmatprep.subr.bf16.mxu0 %v3914
      %3986 = vmatpush1.bf16.msra.mxu0 %v3913
      %3987 = vmatprep.subr.bf16.mxu0 %v3916
      %3988 = vmatpush1.bf16.msra.mxu0 %v3915
      %3989 = vmatprep.subr.bf16.mxu0 %v3918
      %3990 = vmatpush1.bf16.msra.mxu0 %v3917
      %3991 = vmatprep.subr.bf16.mxu0 %v3920
      %3992 = vmatpush1.bf16.msra.mxu0 %v3919
      %3993 = vmatprep.subr.bf16.mxu0 0
      %3994 = vmatpush1.bf16.msra.mxu0 0
      %3995 = vmatprep.subr.bf16.mxu0 0
      %3996 = vmatpush1.bf16.msra.mxu0 0
      %3997 = vmatprep.subr.bf16.mxu0 0
      %3998 = vmatpush1.bf16.msra.mxu0 0
      %3999 = vmatprep.subr.bf16.mxu0 0
      %4000 = vmatpush1.bf16.msra.mxu0 0
      %4001 = vmatprep.subr.bf16.mxu0 0
      %4002 = vmatpush1.bf16.msra.mxu0 0
      %4003 = vmatprep.subr.bf16.mxu0 0
      %4004 = vmatpush1.bf16.msra.mxu0 0
      %4005 = vmatprep.subr.bf16.mxu0 0
      %4006 = vmatpush1.bf16.msra.mxu0 0
      %4007 = vmatprep.subr.bf16.mxu0 0
      %4008 = vmatpush1.bf16.msra.mxu0 0
      %4009 = vmatprep.subr.bf16.mxu0 0
      %4010 = vmatpush1.bf16.msra.mxu0 0
      %4011 = vmatprep.subr.bf16.mxu0 0
      %4012 = vmatpush1.bf16.msra.mxu0 0
      %4013 = vmatprep.subr.bf16.mxu0 0
      %4014 = vmatpush1.bf16.msra.mxu0 0
      %4015 = vmatprep.subr.bf16.mxu0 0
      %4016 = vmatpush1.bf16.msra.mxu0 0
      %4017 = vmatprep.mubr.bf16.mxu0 0
      %4018 = vmatmul.mubr.bf16.gmra.mrb[0].mxu0 %v3962
      %v4019 = vpop.f32.mrb[0].mxu0
      %v4020 = vadd.f32 0.0, %v4019
      %v4021 = vpop.f32.mrb[0].mxu0
      %v4022 = vadd.f32 0.0, %v4021
      %v4023 = vpop.f32.mrb[0].mxu0
      %v4024 = vadd.f32 0.0, %v4023
      %v4025 = vpop.f32.mrb[0].mxu0
      %v4026 = vadd.f32 0.0, %v4025
      %4027 = vmatprep.mubr.bf16.mxu0 0
      %4028 = vmatmul.mubr.bf16.gmra.mrb[0].mxu0 %v3965
      %v4029 = vpop.f32.mrb[0].mxu0
      %v4030 = vadd.f32 0.0, %v4029
      %v4031 = vpop.f32.mrb[0].mxu0
      %v4032 = vadd.f32 0.0, %v4031
      %v4033 = vpop.f32.mrb[0].mxu0
      %v4034 = vadd.f32 0.0, %v4033
      %v4035 = vpop.f32.mrb[0].mxu0
      %v4036 = vadd.f32 0.0, %v4035
      %4037 = vmatprep.mubr.bf16.mxu0 0
      %4038 = vmatmul.mubr.bf16.gmra.mrb[0].mxu0 %v3968
      %v4039 = vpop.f32.mrb[0].mxu0
      %v4040 = vadd.f32 0.0, %v4039
      %v4041 = vpop.f32.mrb[0].mxu0
      %v4042 = vadd.f32 0.0, %v4041
      %v4043 = vpop.f32.mrb[0].mxu0
      %v4044 = vadd.f32 0.0, %v4043
      %v4045 = vpop.f32.mrb[0].mxu0
      %v4046 = vadd.f32 0.0, %v4045
      %4047 = vmatprep.mubr.bf16.mxu0 0
      %4048 = vmatmul.mubr.bf16.gmra.mrb[0].mxu0 %v3971
      %v4049 = vpop.f32.mrb[0].mxu0
      %v4050 = vadd.f32 0.0, %v4049
      %v4051 = vpop.f32.mrb[0].mxu0
      %v4052 = vadd.f32 0.0, %v4051
      %v4053 = vpop.f32.mrb[0].mxu0
      %v4054 = vadd.f32 0.0, %v4053
      %v4055 = vpop.f32.mrb[0].mxu0
      %v4056 = vadd.f32 0.0, %v4055
      %4057 = vmatprep.mubr.bf16.mxu0 0
      %4058 = vmatmul.mubr.bf16.gmra.mrb[0].mxu0 %v3974
      %v4059 = vpop.f32.mrb[0].mxu0
      %v4060 = vadd.f32 0.0, %v4059
      %v4061 = vpop.f32.mrb[0].mxu0
      %v4062 = vadd.f32 0.0, %v4061
      %v4063 = vpop.f32.mrb[0].mxu0
      %v4064 = vadd.f32 0.0, %v4063
      %v4065 = vpop.f32.mrb[0].mxu0
      %v4066 = vadd.f32 0.0, %v4065
      %4067 = vmatprep.mubr.bf16.mxu0 0
      %4068 = vmatmul.mubr.bf16.gmra.mrb[0].mxu0 %v3977
      %v4069 = vpop.f32.mrb[0].mxu0
      %v4070 = vadd.f32 0.0, %v4069
      %v4071 = vpop.f32.mrb[0].mxu0
      %v4072 = vadd.f32 0.0, %v4071
      %v4073 = vpop.f32.mrb[0].mxu0
      %v4074 = vadd.f32 0.0, %v4073
      %v4075 = vpop.f32.mrb[0].mxu0
      %v4076 = vadd.f32 0.0, %v4075
      %4077 = vmatprep.mubr.bf16.mxu0 0
      %4078 = vmatmul.mubr.bf16.gmra.mrb[0].mxu0 %v3980
      %v4079 = vpop.f32.mrb[0].mxu0
      %v4080 = vadd.f32 0.0, %v4079
      %v4081 = vpop.f32.mrb[0].mxu0
      %v4082 = vadd.f32 0.0, %v4081
      %v4083 = vpop.f32.mrb[0].mxu0
      %v4084 = vadd.f32 0.0, %v4083
      %v4085 = vpop.f32.mrb[0].mxu0
      %v4086 = vadd.f32 0.0, %v4085
      %4087 = vmatprep.mubr.bf16.mxu0 0
      %4088 = vmatmul.mubr.bf16.gmra.mrb[0].mxu0 %v3983
      %v4089 = vpop.f32.mrb[0].mxu0
      %v4090 = vadd.f32 0.0, %v4089
      %v4091 = vpop.f32.mrb[0].mxu0
      %v4092 = vadd.f32 0.0, %v4091
      %v4093 = vpop.f32.mrb[0].mxu0
      %v4094 = vadd.f32 0.0, %v4093
      %v4095 = vpop.f32.mrb[0].mxu0
      %v4096 = vadd.f32 0.0, %v4095
      %4097 = vdwg.mxu0
      %v4098 = vadd.f32 %v3800, %v4020
      %v4099 = vadd.f32 %v3801, %v4022
      %v4100 = vadd.f32 %v3802, %v4024
      %v4101 = vadd.f32 %v3803, %v4026
      %v4102 = vadd.f32 %v3804, %v4030
      %v4103 = vadd.f32 %v3805, %v4032
      %v4104 = vadd.f32 %v3806, %v4034
      %v4105 = vadd.f32 %v3807, %v4036
      %v4106 = vadd.f32 %v3808, %v4040
      %v4107 = vadd.f32 %v3809, %v4042
      %v4108 = vadd.f32 %v3810, %v4044
      %v4109 = vadd.f32 %v3811, %v4046
      %v4110 = vadd.f32 %v3812, %v4050
      %v4111 = vadd.f32 %v3813, %v4052
      %v4112 = vadd.f32 %v3814, %v4054
      %v4113 = vadd.f32 %v3815, %v4056
      %v4114 = vadd.f32 %v3816, %v4060
      %v4115 = vadd.f32 %v3817, %v4062
      %v4116 = vadd.f32 %v3818, %v4064
      %v4117 = vadd.f32 %v3819, %v4066
      %v4118 = vadd.f32 %v3820, %v4070
      %v4119 = vadd.f32 %v3821, %v4072
      %v4120 = vadd.f32 %v3822, %v4074
      %v4121 = vadd.f32 %v3823, %v4076
      %v4122 = vadd.f32 %v3824, %v4080
      %v4123 = vadd.f32 %v3825, %v4082
      %v4124 = vadd.f32 %v3826, %v4084
      %v4125 = vadd.f32 %v3827, %v4086
      %v4126 = vadd.f32 %v3828, %v4090
      %v4127 = vadd.f32 %v3829, %v4092
      %v4128 = vadd.f32 %v3830, %v4094
      %v4129 = vadd.f32 %v3831, %v4096
      %s4130 = scalar_lea.vmem %s5, 256
      %v4131 = vld [vmem:[%s4130] sm:$0xf]
      %v4132 = vld [vmem:[%s4130 + $0x4] sm:$0xf]
      %v4133 = vld [vmem:[%s4130 + $0x8] sm:$0xf]
      %v4134 = vld [vmem:[%s4130 + $0xc] sm:$0xf]
      %v4135 = vld [vmem:[%s4130 + $0x10] sm:$0xf]
      %v4136 = vld [vmem:[%s4130 + $0x14] sm:$0xf]
      %v4137 = vld [vmem:[%s4130 + $0x18] sm:$0xf]
      %v4138 = vld [vmem:[%s4130 + $0x1c] sm:$0xf]
      %v4139 = vld [vmem:[%s4130 + $0x20] sm:$0xf]
      %v4140 = vld [vmem:[%s4130 + $0x24] sm:$0xf]
      %v4141 = vld [vmem:[%s4130 + $0x28] sm:$0xf]
      %v4142 = vld [vmem:[%s4130 + $0x2c] sm:$0xf]
      %v4143 = vld [vmem:[%s4130 + $0x30] sm:$0xf]
      %v4144 = vld [vmem:[%s4130 + $0x34] sm:$0xf]
      %v4145 = vld [vmem:[%s4130 + $0x38] sm:$0xf]
      %v4146 = vld [vmem:[%s4130 + $0x3c] sm:$0xf]
      %v4147 = vpack.c.bf16 %v2828, %v2826
      %v4148 = vpack.c.bf16 %v2829, %v2827
      %v4149 = vpack.c.bf16 %v2832, %v2830
      %v4150 = vpack.c.bf16 %v2833, %v2831
      %v4151 = vpack.c.bf16 %v2836, %v2834
      %v4152 = vpack.c.bf16 %v2837, %v2835
      %v4153 = vpack.c.bf16 %v2840, %v2838
      %v4154 = vpack.c.bf16 %v2841, %v2839
      %v4171 = vunpack.c.l.b16 %v4131
      %v4172 = vunpack.c.l.b16 %v4132
      %v4173 = vunpack.c.l.b16 %v4133
      %v4174 = vunpack.c.l.b16 %v4134
      %v4175 = vunpack.c.l.b16 %v4135
      %v4176 = vunpack.c.l.b16 %v4136
      %v4177 = vunpack.c.l.b16 %v4137
      %v4178 = vunpack.c.l.b16 %v4138
      %v4179 = vunpack.c.l.b16 %v4139
      %v4180 = vunpack.c.l.b16 %v4140
      %v4181 = vunpack.c.l.b16 %v4141
      %v4182 = vunpack.c.l.b16 %v4142
      %v4183 = vunpack.c.l.b16 %v4143
      %v4184 = vunpack.c.l.b16 %v4144
      %v4185 = vunpack.c.l.b16 %v4145
      %v4186 = vunpack.c.l.b16 %v4146
      %v4187 = vpack.c.b16 %v4172, %v4171
      %v4188 = vpack.c.b16 %v4174, %v4173
      %v4189 = vpack.c.b16 %v4176, %v4175
      %v4190 = vpack.c.b16 %v4178, %v4177
      %v4191 = vpack.c.b16 %v4180, %v4179
      %v4192 = vpack.c.b16 %v4182, %v4181
      %v4193 = vpack.c.b16 %v4184, %v4183
      %v4194 = vpack.c.b16 %v4186, %v4185
      %v4196 = vsel %vm3130, %v4187, 0
      %v4199 = vsel %vm3130, %v4188, 0
      %v4202 = vsel %vm3130, %v4189, 0
      %v4205 = vsel %vm3130, %v4190, 0
      %v4208 = vsel %vm3130, %v4191, 0
      %v4211 = vsel %vm3130, %v4192, 0
      %v4214 = vsel %vm3130, %v4193, 0
      %v4217 = vsel %vm3130, %v4194, 0
      %4219 = vmatprep.subr.bf16.mxu0 %v4148
      %4220 = vmatpush1.bf16.msra.mxu0 %v4147
      %4221 = vmatprep.subr.bf16.mxu0 %v4150
      %4222 = vmatpush1.bf16.msra.mxu0 %v4149
      %4223 = vmatprep.subr.bf16.mxu0 %v4152
      %4224 = vmatpush1.bf16.msra.mxu0 %v4151
      %4225 = vmatprep.subr.bf16.mxu0 %v4154
      %4226 = vmatpush1.bf16.msra.mxu0 %v4153
      %4227 = vmatprep.subr.bf16.mxu0 0
      %4228 = vmatpush1.bf16.msra.mxu0 0
      %4229 = vmatprep.subr.bf16.mxu0 0
      %4230 = vmatpush1.bf16.msra.mxu0 0
      %4231 = vmatprep.subr.bf16.mxu0 0
      %4232 = vmatpush1.bf16.msra.mxu0 0
      %4233 = vmatprep.subr.bf16.mxu0 0
      %4234 = vmatpush1.bf16.msra.mxu0 0
      %4235 = vmatprep.subr.bf16.mxu0 0
      %4236 = vmatpush1.bf16.msra.mxu0 0
      %4237 = vmatprep.subr.bf16.mxu0 0
      %4238 = vmatpush1.bf16.msra.mxu0 0
      %4239 = vmatprep.subr.bf16.mxu0 0
      %4240 = vmatpush1.bf16.msra.mxu0 0
      %4241 = vmatprep.subr.bf16.mxu0 0
      %4242 = vmatpush1.bf16.msra.mxu0 0
      %4243 = vmatprep.subr.bf16.mxu0 0
      %4244 = vmatpush1.bf16.msra.mxu0 0
      %4245 = vmatprep.subr.bf16.mxu0 0
      %4246 = vmatpush1.bf16.msra.mxu0 0
      %4247 = vmatprep.subr.bf16.mxu0 0
      %4248 = vmatpush1.bf16.msra.mxu0 0
      %4249 = vmatprep.subr.bf16.mxu0 0
      %4250 = vmatpush1.bf16.msra.mxu0 0
      %4251 = vmatprep.mubr.bf16.mxu0 0
      %4252 = vmatmul.mubr.bf16.gmra.mrb[0].mxu0 %v4196
      %v4253 = vpop.f32.mrb[0].mxu0
      %v4254 = vadd.f32 0.0, %v4253
      %v4255 = vpop.f32.mrb[0].mxu0
      %v4256 = vadd.f32 0.0, %v4255
      %v4257 = vpop.f32.mrb[0].mxu0
      %v4258 = vadd.f32 0.0, %v4257
      %v4259 = vpop.f32.mrb[0].mxu0
      %v4260 = vadd.f32 0.0, %v4259
      %4261 = vmatprep.mubr.bf16.mxu0 0
      %4262 = vmatmul.mubr.bf16.gmra.mrb[0].mxu0 %v4199
      %v4263 = vpop.f32.mrb[0].mxu0
      %v4264 = vadd.f32 0.0, %v4263
      %v4265 = vpop.f32.mrb[0].mxu0
      %v4266 = vadd.f32 0.0, %v4265
      %v4267 = vpop.f32.mrb[0].mxu0
      %v4268 = vadd.f32 0.0, %v4267
      %v4269 = vpop.f32.mrb[0].mxu0
      %v4270 = vadd.f32 0.0, %v4269
      %4271 = vmatprep.mubr.bf16.mxu0 0
      %4272 = vmatmul.mubr.bf16.gmra.mrb[0].mxu0 %v4202
      %v4273 = vpop.f32.mrb[0].mxu0
      %v4274 = vadd.f32 0.0, %v4273
      %v4275 = vpop.f32.mrb[0].mxu0
      %v4276 = vadd.f32 0.0, %v4275
      %v4277 = vpop.f32.mrb[0].mxu0
      %v4278 = vadd.f32 0.0, %v4277
      %v4279 = vpop.f32.mrb[0].mxu0
      %v4280 = vadd.f32 0.0, %v4279
      %4281 = vmatprep.mubr.bf16.mxu0 0
      %4282 = vmatmul.mubr.bf16.gmra.mrb[0].mxu0 %v4205
      %v4283 = vpop.f32.mrb[0].mxu0
      %v4284 = vadd.f32 0.0, %v4283
      %v4285 = vpop.f32.mrb[0].mxu0
      %v4286 = vadd.f32 0.0, %v4285
      %v4287 = vpop.f32.mrb[0].mxu0
      %v4288 = vadd.f32 0.0, %v4287
      %v4289 = vpop.f32.mrb[0].mxu0
      %v4290 = vadd.f32 0.0, %v4289
      %4291 = vmatprep.mubr.bf16.mxu0 0
      %4292 = vmatmul.mubr.bf16.gmra.mrb[0].mxu0 %v4208
      %v4293 = vpop.f32.mrb[0].mxu0
      %v4294 = vadd.f32 0.0, %v4293
      %v4295 = vpop.f32.mrb[0].mxu0
      %v4296 = vadd.f32 0.0, %v4295
      %v4297 = vpop.f32.mrb[0].mxu0
      %v4298 = vadd.f32 0.0, %v4297
      %v4299 = vpop.f32.mrb[0].mxu0
      %v4300 = vadd.f32 0.0, %v4299
      %4301 = vmatprep.mubr.bf16.mxu0 0
      %4302 = vmatmul.mubr.bf16.gmra.mrb[0].mxu0 %v4211
      %v4303 = vpop.f32.mrb[0].mxu0
      %v4304 = vadd.f32 0.0, %v4303
      %v4305 = vpop.f32.mrb[0].mxu0
      %v4306 = vadd.f32 0.0, %v4305
      %v4307 = vpop.f32.mrb[0].mxu0
      %v4308 = vadd.f32 0.0, %v4307
      %v4309 = vpop.f32.mrb[0].mxu0
      %v4310 = vadd.f32 0.0, %v4309
      %4311 = vmatprep.mubr.bf16.mxu0 0
      %4312 = vmatmul.mubr.bf16.gmra.mrb[0].mxu0 %v4214
      %v4313 = vpop.f32.mrb[0].mxu0
      %v4314 = vadd.f32 0.0, %v4313
      %v4315 = vpop.f32.mrb[0].mxu0
      %v4316 = vadd.f32 0.0, %v4315
      %v4317 = vpop.f32.mrb[0].mxu0
      %v4318 = vadd.f32 0.0, %v4317
      %v4319 = vpop.f32.mrb[0].mxu0
      %v4320 = vadd.f32 0.0, %v4319
      %4321 = vmatprep.mubr.bf16.mxu0 0
      %4322 = vmatmul.mubr.bf16.gmra.mrb[0].mxu0 %v4217
      %v4323 = vpop.f32.mrb[0].mxu0
      %v4324 = vadd.f32 0.0, %v4323
      %v4325 = vpop.f32.mrb[0].mxu0
      %v4326 = vadd.f32 0.0, %v4325
      %v4327 = vpop.f32.mrb[0].mxu0
      %v4328 = vadd.f32 0.0, %v4327
      %v4329 = vpop.f32.mrb[0].mxu0
      %v4330 = vadd.f32 0.0, %v4329
      %4331 = vdwg.mxu0
      %v4332 = vadd.f32 %v4098, %v4254
      %v4333 = vadd.f32 %v4099, %v4256
      %v4334 = vadd.f32 %v4100, %v4258
      %v4335 = vadd.f32 %v4101, %v4260
      %v4336 = vadd.f32 %v4102, %v4264
      %v4337 = vadd.f32 %v4103, %v4266
      %v4338 = vadd.f32 %v4104, %v4268
      %v4339 = vadd.f32 %v4105, %v4270
      %v4340 = vadd.f32 %v4106, %v4274
      %v4341 = vadd.f32 %v4107, %v4276
      %v4342 = vadd.f32 %v4108, %v4278
      %v4343 = vadd.f32 %v4109, %v4280
      %v4344 = vadd.f32 %v4110, %v4284
      %v4345 = vadd.f32 %v4111, %v4286
      %v4346 = vadd.f32 %v4112, %v4288
      %v4347 = vadd.f32 %v4113, %v4290
      %v4348 = vadd.f32 %v4114, %v4294
      %v4349 = vadd.f32 %v4115, %v4296
      %v4350 = vadd.f32 %v4116, %v4298
      %v4351 = vadd.f32 %v4117, %v4300
      %v4352 = vadd.f32 %v4118, %v4304
      %v4353 = vadd.f32 %v4119, %v4306
      %v4354 = vadd.f32 %v4120, %v4308
      %v4355 = vadd.f32 %v4121, %v4310
      %v4356 = vadd.f32 %v4122, %v4314
      %v4357 = vadd.f32 %v4123, %v4316
      %v4358 = vadd.f32 %v4124, %v4318
      %v4359 = vadd.f32 %v4125, %v4320
      %v4360 = vadd.f32 %v4126, %v4324
      %v4361 = vadd.f32 %v4127, %v4326
      %v4362 = vadd.f32 %v4128, %v4328
      %v4363 = vadd.f32 %v4129, %v4330
      %4364 = vrot.lane.b32.xlu0 %v2826, 127
      %v4365 = vpop.permute.xlu0 %4364
      %4366 = vrot.lane.b32.xlu0 %v2828, 127
      %v4367 = vpop.permute.xlu0 %4366
      %4368 = vrot.lane.b32.xlu0 %v2830, 127
      %v4369 = vpop.permute.xlu0 %4368
      %4370 = vrot.lane.b32.xlu0 %v2832, 127
      %v4371 = vpop.permute.xlu0 %4370
      %4372 = vrot.lane.b32.xlu0 %v2834, 127
      %v4373 = vpop.permute.xlu0 %4372
      %4374 = vrot.lane.b32.xlu0 %v2836, 127
      %v4375 = vpop.permute.xlu0 %4374
      %4376 = vrot.lane.b32.xlu0 %v2838, 127
      %v4377 = vpop.permute.xlu0 %4376
      %4378 = vrot.lane.b32.xlu0 %v2840, 127
      %v4379 = vpop.permute.xlu0 %4378
      %4380 = vrot.lane.b32.xlu0 %v2827, 127
      %v4381 = vpop.permute.xlu0 %4380
      %4382 = vrot.lane.b32.xlu0 %v2829, 127
      %v4383 = vpop.permute.xlu0 %4382
      %4384 = vrot.lane.b32.xlu0 %v2831, 127
      %v4385 = vpop.permute.xlu0 %4384
      %4386 = vrot.lane.b32.xlu0 %v2833, 127
      %v4387 = vpop.permute.xlu0 %4386
      %4388 = vrot.lane.b32.xlu0 %v2835, 127
      %v4389 = vpop.permute.xlu0 %4388
      %4390 = vrot.lane.b32.xlu0 %v2837, 127
      %v4391 = vpop.permute.xlu0 %4390
      %4392 = vrot.lane.b32.xlu0 %v2839, 127
      %v4393 = vpop.permute.xlu0 %4392
      %4394 = vrot.lane.b32.xlu0 %v2841, 127
      %v4395 = vpop.permute.xlu0 %4394
      %v4396 = vsel %vm646, %v4365, %v4381
      %v4397 = vsel %vm646, %v4367, %v4383
      %v4398 = vsel %vm646, %v4369, %v4385
      %v4399 = vsel %vm646, %v4371, %v4387
      %v4400 = vsel %vm646, %v4373, %v4389
      %v4401 = vsel %vm646, %v4375, %v4391
      %v4402 = vsel %vm646, %v4377, %v4393
      %v4403 = vsel %vm646, %v4379, %v4395
      %v4404 = vsel %vm646, %v4381, %v4365
      %v4405 = vsel %vm646, %v4383, %v4367
      %v4406 = vsel %vm646, %v4385, %v4369
      %v4407 = vsel %vm646, %v4387, %v4371
      %v4408 = vsel %vm646, %v4389, %v4373
      %v4409 = vsel %vm646, %v4391, %v4375
      %v4410 = vsel %vm646, %v4393, %v4377
      %v4411 = vsel %vm646, %v4395, %v4379
      %v4412 = vsel %vm653, %v2826, %v4396
      %v4413 = vsel %vm654, %v2827, %v4404
      %v4414 = vsel %vm653, %v2828, %v4397
      %v4415 = vsel %vm654, %v2829, %v4405
      %v4416 = vsel %vm653, %v2830, %v4398
      %v4417 = vsel %vm654, %v2831, %v4406
      %v4418 = vsel %vm653, %v2832, %v4399
      %v4419 = vsel %vm654, %v2833, %v4407
      %v4420 = vsel %vm653, %v2834, %v4400
      %v4421 = vsel %vm654, %v2835, %v4408
      %v4422 = vsel %vm653, %v2836, %v4401
      %v4423 = vsel %vm654, %v2837, %v4409
      %v4424 = vsel %vm653, %v2838, %v4402
      %v4425 = vsel %vm654, %v2839, %v4410
      %v4426 = vsel %vm653, %v2840, %v4403
      %v4427 = vsel %vm654, %v2841, %v4411
      %s4428 = scalar_lea.vmem %s5, 320
      %v4429 = vld [vmem:[%s4428] sm:$0xf]
      %v4430 = vld [vmem:[%s4428 + $0x4] sm:$0xf]
      %v4431 = vld [vmem:[%s4428 + $0x8] sm:$0xf]
      %v4432 = vld [vmem:[%s4428 + $0xc] sm:$0xf]
      %v4433 = vld [vmem:[%s4428 + $0x10] sm:$0xf]
      %v4434 = vld [vmem:[%s4428 + $0x14] sm:$0xf]
      %v4435 = vld [vmem:[%s4428 + $0x18] sm:$0xf]
      %v4436 = vld [vmem:[%s4428 + $0x1c] sm:$0xf]
      %v4437 = vld [vmem:[%s4428 + $0x20] sm:$0xf]
      %v4438 = vld [vmem:[%s4428 + $0x24] sm:$0xf]
      %v4439 = vld [vmem:[%s4428 + $0x28] sm:$0xf]
      %v4440 = vld [vmem:[%s4428 + $0x2c] sm:$0xf]
      %v4441 = vld [vmem:[%s4428 + $0x30] sm:$0xf]
      %v4442 = vld [vmem:[%s4428 + $0x34] sm:$0xf]
      %v4443 = vld [vmem:[%s4428 + $0x38] sm:$0xf]
      %v4444 = vld [vmem:[%s4428 + $0x3c] sm:$0xf]
      %v4445 = vpack.c.bf16 %v4414, %v4412
      %v4446 = vpack.c.bf16 %v4415, %v4413
      %v4447 = vpack.c.bf16 %v4418, %v4416
      %v4448 = vpack.c.bf16 %v4419, %v4417
      %v4449 = vpack.c.bf16 %v4422, %v4420
      %v4450 = vpack.c.bf16 %v4423, %v4421
      %v4451 = vpack.c.bf16 %v4426, %v4424
      %v4452 = vpack.c.bf16 %v4427, %v4425
      %v4469 = vunpack.c.l.b16 %v4429
      %v4470 = vunpack.c.l.b16 %v4430
      %v4471 = vunpack.c.l.b16 %v4431
      %v4472 = vunpack.c.l.b16 %v4432
      %v4473 = vunpack.c.l.b16 %v4433
      %v4474 = vunpack.c.l.b16 %v4434
      %v4475 = vunpack.c.l.b16 %v4435
      %v4476 = vunpack.c.l.b16 %v4436
      %v4477 = vunpack.c.l.b16 %v4437
      %v4478 = vunpack.c.l.b16 %v4438
      %v4479 = vunpack.c.l.b16 %v4439
      %v4480 = vunpack.c.l.b16 %v4440
      %v4481 = vunpack.c.l.b16 %v4441
      %v4482 = vunpack.c.l.b16 %v4442
      %v4483 = vunpack.c.l.b16 %v4443
      %v4484 = vunpack.c.l.b16 %v4444
      %v4485 = vpack.c.b16 %v4470, %v4469
      %v4486 = vpack.c.b16 %v4472, %v4471
      %v4487 = vpack.c.b16 %v4474, %v4473
      %v4488 = vpack.c.b16 %v4476, %v4475
      %v4489 = vpack.c.b16 %v4478, %v4477
      %v4490 = vpack.c.b16 %v4480, %v4479
      %v4491 = vpack.c.b16 %v4482, %v4481
      %v4492 = vpack.c.b16 %v4484, %v4483
      %v4494 = vsel %vm3130, %v4485, 0
      %v4497 = vsel %vm3130, %v4486, 0
      %v4500 = vsel %vm3130, %v4487, 0
      %v4503 = vsel %vm3130, %v4488, 0
      %v4506 = vsel %vm3130, %v4489, 0
      %v4509 = vsel %vm3130, %v4490, 0
      %v4512 = vsel %vm3130, %v4491, 0
      %v4515 = vsel %vm3130, %v4492, 0
      %4517 = vmatprep.subr.bf16.mxu0 %v4446
      %4518 = vmatpush1.bf16.msra.mxu0 %v4445
      %4519 = vmatprep.subr.bf16.mxu0 %v4448
      %4520 = vmatpush1.bf16.msra.mxu0 %v4447
      %4521 = vmatprep.subr.bf16.mxu0 %v4450
      %4522 = vmatpush1.bf16.msra.mxu0 %v4449
      %4523 = vmatprep.subr.bf16.mxu0 %v4452
      %4524 = vmatpush1.bf16.msra.mxu0 %v4451
      %4525 = vmatprep.subr.bf16.mxu0 0
      %4526 = vmatpush1.bf16.msra.mxu0 0
      %4527 = vmatprep.subr.bf16.mxu0 0
      %4528 = vmatpush1.bf16.msra.mxu0 0
      %4529 = vmatprep.subr.bf16.mxu0 0
      %4530 = vmatpush1.bf16.msra.mxu0 0
      %4531 = vmatprep.subr.bf16.mxu0 0
      %4532 = vmatpush1.bf16.msra.mxu0 0
      %4533 = vmatprep.subr.bf16.mxu0 0
      %4534 = vmatpush1.bf16.msra.mxu0 0
      %4535 = vmatprep.subr.bf16.mxu0 0
      %4536 = vmatpush1.bf16.msra.mxu0 0
      %4537 = vmatprep.subr.bf16.mxu0 0
      %4538 = vmatpush1.bf16.msra.mxu0 0
      %4539 = vmatprep.subr.bf16.mxu0 0
      %4540 = vmatpush1.bf16.msra.mxu0 0
      %4541 = vmatprep.subr.bf16.mxu0 0
      %4542 = vmatpush1.bf16.msra.mxu0 0
      %4543 = vmatprep.subr.bf16.mxu0 0
      %4544 = vmatpush1.bf16.msra.mxu0 0
      %4545 = vmatprep.subr.bf16.mxu0 0
      %4546 = vmatpush1.bf16.msra.mxu0 0
      %4547 = vmatprep.subr.bf16.mxu0 0
      %4548 = vmatpush1.bf16.msra.mxu0 0
      %4549 = vmatprep.mubr.bf16.mxu0 0
      %4550 = vmatmul.mubr.bf16.gmra.mrb[0].mxu0 %v4494
      %v4551 = vpop.f32.mrb[0].mxu0
      %v4552 = vadd.f32 0.0, %v4551
      %v4553 = vpop.f32.mrb[0].mxu0
      %v4554 = vadd.f32 0.0, %v4553
      %v4555 = vpop.f32.mrb[0].mxu0
      %v4556 = vadd.f32 0.0, %v4555
      %v4557 = vpop.f32.mrb[0].mxu0
      %v4558 = vadd.f32 0.0, %v4557
      %4559 = vmatprep.mubr.bf16.mxu0 0
      %4560 = vmatmul.mubr.bf16.gmra.mrb[0].mxu0 %v4497
      %v4561 = vpop.f32.mrb[0].mxu0
      %v4562 = vadd.f32 0.0, %v4561
      %v4563 = vpop.f32.mrb[0].mxu0
      %v4564 = vadd.f32 0.0, %v4563
      %v4565 = vpop.f32.mrb[0].mxu0
      %v4566 = vadd.f32 0.0, %v4565
      %v4567 = vpop.f32.mrb[0].mxu0
      %v4568 = vadd.f32 0.0, %v4567
      %4569 = vmatprep.mubr.bf16.mxu0 0
      %4570 = vmatmul.mubr.bf16.gmra.mrb[0].mxu0 %v4500
      %v4571 = vpop.f32.mrb[0].mxu0
      %v4572 = vadd.f32 0.0, %v4571
      %v4573 = vpop.f32.mrb[0].mxu0
      %v4574 = vadd.f32 0.0, %v4573
      %v4575 = vpop.f32.mrb[0].mxu0
      %v4576 = vadd.f32 0.0, %v4575
      %v4577 = vpop.f32.mrb[0].mxu0
      %v4578 = vadd.f32 0.0, %v4577
      %4579 = vmatprep.mubr.bf16.mxu0 0
      %4580 = vmatmul.mubr.bf16.gmra.mrb[0].mxu0 %v4503
      %v4581 = vpop.f32.mrb[0].mxu0
      %v4582 = vadd.f32 0.0, %v4581
      %v4583 = vpop.f32.mrb[0].mxu0
      %v4584 = vadd.f32 0.0, %v4583
      %v4585 = vpop.f32.mrb[0].mxu0
      %v4586 = vadd.f32 0.0, %v4585
      %v4587 = vpop.f32.mrb[0].mxu0
      %v4588 = vadd.f32 0.0, %v4587
      %4589 = vmatprep.mubr.bf16.mxu0 0
      %4590 = vmatmul.mubr.bf16.gmra.mrb[0].mxu0 %v4506
      %v4591 = vpop.f32.mrb[0].mxu0
      %v4592 = vadd.f32 0.0, %v4591
      %v4593 = vpop.f32.mrb[0].mxu0
      %v4594 = vadd.f32 0.0, %v4593
      %v4595 = vpop.f32.mrb[0].mxu0
      %v4596 = vadd.f32 0.0, %v4595
      %v4597 = vpop.f32.mrb[0].mxu0
      %v4598 = vadd.f32 0.0, %v4597
      %4599 = vmatprep.mubr.bf16.mxu0 0
      %4600 = vmatmul.mubr.bf16.gmra.mrb[0].mxu0 %v4509
      %v4601 = vpop.f32.mrb[0].mxu0
      %v4602 = vadd.f32 0.0, %v4601
      %v4603 = vpop.f32.mrb[0].mxu0
      %v4604 = vadd.f32 0.0, %v4603
      %v4605 = vpop.f32.mrb[0].mxu0
      %v4606 = vadd.f32 0.0, %v4605
      %v4607 = vpop.f32.mrb[0].mxu0
      %v4608 = vadd.f32 0.0, %v4607
      %4609 = vmatprep.mubr.bf16.mxu0 0
      %4610 = vmatmul.mubr.bf16.gmra.mrb[0].mxu0 %v4512
      %v4611 = vpop.f32.mrb[0].mxu0
      %v4612 = vadd.f32 0.0, %v4611
      %v4613 = vpop.f32.mrb[0].mxu0
      %v4614 = vadd.f32 0.0, %v4613
      %v4615 = vpop.f32.mrb[0].mxu0
      %v4616 = vadd.f32 0.0, %v4615
      %v4617 = vpop.f32.mrb[0].mxu0
      %v4618 = vadd.f32 0.0, %v4617
      %4619 = vmatprep.mubr.bf16.mxu0 0
      %4620 = vmatmul.mubr.bf16.gmra.mrb[0].mxu0 %v4515
      %v4621 = vpop.f32.mrb[0].mxu0
      %v4622 = vadd.f32 0.0, %v4621
      %v4623 = vpop.f32.mrb[0].mxu0
      %v4624 = vadd.f32 0.0, %v4623
      %v4625 = vpop.f32.mrb[0].mxu0
      %v4626 = vadd.f32 0.0, %v4625
      %v4627 = vpop.f32.mrb[0].mxu0
      %v4628 = vadd.f32 0.0, %v4627
      %4629 = vdwg.mxu0
      %v4630 = vadd.f32 %v4332, %v4552
      %v4631 = vadd.f32 %v4333, %v4554
      %v4632 = vadd.f32 %v4334, %v4556
      %v4633 = vadd.f32 %v4335, %v4558
      %v4634 = vadd.f32 %v4336, %v4562
      %v4635 = vadd.f32 %v4337, %v4564
      %v4636 = vadd.f32 %v4338, %v4566
      %v4637 = vadd.f32 %v4339, %v4568
      %v4638 = vadd.f32 %v4340, %v4572
      %v4639 = vadd.f32 %v4341, %v4574
      %v4640 = vadd.f32 %v4342, %v4576
      %v4641 = vadd.f32 %v4343, %v4578
      %v4642 = vadd.f32 %v4344, %v4582
      %v4643 = vadd.f32 %v4345, %v4584
      %v4644 = vadd.f32 %v4346, %v4586
      %v4645 = vadd.f32 %v4347, %v4588
      %v4646 = vadd.f32 %v4348, %v4592
      %v4647 = vadd.f32 %v4349, %v4594
      %v4648 = vadd.f32 %v4350, %v4596
      %v4649 = vadd.f32 %v4351, %v4598
      %v4650 = vadd.f32 %v4352, %v4602
      %v4651 = vadd.f32 %v4353, %v4604
      %v4652 = vadd.f32 %v4354, %v4606
      %v4653 = vadd.f32 %v4355, %v4608
      %v4654 = vadd.f32 %v4356, %v4612
      %v4655 = vadd.f32 %v4357, %v4614
      %v4656 = vadd.f32 %v4358, %v4616
      %v4657 = vadd.f32 %v4359, %v4618
      %v4658 = vadd.f32 %v4360, %v4622
      %v4659 = vadd.f32 %v4361, %v4624
      %v4660 = vadd.f32 %v4362, %v4626
      %v4661 = vadd.f32 %v4363, %v4628
      %4662 = vrot.lane.b32.xlu0 %v2826, 112
      %v4663 = vpop.permute.xlu0 %4662
      %4664 = vrot.lane.b32.xlu0 %v2828, 112
      %v4665 = vpop.permute.xlu0 %4664
      %4666 = vrot.lane.b32.xlu0 %v2830, 112
      %v4667 = vpop.permute.xlu0 %4666
      %4668 = vrot.lane.b32.xlu0 %v2832, 112
      %v4669 = vpop.permute.xlu0 %4668
      %4670 = vrot.lane.b32.xlu0 %v2834, 112
      %v4671 = vpop.permute.xlu0 %4670
      %4672 = vrot.lane.b32.xlu0 %v2836, 112
      %v4673 = vpop.permute.xlu0 %4672
      %4674 = vrot.lane.b32.xlu0 %v2838, 112
      %v4675 = vpop.permute.xlu0 %4674
      %4676 = vrot.lane.b32.xlu0 %v2840, 112
      %v4677 = vpop.permute.xlu0 %4676
      %4678 = vrot.lane.b32.xlu0 %v2827, 112
      %v4679 = vpop.permute.xlu0 %4678
      %4680 = vrot.lane.b32.xlu0 %v2829, 112
      %v4681 = vpop.permute.xlu0 %4680
      %4682 = vrot.lane.b32.xlu0 %v2831, 112
      %v4683 = vpop.permute.xlu0 %4682
      %4684 = vrot.lane.b32.xlu0 %v2833, 112
      %v4685 = vpop.permute.xlu0 %4684
      %4686 = vrot.lane.b32.xlu0 %v2835, 112
      %v4687 = vpop.permute.xlu0 %4686
      %4688 = vrot.lane.b32.xlu0 %v2837, 112
      %v4689 = vpop.permute.xlu0 %4688
      %4690 = vrot.lane.b32.xlu0 %v2839, 112
      %v4691 = vpop.permute.xlu0 %4690
      %4692 = vrot.lane.b32.xlu0 %v2841, 112
      %v4693 = vpop.permute.xlu0 %4692
      %v4694 = vsel %vm1035, %v4663, %v4679
      %v4695 = vsel %vm1035, %v4665, %v4681
      %v4696 = vsel %vm1035, %v4667, %v4683
      %v4697 = vsel %vm1035, %v4669, %v4685
      %v4698 = vsel %vm1035, %v4671, %v4687
      %v4699 = vsel %vm1035, %v4673, %v4689
      %v4700 = vsel %vm1035, %v4675, %v4691
      %v4701 = vsel %vm1035, %v4677, %v4693
      %v4702 = vsel %vm1035, %v4679, %v4663
      %v4703 = vsel %vm1035, %v4681, %v4665
      %v4704 = vsel %vm1035, %v4683, %v4667
      %v4705 = vsel %vm1035, %v4685, %v4669
      %v4706 = vsel %vm1035, %v4687, %v4671
      %v4707 = vsel %vm1035, %v4689, %v4673
      %v4708 = vsel %vm1035, %v4691, %v4675
      %v4709 = vsel %vm1035, %v4693, %v4677
      %v4710 = vsel %vm1042, %v2826, %v4694
      %v4711 = vsel %vm1043, %v2827, %v4702
      %v4712 = vsel %vm1042, %v2828, %v4695
      %v4713 = vsel %vm1043, %v2829, %v4703
      %v4714 = vsel %vm1042, %v2830, %v4696
      %v4715 = vsel %vm1043, %v2831, %v4704
      %v4716 = vsel %vm1042, %v2832, %v4697
      %v4717 = vsel %vm1043, %v2833, %v4705
      %v4718 = vsel %vm1042, %v2834, %v4698
      %v4719 = vsel %vm1043, %v2835, %v4706
      %v4720 = vsel %vm1042, %v2836, %v4699
      %v4721 = vsel %vm1043, %v2837, %v4707
      %v4722 = vsel %vm1042, %v2838, %v4700
      %v4723 = vsel %vm1043, %v2839, %v4708
      %v4724 = vsel %vm1042, %v2840, %v4701
      %v4725 = vsel %vm1043, %v2841, %v4709
      %4726 = vrot.lane.b32.xlu0 %v4710, 1
      %v4727 = vpop.permute.xlu0 %4726
      %4728 = vrot.lane.b32.xlu0 %v4712, 1
      %v4729 = vpop.permute.xlu0 %4728
      %4730 = vrot.lane.b32.xlu0 %v4714, 1
      %v4731 = vpop.permute.xlu0 %4730
      %4732 = vrot.lane.b32.xlu0 %v4716, 1
      %v4733 = vpop.permute.xlu0 %4732
      %4734 = vrot.lane.b32.xlu0 %v4718, 1
      %v4735 = vpop.permute.xlu0 %4734
      %4736 = vrot.lane.b32.xlu0 %v4720, 1
      %v4737 = vpop.permute.xlu0 %4736
      %4738 = vrot.lane.b32.xlu0 %v4722, 1
      %v4739 = vpop.permute.xlu0 %4738
      %4740 = vrot.lane.b32.xlu0 %v4724, 1
      %v4741 = vpop.permute.xlu0 %4740
      %4742 = vrot.lane.b32.xlu0 %v4711, 1
      %v4743 = vpop.permute.xlu0 %4742
      %4744 = vrot.lane.b32.xlu0 %v4713, 1
      %v4745 = vpop.permute.xlu0 %4744
      %4746 = vrot.lane.b32.xlu0 %v4715, 1
      %v4747 = vpop.permute.xlu0 %4746
      %4748 = vrot.lane.b32.xlu0 %v4717, 1
      %v4749 = vpop.permute.xlu0 %4748
      %4750 = vrot.lane.b32.xlu0 %v4719, 1
      %v4751 = vpop.permute.xlu0 %4750
      %4752 = vrot.lane.b32.xlu0 %v4721, 1
      %v4753 = vpop.permute.xlu0 %4752
      %4754 = vrot.lane.b32.xlu0 %v4723, 1
      %v4755 = vpop.permute.xlu0 %4754
      %4756 = vrot.lane.b32.xlu0 %v4725, 1
      %v4757 = vpop.permute.xlu0 %4756
      %v4758 = vsel %vm457, %v4727, %v4743
      %v4759 = vsel %vm457, %v4729, %v4745
      %v4760 = vsel %vm457, %v4731, %v4747
      %v4761 = vsel %vm457, %v4733, %v4749
      %v4762 = vsel %vm457, %v4735, %v4751
      %v4763 = vsel %vm457, %v4737, %v4753
      %v4764 = vsel %vm457, %v4739, %v4755
      %v4765 = vsel %vm457, %v4741, %v4757
      %v4766 = vsel %vm457, %v4743, %v4727
      %v4767 = vsel %vm457, %v4745, %v4729
      %v4768 = vsel %vm457, %v4747, %v4731
      %v4769 = vsel %vm457, %v4749, %v4733
      %v4770 = vsel %vm457, %v4751, %v4735
      %v4771 = vsel %vm457, %v4753, %v4737
      %v4772 = vsel %vm457, %v4755, %v4739
      %v4773 = vsel %vm457, %v4757, %v4741
      %v4774 = vsel %vm464, %v4710, %v4766
      %v4775 = vsel %vm465, %v4711, %v4758
      %v4776 = vsel %vm464, %v4712, %v4767
      %v4777 = vsel %vm465, %v4713, %v4759
      %v4778 = vsel %vm464, %v4714, %v4768
      %v4779 = vsel %vm465, %v4715, %v4760
      %v4780 = vsel %vm464, %v4716, %v4769
      %v4781 = vsel %vm465, %v4717, %v4761
      %v4782 = vsel %vm464, %v4718, %v4770
      %v4783 = vsel %vm465, %v4719, %v4762
      %v4784 = vsel %vm464, %v4720, %v4771
      %v4785 = vsel %vm465, %v4721, %v4763
      %v4786 = vsel %vm464, %v4722, %v4772
      %v4787 = vsel %vm465, %v4723, %v4764
      %v4788 = vsel %vm464, %v4724, %v4773
      %v4789 = vsel %vm465, %v4725, %v4765
      %s4790 = scalar_lea.vmem %s5, 384
      %v4791 = vld [vmem:[%s4790] sm:$0xf]
      %v4792 = vld [vmem:[%s4790 + $0x4] sm:$0xf]
      %v4793 = vld [vmem:[%s4790 + $0x8] sm:$0xf]
      %v4794 = vld [vmem:[%s4790 + $0xc] sm:$0xf]
      %v4795 = vld [vmem:[%s4790 + $0x10] sm:$0xf]
      %v4796 = vld [vmem:[%s4790 + $0x14] sm:$0xf]
      %v4797 = vld [vmem:[%s4790 + $0x18] sm:$0xf]
      %v4798 = vld [vmem:[%s4790 + $0x1c] sm:$0xf]
      %v4799 = vld [vmem:[%s4790 + $0x20] sm:$0xf]
      %v4800 = vld [vmem:[%s4790 + $0x24] sm:$0xf]
      %v4801 = vld [vmem:[%s4790 + $0x28] sm:$0xf]
      %v4802 = vld [vmem:[%s4790 + $0x2c] sm:$0xf]
      %v4803 = vld [vmem:[%s4790 + $0x30] sm:$0xf]
      %v4804 = vld [vmem:[%s4790 + $0x34] sm:$0xf]
      %v4805 = vld [vmem:[%s4790 + $0x38] sm:$0xf]
      %v4806 = vld [vmem:[%s4790 + $0x3c] sm:$0xf]
      %v4807 = vpack.c.bf16 %v4776, %v4774
      %v4808 = vpack.c.bf16 %v4777, %v4775
      %v4809 = vpack.c.bf16 %v4780, %v4778
      %v4810 = vpack.c.bf16 %v4781, %v4779
      %v4811 = vpack.c.bf16 %v4784, %v4782
      %v4812 = vpack.c.bf16 %v4785, %v4783
      %v4813 = vpack.c.bf16 %v4788, %v4786
      %v4814 = vpack.c.bf16 %v4789, %v4787
      %v4831 = vunpack.c.l.b16 %v4791
      %v4832 = vunpack.c.l.b16 %v4792
      %v4833 = vunpack.c.l.b16 %v4793
      %v4834 = vunpack.c.l.b16 %v4794
      %v4835 = vunpack.c.l.b16 %v4795
      %v4836 = vunpack.c.l.b16 %v4796
      %v4837 = vunpack.c.l.b16 %v4797
      %v4838 = vunpack.c.l.b16 %v4798
      %v4839 = vunpack.c.l.b16 %v4799
      %v4840 = vunpack.c.l.b16 %v4800
      %v4841 = vunpack.c.l.b16 %v4801
      %v4842 = vunpack.c.l.b16 %v4802
      %v4843 = vunpack.c.l.b16 %v4803
      %v4844 = vunpack.c.l.b16 %v4804
      %v4845 = vunpack.c.l.b16 %v4805
      %v4846 = vunpack.c.l.b16 %v4806
      %v4847 = vpack.c.b16 %v4832, %v4831
      %v4848 = vpack.c.b16 %v4834, %v4833
      %v4849 = vpack.c.b16 %v4836, %v4835
      %v4850 = vpack.c.b16 %v4838, %v4837
      %v4851 = vpack.c.b16 %v4840, %v4839
      %v4852 = vpack.c.b16 %v4842, %v4841
      %v4853 = vpack.c.b16 %v4844, %v4843
      %v4854 = vpack.c.b16 %v4846, %v4845
      %v4856 = vsel %vm3130, %v4847, 0
      %v4859 = vsel %vm3130, %v4848, 0
      %v4862 = vsel %vm3130, %v4849, 0
      %v4865 = vsel %vm3130, %v4850, 0
      %v4868 = vsel %vm3130, %v4851, 0
      %v4871 = vsel %vm3130, %v4852, 0
      %v4874 = vsel %vm3130, %v4853, 0
      %v4877 = vsel %vm3130, %v4854, 0
      %4879 = vmatprep.subr.bf16.mxu0 %v4808
      %4880 = vmatpush1.bf16.msra.mxu0 %v4807
      %4881 = vmatprep.subr.bf16.mxu0 %v4810
      %4882 = vmatpush1.bf16.msra.mxu0 %v4809
      %4883 = vmatprep.subr.bf16.mxu0 %v4812
      %4884 = vmatpush1.bf16.msra.mxu0 %v4811
      %4885 = vmatprep.subr.bf16.mxu0 %v4814
      %4886 = vmatpush1.bf16.msra.mxu0 %v4813
      %4887 = vmatprep.subr.bf16.mxu0 0
      %4888 = vmatpush1.bf16.msra.mxu0 0
      %4889 = vmatprep.subr.bf16.mxu0 0
      %4890 = vmatpush1.bf16.msra.mxu0 0
      %4891 = vmatprep.subr.bf16.mxu0 0
      %4892 = vmatpush1.bf16.msra.mxu0 0
      %4893 = vmatprep.subr.bf16.mxu0 0
      %4894 = vmatpush1.bf16.msra.mxu0 0
      %4895 = vmatprep.subr.bf16.mxu0 0
      %4896 = vmatpush1.bf16.msra.mxu0 0
      %4897 = vmatprep.subr.bf16.mxu0 0
      %4898 = vmatpush1.bf16.msra.mxu0 0
      %4899 = vmatprep.subr.bf16.mxu0 0
      %4900 = vmatpush1.bf16.msra.mxu0 0
      %4901 = vmatprep.subr.bf16.mxu0 0
      %4902 = vmatpush1.bf16.msra.mxu0 0
      %4903 = vmatprep.subr.bf16.mxu0 0
      %4904 = vmatpush1.bf16.msra.mxu0 0
      %4905 = vmatprep.subr.bf16.mxu0 0
      %4906 = vmatpush1.bf16.msra.mxu0 0
      %4907 = vmatprep.subr.bf16.mxu0 0
      %4908 = vmatpush1.bf16.msra.mxu0 0
      %4909 = vmatprep.subr.bf16.mxu0 0
      %4910 = vmatpush1.bf16.msra.mxu0 0
      %4911 = vmatprep.mubr.bf16.mxu0 0
      %4912 = vmatmul.mubr.bf16.gmra.mrb[0].mxu0 %v4856
      %v4913 = vpop.f32.mrb[0].mxu0
      %v4914 = vadd.f32 0.0, %v4913
      %v4915 = vpop.f32.mrb[0].mxu0
      %v4916 = vadd.f32 0.0, %v4915
      %v4917 = vpop.f32.mrb[0].mxu0
      %v4918 = vadd.f32 0.0, %v4917
      %v4919 = vpop.f32.mrb[0].mxu0
      %v4920 = vadd.f32 0.0, %v4919
      %4921 = vmatprep.mubr.bf16.mxu0 0
      %4922 = vmatmul.mubr.bf16.gmra.mrb[0].mxu0 %v4859
      %v4923 = vpop.f32.mrb[0].mxu0
      %v4924 = vadd.f32 0.0, %v4923
      %v4925 = vpop.f32.mrb[0].mxu0
      %v4926 = vadd.f32 0.0, %v4925
      %v4927 = vpop.f32.mrb[0].mxu0
      %v4928 = vadd.f32 0.0, %v4927
      %v4929 = vpop.f32.mrb[0].mxu0
      %v4930 = vadd.f32 0.0, %v4929
      %4931 = vmatprep.mubr.bf16.mxu0 0
      %4932 = vmatmul.mubr.bf16.gmra.mrb[0].mxu0 %v4862
      %v4933 = vpop.f32.mrb[0].mxu0
      %v4934 = vadd.f32 0.0, %v4933
      %v4935 = vpop.f32.mrb[0].mxu0
      %v4936 = vadd.f32 0.0, %v4935
      %v4937 = vpop.f32.mrb[0].mxu0
      %v4938 = vadd.f32 0.0, %v4937
      %v4939 = vpop.f32.mrb[0].mxu0
      %v4940 = vadd.f32 0.0, %v4939
      %4941 = vmatprep.mubr.bf16.mxu0 0
      %4942 = vmatmul.mubr.bf16.gmra.mrb[0].mxu0 %v4865
      %v4943 = vpop.f32.mrb[0].mxu0
      %v4944 = vadd.f32 0.0, %v4943
      %v4945 = vpop.f32.mrb[0].mxu0
      %v4946 = vadd.f32 0.0, %v4945
      %v4947 = vpop.f32.mrb[0].mxu0
      %v4948 = vadd.f32 0.0, %v4947
      %v4949 = vpop.f32.mrb[0].mxu0
      %v4950 = vadd.f32 0.0, %v4949
      %4951 = vmatprep.mubr.bf16.mxu0 0
      %4952 = vmatmul.mubr.bf16.gmra.mrb[0].mxu0 %v4868
      %v4953 = vpop.f32.mrb[0].mxu0
      %v4954 = vadd.f32 0.0, %v4953
      %v4955 = vpop.f32.mrb[0].mxu0
      %v4956 = vadd.f32 0.0, %v4955
      %v4957 = vpop.f32.mrb[0].mxu0
      %v4958 = vadd.f32 0.0, %v4957
      %v4959 = vpop.f32.mrb[0].mxu0
      %v4960 = vadd.f32 0.0, %v4959
      %4961 = vmatprep.mubr.bf16.mxu0 0
      %4962 = vmatmul.mubr.bf16.gmra.mrb[0].mxu0 %v4871
      %v4963 = vpop.f32.mrb[0].mxu0
      %v4964 = vadd.f32 0.0, %v4963
      %v4965 = vpop.f32.mrb[0].mxu0
      %v4966 = vadd.f32 0.0, %v4965
      %v4967 = vpop.f32.mrb[0].mxu0
      %v4968 = vadd.f32 0.0, %v4967
      %v4969 = vpop.f32.mrb[0].mxu0
      %v4970 = vadd.f32 0.0, %v4969
      %4971 = vmatprep.mubr.bf16.mxu0 0
      %4972 = vmatmul.mubr.bf16.gmra.mrb[0].mxu0 %v4874
      %v4973 = vpop.f32.mrb[0].mxu0
      %v4974 = vadd.f32 0.0, %v4973
      %v4975 = vpop.f32.mrb[0].mxu0
      %v4976 = vadd.f32 0.0, %v4975
      %v4977 = vpop.f32.mrb[0].mxu0
      %v4978 = vadd.f32 0.0, %v4977
      %v4979 = vpop.f32.mrb[0].mxu0
      %v4980 = vadd.f32 0.0, %v4979
      %4981 = vmatprep.mubr.bf16.mxu0 0
      %4982 = vmatmul.mubr.bf16.gmra.mrb[0].mxu0 %v4877
      %v4983 = vpop.f32.mrb[0].mxu0
      %v4984 = vadd.f32 0.0, %v4983
      %v4985 = vpop.f32.mrb[0].mxu0
      %v4986 = vadd.f32 0.0, %v4985
      %v4987 = vpop.f32.mrb[0].mxu0
      %v4988 = vadd.f32 0.0, %v4987
      %v4989 = vpop.f32.mrb[0].mxu0
      %v4990 = vadd.f32 0.0, %v4989
      %4991 = vdwg.mxu0
      %v4992 = vadd.f32 %v4630, %v4914
      %v4993 = vadd.f32 %v4631, %v4916
      %v4994 = vadd.f32 %v4632, %v4918
      %v4995 = vadd.f32 %v4633, %v4920
      %v4996 = vadd.f32 %v4634, %v4924
      %v4997 = vadd.f32 %v4635, %v4926
      %v4998 = vadd.f32 %v4636, %v4928
      %v4999 = vadd.f32 %v4637, %v4930
      %v5000 = vadd.f32 %v4638, %v4934
      %v5001 = vadd.f32 %v4639, %v4936
      %v5002 = vadd.f32 %v4640, %v4938
      %v5003 = vadd.f32 %v4641, %v4940
      %v5004 = vadd.f32 %v4642, %v4944
      %v5005 = vadd.f32 %v4643, %v4946
      %v5006 = vadd.f32 %v4644, %v4948
      %v5007 = vadd.f32 %v4645, %v4950
      %v5008 = vadd.f32 %v4646, %v4954
      %v5009 = vadd.f32 %v4647, %v4956
      %v5010 = vadd.f32 %v4648, %v4958
      %v5011 = vadd.f32 %v4649, %v4960
      %v5012 = vadd.f32 %v4650, %v4964
      %v5013 = vadd.f32 %v4651, %v4966
      %v5014 = vadd.f32 %v4652, %v4968
      %v5015 = vadd.f32 %v4653, %v4970
      %v5016 = vadd.f32 %v4654, %v4974
      %v5017 = vadd.f32 %v4655, %v4976
      %v5018 = vadd.f32 %v4656, %v4978
      %v5019 = vadd.f32 %v4657, %v4980
      %v5020 = vadd.f32 %v4658, %v4984
      %v5021 = vadd.f32 %v4659, %v4986
      %v5022 = vadd.f32 %v4660, %v4988
      %v5023 = vadd.f32 %v4661, %v4990
      %s5024 = scalar_lea.vmem %s5, 448
      %v5025 = vld [vmem:[%s5024] sm:$0xf]
      %v5026 = vld [vmem:[%s5024 + $0x4] sm:$0xf]
      %v5027 = vld [vmem:[%s5024 + $0x8] sm:$0xf]
      %v5028 = vld [vmem:[%s5024 + $0xc] sm:$0xf]
      %v5029 = vld [vmem:[%s5024 + $0x10] sm:$0xf]
      %v5030 = vld [vmem:[%s5024 + $0x14] sm:$0xf]
      %v5031 = vld [vmem:[%s5024 + $0x18] sm:$0xf]
      %v5032 = vld [vmem:[%s5024 + $0x1c] sm:$0xf]
      %v5033 = vld [vmem:[%s5024 + $0x20] sm:$0xf]
      %v5034 = vld [vmem:[%s5024 + $0x24] sm:$0xf]
      %v5035 = vld [vmem:[%s5024 + $0x28] sm:$0xf]
      %v5036 = vld [vmem:[%s5024 + $0x2c] sm:$0xf]
      %v5037 = vld [vmem:[%s5024 + $0x30] sm:$0xf]
      %v5038 = vld [vmem:[%s5024 + $0x34] sm:$0xf]
      %v5039 = vld [vmem:[%s5024 + $0x38] sm:$0xf]
      %v5040 = vld [vmem:[%s5024 + $0x3c] sm:$0xf]
      %v5041 = vpack.c.bf16 %v4712, %v4710
      %v5042 = vpack.c.bf16 %v4713, %v4711
      %v5043 = vpack.c.bf16 %v4716, %v4714
      %v5044 = vpack.c.bf16 %v4717, %v4715
      %v5045 = vpack.c.bf16 %v4720, %v4718
      %v5046 = vpack.c.bf16 %v4721, %v4719
      %v5047 = vpack.c.bf16 %v4724, %v4722
      %v5048 = vpack.c.bf16 %v4725, %v4723
      %v5065 = vunpack.c.l.b16 %v5025
      %v5066 = vunpack.c.l.b16 %v5026
      %v5067 = vunpack.c.l.b16 %v5027
      %v5068 = vunpack.c.l.b16 %v5028
      %v5069 = vunpack.c.l.b16 %v5029
      %v5070 = vunpack.c.l.b16 %v5030
      %v5071 = vunpack.c.l.b16 %v5031
      %v5072 = vunpack.c.l.b16 %v5032
      %v5073 = vunpack.c.l.b16 %v5033
      %v5074 = vunpack.c.l.b16 %v5034
      %v5075 = vunpack.c.l.b16 %v5035
      %v5076 = vunpack.c.l.b16 %v5036
      %v5077 = vunpack.c.l.b16 %v5037
      %v5078 = vunpack.c.l.b16 %v5038
      %v5079 = vunpack.c.l.b16 %v5039
      %v5080 = vunpack.c.l.b16 %v5040
      %v5081 = vpack.c.b16 %v5066, %v5065
      %v5082 = vpack.c.b16 %v5068, %v5067
      %v5083 = vpack.c.b16 %v5070, %v5069
      %v5084 = vpack.c.b16 %v5072, %v5071
      %v5085 = vpack.c.b16 %v5074, %v5073
      %v5086 = vpack.c.b16 %v5076, %v5075
      %v5087 = vpack.c.b16 %v5078, %v5077
      %v5088 = vpack.c.b16 %v5080, %v5079
      %v5090 = vsel %vm3130, %v5081, 0
      %v5093 = vsel %vm3130, %v5082, 0
      %v5096 = vsel %vm3130, %v5083, 0
      %v5099 = vsel %vm3130, %v5084, 0
      %v5102 = vsel %vm3130, %v5085, 0
      %v5105 = vsel %vm3130, %v5086, 0
      %v5108 = vsel %vm3130, %v5087, 0
      %v5111 = vsel %vm3130, %v5088, 0
      %5113 = vmatprep.subr.bf16.mxu0 %v5042
      %5114 = vmatpush1.bf16.msra.mxu0 %v5041
      %5115 = vmatprep.subr.bf16.mxu0 %v5044
      %5116 = vmatpush1.bf16.msra.mxu0 %v5043
      %5117 = vmatprep.subr.bf16.mxu0 %v5046
      %5118 = vmatpush1.bf16.msra.mxu0 %v5045
      %5119 = vmatprep.subr.bf16.mxu0 %v5048
      %5120 = vmatpush1.bf16.msra.mxu0 %v5047
      %5121 = vmatprep.subr.bf16.mxu0 0
      %5122 = vmatpush1.bf16.msra.mxu0 0
      %5123 = vmatprep.subr.bf16.mxu0 0
      %5124 = vmatpush1.bf16.msra.mxu0 0
      %5125 = vmatprep.subr.bf16.mxu0 0
      %5126 = vmatpush1.bf16.msra.mxu0 0
      %5127 = vmatprep.subr.bf16.mxu0 0
      %5128 = vmatpush1.bf16.msra.mxu0 0
      %5129 = vmatprep.subr.bf16.mxu0 0
      %5130 = vmatpush1.bf16.msra.mxu0 0
      %5131 = vmatprep.subr.bf16.mxu0 0
      %5132 = vmatpush1.bf16.msra.mxu0 0
      %5133 = vmatprep.subr.bf16.mxu0 0
      %5134 = vmatpush1.bf16.msra.mxu0 0
      %5135 = vmatprep.subr.bf16.mxu0 0
      %5136 = vmatpush1.bf16.msra.mxu0 0
      %5137 = vmatprep.subr.bf16.mxu0 0
      %5138 = vmatpush1.bf16.msra.mxu0 0
      %5139 = vmatprep.subr.bf16.mxu0 0
      %5140 = vmatpush1.bf16.msra.mxu0 0
      %5141 = vmatprep.subr.bf16.mxu0 0
      %5142 = vmatpush1.bf16.msra.mxu0 0
      %5143 = vmatprep.subr.bf16.mxu0 0
      %5144 = vmatpush1.bf16.msra.mxu0 0
      %5145 = vmatprep.mubr.bf16.mxu0 0
      %5146 = vmatmul.mubr.bf16.gmra.mrb[0].mxu0 %v5090
      %v5147 = vpop.f32.mrb[0].mxu0
      %v5148 = vadd.f32 0.0, %v5147
      %v5149 = vpop.f32.mrb[0].mxu0
      %v5150 = vadd.f32 0.0, %v5149
      %v5151 = vpop.f32.mrb[0].mxu0
      %v5152 = vadd.f32 0.0, %v5151
      %v5153 = vpop.f32.mrb[0].mxu0
      %v5154 = vadd.f32 0.0, %v5153
      %5155 = vmatprep.mubr.bf16.mxu0 0
      %5156 = vmatmul.mubr.bf16.gmra.mrb[0].mxu0 %v5093
      %v5157 = vpop.f32.mrb[0].mxu0
      %v5158 = vadd.f32 0.0, %v5157
      %v5159 = vpop.f32.mrb[0].mxu0
      %v5160 = vadd.f32 0.0, %v5159
      %v5161 = vpop.f32.mrb[0].mxu0
      %v5162 = vadd.f32 0.0, %v5161
      %v5163 = vpop.f32.mrb[0].mxu0
      %v5164 = vadd.f32 0.0, %v5163
      %5165 = vmatprep.mubr.bf16.mxu0 0
      %5166 = vmatmul.mubr.bf16.gmra.mrb[0].mxu0 %v5096
      %v5167 = vpop.f32.mrb[0].mxu0
      %v5168 = vadd.f32 0.0, %v5167
      %v5169 = vpop.f32.mrb[0].mxu0
      %v5170 = vadd.f32 0.0, %v5169
      %v5171 = vpop.f32.mrb[0].mxu0
      %v5172 = vadd.f32 0.0, %v5171
      %v5173 = vpop.f32.mrb[0].mxu0
      %v5174 = vadd.f32 0.0, %v5173
      %5175 = vmatprep.mubr.bf16.mxu0 0
      %5176 = vmatmul.mubr.bf16.gmra.mrb[0].mxu0 %v5099
      %v5177 = vpop.f32.mrb[0].mxu0
      %v5178 = vadd.f32 0.0, %v5177
      %v5179 = vpop.f32.mrb[0].mxu0
      %v5180 = vadd.f32 0.0, %v5179
      %v5181 = vpop.f32.mrb[0].mxu0
      %v5182 = vadd.f32 0.0, %v5181
      %v5183 = vpop.f32.mrb[0].mxu0
      %v5184 = vadd.f32 0.0, %v5183
      %5185 = vmatprep.mubr.bf16.mxu0 0
      %5186 = vmatmul.mubr.bf16.gmra.mrb[0].mxu0 %v5102
      %v5187 = vpop.f32.mrb[0].mxu0
      %v5188 = vadd.f32 0.0, %v5187
      %v5189 = vpop.f32.mrb[0].mxu0
      %v5190 = vadd.f32 0.0, %v5189
      %v5191 = vpop.f32.mrb[0].mxu0
      %v5192 = vadd.f32 0.0, %v5191
      %v5193 = vpop.f32.mrb[0].mxu0
      %v5194 = vadd.f32 0.0, %v5193
      %5195 = vmatprep.mubr.bf16.mxu0 0
      %5196 = vmatmul.mubr.bf16.gmra.mrb[0].mxu0 %v5105
      %v5197 = vpop.f32.mrb[0].mxu0
      %v5198 = vadd.f32 0.0, %v5197
      %v5199 = vpop.f32.mrb[0].mxu0
      %v5200 = vadd.f32 0.0, %v5199
      %v5201 = vpop.f32.mrb[0].mxu0
      %v5202 = vadd.f32 0.0, %v5201
      %v5203 = vpop.f32.mrb[0].mxu0
      %v5204 = vadd.f32 0.0, %v5203
      %5205 = vmatprep.mubr.bf16.mxu0 0
      %5206 = vmatmul.mubr.bf16.gmra.mrb[0].mxu0 %v5108
      %v5207 = vpop.f32.mrb[0].mxu0
      %v5208 = vadd.f32 0.0, %v5207
      %v5209 = vpop.f32.mrb[0].mxu0
      %v5210 = vadd.f32 0.0, %v5209
      %v5211 = vpop.f32.mrb[0].mxu0
      %v5212 = vadd.f32 0.0, %v5211
      %v5213 = vpop.f32.mrb[0].mxu0
      %v5214 = vadd.f32 0.0, %v5213
      %5215 = vmatprep.mubr.bf16.mxu0 0
      %5216 = vmatmul.mubr.bf16.gmra.mrb[0].mxu0 %v5111
      %v5217 = vpop.f32.mrb[0].mxu0
      %v5218 = vadd.f32 0.0, %v5217
      %v5219 = vpop.f32.mrb[0].mxu0
      %v5220 = vadd.f32 0.0, %v5219
      %v5221 = vpop.f32.mrb[0].mxu0
      %v5222 = vadd.f32 0.0, %v5221
      %v5223 = vpop.f32.mrb[0].mxu0
      %v5224 = vadd.f32 0.0, %v5223
      %5225 = vdwg.mxu0
      %v5226 = vadd.f32 %v4992, %v5148
      %v5227 = vadd.f32 %v4993, %v5150
      %v5228 = vadd.f32 %v4994, %v5152
      %v5229 = vadd.f32 %v4995, %v5154
      %v5230 = vadd.f32 %v4996, %v5158
      %v5231 = vadd.f32 %v4997, %v5160
      %v5232 = vadd.f32 %v4998, %v5162
      %v5233 = vadd.f32 %v4999, %v5164
      %v5234 = vadd.f32 %v5000, %v5168
      %v5235 = vadd.f32 %v5001, %v5170
      %v5236 = vadd.f32 %v5002, %v5172
      %v5237 = vadd.f32 %v5003, %v5174
      %v5238 = vadd.f32 %v5004, %v5178
      %v5239 = vadd.f32 %v5005, %v5180
      %v5240 = vadd.f32 %v5006, %v5182
      %v5241 = vadd.f32 %v5007, %v5184
      %v5242 = vadd.f32 %v5008, %v5188
      %v5243 = vadd.f32 %v5009, %v5190
      %v5244 = vadd.f32 %v5010, %v5192
      %v5245 = vadd.f32 %v5011, %v5194
      %v5246 = vadd.f32 %v5012, %v5198
      %v5247 = vadd.f32 %v5013, %v5200
      %v5248 = vadd.f32 %v5014, %v5202
      %v5249 = vadd.f32 %v5015, %v5204
      %v5250 = vadd.f32 %v5016, %v5208
      %v5251 = vadd.f32 %v5017, %v5210
      %v5252 = vadd.f32 %v5018, %v5212
      %v5253 = vadd.f32 %v5019, %v5214
      %v5254 = vadd.f32 %v5020, %v5218
      %v5255 = vadd.f32 %v5021, %v5220
      %v5256 = vadd.f32 %v5022, %v5222
      %v5257 = vadd.f32 %v5023, %v5224
      %5258 = vrot.lane.b32.xlu0 %v4710, 127
      %v5259 = vpop.permute.xlu0 %5258
      %5260 = vrot.lane.b32.xlu0 %v4712, 127
      %v5261 = vpop.permute.xlu0 %5260
      %5262 = vrot.lane.b32.xlu0 %v4714, 127
      %v5263 = vpop.permute.xlu0 %5262
      %5264 = vrot.lane.b32.xlu0 %v4716, 127
      %v5265 = vpop.permute.xlu0 %5264
      %5266 = vrot.lane.b32.xlu0 %v4718, 127
      %v5267 = vpop.permute.xlu0 %5266
      %5268 = vrot.lane.b32.xlu0 %v4720, 127
      %v5269 = vpop.permute.xlu0 %5268
      %5270 = vrot.lane.b32.xlu0 %v4722, 127
      %v5271 = vpop.permute.xlu0 %5270
      %5272 = vrot.lane.b32.xlu0 %v4724, 127
      %v5273 = vpop.permute.xlu0 %5272
      %5274 = vrot.lane.b32.xlu0 %v4711, 127
      %v5275 = vpop.permute.xlu0 %5274
      %5276 = vrot.lane.b32.xlu0 %v4713, 127
      %v5277 = vpop.permute.xlu0 %5276
      %5278 = vrot.lane.b32.xlu0 %v4715, 127
      %v5279 = vpop.permute.xlu0 %5278
      %5280 = vrot.lane.b32.xlu0 %v4717, 127
      %v5281 = vpop.permute.xlu0 %5280
      %5282 = vrot.lane.b32.xlu0 %v4719, 127
      %v5283 = vpop.permute.xlu0 %5282
      %5284 = vrot.lane.b32.xlu0 %v4721, 127
      %v5285 = vpop.permute.xlu0 %5284
      %5286 = vrot.lane.b32.xlu0 %v4723, 127
      %v5287 = vpop.permute.xlu0 %5286
      %5288 = vrot.lane.b32.xlu0 %v4725, 127
      %v5289 = vpop.permute.xlu0 %5288
      %v5290 = vsel %vm646, %v5259, %v5275
      %v5291 = vsel %vm646, %v5261, %v5277
      %v5292 = vsel %vm646, %v5263, %v5279
      %v5293 = vsel %vm646, %v5265, %v5281
      %v5294 = vsel %vm646, %v5267, %v5283
      %v5295 = vsel %vm646, %v5269, %v5285
      %v5296 = vsel %vm646, %v5271, %v5287
      %v5297 = vsel %vm646, %v5273, %v5289
      %v5298 = vsel %vm646, %v5275, %v5259
      %v5299 = vsel %vm646, %v5277, %v5261
      %v5300 = vsel %vm646, %v5279, %v5263
      %v5301 = vsel %vm646, %v5281, %v5265
      %v5302 = vsel %vm646, %v5283, %v5267
      %v5303 = vsel %vm646, %v5285, %v5269
      %v5304 = vsel %vm646, %v5287, %v5271
      %v5305 = vsel %vm646, %v5289, %v5273
      %v5306 = vsel %vm653, %v4710, %v5290
      %v5307 = vsel %vm654, %v4711, %v5298
      %v5308 = vsel %vm653, %v4712, %v5291
      %v5309 = vsel %vm654, %v4713, %v5299
      %v5310 = vsel %vm653, %v4714, %v5292
      %v5311 = vsel %vm654, %v4715, %v5300
      %v5312 = vsel %vm653, %v4716, %v5293
      %v5313 = vsel %vm654, %v4717, %v5301
      %v5314 = vsel %vm653, %v4718, %v5294
      %v5315 = vsel %vm654, %v4719, %v5302
      %v5316 = vsel %vm653, %v4720, %v5295
      %v5317 = vsel %vm654, %v4721, %v5303
      %v5318 = vsel %vm653, %v4722, %v5296
      %v5319 = vsel %vm654, %v4723, %v5304
      %v5320 = vsel %vm653, %v4724, %v5297
      %v5321 = vsel %vm654, %v4725, %v5305
      %s5322 = scalar_lea.vmem %s5, 512
      %v5323 = vld [vmem:[%s5322] sm:$0xf]
      %v5324 = vld [vmem:[%s5322 + $0x4] sm:$0xf]
      %v5325 = vld [vmem:[%s5322 + $0x8] sm:$0xf]
      %v5326 = vld [vmem:[%s5322 + $0xc] sm:$0xf]
      %v5327 = vld [vmem:[%s5322 + $0x10] sm:$0xf]
      %v5328 = vld [vmem:[%s5322 + $0x14] sm:$0xf]
      %v5329 = vld [vmem:[%s5322 + $0x18] sm:$0xf]
      %v5330 = vld [vmem:[%s5322 + $0x1c] sm:$0xf]
      %v5331 = vld [vmem:[%s5322 + $0x20] sm:$0xf]
      %v5332 = vld [vmem:[%s5322 + $0x24] sm:$0xf]
      %v5333 = vld [vmem:[%s5322 + $0x28] sm:$0xf]
      %v5334 = vld [vmem:[%s5322 + $0x2c] sm:$0xf]
      %v5335 = vld [vmem:[%s5322 + $0x30] sm:$0xf]
      %v5336 = vld [vmem:[%s5322 + $0x34] sm:$0xf]
      %v5337 = vld [vmem:[%s5322 + $0x38] sm:$0xf]
      %v5338 = vld [vmem:[%s5322 + $0x3c] sm:$0xf]
      %v5339 = vpack.c.bf16 %v5308, %v5306
      %v5340 = vpack.c.bf16 %v5309, %v5307
      %v5341 = vpack.c.bf16 %v5312, %v5310
      %v5342 = vpack.c.bf16 %v5313, %v5311
      %v5343 = vpack.c.bf16 %v5316, %v5314
      %v5344 = vpack.c.bf16 %v5317, %v5315
      %v5345 = vpack.c.bf16 %v5320, %v5318
      %v5346 = vpack.c.bf16 %v5321, %v5319
      %v5363 = vunpack.c.l.b16 %v5323
      %v5364 = vunpack.c.l.b16 %v5324
      %v5365 = vunpack.c.l.b16 %v5325
      %v5366 = vunpack.c.l.b16 %v5326
      %v5367 = vunpack.c.l.b16 %v5327
      %v5368 = vunpack.c.l.b16 %v5328
      %v5369 = vunpack.c.l.b16 %v5329
      %v5370 = vunpack.c.l.b16 %v5330
      %v5371 = vunpack.c.l.b16 %v5331
      %v5372 = vunpack.c.l.b16 %v5332
      %v5373 = vunpack.c.l.b16 %v5333
      %v5374 = vunpack.c.l.b16 %v5334
      %v5375 = vunpack.c.l.b16 %v5335
      %v5376 = vunpack.c.l.b16 %v5336
      %v5377 = vunpack.c.l.b16 %v5337
      %v5378 = vunpack.c.l.b16 %v5338
      %v5379 = vpack.c.b16 %v5364, %v5363
      %v5380 = vpack.c.b16 %v5366, %v5365
      %v5381 = vpack.c.b16 %v5368, %v5367
      %v5382 = vpack.c.b16 %v5370, %v5369
      %v5383 = vpack.c.b16 %v5372, %v5371
      %v5384 = vpack.c.b16 %v5374, %v5373
      %v5385 = vpack.c.b16 %v5376, %v5375
      %v5386 = vpack.c.b16 %v5378, %v5377
      %v5388 = vsel %vm3130, %v5379, 0
      %v5391 = vsel %vm3130, %v5380, 0
      %v5394 = vsel %vm3130, %v5381, 0
      %v5397 = vsel %vm3130, %v5382, 0
      %v5400 = vsel %vm3130, %v5383, 0
      %v5403 = vsel %vm3130, %v5384, 0
      %v5406 = vsel %vm3130, %v5385, 0
      %v5409 = vsel %vm3130, %v5386, 0
      %5411 = vmatprep.subr.bf16.mxu0 %v5340
      %5412 = vmatpush1.bf16.msra.mxu0 %v5339
      %5413 = vmatprep.subr.bf16.mxu0 %v5342
      %5414 = vmatpush1.bf16.msra.mxu0 %v5341
      %5415 = vmatprep.subr.bf16.mxu0 %v5344
      %5416 = vmatpush1.bf16.msra.mxu0 %v5343
      %5417 = vmatprep.subr.bf16.mxu0 %v5346
      %5418 = vmatpush1.bf16.msra.mxu0 %v5345
      %5419 = vmatprep.subr.bf16.mxu0 0
      %5420 = vmatpush1.bf16.msra.mxu0 0
      %5421 = vmatprep.subr.bf16.mxu0 0
      %5422 = vmatpush1.bf16.msra.mxu0 0
      %5423 = vmatprep.subr.bf16.mxu0 0
      %5424 = vmatpush1.bf16.msra.mxu0 0
      %5425 = vmatprep.subr.bf16.mxu0 0
      %5426 = vmatpush1.bf16.msra.mxu0 0
      %5427 = vmatprep.subr.bf16.mxu0 0
      %5428 = vmatpush1.bf16.msra.mxu0 0
      %5429 = vmatprep.subr.bf16.mxu0 0
      %5430 = vmatpush1.bf16.msra.mxu0 0
      %5431 = vmatprep.subr.bf16.mxu0 0
      %5432 = vmatpush1.bf16.msra.mxu0 0
      %5433 = vmatprep.subr.bf16.mxu0 0
      %5434 = vmatpush1.bf16.msra.mxu0 0
      %5435 = vmatprep.subr.bf16.mxu0 0
      %5436 = vmatpush1.bf16.msra.mxu0 0
      %5437 = vmatprep.subr.bf16.mxu0 0
      %5438 = vmatpush1.bf16.msra.mxu0 0
      %5439 = vmatprep.subr.bf16.mxu0 0
      %5440 = vmatpush1.bf16.msra.mxu0 0
      %5441 = vmatprep.subr.bf16.mxu0 0
      %5442 = vmatpush1.bf16.msra.mxu0 0
      %5443 = vmatprep.mubr.bf16.mxu0 0
      %5444 = vmatmul.mubr.bf16.gmra.mrb[0].mxu0 %v5388
      %v5445 = vpop.f32.mrb[0].mxu0
      %v5446 = vadd.f32 0.0, %v5445
      %v5447 = vpop.f32.mrb[0].mxu0
      %v5448 = vadd.f32 0.0, %v5447
      %v5449 = vpop.f32.mrb[0].mxu0
      %v5450 = vadd.f32 0.0, %v5449
      %v5451 = vpop.f32.mrb[0].mxu0
      %v5452 = vadd.f32 0.0, %v5451
      %5453 = vmatprep.mubr.bf16.mxu0 0
      %5454 = vmatmul.mubr.bf16.gmra.mrb[0].mxu0 %v5391
      %v5455 = vpop.f32.mrb[0].mxu0
      %v5456 = vadd.f32 0.0, %v5455
      %v5457 = vpop.f32.mrb[0].mxu0
      %v5458 = vadd.f32 0.0, %v5457
      %v5459 = vpop.f32.mrb[0].mxu0
      %v5460 = vadd.f32 0.0, %v5459
      %v5461 = vpop.f32.mrb[0].mxu0
      %v5462 = vadd.f32 0.0, %v5461
      %5463 = vmatprep.mubr.bf16.mxu0 0
      %5464 = vmatmul.mubr.bf16.gmra.mrb[0].mxu0 %v5394
      %v5465 = vpop.f32.mrb[0].mxu0
      %v5466 = vadd.f32 0.0, %v5465
      %v5467 = vpop.f32.mrb[0].mxu0
      %v5468 = vadd.f32 0.0, %v5467
      %v5469 = vpop.f32.mrb[0].mxu0
      %v5470 = vadd.f32 0.0, %v5469
      %v5471 = vpop.f32.mrb[0].mxu0
      %v5472 = vadd.f32 0.0, %v5471
      %5473 = vmatprep.mubr.bf16.mxu0 0
      %5474 = vmatmul.mubr.bf16.gmra.mrb[0].mxu0 %v5397
      %v5475 = vpop.f32.mrb[0].mxu0
      %v5476 = vadd.f32 0.0, %v5475
      %v5477 = vpop.f32.mrb[0].mxu0
      %v5478 = vadd.f32 0.0, %v5477
      %v5479 = vpop.f32.mrb[0].mxu0
      %v5480 = vadd.f32 0.0, %v5479
      %v5481 = vpop.f32.mrb[0].mxu0
      %v5482 = vadd.f32 0.0, %v5481
      %5483 = vmatprep.mubr.bf16.mxu0 0
      %5484 = vmatmul.mubr.bf16.gmra.mrb[0].mxu0 %v5400
      %v5485 = vpop.f32.mrb[0].mxu0
      %v5486 = vadd.f32 0.0, %v5485
      %v5487 = vpop.f32.mrb[0].mxu0
      %v5488 = vadd.f32 0.0, %v5487
      %v5489 = vpop.f32.mrb[0].mxu0
      %v5490 = vadd.f32 0.0, %v5489
      %v5491 = vpop.f32.mrb[0].mxu0
      %v5492 = vadd.f32 0.0, %v5491
      %5493 = vmatprep.mubr.bf16.mxu0 0
      %5494 = vmatmul.mubr.bf16.gmra.mrb[0].mxu0 %v5403
      %v5495 = vpop.f32.mrb[0].mxu0
      %v5496 = vadd.f32 0.0, %v5495
      %v5497 = vpop.f32.mrb[0].mxu0
      %v5498 = vadd.f32 0.0, %v5497
      %v5499 = vpop.f32.mrb[0].mxu0
      %v5500 = vadd.f32 0.0, %v5499
      %v5501 = vpop.f32.mrb[0].mxu0
      %v5502 = vadd.f32 0.0, %v5501
      %5503 = vmatprep.mubr.bf16.mxu0 0
      %5504 = vmatmul.mubr.bf16.gmra.mrb[0].mxu0 %v5406
      %v5505 = vpop.f32.mrb[0].mxu0
      %v5506 = vadd.f32 0.0, %v5505
      %v5507 = vpop.f32.mrb[0].mxu0
      %v5508 = vadd.f32 0.0, %v5507
      %v5509 = vpop.f32.mrb[0].mxu0
      %v5510 = vadd.f32 0.0, %v5509
      %v5511 = vpop.f32.mrb[0].mxu0
      %v5512 = vadd.f32 0.0, %v5511
      %5513 = vmatprep.mubr.bf16.mxu0 0
      %5514 = vmatmul.mubr.bf16.gmra.mrb[0].mxu0 %v5409
      %v5515 = vpop.f32.mrb[0].mxu0
      %v5516 = vadd.f32 0.0, %v5515
      %v5517 = vpop.f32.mrb[0].mxu0
      %v5518 = vadd.f32 0.0, %v5517
      %v5519 = vpop.f32.mrb[0].mxu0
      %v5520 = vadd.f32 0.0, %v5519
      %v5521 = vpop.f32.mrb[0].mxu0
      %v5522 = vadd.f32 0.0, %v5521
      %5523 = vdwg.mxu0
      %v5524 = vadd.f32 %v5226, %v5446
      %v5525 = vadd.f32 %v5227, %v5448
      %v5526 = vadd.f32 %v5228, %v5450
      %v5527 = vadd.f32 %v5229, %v5452
      %v5528 = vadd.f32 %v5230, %v5456
      %v5529 = vadd.f32 %v5231, %v5458
      %v5530 = vadd.f32 %v5232, %v5460
      %v5531 = vadd.f32 %v5233, %v5462
      %v5532 = vadd.f32 %v5234, %v5466
      %v5533 = vadd.f32 %v5235, %v5468
      %v5534 = vadd.f32 %v5236, %v5470
      %v5535 = vadd.f32 %v5237, %v5472
      %v5536 = vadd.f32 %v5238, %v5476
      %v5537 = vadd.f32 %v5239, %v5478
      %v5538 = vadd.f32 %v5240, %v5480
      %v5539 = vadd.f32 %v5241, %v5482
      %v5540 = vadd.f32 %v5242, %v5486
      %v5541 = vadd.f32 %v5243, %v5488
      %v5542 = vadd.f32 %v5244, %v5490
      %v5543 = vadd.f32 %v5245, %v5492
      %v5544 = vadd.f32 %v5246, %v5496
      %v5545 = vadd.f32 %v5247, %v5498
      %v5546 = vadd.f32 %v5248, %v5500
      %v5547 = vadd.f32 %v5249, %v5502
      %v5548 = vadd.f32 %v5250, %v5506
      %v5549 = vadd.f32 %v5251, %v5508
      %v5550 = vadd.f32 %v5252, %v5510
      %v5551 = vadd.f32 %v5253, %v5512
      %v5552 = vadd.f32 %v5254, %v5516
      %v5553 = vadd.f32 %v5255, %v5518
      %v5554 = vadd.f32 %v5256, %v5520
      %v5555 = vadd.f32 %v5257, %v5522
      %v5556 = vld [vmem:[%s8] sm:$0xff]
      %v5557 = vld [vmem:[%s8 + $0x8] sm:$0xff]
      %5559 = vset.pattern.permute.xlu0 0
      %5560 = vperm.xlu0 %5559, %v5556
      %v5561 = vpop.permute.xlu0 %5560
      %5564 = vset.pattern.permute.xlu0 0
      %5565 = vperm.xlu0 %5564, %v5557
      %v5566 = vpop.permute.xlu0 %5565
      %5568 = vrot.lane.b32.xlu0 %v5524, 16
      %v5569 = vpop.permute.xlu0 %5568
      %5570 = vrot.lane.b32.xlu0 %v5526, 16
      %v5571 = vpop.permute.xlu0 %5570
      %5572 = vrot.lane.b32.xlu0 %v5528, 16
      %v5573 = vpop.permute.xlu0 %5572
      %5574 = vrot.lane.b32.xlu0 %v5530, 16
      %v5575 = vpop.permute.xlu0 %5574
      %5576 = vrot.lane.b32.xlu0 %v5532, 16
      %v5577 = vpop.permute.xlu0 %5576
      %5578 = vrot.lane.b32.xlu0 %v5534, 16
      %v5579 = vpop.permute.xlu0 %5578
      %5580 = vrot.lane.b32.xlu0 %v5536, 16
      %v5581 = vpop.permute.xlu0 %5580
      %5582 = vrot.lane.b32.xlu0 %v5538, 16
      %v5583 = vpop.permute.xlu0 %5582
      %5584 = vrot.lane.b32.xlu0 %v5540, 16
      %v5585 = vpop.permute.xlu0 %5584
      %5586 = vrot.lane.b32.xlu0 %v5542, 16
      %v5587 = vpop.permute.xlu0 %5586
      %5588 = vrot.lane.b32.xlu0 %v5544, 16
      %v5589 = vpop.permute.xlu0 %5588
      %5590 = vrot.lane.b32.xlu0 %v5546, 16
      %v5591 = vpop.permute.xlu0 %5590
      %5592 = vrot.lane.b32.xlu0 %v5548, 16
      %v5593 = vpop.permute.xlu0 %5592
      %5594 = vrot.lane.b32.xlu0 %v5550, 16
      %v5595 = vpop.permute.xlu0 %5594
      %5596 = vrot.lane.b32.xlu0 %v5552, 16
      %v5597 = vpop.permute.xlu0 %5596
      %5598 = vrot.lane.b32.xlu0 %v5554, 16
      %v5599 = vpop.permute.xlu0 %5598
      %5600 = vrot.lane.b32.xlu0 %v5525, 16
      %v5601 = vpop.permute.xlu0 %5600
      %5602 = vrot.lane.b32.xlu0 %v5527, 16
      %v5603 = vpop.permute.xlu0 %5602
      %5604 = vrot.lane.b32.xlu0 %v5529, 16
      %v5605 = vpop.permute.xlu0 %5604
      %5606 = vrot.lane.b32.xlu0 %v5531, 16
      %v5607 = vpop.permute.xlu0 %5606
      %5608 = vrot.lane.b32.xlu0 %v5533, 16
      %v5609 = vpop.permute.xlu0 %5608
      %5610 = vrot.lane.b32.xlu0 %v5535, 16
      %v5611 = vpop.permute.xlu0 %5610
      %5612 = vrot.lane.b32.xlu0 %v5537, 16
      %v5613 = vpop.permute.xlu0 %5612
      %5614 = vrot.lane.b32.xlu0 %v5539, 16
      %v5615 = vpop.permute.xlu0 %5614
      %5616 = vrot.lane.b32.xlu0 %v5541, 16
      %v5617 = vpop.permute.xlu0 %5616
      %5618 = vrot.lane.b32.xlu0 %v5543, 16
      %v5619 = vpop.permute.xlu0 %5618
      %5620 = vrot.lane.b32.xlu0 %v5545, 16
      %v5621 = vpop.permute.xlu0 %5620
      %5622 = vrot.lane.b32.xlu0 %v5547, 16
      %v5623 = vpop.permute.xlu0 %5622
      %5624 = vrot.lane.b32.xlu0 %v5549, 16
      %v5625 = vpop.permute.xlu0 %5624
      %5626 = vrot.lane.b32.xlu0 %v5551, 16
      %v5627 = vpop.permute.xlu0 %5626
      %5628 = vrot.lane.b32.xlu0 %v5553, 16
      %v5629 = vpop.permute.xlu0 %5628
      %5630 = vrot.lane.b32.xlu0 %v5555, 16
      %v5631 = vpop.permute.xlu0 %5630
      %v5632 = vsel %vm397, %v5569, %v5601
      %v5633 = vsel %vm397, %v5571, %v5603
      %v5634 = vsel %vm397, %v5573, %v5605
      %v5635 = vsel %vm397, %v5575, %v5607
      %v5636 = vsel %vm397, %v5577, %v5609
      %v5637 = vsel %vm397, %v5579, %v5611
      %v5638 = vsel %vm397, %v5581, %v5613
      %v5639 = vsel %vm397, %v5583, %v5615
      %v5640 = vsel %vm397, %v5585, %v5617
      %v5641 = vsel %vm397, %v5587, %v5619
      %v5642 = vsel %vm397, %v5589, %v5621
      %v5643 = vsel %vm397, %v5591, %v5623
      %v5644 = vsel %vm397, %v5593, %v5625
      %v5645 = vsel %vm397, %v5595, %v5627
      %v5646 = vsel %vm397, %v5597, %v5629
      %v5647 = vsel %vm397, %v5599, %v5631
      %v5648 = vsel %vm397, %v5601, %v5569
      %v5649 = vsel %vm397, %v5603, %v5571
      %v5650 = vsel %vm397, %v5605, %v5573
      %v5651 = vsel %vm397, %v5607, %v5575
      %v5652 = vsel %vm397, %v5609, %v5577
      %v5653 = vsel %vm397, %v5611, %v5579
      %v5654 = vsel %vm397, %v5613, %v5581
      %v5655 = vsel %vm397, %v5615, %v5583
      %v5656 = vsel %vm397, %v5617, %v5585
      %v5657 = vsel %vm397, %v5619, %v5587
      %v5658 = vsel %vm397, %v5621, %v5589
      %v5659 = vsel %vm397, %v5623, %v5591
      %v5660 = vsel %vm397, %v5625, %v5593
      %v5661 = vsel %vm397, %v5627, %v5595
      %v5662 = vsel %vm397, %v5629, %v5597
      %v5663 = vsel %vm397, %v5631, %v5599
      %v5664 = vsel %vm443, %v5524, %v5648
      %v5665 = vsel %vm444, %v5525, %v5632
      %v5666 = vsel %vm443, %v5526, %v5649
      %v5667 = vsel %vm444, %v5527, %v5633
      %v5668 = vsel %vm443, %v5528, %v5650
      %v5669 = vsel %vm444, %v5529, %v5634
      %v5670 = vsel %vm443, %v5530, %v5651
      %v5671 = vsel %vm444, %v5531, %v5635
      %v5672 = vsel %vm443, %v5532, %v5652
      %v5673 = vsel %vm444, %v5533, %v5636
      %v5674 = vsel %vm443, %v5534, %v5653
      %v5675 = vsel %vm444, %v5535, %v5637
      %v5676 = vsel %vm443, %v5536, %v5654
      %v5677 = vsel %vm444, %v5537, %v5638
      %v5678 = vsel %vm443, %v5538, %v5655
      %v5679 = vsel %vm444, %v5539, %v5639
      %v5680 = vsel %vm443, %v5540, %v5656
      %v5681 = vsel %vm444, %v5541, %v5640
      %v5682 = vsel %vm443, %v5542, %v5657
      %v5683 = vsel %vm444, %v5543, %v5641
      %v5684 = vsel %vm443, %v5544, %v5658
      %v5685 = vsel %vm444, %v5545, %v5642
      %v5686 = vsel %vm443, %v5546, %v5659
      %v5687 = vsel %vm444, %v5547, %v5643
      %v5688 = vsel %vm443, %v5548, %v5660
      %v5689 = vsel %vm444, %v5549, %v5644
      %v5690 = vsel %vm443, %v5550, %v5661
      %v5691 = vsel %vm444, %v5551, %v5645
      %v5692 = vsel %vm443, %v5552, %v5662
      %v5693 = vsel %vm444, %v5553, %v5646
      %v5694 = vsel %vm443, %v5554, %v5663
      %v5695 = vsel %vm444, %v5555, %v5647
      %5696 = vrot.lane.b32.xlu0 %v5664, 1
      %v5697 = vpop.permute.xlu0 %5696
      %5698 = vrot.lane.b32.xlu0 %v5666, 1
      %v5699 = vpop.permute.xlu0 %5698
      %5700 = vrot.lane.b32.xlu0 %v5668, 1
      %v5701 = vpop.permute.xlu0 %5700
      %5702 = vrot.lane.b32.xlu0 %v5670, 1
      %v5703 = vpop.permute.xlu0 %5702
      %5704 = vrot.lane.b32.xlu0 %v5672, 1
      %v5705 = vpop.permute.xlu0 %5704
      %5706 = vrot.lane.b32.xlu0 %v5674, 1
      %v5707 = vpop.permute.xlu0 %5706
      %5708 = vrot.lane.b32.xlu0 %v5676, 1
      %v5709 = vpop.permute.xlu0 %5708
      %5710 = vrot.lane.b32.xlu0 %v5678, 1
      %v5711 = vpop.permute.xlu0 %5710
      %5712 = vrot.lane.b32.xlu0 %v5680, 1
      %v5713 = vpop.permute.xlu0 %5712
      %5714 = vrot.lane.b32.xlu0 %v5682, 1
      %v5715 = vpop.permute.xlu0 %5714
      %5716 = vrot.lane.b32.xlu0 %v5684, 1
      %v5717 = vpop.permute.xlu0 %5716
      %5718 = vrot.lane.b32.xlu0 %v5686, 1
      %v5719 = vpop.permute.xlu0 %5718
      %5720 = vrot.lane.b32.xlu0 %v5688, 1
      %v5721 = vpop.permute.xlu0 %5720
      %5722 = vrot.lane.b32.xlu0 %v5690, 1
      %v5723 = vpop.permute.xlu0 %5722
      %5724 = vrot.lane.b32.xlu0 %v5692, 1
      %v5725 = vpop.permute.xlu0 %5724
      %5726 = vrot.lane.b32.xlu0 %v5694, 1
      %v5727 = vpop.permute.xlu0 %5726
      %5728 = vrot.lane.b32.xlu0 %v5665, 1
      %v5729 = vpop.permute.xlu0 %5728
      %5730 = vrot.lane.b32.xlu0 %v5667, 1
      %v5731 = vpop.permute.xlu0 %5730
      %5732 = vrot.lane.b32.xlu0 %v5669, 1
      %v5733 = vpop.permute.xlu0 %5732
      %5734 = vrot.lane.b32.xlu0 %v5671, 1
      %v5735 = vpop.permute.xlu0 %5734
      %5736 = vrot.lane.b32.xlu0 %v5673, 1
      %v5737 = vpop.permute.xlu0 %5736
      %5738 = vrot.lane.b32.xlu0 %v5675, 1
      %v5739 = vpop.permute.xlu0 %5738
      %5740 = vrot.lane.b32.xlu0 %v5677, 1
      %v5741 = vpop.permute.xlu0 %5740
      %5742 = vrot.lane.b32.xlu0 %v5679, 1
      %v5743 = vpop.permute.xlu0 %5742
      %5744 = vrot.lane.b32.xlu0 %v5681, 1
      %v5745 = vpop.permute.xlu0 %5744
      %5746 = vrot.lane.b32.xlu0 %v5683, 1
      %v5747 = vpop.permute.xlu0 %5746
      %5748 = vrot.lane.b32.xlu0 %v5685, 1
      %v5749 = vpop.permute.xlu0 %5748
      %5750 = vrot.lane.b32.xlu0 %v5687, 1
      %v5751 = vpop.permute.xlu0 %5750
      %5752 = vrot.lane.b32.xlu0 %v5689, 1
      %v5753 = vpop.permute.xlu0 %5752
      %5754 = vrot.lane.b32.xlu0 %v5691, 1
      %v5755 = vpop.permute.xlu0 %5754
      %5756 = vrot.lane.b32.xlu0 %v5693, 1
      %v5757 = vpop.permute.xlu0 %5756
      %5758 = vrot.lane.b32.xlu0 %v5695, 1
      %v5759 = vpop.permute.xlu0 %5758
      %v5760 = vsel %vm457, %v5697, %v5729
      %v5761 = vsel %vm457, %v5699, %v5731
      %v5762 = vsel %vm457, %v5701, %v5733
      %v5763 = vsel %vm457, %v5703, %v5735
      %v5764 = vsel %vm457, %v5705, %v5737
      %v5765 = vsel %vm457, %v5707, %v5739
      %v5766 = vsel %vm457, %v5709, %v5741
      %v5767 = vsel %vm457, %v5711, %v5743
      %v5768 = vsel %vm457, %v5713, %v5745
      %v5769 = vsel %vm457, %v5715, %v5747
      %v5770 = vsel %vm457, %v5717, %v5749
      %v5771 = vsel %vm457, %v5719, %v5751
      %v5772 = vsel %vm457, %v5721, %v5753
      %v5773 = vsel %vm457, %v5723, %v5755
      %v5774 = vsel %vm457, %v5725, %v5757
      %v5775 = vsel %vm457, %v5727, %v5759
      %v5776 = vsel %vm457, %v5729, %v5697
      %v5777 = vsel %vm457, %v5731, %v5699
      %v5778 = vsel %vm457, %v5733, %v5701
      %v5779 = vsel %vm457, %v5735, %v5703
      %v5780 = vsel %vm457, %v5737, %v5705
      %v5781 = vsel %vm457, %v5739, %v5707
      %v5782 = vsel %vm457, %v5741, %v5709
      %v5783 = vsel %vm457, %v5743, %v5711
      %v5784 = vsel %vm457, %v5745, %v5713
      %v5785 = vsel %vm457, %v5747, %v5715
      %v5786 = vsel %vm457, %v5749, %v5717
      %v5787 = vsel %vm457, %v5751, %v5719
      %v5788 = vsel %vm457, %v5753, %v5721
      %v5789 = vsel %vm457, %v5755, %v5723
      %v5790 = vsel %vm457, %v5757, %v5725
      %v5791 = vsel %vm457, %v5759, %v5727
      %v5792 = vsel %vm464, %v5664, %v5776
      %v5793 = vsel %vm465, %v5665, %v5760
      %v5794 = vsel %vm464, %v5666, %v5777
      %v5795 = vsel %vm465, %v5667, %v5761
      %v5796 = vsel %vm464, %v5668, %v5778
      %v5797 = vsel %vm465, %v5669, %v5762
      %v5798 = vsel %vm464, %v5670, %v5779
      %v5799 = vsel %vm465, %v5671, %v5763
      %v5800 = vsel %vm464, %v5672, %v5780
      %v5801 = vsel %vm465, %v5673, %v5764
      %v5802 = vsel %vm464, %v5674, %v5781
      %v5803 = vsel %vm465, %v5675, %v5765
      %v5804 = vsel %vm464, %v5676, %v5782
      %v5805 = vsel %vm465, %v5677, %v5766
      %v5806 = vsel %vm464, %v5678, %v5783
      %v5807 = vsel %vm465, %v5679, %v5767
      %v5808 = vsel %vm464, %v5680, %v5784
      %v5809 = vsel %vm465, %v5681, %v5768
      %v5810 = vsel %vm464, %v5682, %v5785
      %v5811 = vsel %vm465, %v5683, %v5769
      %v5812 = vsel %vm464, %v5684, %v5786
      %v5813 = vsel %vm465, %v5685, %v5770
      %v5814 = vsel %vm464, %v5686, %v5787
      %v5815 = vsel %vm465, %v5687, %v5771
      %v5816 = vsel %vm464, %v5688, %v5788
      %v5817 = vsel %vm465, %v5689, %v5772
      %v5818 = vsel %vm464, %v5690, %v5789
      %v5819 = vsel %vm465, %v5691, %v5773
      %v5820 = vsel %vm464, %v5692, %v5790
      %v5821 = vsel %vm465, %v5693, %v5774
      %v5822 = vsel %vm464, %v5694, %v5791
      %v5823 = vsel %vm465, %v5695, %v5775
      %v5824 = vld [vmem:[%s7] sm:$0xf]
      %v5825 = vld [vmem:[%s7 + $0x4] sm:$0xf]
      %v5826 = vpack.c.bf16 %v5794, %v5792
      %v5827 = vpack.c.bf16 %v5795, %v5793
      %v5828 = vpack.c.bf16 %v5798, %v5796
      %v5829 = vpack.c.bf16 %v5799, %v5797
      %v5830 = vpack.c.bf16 %v5802, %v5800
      %v5831 = vpack.c.bf16 %v5803, %v5801
      %v5832 = vpack.c.bf16 %v5806, %v5804
      %v5833 = vpack.c.bf16 %v5807, %v5805
      %v5834 = vpack.c.bf16 %v5810, %v5808
      %v5835 = vpack.c.bf16 %v5811, %v5809
      %v5836 = vpack.c.bf16 %v5814, %v5812
      %v5837 = vpack.c.bf16 %v5815, %v5813
      %v5838 = vpack.c.bf16 %v5818, %v5816
      %v5839 = vpack.c.bf16 %v5819, %v5817
      %v5840 = vpack.c.bf16 %v5822, %v5820
      %v5841 = vpack.c.bf16 %v5823, %v5821
      %v5844 = vunpack.c.l.b16 %v5824
      %v5845 = vunpack.c.l.b16 %v5825
      %v5846 = vpack.c.b16 %v5845, %v5844
      %5848 = vmatprep.subr.bf16.mxu0 %v5827
      %5849 = vmatpush1.bf16.msra.mxu0 %v5826
      %5850 = vmatprep.subr.bf16.mxu0 %v5829
      %5851 = vmatpush1.bf16.msra.mxu0 %v5828
      %5852 = vmatprep.subr.bf16.mxu0 %v5831
      %5853 = vmatpush1.bf16.msra.mxu0 %v5830
      %5854 = vmatprep.subr.bf16.mxu0 %v5833
      %5855 = vmatpush1.bf16.msra.mxu0 %v5832
      %5856 = vmatprep.subr.bf16.mxu0 %v5835
      %5857 = vmatpush1.bf16.msra.mxu0 %v5834
      %5858 = vmatprep.subr.bf16.mxu0 %v5837
      %5859 = vmatpush1.bf16.msra.mxu0 %v5836
      %5860 = vmatprep.subr.bf16.mxu0 %v5839
      %5861 = vmatpush1.bf16.msra.mxu0 %v5838
      %5862 = vmatprep.subr.bf16.mxu0 %v5841
      %5863 = vmatpush1.bf16.msra.mxu0 %v5840
      %5864 = vmatprep.subr.bf16.mxu0 0
      %5865 = vmatpush1.bf16.msra.mxu0 0
      %5866 = vmatprep.subr.bf16.mxu0 0
      %5867 = vmatpush1.bf16.msra.mxu0 0
      %5868 = vmatprep.subr.bf16.mxu0 0
      %5869 = vmatpush1.bf16.msra.mxu0 0
      %5870 = vmatprep.subr.bf16.mxu0 0
      %5871 = vmatpush1.bf16.msra.mxu0 0
      %5872 = vmatprep.subr.bf16.mxu0 0
      %5873 = vmatpush1.bf16.msra.mxu0 0
      %5874 = vmatprep.subr.bf16.mxu0 0
      %5875 = vmatpush1.bf16.msra.mxu0 0
      %5876 = vmatprep.subr.bf16.mxu0 0
      %5877 = vmatpush1.bf16.msra.mxu0 0
      %5878 = vmatprep.subr.bf16.mxu0 0
      %5879 = vmatpush1.bf16.msra.mxu0 0
      %5880 = vmatprep.mubr.bf16.mxu0 0
      %5881 = vmatmul.mubr.bf16.gmra.mrb[0].mxu0 %v5846
      %v5882 = vpop.f32.mrb[0].mxu0
      %v5883 = vadd.f32 0.0, %v5882
      %v5884 = vpop.f32.mrb[0].mxu0
      %v5885 = vadd.f32 0.0, %v5884
      %v5886 = vpop.f32.mrb[0].mxu0
      %v5887 = vadd.f32 0.0, %v5886
      %v5888 = vpop.f32.mrb[0].mxu0
      %v5889 = vadd.f32 0.0, %v5888
      %5890 = vdwg.mxu0
      %v5891 = vadd.f32 %v5561, %v5883
      %v5892 = vadd.f32 %v5561, %v5885
      %v5893 = vadd.f32 %v5566, %v5887
      %v5894 = vadd.f32 %v5566, %v5889
      %s5895 = scalar_lea.vmem %s7, 8
      %v5896 = vld [vmem:[%s5895] sm:$0xf]
      %v5897 = vld [vmem:[%s5895 + $0x4] sm:$0xf]
      %v5898 = vpack.c.bf16 %v5666, %v5664
      %v5899 = vpack.c.bf16 %v5667, %v5665
      %v5900 = vpack.c.bf16 %v5670, %v5668
      %v5901 = vpack.c.bf16 %v5671, %v5669
      %v5902 = vpack.c.bf16 %v5674, %v5672
      %v5903 = vpack.c.bf16 %v5675, %v5673
      %v5904 = vpack.c.bf16 %v5678, %v5676
      %v5905 = vpack.c.bf16 %v5679, %v5677
      %v5906 = vpack.c.bf16 %v5682, %v5680
      %v5907 = vpack.c.bf16 %v5683, %v5681
      %v5908 = vpack.c.bf16 %v5686, %v5684
      %v5909 = vpack.c.bf16 %v5687, %v5685
      %v5910 = vpack.c.bf16 %v5690, %v5688
      %v5911 = vpack.c.bf16 %v5691, %v5689
      %v5912 = vpack.c.bf16 %v5694, %v5692
      %v5913 = vpack.c.bf16 %v5695, %v5693
      %v5916 = vunpack.c.l.b16 %v5896
      %v5917 = vunpack.c.l.b16 %v5897
      %v5918 = vpack.c.b16 %v5917, %v5916
      %5920 = vmatprep.subr.bf16.mxu0 %v5899
      %5921 = vmatpush1.bf16.msra.mxu0 %v5898
      %5922 = vmatprep.subr.bf16.mxu0 %v5901
      %5923 = vmatpush1.bf16.msra.mxu0 %v5900
      %5924 = vmatprep.subr.bf16.mxu0 %v5903
      %5925 = vmatpush1.bf16.msra.mxu0 %v5902
      %5926 = vmatprep.subr.bf16.mxu0 %v5905
      %5927 = vmatpush1.bf16.msra.mxu0 %v5904
      %5928 = vmatprep.subr.bf16.mxu0 %v5907
      %5929 = vmatpush1.bf16.msra.mxu0 %v5906
      %5930 = vmatprep.subr.bf16.mxu0 %v5909
      %5931 = vmatpush1.bf16.msra.mxu0 %v5908
      %5932 = vmatprep.subr.bf16.mxu0 %v5911
      %5933 = vmatpush1.bf16.msra.mxu0 %v5910
      %5934 = vmatprep.subr.bf16.mxu0 %v5913
      %5935 = vmatpush1.bf16.msra.mxu0 %v5912
      %5936 = vmatprep.subr.bf16.mxu0 0
      %5937 = vmatpush1.bf16.msra.mxu0 0
      %5938 = vmatprep.subr.bf16.mxu0 0
      %5939 = vmatpush1.bf16.msra.mxu0 0
      %5940 = vmatprep.subr.bf16.mxu0 0
      %5941 = vmatpush1.bf16.msra.mxu0 0
      %5942 = vmatprep.subr.bf16.mxu0 0
      %5943 = vmatpush1.bf16.msra.mxu0 0
      %5944 = vmatprep.subr.bf16.mxu0 0
      %5945 = vmatpush1.bf16.msra.mxu0 0
      %5946 = vmatprep.subr.bf16.mxu0 0
      %5947 = vmatpush1.bf16.msra.mxu0 0
      %5948 = vmatprep.subr.bf16.mxu0 0
      %5949 = vmatpush1.bf16.msra.mxu0 0
      %5950 = vmatprep.subr.bf16.mxu0 0
      %5951 = vmatpush1.bf16.msra.mxu0 0
      %5952 = vmatprep.mubr.bf16.mxu0 0
      %5953 = vmatmul.mubr.bf16.gmra.mrb[0].mxu0 %v5918
      %v5954 = vpop.f32.mrb[0].mxu0
      %v5955 = vadd.f32 0.0, %v5954
      %v5956 = vpop.f32.mrb[0].mxu0
      %v5957 = vadd.f32 0.0, %v5956
      %v5958 = vpop.f32.mrb[0].mxu0
      %v5959 = vadd.f32 0.0, %v5958
      %v5960 = vpop.f32.mrb[0].mxu0
      %v5961 = vadd.f32 0.0, %v5960
      %5962 = vdwg.mxu0
      %v5963 = vadd.f32 %v5891, %v5955
      %v5964 = vadd.f32 %v5892, %v5957
      %v5965 = vadd.f32 %v5893, %v5959
      %v5966 = vadd.f32 %v5894, %v5961
      %5967 = vrot.lane.b32.xlu0 %v5664, 127
      %v5968 = vpop.permute.xlu0 %5967
      %5969 = vrot.lane.b32.xlu0 %v5666, 127
      %v5970 = vpop.permute.xlu0 %5969
      %5971 = vrot.lane.b32.xlu0 %v5668, 127
      %v5972 = vpop.permute.xlu0 %5971
      %5973 = vrot.lane.b32.xlu0 %v5670, 127
      %v5974 = vpop.permute.xlu0 %5973
      %5975 = vrot.lane.b32.xlu0 %v5672, 127
      %v5976 = vpop.permute.xlu0 %5975
      %5977 = vrot.lane.b32.xlu0 %v5674, 127
      %v5978 = vpop.permute.xlu0 %5977
      %5979 = vrot.lane.b32.xlu0 %v5676, 127
      %v5980 = vpop.permute.xlu0 %5979
      %5981 = vrot.lane.b32.xlu0 %v5678, 127
      %v5982 = vpop.permute.xlu0 %5981
      %5983 = vrot.lane.b32.xlu0 %v5680, 127
      %v5984 = vpop.permute.xlu0 %5983
      %5985 = vrot.lane.b32.xlu0 %v5682, 127
      %v5986 = vpop.permute.xlu0 %5985
      %5987 = vrot.lane.b32.xlu0 %v5684, 127
      %v5988 = vpop.permute.xlu0 %5987
      %5989 = vrot.lane.b32.xlu0 %v5686, 127
      %v5990 = vpop.permute.xlu0 %5989
      %5991 = vrot.lane.b32.xlu0 %v5688, 127
      %v5992 = vpop.permute.xlu0 %5991
      %5993 = vrot.lane.b32.xlu0 %v5690, 127
      %v5994 = vpop.permute.xlu0 %5993
      %5995 = vrot.lane.b32.xlu0 %v5692, 127
      %v5996 = vpop.permute.xlu0 %5995
      %5997 = vrot.lane.b32.xlu0 %v5694, 127
      %v5998 = vpop.permute.xlu0 %5997
      %5999 = vrot.lane.b32.xlu0 %v5665, 127
      %v6000 = vpop.permute.xlu0 %5999
      %6001 = vrot.lane.b32.xlu0 %v5667, 127
      %v6002 = vpop.permute.xlu0 %6001
      %6003 = vrot.lane.b32.xlu0 %v5669, 127
      %v6004 = vpop.permute.xlu0 %6003
      %6005 = vrot.lane.b32.xlu0 %v5671, 127
      %v6006 = vpop.permute.xlu0 %6005
      %6007 = vrot.lane.b32.xlu0 %v5673, 127
      %v6008 = vpop.permute.xlu0 %6007
      %6009 = vrot.lane.b32.xlu0 %v5675, 127
      %v6010 = vpop.permute.xlu0 %6009
      %6011 = vrot.lane.b32.xlu0 %v5677, 127
      %v6012 = vpop.permute.xlu0 %6011
      %6013 = vrot.lane.b32.xlu0 %v5679, 127
      %v6014 = vpop.permute.xlu0 %6013
      %6015 = vrot.lane.b32.xlu0 %v5681, 127
      %v6016 = vpop.permute.xlu0 %6015
      %6017 = vrot.lane.b32.xlu0 %v5683, 127
      %v6018 = vpop.permute.xlu0 %6017
      %6019 = vrot.lane.b32.xlu0 %v5685, 127
      %v6020 = vpop.permute.xlu0 %6019
      %6021 = vrot.lane.b32.xlu0 %v5687, 127
      %v6022 = vpop.permute.xlu0 %6021
      %6023 = vrot.lane.b32.xlu0 %v5689, 127
      %v6024 = vpop.permute.xlu0 %6023
      %6025 = vrot.lane.b32.xlu0 %v5691, 127
      %v6026 = vpop.permute.xlu0 %6025
      %6027 = vrot.lane.b32.xlu0 %v5693, 127
      %v6028 = vpop.permute.xlu0 %6027
      %6029 = vrot.lane.b32.xlu0 %v5695, 127
      %v6030 = vpop.permute.xlu0 %6029
      %v6031 = vsel %vm646, %v5968, %v6000
      %v6032 = vsel %vm646, %v5970, %v6002
      %v6033 = vsel %vm646, %v5972, %v6004
      %v6034 = vsel %vm646, %v5974, %v6006
      %v6035 = vsel %vm646, %v5976, %v6008
      %v6036 = vsel %vm646, %v5978, %v6010
      %v6037 = vsel %vm646, %v5980, %v6012
      %v6038 = vsel %vm646, %v5982, %v6014
      %v6039 = vsel %vm646, %v5984, %v6016
      %v6040 = vsel %vm646, %v5986, %v6018
      %v6041 = vsel %vm646, %v5988, %v6020
      %v6042 = vsel %vm646, %v5990, %v6022
      %v6043 = vsel %vm646, %v5992, %v6024
      %v6044 = vsel %vm646, %v5994, %v6026
      %v6045 = vsel %vm646, %v5996, %v6028
      %v6046 = vsel %vm646, %v5998, %v6030
      %v6047 = vsel %vm646, %v6000, %v5968
      %v6048 = vsel %vm646, %v6002, %v5970
      %v6049 = vsel %vm646, %v6004, %v5972
      %v6050 = vsel %vm646, %v6006, %v5974
      %v6051 = vsel %vm646, %v6008, %v5976
      %v6052 = vsel %vm646, %v6010, %v5978
      %v6053 = vsel %vm646, %v6012, %v5980
      %v6054 = vsel %vm646, %v6014, %v5982
      %v6055 = vsel %vm646, %v6016, %v5984
      %v6056 = vsel %vm646, %v6018, %v5986
      %v6057 = vsel %vm646, %v6020, %v5988
      %v6058 = vsel %vm646, %v6022, %v5990
      %v6059 = vsel %vm646, %v6024, %v5992
      %v6060 = vsel %vm646, %v6026, %v5994
      %v6061 = vsel %vm646, %v6028, %v5996
      %v6062 = vsel %vm646, %v6030, %v5998
      %v6063 = vsel %vm653, %v5664, %v6031
      %v6064 = vsel %vm654, %v5665, %v6047
      %v6065 = vsel %vm653, %v5666, %v6032
      %v6066 = vsel %vm654, %v5667, %v6048
      %v6067 = vsel %vm653, %v5668, %v6033
      %v6068 = vsel %vm654, %v5669, %v6049
      %v6069 = vsel %vm653, %v5670, %v6034
      %v6070 = vsel %vm654, %v5671, %v6050
      %v6071 = vsel %vm653, %v5672, %v6035
      %v6072 = vsel %vm654, %v5673, %v6051
      %v6073 = vsel %vm653, %v5674, %v6036
      %v6074 = vsel %vm654, %v5675, %v6052
      %v6075 = vsel %vm653, %v5676, %v6037
      %v6076 = vsel %vm654, %v5677, %v6053
      %v6077 = vsel %vm653, %v5678, %v6038
      %v6078 = vsel %vm654, %v5679, %v6054
      %v6079 = vsel %vm653, %v5680, %v6039
      %v6080 = vsel %vm654, %v5681, %v6055
      %v6081 = vsel %vm653, %v5682, %v6040
      %v6082 = vsel %vm654, %v5683, %v6056
      %v6083 = vsel %vm653, %v5684, %v6041
      %v6084 = vsel %vm654, %v5685, %v6057
      %v6085 = vsel %vm653, %v5686, %v6042
      %v6086 = vsel %vm654, %v5687, %v6058
      %v6087 = vsel %vm653, %v5688, %v6043
      %v6088 = vsel %vm654, %v5689, %v6059
      %v6089 = vsel %vm653, %v5690, %v6044
      %v6090 = vsel %vm654, %v5691, %v6060
      %v6091 = vsel %vm653, %v5692, %v6045
      %v6092 = vsel %vm654, %v5693, %v6061
      %v6093 = vsel %vm653, %v5694, %v6046
      %v6094 = vsel %vm654, %v5695, %v6062
      %s6095 = scalar_lea.vmem %s7, 16
      %v6096 = vld [vmem:[%s6095] sm:$0xf]
      %v6097 = vld [vmem:[%s6095 + $0x4] sm:$0xf]
      %v6098 = vpack.c.bf16 %v6065, %v6063
      %v6099 = vpack.c.bf16 %v6066, %v6064
      %v6100 = vpack.c.bf16 %v6069, %v6067
      %v6101 = vpack.c.bf16 %v6070, %v6068
      %v6102 = vpack.c.bf16 %v6073, %v6071
      %v6103 = vpack.c.bf16 %v6074, %v6072
      %v6104 = vpack.c.bf16 %v6077, %v6075
      %v6105 = vpack.c.bf16 %v6078, %v6076
      %v6106 = vpack.c.bf16 %v6081, %v6079
      %v6107 = vpack.c.bf16 %v6082, %v6080
      %v6108 = vpack.c.bf16 %v6085, %v6083
      %v6109 = vpack.c.bf16 %v6086, %v6084
      %v6110 = vpack.c.bf16 %v6089, %v6087
      %v6111 = vpack.c.bf16 %v6090, %v6088
      %v6112 = vpack.c.bf16 %v6093, %v6091
      %v6113 = vpack.c.bf16 %v6094, %v6092
      %v6116 = vunpack.c.l.b16 %v6096
      %v6117 = vunpack.c.l.b16 %v6097
      %v6118 = vpack.c.b16 %v6117, %v6116
      %6120 = vmatprep.subr.bf16.mxu0 %v6099
      %6121 = vmatpush1.bf16.msra.mxu0 %v6098
      %6122 = vmatprep.subr.bf16.mxu0 %v6101
      %6123 = vmatpush1.bf16.msra.mxu0 %v6100
      %6124 = vmatprep.subr.bf16.mxu0 %v6103
      %6125 = vmatpush1.bf16.msra.mxu0 %v6102
      %6126 = vmatprep.subr.bf16.mxu0 %v6105
      %6127 = vmatpush1.bf16.msra.mxu0 %v6104
      %6128 = vmatprep.subr.bf16.mxu0 %v6107
      %6129 = vmatpush1.bf16.msra.mxu0 %v6106
      %6130 = vmatprep.subr.bf16.mxu0 %v6109
      %6131 = vmatpush1.bf16.msra.mxu0 %v6108
      %6132 = vmatprep.subr.bf16.mxu0 %v6111
      %6133 = vmatpush1.bf16.msra.mxu0 %v6110
      %6134 = vmatprep.subr.bf16.mxu0 %v6113
      %6135 = vmatpush1.bf16.msra.mxu0 %v6112
      %6136 = vmatprep.subr.bf16.mxu0 0
      %6137 = vmatpush1.bf16.msra.mxu0 0
      %6138 = vmatprep.subr.bf16.mxu0 0
      %6139 = vmatpush1.bf16.msra.mxu0 0
      %6140 = vmatprep.subr.bf16.mxu0 0
      %6141 = vmatpush1.bf16.msra.mxu0 0
      %6142 = vmatprep.subr.bf16.mxu0 0
      %6143 = vmatpush1.bf16.msra.mxu0 0
      %6144 = vmatprep.subr.bf16.mxu0 0
      %6145 = vmatpush1.bf16.msra.mxu0 0
      %6146 = vmatprep.subr.bf16.mxu0 0
      %6147 = vmatpush1.bf16.msra.mxu0 0
      %6148 = vmatprep.subr.bf16.mxu0 0
      %6149 = vmatpush1.bf16.msra.mxu0 0
      %6150 = vmatprep.subr.bf16.mxu0 0
      %6151 = vmatpush1.bf16.msra.mxu0 0
      %6152 = vmatprep.mubr.bf16.mxu0 0
      %6153 = vmatmul.mubr.bf16.gmra.mrb[0].mxu0 %v6118
      %v6154 = vpop.f32.mrb[0].mxu0
      %v6155 = vadd.f32 0.0, %v6154
      %v6156 = vpop.f32.mrb[0].mxu0
      %v6157 = vadd.f32 0.0, %v6156
      %v6158 = vpop.f32.mrb[0].mxu0
      %v6159 = vadd.f32 0.0, %v6158
      %v6160 = vpop.f32.mrb[0].mxu0
      %v6161 = vadd.f32 0.0, %v6160
      %6162 = vdwg.mxu0
      %v6163 = vadd.f32 %v5963, %v6155
      %v6164 = vadd.f32 %v5964, %v6157
      %v6165 = vadd.f32 %v5965, %v6159
      %v6166 = vadd.f32 %v5966, %v6161
      %6167 = vrot.lane.b32.xlu0 %v5524, 1
      %v6168 = vpop.permute.xlu0 %6167
      %6169 = vrot.lane.b32.xlu0 %v5526, 1
      %v6170 = vpop.permute.xlu0 %6169
      %6171 = vrot.lane.b32.xlu0 %v5528, 1
      %v6172 = vpop.permute.xlu0 %6171
      %6173 = vrot.lane.b32.xlu0 %v5530, 1
      %v6174 = vpop.permute.xlu0 %6173
      %6175 = vrot.lane.b32.xlu0 %v5532, 1
      %v6176 = vpop.permute.xlu0 %6175
      %6177 = vrot.lane.b32.xlu0 %v5534, 1
      %v6178 = vpop.permute.xlu0 %6177
      %6179 = vrot.lane.b32.xlu0 %v5536, 1
      %v6180 = vpop.permute.xlu0 %6179
      %6181 = vrot.lane.b32.xlu0 %v5538, 1
      %v6182 = vpop.permute.xlu0 %6181
      %6183 = vrot.lane.b32.xlu0 %v5540, 1
      %v6184 = vpop.permute.xlu0 %6183
      %6185 = vrot.lane.b32.xlu0 %v5542, 1
      %v6186 = vpop.permute.xlu0 %6185
      %6187 = vrot.lane.b32.xlu0 %v5544, 1
      %v6188 = vpop.permute.xlu0 %6187
      %6189 = vrot.lane.b32.xlu0 %v5546, 1
      %v6190 = vpop.permute.xlu0 %6189
      %6191 = vrot.lane.b32.xlu0 %v5548, 1
      %v6192 = vpop.permute.xlu0 %6191
      %6193 = vrot.lane.b32.xlu0 %v5550, 1
      %v6194 = vpop.permute.xlu0 %6193
      %6195 = vrot.lane.b32.xlu0 %v5552, 1
      %v6196 = vpop.permute.xlu0 %6195
      %6197 = vrot.lane.b32.xlu0 %v5554, 1
      %v6198 = vpop.permute.xlu0 %6197
      %6199 = vrot.lane.b32.xlu0 %v5525, 1
      %v6200 = vpop.permute.xlu0 %6199
      %6201 = vrot.lane.b32.xlu0 %v5527, 1
      %v6202 = vpop.permute.xlu0 %6201
      %6203 = vrot.lane.b32.xlu0 %v5529, 1
      %v6204 = vpop.permute.xlu0 %6203
      %6205 = vrot.lane.b32.xlu0 %v5531, 1
      %v6206 = vpop.permute.xlu0 %6205
      %6207 = vrot.lane.b32.xlu0 %v5533, 1
      %v6208 = vpop.permute.xlu0 %6207
      %6209 = vrot.lane.b32.xlu0 %v5535, 1
      %v6210 = vpop.permute.xlu0 %6209
      %6211 = vrot.lane.b32.xlu0 %v5537, 1
      %v6212 = vpop.permute.xlu0 %6211
      %6213 = vrot.lane.b32.xlu0 %v5539, 1
      %v6214 = vpop.permute.xlu0 %6213
      %6215 = vrot.lane.b32.xlu0 %v5541, 1
      %v6216 = vpop.permute.xlu0 %6215
      %6217 = vrot.lane.b32.xlu0 %v5543, 1
      %v6218 = vpop.permute.xlu0 %6217
      %6219 = vrot.lane.b32.xlu0 %v5545, 1
      %v6220 = vpop.permute.xlu0 %6219
      %6221 = vrot.lane.b32.xlu0 %v5547, 1
      %v6222 = vpop.permute.xlu0 %6221
      %6223 = vrot.lane.b32.xlu0 %v5549, 1
      %v6224 = vpop.permute.xlu0 %6223
      %6225 = vrot.lane.b32.xlu0 %v5551, 1
      %v6226 = vpop.permute.xlu0 %6225
      %6227 = vrot.lane.b32.xlu0 %v5553, 1
      %v6228 = vpop.permute.xlu0 %6227
      %6229 = vrot.lane.b32.xlu0 %v5555, 1
      %v6230 = vpop.permute.xlu0 %6229
      %v6231 = vsel %vm457, %v6168, %v6200
      %v6232 = vsel %vm457, %v6170, %v6202
      %v6233 = vsel %vm457, %v6172, %v6204
      %v6234 = vsel %vm457, %v6174, %v6206
      %v6235 = vsel %vm457, %v6176, %v6208
      %v6236 = vsel %vm457, %v6178, %v6210
      %v6237 = vsel %vm457, %v6180, %v6212
      %v6238 = vsel %vm457, %v6182, %v6214
      %v6239 = vsel %vm457, %v6184, %v6216
      %v6240 = vsel %vm457, %v6186, %v6218
      %v6241 = vsel %vm457, %v6188, %v6220
      %v6242 = vsel %vm457, %v6190, %v6222
      %v6243 = vsel %vm457, %v6192, %v6224
      %v6244 = vsel %vm457, %v6194, %v6226
      %v6245 = vsel %vm457, %v6196, %v6228
      %v6246 = vsel %vm457, %v6198, %v6230
      %v6247 = vsel %vm457, %v6200, %v6168
      %v6248 = vsel %vm457, %v6202, %v6170
      %v6249 = vsel %vm457, %v6204, %v6172
      %v6250 = vsel %vm457, %v6206, %v6174
      %v6251 = vsel %vm457, %v6208, %v6176
      %v6252 = vsel %vm457, %v6210, %v6178
      %v6253 = vsel %vm457, %v6212, %v6180
      %v6254 = vsel %vm457, %v6214, %v6182
      %v6255 = vsel %vm457, %v6216, %v6184
      %v6256 = vsel %vm457, %v6218, %v6186
      %v6257 = vsel %vm457, %v6220, %v6188
      %v6258 = vsel %vm457, %v6222, %v6190
      %v6259 = vsel %vm457, %v6224, %v6192
      %v6260 = vsel %vm457, %v6226, %v6194
      %v6261 = vsel %vm457, %v6228, %v6196
      %v6262 = vsel %vm457, %v6230, %v6198
      %v6263 = vsel %vm464, %v5524, %v6247
      %v6264 = vsel %vm465, %v5525, %v6231
      %v6265 = vsel %vm464, %v5526, %v6248
      %v6266 = vsel %vm465, %v5527, %v6232
      %v6267 = vsel %vm464, %v5528, %v6249
      %v6268 = vsel %vm465, %v5529, %v6233
      %v6269 = vsel %vm464, %v5530, %v6250
      %v6270 = vsel %vm465, %v5531, %v6234
      %v6271 = vsel %vm464, %v5532, %v6251
      %v6272 = vsel %vm465, %v5533, %v6235
      %v6273 = vsel %vm464, %v5534, %v6252
      %v6274 = vsel %vm465, %v5535, %v6236
      %v6275 = vsel %vm464, %v5536, %v6253
      %v6276 = vsel %vm465, %v5537, %v6237
      %v6277 = vsel %vm464, %v5538, %v6254
      %v6278 = vsel %vm465, %v5539, %v6238
      %v6279 = vsel %vm464, %v5540, %v6255
      %v6280 = vsel %vm465, %v5541, %v6239
      %v6281 = vsel %vm464, %v5542, %v6256
      %v6282 = vsel %vm465, %v5543, %v6240
      %v6283 = vsel %vm464, %v5544, %v6257
      %v6284 = vsel %vm465, %v5545, %v6241
      %v6285 = vsel %vm464, %v5546, %v6258
      %v6286 = vsel %vm465, %v5547, %v6242
      %v6287 = vsel %vm464, %v5548, %v6259
      %v6288 = vsel %vm465, %v5549, %v6243
      %v6289 = vsel %vm464, %v5550, %v6260
      %v6290 = vsel %vm465, %v5551, %v6244
      %v6291 = vsel %vm464, %v5552, %v6261
      %v6292 = vsel %vm465, %v5553, %v6245
      %v6293 = vsel %vm464, %v5554, %v6262
      %v6294 = vsel %vm465, %v5555, %v6246
      %s6295 = scalar_lea.vmem %s7, 24
      %v6296 = vld [vmem:[%s6295] sm:$0xf]
      %v6297 = vld [vmem:[%s6295 + $0x4] sm:$0xf]
      %v6298 = vpack.c.bf16 %v6265, %v6263
      %v6299 = vpack.c.bf16 %v6266, %v6264
      %v6300 = vpack.c.bf16 %v6269, %v6267
      %v6301 = vpack.c.bf16 %v6270, %v6268
      %v6302 = vpack.c.bf16 %v6273, %v6271
      %v6303 = vpack.c.bf16 %v6274, %v6272
      %v6304 = vpack.c.bf16 %v6277, %v6275
      %v6305 = vpack.c.bf16 %v6278, %v6276
      %v6306 = vpack.c.bf16 %v6281, %v6279
      %v6307 = vpack.c.bf16 %v6282, %v6280
      %v6308 = vpack.c.bf16 %v6285, %v6283
      %v6309 = vpack.c.bf16 %v6286, %v6284
      %v6310 = vpack.c.bf16 %v6289, %v6287
      %v6311 = vpack.c.bf16 %v6290, %v6288
      %v6312 = vpack.c.bf16 %v6293, %v6291
      %v6313 = vpack.c.bf16 %v6294, %v6292
      %v6316 = vunpack.c.l.b16 %v6296
      %v6317 = vunpack.c.l.b16 %v6297
      %v6318 = vpack.c.b16 %v6317, %v6316
      %6320 = vmatprep.subr.bf16.mxu0 %v6299
      %6321 = vmatpush1.bf16.msra.mxu0 %v6298
      %6322 = vmatprep.subr.bf16.mxu0 %v6301
      %6323 = vmatpush1.bf16.msra.mxu0 %v6300
      %6324 = vmatprep.subr.bf16.mxu0 %v6303
      %6325 = vmatpush1.bf16.msra.mxu0 %v6302
      %6326 = vmatprep.subr.bf16.mxu0 %v6305
      %6327 = vmatpush1.bf16.msra.mxu0 %v6304
      %6328 = vmatprep.subr.bf16.mxu0 %v6307
      %6329 = vmatpush1.bf16.msra.mxu0 %v6306
      %6330 = vmatprep.subr.bf16.mxu0 %v6309
      %6331 = vmatpush1.bf16.msra.mxu0 %v6308
      %6332 = vmatprep.subr.bf16.mxu0 %v6311
      %6333 = vmatpush1.bf16.msra.mxu0 %v6310
      %6334 = vmatprep.subr.bf16.mxu0 %v6313
      %6335 = vmatpush1.bf16.msra.mxu0 %v6312
      %6336 = vmatprep.subr.bf16.mxu0 0
      %6337 = vmatpush1.bf16.msra.mxu0 0
      %6338 = vmatprep.subr.bf16.mxu0 0
      %6339 = vmatpush1.bf16.msra.mxu0 0
      %6340 = vmatprep.subr.bf16.mxu0 0
      %6341 = vmatpush1.bf16.msra.mxu0 0
      %6342 = vmatprep.subr.bf16.mxu0 0
      %6343 = vmatpush1.bf16.msra.mxu0 0
      %6344 = vmatprep.subr.bf16.mxu0 0
      %6345 = vmatpush1.bf16.msra.mxu0 0
      %6346 = vmatprep.subr.bf16.mxu0 0
      %6347 = vmatpush1.bf16.msra.mxu0 0
      %6348 = vmatprep.subr.bf16.mxu0 0
      %6349 = vmatpush1.bf16.msra.mxu0 0
      %6350 = vmatprep.subr.bf16.mxu0 0
      %6351 = vmatpush1.bf16.msra.mxu0 0
      %6352 = vmatprep.mubr.bf16.mxu0 0
      %6353 = vmatmul.mubr.bf16.gmra.mrb[0].mxu0 %v6318
      %v6354 = vpop.f32.mrb[0].mxu0
      %v6355 = vadd.f32 0.0, %v6354
      %v6356 = vpop.f32.mrb[0].mxu0
      %v6357 = vadd.f32 0.0, %v6356
      %v6358 = vpop.f32.mrb[0].mxu0
      %v6359 = vadd.f32 0.0, %v6358
      %v6360 = vpop.f32.mrb[0].mxu0
      %v6361 = vadd.f32 0.0, %v6360
      %6362 = vdwg.mxu0
      %v6363 = vadd.f32 %v6163, %v6355
      %v6364 = vadd.f32 %v6164, %v6357
      %v6365 = vadd.f32 %v6165, %v6359
      %v6366 = vadd.f32 %v6166, %v6361
      %s6367 = scalar_lea.vmem %s7, 32
      %v6368 = vld [vmem:[%s6367] sm:$0xf]
      %v6369 = vld [vmem:[%s6367 + $0x4] sm:$0xf]
      %v6370 = vpack.c.bf16 %v5526, %v5524
      %v6371 = vpack.c.bf16 %v5527, %v5525
      %v6372 = vpack.c.bf16 %v5530, %v5528
      %v6373 = vpack.c.bf16 %v5531, %v5529
      %v6374 = vpack.c.bf16 %v5534, %v5532
      %v6375 = vpack.c.bf16 %v5535, %v5533
      %v6376 = vpack.c.bf16 %v5538, %v5536
      %v6377 = vpack.c.bf16 %v5539, %v5537
      %v6378 = vpack.c.bf16 %v5542, %v5540
      %v6379 = vpack.c.bf16 %v5543, %v5541
      %v6380 = vpack.c.bf16 %v5546, %v5544
      %v6381 = vpack.c.bf16 %v5547, %v5545
      %v6382 = vpack.c.bf16 %v5550, %v5548
      %v6383 = vpack.c.bf16 %v5551, %v5549
      %v6384 = vpack.c.bf16 %v5554, %v5552
      %v6385 = vpack.c.bf16 %v5555, %v5553
      %v6388 = vunpack.c.l.b16 %v6368
      %v6389 = vunpack.c.l.b16 %v6369
      %v6390 = vpack.c.b16 %v6389, %v6388
      %6392 = vmatprep.subr.bf16.mxu0 %v6371
      %6393 = vmatpush1.bf16.msra.mxu0 %v6370
      %6394 = vmatprep.subr.bf16.mxu0 %v6373
      %6395 = vmatpush1.bf16.msra.mxu0 %v6372
      %6396 = vmatprep.subr.bf16.mxu0 %v6375
      %6397 = vmatpush1.bf16.msra.mxu0 %v6374
      %6398 = vmatprep.subr.bf16.mxu0 %v6377
      %6399 = vmatpush1.bf16.msra.mxu0 %v6376
      %6400 = vmatprep.subr.bf16.mxu0 %v6379
      %6401 = vmatpush1.bf16.msra.mxu0 %v6378
      %6402 = vmatprep.subr.bf16.mxu0 %v6381
      %6403 = vmatpush1.bf16.msra.mxu0 %v6380
      %6404 = vmatprep.subr.bf16.mxu0 %v6383
      %6405 = vmatpush1.bf16.msra.mxu0 %v6382
      %6406 = vmatprep.subr.bf16.mxu0 %v6385
      %6407 = vmatpush1.bf16.msra.mxu0 %v6384
      %6408 = vmatprep.subr.bf16.mxu0 0
      %6409 = vmatpush1.bf16.msra.mxu0 0
      %6410 = vmatprep.subr.bf16.mxu0 0
      %6411 = vmatpush1.bf16.msra.mxu0 0
      %6412 = vmatprep.subr.bf16.mxu0 0
      %6413 = vmatpush1.bf16.msra.mxu0 0
      %6414 = vmatprep.subr.bf16.mxu0 0
      %6415 = vmatpush1.bf16.msra.mxu0 0
      %6416 = vmatprep.subr.bf16.mxu0 0
      %6417 = vmatpush1.bf16.msra.mxu0 0
      %6418 = vmatprep.subr.bf16.mxu0 0
      %6419 = vmatpush1.bf16.msra.mxu0 0
      %6420 = vmatprep.subr.bf16.mxu0 0
      %6421 = vmatpush1.bf16.msra.mxu0 0
      %6422 = vmatprep.subr.bf16.mxu0 0
      %6423 = vmatpush1.bf16.msra.mxu0 0
      %6424 = vmatprep.mubr.bf16.mxu0 0
      %6425 = vmatmul.mubr.bf16.gmra.mrb[0].mxu0 %v6390
      %v6426 = vpop.f32.mrb[0].mxu0
      %v6427 = vadd.f32 0.0, %v6426
      %v6428 = vpop.f32.mrb[0].mxu0
      %v6429 = vadd.f32 0.0, %v6428
      %v6430 = vpop.f32.mrb[0].mxu0
      %v6431 = vadd.f32 0.0, %v6430
      %v6432 = vpop.f32.mrb[0].mxu0
      %v6433 = vadd.f32 0.0, %v6432
      %6434 = vdwg.mxu0
      %v6435 = vadd.f32 %v6363, %v6427
      %v6436 = vadd.f32 %v6364, %v6429
      %v6437 = vadd.f32 %v6365, %v6431
      %v6438 = vadd.f32 %v6366, %v6433
      %6439 = vrot.lane.b32.xlu0 %v5524, 127
      %v6440 = vpop.permute.xlu0 %6439
      %6441 = vrot.lane.b32.xlu0 %v5526, 127
      %v6442 = vpop.permute.xlu0 %6441
      %6443 = vrot.lane.b32.xlu0 %v5528, 127
      %v6444 = vpop.permute.xlu0 %6443
      %6445 = vrot.lane.b32.xlu0 %v5530, 127
      %v6446 = vpop.permute.xlu0 %6445
      %6447 = vrot.lane.b32.xlu0 %v5532, 127
      %v6448 = vpop.permute.xlu0 %6447
      %6449 = vrot.lane.b32.xlu0 %v5534, 127
      %v6450 = vpop.permute.xlu0 %6449
      %6451 = vrot.lane.b32.xlu0 %v5536, 127
      %v6452 = vpop.permute.xlu0 %6451
      %6453 = vrot.lane.b32.xlu0 %v5538, 127
      %v6454 = vpop.permute.xlu0 %6453
      %6455 = vrot.lane.b32.xlu0 %v5540, 127
      %v6456 = vpop.permute.xlu0 %6455
      %6457 = vrot.lane.b32.xlu0 %v5542, 127
      %v6458 = vpop.permute.xlu0 %6457
      %6459 = vrot.lane.b32.xlu0 %v5544, 127
      %v6460 = vpop.permute.xlu0 %6459
      %6461 = vrot.lane.b32.xlu0 %v5546, 127
      %v6462 = vpop.permute.xlu0 %6461
      %6463 = vrot.lane.b32.xlu0 %v5548, 127
      %v6464 = vpop.permute.xlu0 %6463
      %6465 = vrot.lane.b32.xlu0 %v5550, 127
      %v6466 = vpop.permute.xlu0 %6465
      %6467 = vrot.lane.b32.xlu0 %v5552, 127
      %v6468 = vpop.permute.xlu0 %6467
      %6469 = vrot.lane.b32.xlu0 %v5554, 127
      %v6470 = vpop.permute.xlu0 %6469
      %6471 = vrot.lane.b32.xlu0 %v5525, 127
      %v6472 = vpop.permute.xlu0 %6471
      %6473 = vrot.lane.b32.xlu0 %v5527, 127
      %v6474 = vpop.permute.xlu0 %6473
      %6475 = vrot.lane.b32.xlu0 %v5529, 127
      %v6476 = vpop.permute.xlu0 %6475
      %6477 = vrot.lane.b32.xlu0 %v5531, 127
      %v6478 = vpop.permute.xlu0 %6477
      %6479 = vrot.lane.b32.xlu0 %v5533, 127
      %v6480 = vpop.permute.xlu0 %6479
      %6481 = vrot.lane.b32.xlu0 %v5535, 127
      %v6482 = vpop.permute.xlu0 %6481
      %6483 = vrot.lane.b32.xlu0 %v5537, 127
      %v6484 = vpop.permute.xlu0 %6483
      %6485 = vrot.lane.b32.xlu0 %v5539, 127
      %v6486 = vpop.permute.xlu0 %6485
      %6487 = vrot.lane.b32.xlu0 %v5541, 127
      %v6488 = vpop.permute.xlu0 %6487
      %6489 = vrot.lane.b32.xlu0 %v5543, 127
      %v6490 = vpop.permute.xlu0 %6489
      %6491 = vrot.lane.b32.xlu0 %v5545, 127
      %v6492 = vpop.permute.xlu0 %6491
      %6493 = vrot.lane.b32.xlu0 %v5547, 127
      %v6494 = vpop.permute.xlu0 %6493
      %6495 = vrot.lane.b32.xlu0 %v5549, 127
      %v6496 = vpop.permute.xlu0 %6495
      %6497 = vrot.lane.b32.xlu0 %v5551, 127
      %v6498 = vpop.permute.xlu0 %6497
      %6499 = vrot.lane.b32.xlu0 %v5553, 127
      %v6500 = vpop.permute.xlu0 %6499
      %6501 = vrot.lane.b32.xlu0 %v5555, 127
      %v6502 = vpop.permute.xlu0 %6501
      %v6503 = vsel %vm646, %v6440, %v6472
      %v6504 = vsel %vm646, %v6442, %v6474
      %v6505 = vsel %vm646, %v6444, %v6476
      %v6506 = vsel %vm646, %v6446, %v6478
      %v6507 = vsel %vm646, %v6448, %v6480
      %v6508 = vsel %vm646, %v6450, %v6482
      %v6509 = vsel %vm646, %v6452, %v6484
      %v6510 = vsel %vm646, %v6454, %v6486
      %v6511 = vsel %vm646, %v6456, %v6488
      %v6512 = vsel %vm646, %v6458, %v6490
      %v6513 = vsel %vm646, %v6460, %v6492
      %v6514 = vsel %vm646, %v6462, %v6494
      %v6515 = vsel %vm646, %v6464, %v6496
      %v6516 = vsel %vm646, %v6466, %v6498
      %v6517 = vsel %vm646, %v6468, %v6500
      %v6518 = vsel %vm646, %v6470, %v6502
      %v6519 = vsel %vm646, %v6472, %v6440
      %v6520 = vsel %vm646, %v6474, %v6442
      %v6521 = vsel %vm646, %v6476, %v6444
      %v6522 = vsel %vm646, %v6478, %v6446
      %v6523 = vsel %vm646, %v6480, %v6448
      %v6524 = vsel %vm646, %v6482, %v6450
      %v6525 = vsel %vm646, %v6484, %v6452
      %v6526 = vsel %vm646, %v6486, %v6454
      %v6527 = vsel %vm646, %v6488, %v6456
      %v6528 = vsel %vm646, %v6490, %v6458
      %v6529 = vsel %vm646, %v6492, %v6460
      %v6530 = vsel %vm646, %v6494, %v6462
      %v6531 = vsel %vm646, %v6496, %v6464
      %v6532 = vsel %vm646, %v6498, %v6466
      %v6533 = vsel %vm646, %v6500, %v6468
      %v6534 = vsel %vm646, %v6502, %v6470
      %v6535 = vsel %vm653, %v5524, %v6503
      %v6536 = vsel %vm654, %v5525, %v6519
      %v6537 = vsel %vm653, %v5526, %v6504
      %v6538 = vsel %vm654, %v5527, %v6520
      %v6539 = vsel %vm653, %v5528, %v6505
      %v6540 = vsel %vm654, %v5529, %v6521
      %v6541 = vsel %vm653, %v5530, %v6506
      %v6542 = vsel %vm654, %v5531, %v6522
      %v6543 = vsel %vm653, %v5532, %v6507
      %v6544 = vsel %vm654, %v5533, %v6523
      %v6545 = vsel %vm653, %v5534, %v6508
      %v6546 = vsel %vm654, %v5535, %v6524
      %v6547 = vsel %vm653, %v5536, %v6509
      %v6548 = vsel %vm654, %v5537, %v6525
      %v6549 = vsel %vm653, %v5538, %v6510
      %v6550 = vsel %vm654, %v5539, %v6526
      %v6551 = vsel %vm653, %v5540, %v6511
      %v6552 = vsel %vm654, %v5541, %v6527
      %v6553 = vsel %vm653, %v5542, %v6512
      %v6554 = vsel %vm654, %v5543, %v6528
      %v6555 = vsel %vm653, %v5544, %v6513
      %v6556 = vsel %vm654, %v5545, %v6529
      %v6557 = vsel %vm653, %v5546, %v6514
      %v6558 = vsel %vm654, %v5547, %v6530
      %v6559 = vsel %vm653, %v5548, %v6515
      %v6560 = vsel %vm654, %v5549, %v6531
      %v6561 = vsel %vm653, %v5550, %v6516
      %v6562 = vsel %vm654, %v5551, %v6532
      %v6563 = vsel %vm653, %v5552, %v6517
      %v6564 = vsel %vm654, %v5553, %v6533
      %v6565 = vsel %vm653, %v5554, %v6518
      %v6566 = vsel %vm654, %v5555, %v6534
      %s6567 = scalar_lea.vmem %s7, 40
      %v6568 = vld [vmem:[%s6567] sm:$0xf]
      %v6569 = vld [vmem:[%s6567 + $0x4] sm:$0xf]
      %v6570 = vpack.c.bf16 %v6537, %v6535
      %v6571 = vpack.c.bf16 %v6538, %v6536
      %v6572 = vpack.c.bf16 %v6541, %v6539
      %v6573 = vpack.c.bf16 %v6542, %v6540
      %v6574 = vpack.c.bf16 %v6545, %v6543
      %v6575 = vpack.c.bf16 %v6546, %v6544
      %v6576 = vpack.c.bf16 %v6549, %v6547
      %v6577 = vpack.c.bf16 %v6550, %v6548
      %v6578 = vpack.c.bf16 %v6553, %v6551
      %v6579 = vpack.c.bf16 %v6554, %v6552
      %v6580 = vpack.c.bf16 %v6557, %v6555
      %v6581 = vpack.c.bf16 %v6558, %v6556
      %v6582 = vpack.c.bf16 %v6561, %v6559
      %v6583 = vpack.c.bf16 %v6562, %v6560
      %v6584 = vpack.c.bf16 %v6565, %v6563
      %v6585 = vpack.c.bf16 %v6566, %v6564
      %v6588 = vunpack.c.l.b16 %v6568
      %v6589 = vunpack.c.l.b16 %v6569
      %v6590 = vpack.c.b16 %v6589, %v6588
      %6592 = vmatprep.subr.bf16.mxu0 %v6571
      %6593 = vmatpush1.bf16.msra.mxu0 %v6570
      %6594 = vmatprep.subr.bf16.mxu0 %v6573
      %6595 = vmatpush1.bf16.msra.mxu0 %v6572
      %6596 = vmatprep.subr.bf16.mxu0 %v6575
      %6597 = vmatpush1.bf16.msra.mxu0 %v6574
      %6598 = vmatprep.subr.bf16.mxu0 %v6577
      %6599 = vmatpush1.bf16.msra.mxu0 %v6576
      %6600 = vmatprep.subr.bf16.mxu0 %v6579
      %6601 = vmatpush1.bf16.msra.mxu0 %v6578
      %6602 = vmatprep.subr.bf16.mxu0 %v6581
      %6603 = vmatpush1.bf16.msra.mxu0 %v6580
      %6604 = vmatprep.subr.bf16.mxu0 %v6583
      %6605 = vmatpush1.bf16.msra.mxu0 %v6582
      %6606 = vmatprep.subr.bf16.mxu0 %v6585
      %6607 = vmatpush1.bf16.msra.mxu0 %v6584
      %6608 = vmatprep.subr.bf16.mxu0 0
      %6609 = vmatpush1.bf16.msra.mxu0 0
      %6610 = vmatprep.subr.bf16.mxu0 0
      %6611 = vmatpush1.bf16.msra.mxu0 0
      %6612 = vmatprep.subr.bf16.mxu0 0
      %6613 = vmatpush1.bf16.msra.mxu0 0
      %6614 = vmatprep.subr.bf16.mxu0 0
      %6615 = vmatpush1.bf16.msra.mxu0 0
      %6616 = vmatprep.subr.bf16.mxu0 0
      %6617 = vmatpush1.bf16.msra.mxu0 0
      %6618 = vmatprep.subr.bf16.mxu0 0
      %6619 = vmatpush1.bf16.msra.mxu0 0
      %6620 = vmatprep.subr.bf16.mxu0 0
      %6621 = vmatpush1.bf16.msra.mxu0 0
      %6622 = vmatprep.subr.bf16.mxu0 0
      %6623 = vmatpush1.bf16.msra.mxu0 0
      %6624 = vmatprep.mubr.bf16.mxu0 0
      %6625 = vmatmul.mubr.bf16.gmra.mrb[0].mxu0 %v6590
      %v6626 = vpop.f32.mrb[0].mxu0
      %v6627 = vadd.f32 0.0, %v6626
      %v6628 = vpop.f32.mrb[0].mxu0
      %v6629 = vadd.f32 0.0, %v6628
      %v6630 = vpop.f32.mrb[0].mxu0
      %v6631 = vadd.f32 0.0, %v6630
      %v6632 = vpop.f32.mrb[0].mxu0
      %v6633 = vadd.f32 0.0, %v6632
      %6634 = vdwg.mxu0
      %v6635 = vadd.f32 %v6435, %v6627
      %v6636 = vadd.f32 %v6436, %v6629
      %v6637 = vadd.f32 %v6437, %v6631
      %v6638 = vadd.f32 %v6438, %v6633
      %6639 = vrot.lane.b32.xlu0 %v5524, 112
      %v6640 = vpop.permute.xlu0 %6639
      %6641 = vrot.lane.b32.xlu0 %v5526, 112
      %v6642 = vpop.permute.xlu0 %6641
      %6643 = vrot.lane.b32.xlu0 %v5528, 112
      %v6644 = vpop.permute.xlu0 %6643
      %6645 = vrot.lane.b32.xlu0 %v5530, 112
      %v6646 = vpop.permute.xlu0 %6645
      %6647 = vrot.lane.b32.xlu0 %v5532, 112
      %v6648 = vpop.permute.xlu0 %6647
      %6649 = vrot.lane.b32.xlu0 %v5534, 112
      %v6650 = vpop.permute.xlu0 %6649
      %6651 = vrot.lane.b32.xlu0 %v5536, 112
      %v6652 = vpop.permute.xlu0 %6651
      %6653 = vrot.lane.b32.xlu0 %v5538, 112
      %v6654 = vpop.permute.xlu0 %6653
      %6655 = vrot.lane.b32.xlu0 %v5540, 112
      %v6656 = vpop.permute.xlu0 %6655
      %6657 = vrot.lane.b32.xlu0 %v5542, 112
      %v6658 = vpop.permute.xlu0 %6657
      %6659 = vrot.lane.b32.xlu0 %v5544, 112
      %v6660 = vpop.permute.xlu0 %6659
      %6661 = vrot.lane.b32.xlu0 %v5546, 112
      %v6662 = vpop.permute.xlu0 %6661
      %6663 = vrot.lane.b32.xlu0 %v5548, 112
      %v6664 = vpop.permute.xlu0 %6663
      %6665 = vrot.lane.b32.xlu0 %v5550, 112
      %v6666 = vpop.permute.xlu0 %6665
      %6667 = vrot.lane.b32.xlu0 %v5552, 112
      %v6668 = vpop.permute.xlu0 %6667
      %6669 = vrot.lane.b32.xlu0 %v5554, 112
      %v6670 = vpop.permute.xlu0 %6669
      %6671 = vrot.lane.b32.xlu0 %v5525, 112
      %v6672 = vpop.permute.xlu0 %6671
      %6673 = vrot.lane.b32.xlu0 %v5527, 112
      %v6674 = vpop.permute.xlu0 %6673
      %6675 = vrot.lane.b32.xlu0 %v5529, 112
      %v6676 = vpop.permute.xlu0 %6675
      %6677 = vrot.lane.b32.xlu0 %v5531, 112
      %v6678 = vpop.permute.xlu0 %6677
      %6679 = vrot.lane.b32.xlu0 %v5533, 112
      %v6680 = vpop.permute.xlu0 %6679
      %6681 = vrot.lane.b32.xlu0 %v5535, 112
      %v6682 = vpop.permute.xlu0 %6681
      %6683 = vrot.lane.b32.xlu0 %v5537, 112
      %v6684 = vpop.permute.xlu0 %6683
      %6685 = vrot.lane.b32.xlu0 %v5539, 112
      %v6686 = vpop.permute.xlu0 %6685
      %6687 = vrot.lane.b32.xlu0 %v5541, 112
      %v6688 = vpop.permute.xlu0 %6687
      %6689 = vrot.lane.b32.xlu0 %v5543, 112
      %v6690 = vpop.permute.xlu0 %6689
      %6691 = vrot.lane.b32.xlu0 %v5545, 112
      %v6692 = vpop.permute.xlu0 %6691
      %6693 = vrot.lane.b32.xlu0 %v5547, 112
      %v6694 = vpop.permute.xlu0 %6693
      %6695 = vrot.lane.b32.xlu0 %v5549, 112
      %v6696 = vpop.permute.xlu0 %6695
      %6697 = vrot.lane.b32.xlu0 %v5551, 112
      %v6698 = vpop.permute.xlu0 %6697
      %6699 = vrot.lane.b32.xlu0 %v5553, 112
      %v6700 = vpop.permute.xlu0 %6699
      %6701 = vrot.lane.b32.xlu0 %v5555, 112
      %v6702 = vpop.permute.xlu0 %6701
      %v6703 = vsel %vm1035, %v6640, %v6672
      %v6704 = vsel %vm1035, %v6642, %v6674
      %v6705 = vsel %vm1035, %v6644, %v6676
      %v6706 = vsel %vm1035, %v6646, %v6678
      %v6707 = vsel %vm1035, %v6648, %v6680
      %v6708 = vsel %vm1035, %v6650, %v6682
      %v6709 = vsel %vm1035, %v6652, %v6684
      %v6710 = vsel %vm1035, %v6654, %v6686
      %v6711 = vsel %vm1035, %v6656, %v6688
      %v6712 = vsel %vm1035, %v6658, %v6690
      %v6713 = vsel %vm1035, %v6660, %v6692
      %v6714 = vsel %vm1035, %v6662, %v6694
      %v6715 = vsel %vm1035, %v6664, %v6696
      %v6716 = vsel %vm1035, %v6666, %v6698
      %v6717 = vsel %vm1035, %v6668, %v6700
      %v6718 = vsel %vm1035, %v6670, %v6702
      %v6719 = vsel %vm1035, %v6672, %v6640
      %v6720 = vsel %vm1035, %v6674, %v6642
      %v6721 = vsel %vm1035, %v6676, %v6644
      %v6722 = vsel %vm1035, %v6678, %v6646
      %v6723 = vsel %vm1035, %v6680, %v6648
      %v6724 = vsel %vm1035, %v6682, %v6650
      %v6725 = vsel %vm1035, %v6684, %v6652
      %v6726 = vsel %vm1035, %v6686, %v6654
      %v6727 = vsel %vm1035, %v6688, %v6656
      %v6728 = vsel %vm1035, %v6690, %v6658
      %v6729 = vsel %vm1035, %v6692, %v6660
      %v6730 = vsel %vm1035, %v6694, %v6662
      %v6731 = vsel %vm1035, %v6696, %v6664
      %v6732 = vsel %vm1035, %v6698, %v6666
      %v6733 = vsel %vm1035, %v6700, %v6668
      %v6734 = vsel %vm1035, %v6702, %v6670
      %v6735 = vsel %vm1042, %v5524, %v6703
      %v6736 = vsel %vm1043, %v5525, %v6719
      %v6737 = vsel %vm1042, %v5526, %v6704
      %v6738 = vsel %vm1043, %v5527, %v6720
      %v6739 = vsel %vm1042, %v5528, %v6705
      %v6740 = vsel %vm1043, %v5529, %v6721
      %v6741 = vsel %vm1042, %v5530, %v6706
      %v6742 = vsel %vm1043, %v5531, %v6722
      %v6743 = vsel %vm1042, %v5532, %v6707
      %v6744 = vsel %vm1043, %v5533, %v6723
      %v6745 = vsel %vm1042, %v5534, %v6708
      %v6746 = vsel %vm1043, %v5535, %v6724
      %v6747 = vsel %vm1042, %v5536, %v6709
      %v6748 = vsel %vm1043, %v5537, %v6725
      %v6749 = vsel %vm1042, %v5538, %v6710
      %v6750 = vsel %vm1043, %v5539, %v6726
      %v6751 = vsel %vm1042, %v5540, %v6711
      %v6752 = vsel %vm1043, %v5541, %v6727
      %v6753 = vsel %vm1042, %v5542, %v6712
      %v6754 = vsel %vm1043, %v5543, %v6728
      %v6755 = vsel %vm1042, %v5544, %v6713
      %v6756 = vsel %vm1043, %v5545, %v6729
      %v6757 = vsel %vm1042, %v5546, %v6714
      %v6758 = vsel %vm1043, %v5547, %v6730
      %v6759 = vsel %vm1042, %v5548, %v6715
      %v6760 = vsel %vm1043, %v5549, %v6731
      %v6761 = vsel %vm1042, %v5550, %v6716
      %v6762 = vsel %vm1043, %v5551, %v6732
      %v6763 = vsel %vm1042, %v5552, %v6717
      %v6764 = vsel %vm1043, %v5553, %v6733
      %v6765 = vsel %vm1042, %v5554, %v6718
      %v6766 = vsel %vm1043, %v5555, %v6734
      %6767 = vrot.lane.b32.xlu0 %v6735, 1
      %v6768 = vpop.permute.xlu0 %6767
      %6769 = vrot.lane.b32.xlu0 %v6737, 1
      %v6770 = vpop.permute.xlu0 %6769
      %6771 = vrot.lane.b32.xlu0 %v6739, 1
      %v6772 = vpop.permute.xlu0 %6771
      %6773 = vrot.lane.b32.xlu0 %v6741, 1
      %v6774 = vpop.permute.xlu0 %6773
      %6775 = vrot.lane.b32.xlu0 %v6743, 1
      %v6776 = vpop.permute.xlu0 %6775
      %6777 = vrot.lane.b32.xlu0 %v6745, 1
      %v6778 = vpop.permute.xlu0 %6777
      %6779 = vrot.lane.b32.xlu0 %v6747, 1
      %v6780 = vpop.permute.xlu0 %6779
      %6781 = vrot.lane.b32.xlu0 %v6749, 1
      %v6782 = vpop.permute.xlu0 %6781
      %6783 = vrot.lane.b32.xlu0 %v6751, 1
      %v6784 = vpop.permute.xlu0 %6783
      %6785 = vrot.lane.b32.xlu0 %v6753, 1
      %v6786 = vpop.permute.xlu0 %6785
      %6787 = vrot.lane.b32.xlu0 %v6755, 1
      %v6788 = vpop.permute.xlu0 %6787
      %6789 = vrot.lane.b32.xlu0 %v6757, 1
      %v6790 = vpop.permute.xlu0 %6789
      %6791 = vrot.lane.b32.xlu0 %v6759, 1
      %v6792 = vpop.permute.xlu0 %6791
      %6793 = vrot.lane.b32.xlu0 %v6761, 1
      %v6794 = vpop.permute.xlu0 %6793
      %6795 = vrot.lane.b32.xlu0 %v6763, 1
      %v6796 = vpop.permute.xlu0 %6795
      %6797 = vrot.lane.b32.xlu0 %v6765, 1
      %v6798 = vpop.permute.xlu0 %6797
      %6799 = vrot.lane.b32.xlu0 %v6736, 1
      %v6800 = vpop.permute.xlu0 %6799
      %6801 = vrot.lane.b32.xlu0 %v6738, 1
      %v6802 = vpop.permute.xlu0 %6801
      %6803 = vrot.lane.b32.xlu0 %v6740, 1
      %v6804 = vpop.permute.xlu0 %6803
      %6805 = vrot.lane.b32.xlu0 %v6742, 1
      %v6806 = vpop.permute.xlu0 %6805
      %6807 = vrot.lane.b32.xlu0 %v6744, 1
      %v6808 = vpop.permute.xlu0 %6807
      %6809 = vrot.lane.b32.xlu0 %v6746, 1
      %v6810 = vpop.permute.xlu0 %6809
      %6811 = vrot.lane.b32.xlu0 %v6748, 1
      %v6812 = vpop.permute.xlu0 %6811
      %6813 = vrot.lane.b32.xlu0 %v6750, 1
      %v6814 = vpop.permute.xlu0 %6813
      %6815 = vrot.lane.b32.xlu0 %v6752, 1
      %v6816 = vpop.permute.xlu0 %6815
      %6817 = vrot.lane.b32.xlu0 %v6754, 1
      %v6818 = vpop.permute.xlu0 %6817
      %6819 = vrot.lane.b32.xlu0 %v6756, 1
      %v6820 = vpop.permute.xlu0 %6819
      %6821 = vrot.lane.b32.xlu0 %v6758, 1
      %v6822 = vpop.permute.xlu0 %6821
      %6823 = vrot.lane.b32.xlu0 %v6760, 1
      %v6824 = vpop.permute.xlu0 %6823
      %6825 = vrot.lane.b32.xlu0 %v6762, 1
      %v6826 = vpop.permute.xlu0 %6825
      %6827 = vrot.lane.b32.xlu0 %v6764, 1
      %v6828 = vpop.permute.xlu0 %6827
      %6829 = vrot.lane.b32.xlu0 %v6766, 1
      %v6830 = vpop.permute.xlu0 %6829
      %v6831 = vsel %vm457, %v6768, %v6800
      %v6832 = vsel %vm457, %v6770, %v6802
      %v6833 = vsel %vm457, %v6772, %v6804
      %v6834 = vsel %vm457, %v6774, %v6806
      %v6835 = vsel %vm457, %v6776, %v6808
      %v6836 = vsel %vm457, %v6778, %v6810
      %v6837 = vsel %vm457, %v6780, %v6812
      %v6838 = vsel %vm457, %v6782, %v6814
      %v6839 = vsel %vm457, %v6784, %v6816
      %v6840 = vsel %vm457, %v6786, %v6818
      %v6841 = vsel %vm457, %v6788, %v6820
      %v6842 = vsel %vm457, %v6790, %v6822
      %v6843 = vsel %vm457, %v6792, %v6824
      %v6844 = vsel %vm457, %v6794, %v6826
      %v6845 = vsel %vm457, %v6796, %v6828
      %v6846 = vsel %vm457, %v6798, %v6830
      %v6847 = vsel %vm457, %v6800, %v6768
      %v6848 = vsel %vm457, %v6802, %v6770
      %v6849 = vsel %vm457, %v6804, %v6772
      %v6850 = vsel %vm457, %v6806, %v6774
      %v6851 = vsel %vm457, %v6808, %v6776
      %v6852 = vsel %vm457, %v6810, %v6778
      %v6853 = vsel %vm457, %v6812, %v6780
      %v6854 = vsel %vm457, %v6814, %v6782
      %v6855 = vsel %vm457, %v6816, %v6784
      %v6856 = vsel %vm457, %v6818, %v6786
      %v6857 = vsel %vm457, %v6820, %v6788
      %v6858 = vsel %vm457, %v6822, %v6790
      %v6859 = vsel %vm457, %v6824, %v6792
      %v6860 = vsel %vm457, %v6826, %v6794
      %v6861 = vsel %vm457, %v6828, %v6796
      %v6862 = vsel %vm457, %v6830, %v6798
      %v6863 = vsel %vm464, %v6735, %v6847
      %v6864 = vsel %vm465, %v6736, %v6831
      %v6865 = vsel %vm464, %v6737, %v6848
      %v6866 = vsel %vm465, %v6738, %v6832
      %v6867 = vsel %vm464, %v6739, %v6849
      %v6868 = vsel %vm465, %v6740, %v6833
      %v6869 = vsel %vm464, %v6741, %v6850
      %v6870 = vsel %vm465, %v6742, %v6834
      %v6871 = vsel %vm464, %v6743, %v6851
      %v6872 = vsel %vm465, %v6744, %v6835
      %v6873 = vsel %vm464, %v6745, %v6852
      %v6874 = vsel %vm465, %v6746, %v6836
      %v6875 = vsel %vm464, %v6747, %v6853
      %v6876 = vsel %vm465, %v6748, %v6837
      %v6877 = vsel %vm464, %v6749, %v6854
      %v6878 = vsel %vm465, %v6750, %v6838
      %v6879 = vsel %vm464, %v6751, %v6855
      %v6880 = vsel %vm465, %v6752, %v6839
      %v6881 = vsel %vm464, %v6753, %v6856
      %v6882 = vsel %vm465, %v6754, %v6840
      %v6883 = vsel %vm464, %v6755, %v6857
      %v6884 = vsel %vm465, %v6756, %v6841
      %v6885 = vsel %vm464, %v6757, %v6858
      %v6886 = vsel %vm465, %v6758, %v6842
      %v6887 = vsel %vm464, %v6759, %v6859
      %v6888 = vsel %vm465, %v6760, %v6843
      %v6889 = vsel %vm464, %v6761, %v6860
      %v6890 = vsel %vm465, %v6762, %v6844
      %v6891 = vsel %vm464, %v6763, %v6861
      %v6892 = vsel %vm465, %v6764, %v6845
      %v6893 = vsel %vm464, %v6765, %v6862
      %v6894 = vsel %vm465, %v6766, %v6846
      %s6895 = scalar_lea.vmem %s7, 48
      %v6896 = vld [vmem:[%s6895] sm:$0xf]
      %v6897 = vld [vmem:[%s6895 + $0x4] sm:$0xf]
      %v6898 = vpack.c.bf16 %v6865, %v6863
      %v6899 = vpack.c.bf16 %v6866, %v6864
      %v6900 = vpack.c.bf16 %v6869, %v6867
      %v6901 = vpack.c.bf16 %v6870, %v6868
      %v6902 = vpack.c.bf16 %v6873, %v6871
      %v6903 = vpack.c.bf16 %v6874, %v6872
      %v6904 = vpack.c.bf16 %v6877, %v6875
      %v6905 = vpack.c.bf16 %v6878, %v6876
      %v6906 = vpack.c.bf16 %v6881, %v6879
      %v6907 = vpack.c.bf16 %v6882, %v6880
      %v6908 = vpack.c.bf16 %v6885, %v6883
      %v6909 = vpack.c.bf16 %v6886, %v6884
      %v6910 = vpack.c.bf16 %v6889, %v6887
      %v6911 = vpack.c.bf16 %v6890, %v6888
      %v6912 = vpack.c.bf16 %v6893, %v6891
      %v6913 = vpack.c.bf16 %v6894, %v6892
      %v6916 = vunpack.c.l.b16 %v6896
      %v6917 = vunpack.c.l.b16 %v6897
      %v6918 = vpack.c.b16 %v6917, %v6916
      %6920 = vmatprep.subr.bf16.mxu0 %v6899
      %6921 = vmatpush1.bf16.msra.mxu0 %v6898
      %6922 = vmatprep.subr.bf16.mxu0 %v6901
      %6923 = vmatpush1.bf16.msra.mxu0 %v6900
      %6924 = vmatprep.subr.bf16.mxu0 %v6903
      %6925 = vmatpush1.bf16.msra.mxu0 %v6902
      %6926 = vmatprep.subr.bf16.mxu0 %v6905
      %6927 = vmatpush1.bf16.msra.mxu0 %v6904
      %6928 = vmatprep.subr.bf16.mxu0 %v6907
      %6929 = vmatpush1.bf16.msra.mxu0 %v6906
      %6930 = vmatprep.subr.bf16.mxu0 %v6909
      %6931 = vmatpush1.bf16.msra.mxu0 %v6908
      %6932 = vmatprep.subr.bf16.mxu0 %v6911
      %6933 = vmatpush1.bf16.msra.mxu0 %v6910
      %6934 = vmatprep.subr.bf16.mxu0 %v6913
      %6935 = vmatpush1.bf16.msra.mxu0 %v6912
      %6936 = vmatprep.subr.bf16.mxu0 0
      %6937 = vmatpush1.bf16.msra.mxu0 0
      %6938 = vmatprep.subr.bf16.mxu0 0
      %6939 = vmatpush1.bf16.msra.mxu0 0
      %6940 = vmatprep.subr.bf16.mxu0 0
      %6941 = vmatpush1.bf16.msra.mxu0 0
      %6942 = vmatprep.subr.bf16.mxu0 0
      %6943 = vmatpush1.bf16.msra.mxu0 0
      %6944 = vmatprep.subr.bf16.mxu0 0
      %6945 = vmatpush1.bf16.msra.mxu0 0
      %6946 = vmatprep.subr.bf16.mxu0 0
      %6947 = vmatpush1.bf16.msra.mxu0 0
      %6948 = vmatprep.subr.bf16.mxu0 0
      %6949 = vmatpush1.bf16.msra.mxu0 0
      %6950 = vmatprep.subr.bf16.mxu0 0
      %6951 = vmatpush1.bf16.msra.mxu0 0
      %6952 = vmatprep.mubr.bf16.mxu0 0
      %6953 = vmatmul.mubr.bf16.gmra.mrb[0].mxu0 %v6918
      %v6954 = vpop.f32.mrb[0].mxu0
      %v6955 = vadd.f32 0.0, %v6954
      %v6956 = vpop.f32.mrb[0].mxu0
      %v6957 = vadd.f32 0.0, %v6956
      %v6958 = vpop.f32.mrb[0].mxu0
      %v6959 = vadd.f32 0.0, %v6958
      %v6960 = vpop.f32.mrb[0].mxu0
      %v6961 = vadd.f32 0.0, %v6960
      %6962 = vdwg.mxu0
      %v6963 = vadd.f32 %v6635, %v6955
      %v6964 = vadd.f32 %v6636, %v6957
      %v6965 = vadd.f32 %v6637, %v6959
      %v6966 = vadd.f32 %v6638, %v6961
      %s6967 = scalar_lea.vmem %s7, 56
      %v6968 = vld [vmem:[%s6967] sm:$0xf]
      %v6969 = vld [vmem:[%s6967 + $0x4] sm:$0xf]
      %v6970 = vpack.c.bf16 %v6737, %v6735
      %v6971 = vpack.c.bf16 %v6738, %v6736
      %v6972 = vpack.c.bf16 %v6741, %v6739
      %v6973 = vpack.c.bf16 %v6742, %v6740
      %v6974 = vpack.c.bf16 %v6745, %v6743
      %v6975 = vpack.c.bf16 %v6746, %v6744
      %v6976 = vpack.c.bf16 %v6749, %v6747
      %v6977 = vpack.c.bf16 %v6750, %v6748
      %v6978 = vpack.c.bf16 %v6753, %v6751
      %v6979 = vpack.c.bf16 %v6754, %v6752
      %v6980 = vpack.c.bf16 %v6757, %v6755
      %v6981 = vpack.c.bf16 %v6758, %v6756
      %v6982 = vpack.c.bf16 %v6761, %v6759
      %v6983 = vpack.c.bf16 %v6762, %v6760
      %v6984 = vpack.c.bf16 %v6765, %v6763
      %v6985 = vpack.c.bf16 %v6766, %v6764
      %v6988 = vunpack.c.l.b16 %v6968
      %v6989 = vunpack.c.l.b16 %v6969
      %v6990 = vpack.c.b16 %v6989, %v6988
      %6992 = vmatprep.subr.bf16.mxu0 %v6971
      %6993 = vmatpush1.bf16.msra.mxu0 %v6970
      %6994 = vmatprep.subr.bf16.mxu0 %v6973
      %6995 = vmatpush1.bf16.msra.mxu0 %v6972
      %6996 = vmatprep.subr.bf16.mxu0 %v6975
      %6997 = vmatpush1.bf16.msra.mxu0 %v6974
      %6998 = vmatprep.subr.bf16.mxu0 %v6977
      %6999 = vmatpush1.bf16.msra.mxu0 %v6976
      %7000 = vmatprep.subr.bf16.mxu0 %v6979
      %7001 = vmatpush1.bf16.msra.mxu0 %v6978
      %7002 = vmatprep.subr.bf16.mxu0 %v6981
      %7003 = vmatpush1.bf16.msra.mxu0 %v6980
      %7004 = vmatprep.subr.bf16.mxu0 %v6983
      %7005 = vmatpush1.bf16.msra.mxu0 %v6982
      %7006 = vmatprep.subr.bf16.mxu0 %v6985
      %7007 = vmatpush1.bf16.msra.mxu0 %v6984
      %7008 = vmatprep.subr.bf16.mxu0 0
      %7009 = vmatpush1.bf16.msra.mxu0 0
      %7010 = vmatprep.subr.bf16.mxu0 0
      %7011 = vmatpush1.bf16.msra.mxu0 0
      %7012 = vmatprep.subr.bf16.mxu0 0
      %7013 = vmatpush1.bf16.msra.mxu0 0
      %7014 = vmatprep.subr.bf16.mxu0 0
      %7015 = vmatpush1.bf16.msra.mxu0 0
      %7016 = vmatprep.subr.bf16.mxu0 0
      %7017 = vmatpush1.bf16.msra.mxu0 0
      %7018 = vmatprep.subr.bf16.mxu0 0
      %7019 = vmatpush1.bf16.msra.mxu0 0
      %7020 = vmatprep.subr.bf16.mxu0 0
      %7021 = vmatpush1.bf16.msra.mxu0 0
      %7022 = vmatprep.subr.bf16.mxu0 0
      %7023 = vmatpush1.bf16.msra.mxu0 0
      %7024 = vmatprep.mubr.bf16.mxu0 0
      %7025 = vmatmul.mubr.bf16.gmra.mrb[0].mxu0 %v6990
      %v7026 = vpop.f32.mrb[0].mxu0
      %v7027 = vadd.f32 0.0, %v7026
      %v7028 = vpop.f32.mrb[0].mxu0
      %v7029 = vadd.f32 0.0, %v7028
      %v7030 = vpop.f32.mrb[0].mxu0
      %v7031 = vadd.f32 0.0, %v7030
      %v7032 = vpop.f32.mrb[0].mxu0
      %v7033 = vadd.f32 0.0, %v7032
      %7034 = vdwg.mxu0
      %v7035 = vadd.f32 %v6963, %v7027
      %v7036 = vadd.f32 %v6964, %v7029
      %v7037 = vadd.f32 %v6965, %v7031
      %v7038 = vadd.f32 %v6966, %v7033
      %7039 = vrot.lane.b32.xlu0 %v6735, 127
      %v7040 = vpop.permute.xlu0 %7039
      %7041 = vrot.lane.b32.xlu0 %v6737, 127
      %v7042 = vpop.permute.xlu0 %7041
      %7043 = vrot.lane.b32.xlu0 %v6739, 127
      %v7044 = vpop.permute.xlu0 %7043
      %7045 = vrot.lane.b32.xlu0 %v6741, 127
      %v7046 = vpop.permute.xlu0 %7045
      %7047 = vrot.lane.b32.xlu0 %v6743, 127
      %v7048 = vpop.permute.xlu0 %7047
      %7049 = vrot.lane.b32.xlu0 %v6745, 127
      %v7050 = vpop.permute.xlu0 %7049
      %7051 = vrot.lane.b32.xlu0 %v6747, 127
      %v7052 = vpop.permute.xlu0 %7051
      %7053 = vrot.lane.b32.xlu0 %v6749, 127
      %v7054 = vpop.permute.xlu0 %7053
      %7055 = vrot.lane.b32.xlu0 %v6751, 127
      %v7056 = vpop.permute.xlu0 %7055
      %7057 = vrot.lane.b32.xlu0 %v6753, 127
      %v7058 = vpop.permute.xlu0 %7057
      %7059 = vrot.lane.b32.xlu0 %v6755, 127
      %v7060 = vpop.permute.xlu0 %7059
      %7061 = vrot.lane.b32.xlu0 %v6757, 127
      %v7062 = vpop.permute.xlu0 %7061
      %7063 = vrot.lane.b32.xlu0 %v6759, 127
      %v7064 = vpop.permute.xlu0 %7063
      %7065 = vrot.lane.b32.xlu0 %v6761, 127
      %v7066 = vpop.permute.xlu0 %7065
      %7067 = vrot.lane.b32.xlu0 %v6763, 127
      %v7068 = vpop.permute.xlu0 %7067
      %7069 = vrot.lane.b32.xlu0 %v6765, 127
      %v7070 = vpop.permute.xlu0 %7069
      %7071 = vrot.lane.b32.xlu0 %v6736, 127
      %v7072 = vpop.permute.xlu0 %7071
      %7073 = vrot.lane.b32.xlu0 %v6738, 127
      %v7074 = vpop.permute.xlu0 %7073
      %7075 = vrot.lane.b32.xlu0 %v6740, 127
      %v7076 = vpop.permute.xlu0 %7075
      %7077 = vrot.lane.b32.xlu0 %v6742, 127
      %v7078 = vpop.permute.xlu0 %7077
      %7079 = vrot.lane.b32.xlu0 %v6744, 127
      %v7080 = vpop.permute.xlu0 %7079
      %7081 = vrot.lane.b32.xlu0 %v6746, 127
      %v7082 = vpop.permute.xlu0 %7081
      %7083 = vrot.lane.b32.xlu0 %v6748, 127
      %v7084 = vpop.permute.xlu0 %7083
      %7085 = vrot.lane.b32.xlu0 %v6750, 127
      %v7086 = vpop.permute.xlu0 %7085
      %7087 = vrot.lane.b32.xlu0 %v6752, 127
      %v7088 = vpop.permute.xlu0 %7087
      %7089 = vrot.lane.b32.xlu0 %v6754, 127
      %v7090 = vpop.permute.xlu0 %7089
      %7091 = vrot.lane.b32.xlu0 %v6756, 127
      %v7092 = vpop.permute.xlu0 %7091
      %7093 = vrot.lane.b32.xlu0 %v6758, 127
      %v7094 = vpop.permute.xlu0 %7093
      %7095 = vrot.lane.b32.xlu0 %v6760, 127
      %v7096 = vpop.permute.xlu0 %7095
      %7097 = vrot.lane.b32.xlu0 %v6762, 127
      %v7098 = vpop.permute.xlu0 %7097
      %7099 = vrot.lane.b32.xlu0 %v6764, 127
      %v7100 = vpop.permute.xlu0 %7099
      %7101 = vrot.lane.b32.xlu0 %v6766, 127
      %v7102 = vpop.permute.xlu0 %7101
      %v7103 = vsel %vm646, %v7040, %v7072
      %v7104 = vsel %vm646, %v7042, %v7074
      %v7105 = vsel %vm646, %v7044, %v7076
      %v7106 = vsel %vm646, %v7046, %v7078
      %v7107 = vsel %vm646, %v7048, %v7080
      %v7108 = vsel %vm646, %v7050, %v7082
      %v7109 = vsel %vm646, %v7052, %v7084
      %v7110 = vsel %vm646, %v7054, %v7086
      %v7111 = vsel %vm646, %v7056, %v7088
      %v7112 = vsel %vm646, %v7058, %v7090
      %v7113 = vsel %vm646, %v7060, %v7092
      %v7114 = vsel %vm646, %v7062, %v7094
      %v7115 = vsel %vm646, %v7064, %v7096
      %v7116 = vsel %vm646, %v7066, %v7098
      %v7117 = vsel %vm646, %v7068, %v7100
      %v7118 = vsel %vm646, %v7070, %v7102
      %v7119 = vsel %vm646, %v7072, %v7040
      %v7120 = vsel %vm646, %v7074, %v7042
      %v7121 = vsel %vm646, %v7076, %v7044
      %v7122 = vsel %vm646, %v7078, %v7046
      %v7123 = vsel %vm646, %v7080, %v7048
      %v7124 = vsel %vm646, %v7082, %v7050
      %v7125 = vsel %vm646, %v7084, %v7052
      %v7126 = vsel %vm646, %v7086, %v7054
      %v7127 = vsel %vm646, %v7088, %v7056
      %v7128 = vsel %vm646, %v7090, %v7058
      %v7129 = vsel %vm646, %v7092, %v7060
      %v7130 = vsel %vm646, %v7094, %v7062
      %v7131 = vsel %vm646, %v7096, %v7064
      %v7132 = vsel %vm646, %v7098, %v7066
      %v7133 = vsel %vm646, %v7100, %v7068
      %v7134 = vsel %vm646, %v7102, %v7070
      %v7135 = vsel %vm653, %v6735, %v7103
      %v7136 = vsel %vm654, %v6736, %v7119
      %v7137 = vsel %vm653, %v6737, %v7104
      %v7138 = vsel %vm654, %v6738, %v7120
      %v7139 = vsel %vm653, %v6739, %v7105
      %v7140 = vsel %vm654, %v6740, %v7121
      %v7141 = vsel %vm653, %v6741, %v7106
      %v7142 = vsel %vm654, %v6742, %v7122
      %v7143 = vsel %vm653, %v6743, %v7107
      %v7144 = vsel %vm654, %v6744, %v7123
      %v7145 = vsel %vm653, %v6745, %v7108
      %v7146 = vsel %vm654, %v6746, %v7124
      %v7147 = vsel %vm653, %v6747, %v7109
      %v7148 = vsel %vm654, %v6748, %v7125
      %v7149 = vsel %vm653, %v6749, %v7110
      %v7150 = vsel %vm654, %v6750, %v7126
      %v7151 = vsel %vm653, %v6751, %v7111
      %v7152 = vsel %vm654, %v6752, %v7127
      %v7153 = vsel %vm653, %v6753, %v7112
      %v7154 = vsel %vm654, %v6754, %v7128
      %v7155 = vsel %vm653, %v6755, %v7113
      %v7156 = vsel %vm654, %v6756, %v7129
      %v7157 = vsel %vm653, %v6757, %v7114
      %v7158 = vsel %vm654, %v6758, %v7130
      %v7159 = vsel %vm653, %v6759, %v7115
      %v7160 = vsel %vm654, %v6760, %v7131
      %v7161 = vsel %vm653, %v6761, %v7116
      %v7162 = vsel %vm654, %v6762, %v7132
      %v7163 = vsel %vm653, %v6763, %v7117
      %v7164 = vsel %vm654, %v6764, %v7133
      %v7165 = vsel %vm653, %v6765, %v7118
      %v7166 = vsel %vm654, %v6766, %v7134
      %s7167 = scalar_lea.vmem %s7, 64
      %v7168 = vld [vmem:[%s7167] sm:$0xf]
      %v7169 = vld [vmem:[%s7167 + $0x4] sm:$0xf]
      %v7170 = vpack.c.bf16 %v7137, %v7135
      %v7171 = vpack.c.bf16 %v7138, %v7136
      %v7172 = vpack.c.bf16 %v7141, %v7139
      %v7173 = vpack.c.bf16 %v7142, %v7140
      %v7174 = vpack.c.bf16 %v7145, %v7143
      %v7175 = vpack.c.bf16 %v7146, %v7144
      %v7176 = vpack.c.bf16 %v7149, %v7147
      %v7177 = vpack.c.bf16 %v7150, %v7148
      %v7178 = vpack.c.bf16 %v7153, %v7151
      %v7179 = vpack.c.bf16 %v7154, %v7152
      %v7180 = vpack.c.bf16 %v7157, %v7155
      %v7181 = vpack.c.bf16 %v7158, %v7156
      %v7182 = vpack.c.bf16 %v7161, %v7159
      %v7183 = vpack.c.bf16 %v7162, %v7160
      %v7184 = vpack.c.bf16 %v7165, %v7163
      %v7185 = vpack.c.bf16 %v7166, %v7164
      %v7188 = vunpack.c.l.b16 %v7168
      %v7189 = vunpack.c.l.b16 %v7169
      %v7190 = vpack.c.b16 %v7189, %v7188
      %7192 = vmatprep.subr.bf16.mxu0 %v7171
      %7193 = vmatpush1.bf16.msra.mxu0 %v7170
      %7194 = vmatprep.subr.bf16.mxu0 %v7173
      %7195 = vmatpush1.bf16.msra.mxu0 %v7172
      %7196 = vmatprep.subr.bf16.mxu0 %v7175
      %7197 = vmatpush1.bf16.msra.mxu0 %v7174
      %7198 = vmatprep.subr.bf16.mxu0 %v7177
      %7199 = vmatpush1.bf16.msra.mxu0 %v7176
      %7200 = vmatprep.subr.bf16.mxu0 %v7179
      %7201 = vmatpush1.bf16.msra.mxu0 %v7178
      %7202 = vmatprep.subr.bf16.mxu0 %v7181
      %7203 = vmatpush1.bf16.msra.mxu0 %v7180
      %7204 = vmatprep.subr.bf16.mxu0 %v7183
      %7205 = vmatpush1.bf16.msra.mxu0 %v7182
      %7206 = vmatprep.subr.bf16.mxu0 %v7185
      %7207 = vmatpush1.bf16.msra.mxu0 %v7184
      %7208 = vmatprep.subr.bf16.mxu0 0
      %7209 = vmatpush1.bf16.msra.mxu0 0
      %7210 = vmatprep.subr.bf16.mxu0 0
      %7211 = vmatpush1.bf16.msra.mxu0 0
      %7212 = vmatprep.subr.bf16.mxu0 0
      %7213 = vmatpush1.bf16.msra.mxu0 0
      %7214 = vmatprep.subr.bf16.mxu0 0
      %7215 = vmatpush1.bf16.msra.mxu0 0
      %7216 = vmatprep.subr.bf16.mxu0 0
      %7217 = vmatpush1.bf16.msra.mxu0 0
      %7218 = vmatprep.subr.bf16.mxu0 0
      %7219 = vmatpush1.bf16.msra.mxu0 0
      %7220 = vmatprep.subr.bf16.mxu0 0
      %7221 = vmatpush1.bf16.msra.mxu0 0
      %7222 = vmatprep.subr.bf16.mxu0 0
      %7223 = vmatpush1.bf16.msra.mxu0 0
      %7224 = vmatprep.mubr.bf16.mxu0 0
      %7225 = vmatmul.mubr.bf16.gmra.mrb[0].mxu0 %v7190
      %v7226 = vpop.f32.mrb[0].mxu0
      %v7227 = vadd.f32 0.0, %v7226
      %v7228 = vpop.f32.mrb[0].mxu0
      %v7229 = vadd.f32 0.0, %v7228
      %v7230 = vpop.f32.mrb[0].mxu0
      %v7231 = vadd.f32 0.0, %v7230
      %v7232 = vpop.f32.mrb[0].mxu0
      %v7233 = vadd.f32 0.0, %v7232
      %7234 = vdwg.mxu0
      %v7235 = vadd.f32 %v7035, %v7227
      %v7236 = vadd.f32 %v7036, %v7229
      %v7237 = vadd.f32 %v7037, %v7231
      %v7238 = vadd.f32 %v7038, %v7233
      %v7239 = vld [vmem:[%s10] sm:$0xff]
      %v7240 = vld [vmem:[%s10 + $0x8] sm:$0xff]
      %7242 = vset.pattern.permute.xlu0 0
      %7243 = vperm.xlu0 %7242, %v7239
      %v7244 = vpop.permute.xlu0 %7243
      %7247 = vset.pattern.permute.xlu0 0
      %7248 = vperm.xlu0 %7247, %v7240
      %v7249 = vpop.permute.xlu0 %7248
      %7251 = vrot.lane.b32.xlu0 %v7235, 16
      %v7252 = vpop.permute.xlu0 %7251
      %7253 = vrot.lane.b32.xlu0 %v7237, 16
      %v7254 = vpop.permute.xlu0 %7253
      %7255 = vrot.lane.b32.xlu0 %v7236, 16
      %v7256 = vpop.permute.xlu0 %7255
      %7257 = vrot.lane.b32.xlu0 %v7238, 16
      %v7258 = vpop.permute.xlu0 %7257
      %v7259 = vsel %vm397, %v7252, %v7256
      %v7260 = vsel %vm397, %v7254, %v7258
      %v7261 = vsel %vm397, %v7256, %v7252
      %v7262 = vsel %vm397, %v7258, %v7254
      %v7263 = vsel %vm443, %v7235, %v7261
      %v7264 = vsel %vm444, %v7236, %v7259
      %v7265 = vsel %vm443, %v7237, %v7262
      %v7266 = vsel %vm444, %v7238, %v7260
      %7267 = vrot.lane.b32.xlu0 %v7263, 1
      %v7268 = vpop.permute.xlu0 %7267
      %7269 = vrot.lane.b32.xlu0 %v7265, 1
      %v7270 = vpop.permute.xlu0 %7269
      %7271 = vrot.lane.b32.xlu0 %v7264, 1
      %v7272 = vpop.permute.xlu0 %7271
      %7273 = vrot.lane.b32.xlu0 %v7266, 1
      %v7274 = vpop.permute.xlu0 %7273
      %v7275 = vsel %vm457, %v7268, %v7272
      %v7276 = vsel %vm457, %v7270, %v7274
      %v7277 = vsel %vm457, %v7272, %v7268
      %v7278 = vsel %vm457, %v7274, %v7270
      %v7279 = vsel %vm464, %v7263, %v7277
      %v7280 = vsel %vm465, %v7264, %v7275
      %v7281 = vsel %vm464, %v7265, %v7278
      %v7282 = vsel %vm465, %v7266, %v7276
      %v7283 = vld [vmem:[%s9] sm:$0xf]
      %v7284 = vld [vmem:[%s9 + $0x4] sm:$0xf]
      %v7285 = vpack.c.bf16 %v7281, %v7279
      %v7286 = vpack.c.bf16 %v7282, %v7280
      %v7289 = vunpack.c.l.b16 %v7283
      %v7290 = vunpack.c.l.b16 %v7284
      %v7291 = vpack.c.b16 %v7290, %v7289
      %v7293 = vsel %vm486, %v7291, 0
      %7295 = vmatprep.subr.bf16.mxu0 %v7286
      %7296 = vmatpush1.bf16.msra.mxu0 %v7285
      %7297 = vmatprep.subr.bf16.mxu0 0
      %7298 = vmatpush1.bf16.msra.mxu0 0
      %7299 = vmatprep.subr.bf16.mxu0 0
      %7300 = vmatpush1.bf16.msra.mxu0 0
      %7301 = vmatprep.subr.bf16.mxu0 0
      %7302 = vmatpush1.bf16.msra.mxu0 0
      %7303 = vmatprep.subr.bf16.mxu0 0
      %7304 = vmatpush1.bf16.msra.mxu0 0
      %7305 = vmatprep.subr.bf16.mxu0 0
      %7306 = vmatpush1.bf16.msra.mxu0 0
      %7307 = vmatprep.subr.bf16.mxu0 0
      %7308 = vmatpush1.bf16.msra.mxu0 0
      %7309 = vmatprep.subr.bf16.mxu0 0
      %7310 = vmatpush1.bf16.msra.mxu0 0
      %7311 = vmatprep.subr.bf16.mxu0 0
      %7312 = vmatpush1.bf16.msra.mxu0 0
      %7313 = vmatprep.subr.bf16.mxu0 0
      %7314 = vmatpush1.bf16.msra.mxu0 0
      %7315 = vmatprep.subr.bf16.mxu0 0
      %7316 = vmatpush1.bf16.msra.mxu0 0
      %7317 = vmatprep.subr.bf16.mxu0 0
      %7318 = vmatpush1.bf16.msra.mxu0 0
      %7319 = vmatprep.subr.bf16.mxu0 0
      %7320 = vmatpush1.bf16.msra.mxu0 0
      %7321 = vmatprep.subr.bf16.mxu0 0
      %7322 = vmatpush1.bf16.msra.mxu0 0
      %7323 = vmatprep.subr.bf16.mxu0 0
      %7324 = vmatpush1.bf16.msra.mxu0 0
      %7325 = vmatprep.subr.bf16.mxu0 0
      %7326 = vmatpush1.bf16.msra.mxu0 0
      %7327 = vmatprep.mubr.bf16.mxu0 0
      %7328 = vmatmul.mubr.bf16.gmra.mrb[0].mxu0 %v7293
      %v7329 = vpop.f32.mrb[0].mxu0
      %v7330 = vadd.f32 0.0, %v7329
      %v7331 = vpop.f32.mrb[0].mxu0
      %v7332 = vadd.f32 0.0, %v7331
      %v7333 = vpop.f32.mrb[0].mxu0
      %v7334 = vadd.f32 0.0, %v7333
      %v7335 = vpop.f32.mrb[0].mxu0
      %v7336 = vadd.f32 0.0, %v7335
      %7337 = vdwg.mxu0
      %v7338 = vadd.f32 %v7244, %v7330
      %v7339 = vadd.f32 %v7244, %v7332
      %v7340 = vadd.f32 %v7249, %v7334
      %v7341 = vadd.f32 %v7249, %v7336
      %s7342 = scalar_lea.vmem %s9, 8
      %v7343 = vld [vmem:[%s7342] sm:$0xf]
      %v7344 = vld [vmem:[%s7342 + $0x4] sm:$0xf]
      %v7345 = vpack.c.bf16 %v7265, %v7263
      %v7346 = vpack.c.bf16 %v7266, %v7264
      %v7349 = vunpack.c.l.b16 %v7343
      %v7350 = vunpack.c.l.b16 %v7344
      %v7351 = vpack.c.b16 %v7350, %v7349
      %v7353 = vsel %vm486, %v7351, 0
      %7355 = vmatprep.subr.bf16.mxu0 %v7346
      %7356 = vmatpush1.bf16.msra.mxu0 %v7345
      %7357 = vmatprep.subr.bf16.mxu0 0
      %7358 = vmatpush1.bf16.msra.mxu0 0
      %7359 = vmatprep.subr.bf16.mxu0 0
      %7360 = vmatpush1.bf16.msra.mxu0 0
      %7361 = vmatprep.subr.bf16.mxu0 0
      %7362 = vmatpush1.bf16.msra.mxu0 0
      %7363 = vmatprep.subr.bf16.mxu0 0
      %7364 = vmatpush1.bf16.msra.mxu0 0
      %7365 = vmatprep.subr.bf16.mxu0 0
      %7366 = vmatpush1.bf16.msra.mxu0 0
      %7367 = vmatprep.subr.bf16.mxu0 0
      %7368 = vmatpush1.bf16.msra.mxu0 0
      %7369 = vmatprep.subr.bf16.mxu0 0
      %7370 = vmatpush1.bf16.msra.mxu0 0
      %7371 = vmatprep.subr.bf16.mxu0 0
      %7372 = vmatpush1.bf16.msra.mxu0 0
      %7373 = vmatprep.subr.bf16.mxu0 0
      %7374 = vmatpush1.bf16.msra.mxu0 0
      %7375 = vmatprep.subr.bf16.mxu0 0
      %7376 = vmatpush1.bf16.msra.mxu0 0
      %7377 = vmatprep.subr.bf16.mxu0 0
      %7378 = vmatpush1.bf16.msra.mxu0 0
      %7379 = vmatprep.subr.bf16.mxu0 0
      %7380 = vmatpush1.bf16.msra.mxu0 0
      %7381 = vmatprep.subr.bf16.mxu0 0
      %7382 = vmatpush1.bf16.msra.mxu0 0
      %7383 = vmatprep.subr.bf16.mxu0 0
      %7384 = vmatpush1.bf16.msra.mxu0 0
      %7385 = vmatprep.subr.bf16.mxu0 0
      %7386 = vmatpush1.bf16.msra.mxu0 0
      %7387 = vmatprep.mubr.bf16.mxu0 0
      %7388 = vmatmul.mubr.bf16.gmra.mrb[0].mxu0 %v7353
      %v7389 = vpop.f32.mrb[0].mxu0
      %v7390 = vadd.f32 0.0, %v7389
      %v7391 = vpop.f32.mrb[0].mxu0
      %v7392 = vadd.f32 0.0, %v7391
      %v7393 = vpop.f32.mrb[0].mxu0
      %v7394 = vadd.f32 0.0, %v7393
      %v7395 = vpop.f32.mrb[0].mxu0
      %v7396 = vadd.f32 0.0, %v7395
      %7397 = vdwg.mxu0
      %v7398 = vadd.f32 %v7338, %v7390
      %v7399 = vadd.f32 %v7339, %v7392
      %v7400 = vadd.f32 %v7340, %v7394
      %v7401 = vadd.f32 %v7341, %v7396
      %7402 = vrot.lane.b32.xlu0 %v7263, 127
      %v7403 = vpop.permute.xlu0 %7402
      %7404 = vrot.lane.b32.xlu0 %v7265, 127
      %v7405 = vpop.permute.xlu0 %7404
      %7406 = vrot.lane.b32.xlu0 %v7264, 127
      %v7407 = vpop.permute.xlu0 %7406
      %7408 = vrot.lane.b32.xlu0 %v7266, 127
      %v7409 = vpop.permute.xlu0 %7408
      %v7410 = vsel %vm646, %v7403, %v7407
      %v7411 = vsel %vm646, %v7405, %v7409
      %v7412 = vsel %vm646, %v7407, %v7403
      %v7413 = vsel %vm646, %v7409, %v7405
      %v7414 = vsel %vm653, %v7263, %v7410
      %v7415 = vsel %vm654, %v7264, %v7412
      %v7416 = vsel %vm653, %v7265, %v7411
      %v7417 = vsel %vm654, %v7266, %v7413
      %s7418 = scalar_lea.vmem %s9, 16
      %v7419 = vld [vmem:[%s7418] sm:$0xf]
      %v7420 = vld [vmem:[%s7418 + $0x4] sm:$0xf]
      %v7421 = vpack.c.bf16 %v7416, %v7414
      %v7422 = vpack.c.bf16 %v7417, %v7415
      %v7425 = vunpack.c.l.b16 %v7419
      %v7426 = vunpack.c.l.b16 %v7420
      %v7427 = vpack.c.b16 %v7426, %v7425
      %v7429 = vsel %vm486, %v7427, 0
      %7431 = vmatprep.subr.bf16.mxu0 %v7422
      %7432 = vmatpush1.bf16.msra.mxu0 %v7421
      %7433 = vmatprep.subr.bf16.mxu0 0
      %7434 = vmatpush1.bf16.msra.mxu0 0
      %7435 = vmatprep.subr.bf16.mxu0 0
      %7436 = vmatpush1.bf16.msra.mxu0 0
      %7437 = vmatprep.subr.bf16.mxu0 0
      %7438 = vmatpush1.bf16.msra.mxu0 0
      %7439 = vmatprep.subr.bf16.mxu0 0
      %7440 = vmatpush1.bf16.msra.mxu0 0
      %7441 = vmatprep.subr.bf16.mxu0 0
      %7442 = vmatpush1.bf16.msra.mxu0 0
      %7443 = vmatprep.subr.bf16.mxu0 0
      %7444 = vmatpush1.bf16.msra.mxu0 0
      %7445 = vmatprep.subr.bf16.mxu0 0
      %7446 = vmatpush1.bf16.msra.mxu0 0
      %7447 = vmatprep.subr.bf16.mxu0 0
      %7448 = vmatpush1.bf16.msra.mxu0 0
      %7449 = vmatprep.subr.bf16.mxu0 0
      %7450 = vmatpush1.bf16.msra.mxu0 0
      %7451 = vmatprep.subr.bf16.mxu0 0
      %7452 = vmatpush1.bf16.msra.mxu0 0
      %7453 = vmatprep.subr.bf16.mxu0 0
      %7454 = vmatpush1.bf16.msra.mxu0 0
      %7455 = vmatprep.subr.bf16.mxu0 0
      %7456 = vmatpush1.bf16.msra.mxu0 0
      %7457 = vmatprep.subr.bf16.mxu0 0
      %7458 = vmatpush1.bf16.msra.mxu0 0
      %7459 = vmatprep.subr.bf16.mxu0 0
      %7460 = vmatpush1.bf16.msra.mxu0 0
      %7461 = vmatprep.subr.bf16.mxu0 0
      %7462 = vmatpush1.bf16.msra.mxu0 0
      %7463 = vmatprep.mubr.bf16.mxu0 0
      %7464 = vmatmul.mubr.bf16.gmra.mrb[0].mxu0 %v7429
      %v7465 = vpop.f32.mrb[0].mxu0
      %v7466 = vadd.f32 0.0, %v7465
      %v7467 = vpop.f32.mrb[0].mxu0
      %v7468 = vadd.f32 0.0, %v7467
      %v7469 = vpop.f32.mrb[0].mxu0
      %v7470 = vadd.f32 0.0, %v7469
      %v7471 = vpop.f32.mrb[0].mxu0
      %v7472 = vadd.f32 0.0, %v7471
      %7473 = vdwg.mxu0
      %v7474 = vadd.f32 %v7398, %v7466
      %v7475 = vadd.f32 %v7399, %v7468
      %v7476 = vadd.f32 %v7400, %v7470
      %v7477 = vadd.f32 %v7401, %v7472
      %7478 = vrot.lane.b32.xlu0 %v7235, 1
      %v7479 = vpop.permute.xlu0 %7478
      %7480 = vrot.lane.b32.xlu0 %v7237, 1
      %v7481 = vpop.permute.xlu0 %7480
      %7482 = vrot.lane.b32.xlu0 %v7236, 1
      %v7483 = vpop.permute.xlu0 %7482
      %7484 = vrot.lane.b32.xlu0 %v7238, 1
      %v7485 = vpop.permute.xlu0 %7484
      %v7486 = vsel %vm457, %v7479, %v7483
      %v7487 = vsel %vm457, %v7481, %v7485
      %v7488 = vsel %vm457, %v7483, %v7479
      %v7489 = vsel %vm457, %v7485, %v7481
      %v7490 = vsel %vm464, %v7235, %v7488
      %v7491 = vsel %vm465, %v7236, %v7486
      %v7492 = vsel %vm464, %v7237, %v7489
      %v7493 = vsel %vm465, %v7238, %v7487
      %s7494 = scalar_lea.vmem %s9, 24
      %v7495 = vld [vmem:[%s7494] sm:$0xf]
      %v7496 = vld [vmem:[%s7494 + $0x4] sm:$0xf]
      %v7497 = vpack.c.bf16 %v7492, %v7490
      %v7498 = vpack.c.bf16 %v7493, %v7491
      %v7501 = vunpack.c.l.b16 %v7495
      %v7502 = vunpack.c.l.b16 %v7496
      %v7503 = vpack.c.b16 %v7502, %v7501
      %v7505 = vsel %vm486, %v7503, 0
      %7507 = vmatprep.subr.bf16.mxu0 %v7498
      %7508 = vmatpush1.bf16.msra.mxu0 %v7497
      %7509 = vmatprep.subr.bf16.mxu0 0
      %7510 = vmatpush1.bf16.msra.mxu0 0
      %7511 = vmatprep.subr.bf16.mxu0 0
      %7512 = vmatpush1.bf16.msra.mxu0 0
      %7513 = vmatprep.subr.bf16.mxu0 0
      %7514 = vmatpush1.bf16.msra.mxu0 0
      %7515 = vmatprep.subr.bf16.mxu0 0
      %7516 = vmatpush1.bf16.msra.mxu0 0
      %7517 = vmatprep.subr.bf16.mxu0 0
      %7518 = vmatpush1.bf16.msra.mxu0 0
      %7519 = vmatprep.subr.bf16.mxu0 0
      %7520 = vmatpush1.bf16.msra.mxu0 0
      %7521 = vmatprep.subr.bf16.mxu0 0
      %7522 = vmatpush1.bf16.msra.mxu0 0
      %7523 = vmatprep.subr.bf16.mxu0 0
      %7524 = vmatpush1.bf16.msra.mxu0 0
      %7525 = vmatprep.subr.bf16.mxu0 0
      %7526 = vmatpush1.bf16.msra.mxu0 0
      %7527 = vmatprep.subr.bf16.mxu0 0
      %7528 = vmatpush1.bf16.msra.mxu0 0
      %7529 = vmatprep.subr.bf16.mxu0 0
      %7530 = vmatpush1.bf16.msra.mxu0 0
      %7531 = vmatprep.subr.bf16.mxu0 0
      %7532 = vmatpush1.bf16.msra.mxu0 0
      %7533 = vmatprep.subr.bf16.mxu0 0
      %7534 = vmatpush1.bf16.msra.mxu0 0
      %7535 = vmatprep.subr.bf16.mxu0 0
      %7536 = vmatpush1.bf16.msra.mxu0 0
      %7537 = vmatprep.subr.bf16.mxu0 0
      %7538 = vmatpush1.bf16.msra.mxu0 0
      %7539 = vmatprep.mubr.bf16.mxu0 0
      %7540 = vmatmul.mubr.bf16.gmra.mrb[0].mxu0 %v7505
      %v7541 = vpop.f32.mrb[0].mxu0
      %v7542 = vadd.f32 0.0, %v7541
      %v7543 = vpop.f32.mrb[0].mxu0
      %v7544 = vadd.f32 0.0, %v7543
      %v7545 = vpop.f32.mrb[0].mxu0
      %v7546 = vadd.f32 0.0, %v7545
      %v7547 = vpop.f32.mrb[0].mxu0
      %v7548 = vadd.f32 0.0, %v7547
      %7549 = vdwg.mxu0
      %v7550 = vadd.f32 %v7474, %v7542
      %v7551 = vadd.f32 %v7475, %v7544
      %v7552 = vadd.f32 %v7476, %v7546
      %v7553 = vadd.f32 %v7477, %v7548
      %s7554 = scalar_lea.vmem %s9, 32
      %v7555 = vld [vmem:[%s7554] sm:$0xf]
      %v7556 = vld [vmem:[%s7554 + $0x4] sm:$0xf]
      %v7557 = vpack.c.bf16 %v7237, %v7235
      %v7558 = vpack.c.bf16 %v7238, %v7236
      %v7561 = vunpack.c.l.b16 %v7555
      %v7562 = vunpack.c.l.b16 %v7556
      %v7563 = vpack.c.b16 %v7562, %v7561
      %v7565 = vsel %vm486, %v7563, 0
      %7567 = vmatprep.subr.bf16.mxu0 %v7558
      %7568 = vmatpush1.bf16.msra.mxu0 %v7557
      %7569 = vmatprep.subr.bf16.mxu0 0
      %7570 = vmatpush1.bf16.msra.mxu0 0
      %7571 = vmatprep.subr.bf16.mxu0 0
      %7572 = vmatpush1.bf16.msra.mxu0 0
      %7573 = vmatprep.subr.bf16.mxu0 0
      %7574 = vmatpush1.bf16.msra.mxu0 0
      %7575 = vmatprep.subr.bf16.mxu0 0
      %7576 = vmatpush1.bf16.msra.mxu0 0
      %7577 = vmatprep.subr.bf16.mxu0 0
      %7578 = vmatpush1.bf16.msra.mxu0 0
      %7579 = vmatprep.subr.bf16.mxu0 0
      %7580 = vmatpush1.bf16.msra.mxu0 0
      %7581 = vmatprep.subr.bf16.mxu0 0
      %7582 = vmatpush1.bf16.msra.mxu0 0
      %7583 = vmatprep.subr.bf16.mxu0 0
      %7584 = vmatpush1.bf16.msra.mxu0 0
      %7585 = vmatprep.subr.bf16.mxu0 0
      %7586 = vmatpush1.bf16.msra.mxu0 0
      %7587 = vmatprep.subr.bf16.mxu0 0
      %7588 = vmatpush1.bf16.msra.mxu0 0
      %7589 = vmatprep.subr.bf16.mxu0 0
      %7590 = vmatpush1.bf16.msra.mxu0 0
      %7591 = vmatprep.subr.bf16.mxu0 0
      %7592 = vmatpush1.bf16.msra.mxu0 0
      %7593 = vmatprep.subr.bf16.mxu0 0
      %7594 = vmatpush1.bf16.msra.mxu0 0
      %7595 = vmatprep.subr.bf16.mxu0 0
      %7596 = vmatpush1.bf16.msra.mxu0 0
      %7597 = vmatprep.subr.bf16.mxu0 0
      %7598 = vmatpush1.bf16.msra.mxu0 0
      %7599 = vmatprep.mubr.bf16.mxu0 0
      %7600 = vmatmul.mubr.bf16.gmra.mrb[0].mxu0 %v7565
      %v7601 = vpop.f32.mrb[0].mxu0
      %v7602 = vadd.f32 0.0, %v7601
      %v7603 = vpop.f32.mrb[0].mxu0
      %v7604 = vadd.f32 0.0, %v7603
      %v7605 = vpop.f32.mrb[0].mxu0
      %v7606 = vadd.f32 0.0, %v7605
      %v7607 = vpop.f32.mrb[0].mxu0
      %v7608 = vadd.f32 0.0, %v7607
      %7609 = vdwg.mxu0
      %v7610 = vadd.f32 %v7550, %v7602
      %v7611 = vadd.f32 %v7551, %v7604
      %v7612 = vadd.f32 %v7552, %v7606
      %v7613 = vadd.f32 %v7553, %v7608
      %7614 = vrot.lane.b32.xlu0 %v7235, 127
      %v7615 = vpop.permute.xlu0 %7614
      %7616 = vrot.lane.b32.xlu0 %v7237, 127
      %v7617 = vpop.permute.xlu0 %7616
      %7618 = vrot.lane.b32.xlu0 %v7236, 127
      %v7619 = vpop.permute.xlu0 %7618
      %7620 = vrot.lane.b32.xlu0 %v7238, 127
      %v7621 = vpop.permute.xlu0 %7620
      %v7622 = vsel %vm646, %v7615, %v7619
      %v7623 = vsel %vm646, %v7617, %v7621
      %v7624 = vsel %vm646, %v7619, %v7615
      %v7625 = vsel %vm646, %v7621, %v7617
      %v7626 = vsel %vm653, %v7235, %v7622
      %v7627 = vsel %vm654, %v7236, %v7624
      %v7628 = vsel %vm653, %v7237, %v7623
      %v7629 = vsel %vm654, %v7238, %v7625
      %s7630 = scalar_lea.vmem %s9, 40
      %v7631 = vld [vmem:[%s7630] sm:$0xf]
      %v7632 = vld [vmem:[%s7630 + $0x4] sm:$0xf]
      %v7633 = vpack.c.bf16 %v7628, %v7626
      %v7634 = vpack.c.bf16 %v7629, %v7627
      %v7637 = vunpack.c.l.b16 %v7631
      %v7638 = vunpack.c.l.b16 %v7632
      %v7639 = vpack.c.b16 %v7638, %v7637
      %v7641 = vsel %vm486, %v7639, 0
      %7643 = vmatprep.subr.bf16.mxu0 %v7634
      %7644 = vmatpush1.bf16.msra.mxu0 %v7633
      %7645 = vmatprep.subr.bf16.mxu0 0
      %7646 = vmatpush1.bf16.msra.mxu0 0
      %7647 = vmatprep.subr.bf16.mxu0 0
      %7648 = vmatpush1.bf16.msra.mxu0 0
      %7649 = vmatprep.subr.bf16.mxu0 0
      %7650 = vmatpush1.bf16.msra.mxu0 0
      %7651 = vmatprep.subr.bf16.mxu0 0
      %7652 = vmatpush1.bf16.msra.mxu0 0
      %7653 = vmatprep.subr.bf16.mxu0 0
      %7654 = vmatpush1.bf16.msra.mxu0 0
      %7655 = vmatprep.subr.bf16.mxu0 0
      %7656 = vmatpush1.bf16.msra.mxu0 0
      %7657 = vmatprep.subr.bf16.mxu0 0
      %7658 = vmatpush1.bf16.msra.mxu0 0
      %7659 = vmatprep.subr.bf16.mxu0 0
      %7660 = vmatpush1.bf16.msra.mxu0 0
      %7661 = vmatprep.subr.bf16.mxu0 0
      %7662 = vmatpush1.bf16.msra.mxu0 0
      %7663 = vmatprep.subr.bf16.mxu0 0
      %7664 = vmatpush1.bf16.msra.mxu0 0
      %7665 = vmatprep.subr.bf16.mxu0 0
      %7666 = vmatpush1.bf16.msra.mxu0 0
      %7667 = vmatprep.subr.bf16.mxu0 0
      %7668 = vmatpush1.bf16.msra.mxu0 0
      %7669 = vmatprep.subr.bf16.mxu0 0
      %7670 = vmatpush1.bf16.msra.mxu0 0
      %7671 = vmatprep.subr.bf16.mxu0 0
      %7672 = vmatpush1.bf16.msra.mxu0 0
      %7673 = vmatprep.subr.bf16.mxu0 0
      %7674 = vmatpush1.bf16.msra.mxu0 0
      %7675 = vmatprep.mubr.bf16.mxu0 0
      %7676 = vmatmul.mubr.bf16.gmra.mrb[0].mxu0 %v7641
      %v7677 = vpop.f32.mrb[0].mxu0
      %v7678 = vadd.f32 0.0, %v7677
      %v7679 = vpop.f32.mrb[0].mxu0
      %v7680 = vadd.f32 0.0, %v7679
      %v7681 = vpop.f32.mrb[0].mxu0
      %v7682 = vadd.f32 0.0, %v7681
      %v7683 = vpop.f32.mrb[0].mxu0
      %v7684 = vadd.f32 0.0, %v7683
      %7685 = vdwg.mxu0
      %v7686 = vadd.f32 %v7610, %v7678
      %v7687 = vadd.f32 %v7611, %v7680
      %v7688 = vadd.f32 %v7612, %v7682
      %v7689 = vadd.f32 %v7613, %v7684
      %7690 = vrot.lane.b32.xlu0 %v7235, 112
      %v7691 = vpop.permute.xlu0 %7690
      %7692 = vrot.lane.b32.xlu0 %v7237, 112
      %v7693 = vpop.permute.xlu0 %7692
      %7694 = vrot.lane.b32.xlu0 %v7236, 112
      %v7695 = vpop.permute.xlu0 %7694
      %7696 = vrot.lane.b32.xlu0 %v7238, 112
      %v7697 = vpop.permute.xlu0 %7696
      %v7698 = vsel %vm1035, %v7691, %v7695
      %v7699 = vsel %vm1035, %v7693, %v7697
      %v7700 = vsel %vm1035, %v7695, %v7691
      %v7701 = vsel %vm1035, %v7697, %v7693
      %v7702 = vsel %vm1042, %v7235, %v7698
      %v7703 = vsel %vm1043, %v7236, %v7700
      %v7704 = vsel %vm1042, %v7237, %v7699
      %v7705 = vsel %vm1043, %v7238, %v7701
      %7706 = vrot.lane.b32.xlu0 %v7702, 1
      %v7707 = vpop.permute.xlu0 %7706
      %7708 = vrot.lane.b32.xlu0 %v7704, 1
      %v7709 = vpop.permute.xlu0 %7708
      %7710 = vrot.lane.b32.xlu0 %v7703, 1
      %v7711 = vpop.permute.xlu0 %7710
      %7712 = vrot.lane.b32.xlu0 %v7705, 1
      %v7713 = vpop.permute.xlu0 %7712
      %v7714 = vsel %vm457, %v7707, %v7711
      %v7715 = vsel %vm457, %v7709, %v7713
      %v7716 = vsel %vm457, %v7711, %v7707
      %v7717 = vsel %vm457, %v7713, %v7709
      %v7718 = vsel %vm464, %v7702, %v7716
      %v7719 = vsel %vm465, %v7703, %v7714
      %v7720 = vsel %vm464, %v7704, %v7717
      %v7721 = vsel %vm465, %v7705, %v7715
      %s7722 = scalar_lea.vmem %s9, 48
      %v7723 = vld [vmem:[%s7722] sm:$0xf]
      %v7724 = vld [vmem:[%s7722 + $0x4] sm:$0xf]
      %v7725 = vpack.c.bf16 %v7720, %v7718
      %v7726 = vpack.c.bf16 %v7721, %v7719
      %v7729 = vunpack.c.l.b16 %v7723
      %v7730 = vunpack.c.l.b16 %v7724
      %v7731 = vpack.c.b16 %v7730, %v7729
      %v7733 = vsel %vm486, %v7731, 0
      %7735 = vmatprep.subr.bf16.mxu0 %v7726
      %7736 = vmatpush1.bf16.msra.mxu0 %v7725
      %7737 = vmatprep.subr.bf16.mxu0 0
      %7738 = vmatpush1.bf16.msra.mxu0 0
      %7739 = vmatprep.subr.bf16.mxu0 0
      %7740 = vmatpush1.bf16.msra.mxu0 0
      %7741 = vmatprep.subr.bf16.mxu0 0
      %7742 = vmatpush1.bf16.msra.mxu0 0
      %7743 = vmatprep.subr.bf16.mxu0 0
      %7744 = vmatpush1.bf16.msra.mxu0 0
      %7745 = vmatprep.subr.bf16.mxu0 0
      %7746 = vmatpush1.bf16.msra.mxu0 0
      %7747 = vmatprep.subr.bf16.mxu0 0
      %7748 = vmatpush1.bf16.msra.mxu0 0
      %7749 = vmatprep.subr.bf16.mxu0 0
      %7750 = vmatpush1.bf16.msra.mxu0 0
      %7751 = vmatprep.subr.bf16.mxu0 0
      %7752 = vmatpush1.bf16.msra.mxu0 0
      %7753 = vmatprep.subr.bf16.mxu0 0
      %7754 = vmatpush1.bf16.msra.mxu0 0
      %7755 = vmatprep.subr.bf16.mxu0 0
      %7756 = vmatpush1.bf16.msra.mxu0 0
      %7757 = vmatprep.subr.bf16.mxu0 0
      %7758 = vmatpush1.bf16.msra.mxu0 0
      %7759 = vmatprep.subr.bf16.mxu0 0
      %7760 = vmatpush1.bf16.msra.mxu0 0
      %7761 = vmatprep.subr.bf16.mxu0 0
      %7762 = vmatpush1.bf16.msra.mxu0 0
      %7763 = vmatprep.subr.bf16.mxu0 0
      %7764 = vmatpush1.bf16.msra.mxu0 0
      %7765 = vmatprep.subr.bf16.mxu0 0
      %7766 = vmatpush1.bf16.msra.mxu0 0
      %7767 = vmatprep.mubr.bf16.mxu0 0
      %7768 = vmatmul.mubr.bf16.gmra.mrb[0].mxu0 %v7733
      %v7769 = vpop.f32.mrb[0].mxu0
      %v7770 = vadd.f32 0.0, %v7769
      %v7771 = vpop.f32.mrb[0].mxu0
      %v7772 = vadd.f32 0.0, %v7771
      %v7773 = vpop.f32.mrb[0].mxu0
      %v7774 = vadd.f32 0.0, %v7773
      %v7775 = vpop.f32.mrb[0].mxu0
      %v7776 = vadd.f32 0.0, %v7775
      %7777 = vdwg.mxu0
      %v7778 = vadd.f32 %v7686, %v7770
      %v7779 = vadd.f32 %v7687, %v7772
      %v7780 = vadd.f32 %v7688, %v7774
      %v7781 = vadd.f32 %v7689, %v7776
      %s7782 = scalar_lea.vmem %s9, 56
      %v7783 = vld [vmem:[%s7782] sm:$0xf]
      %v7784 = vld [vmem:[%s7782 + $0x4] sm:$0xf]
      %v7785 = vpack.c.bf16 %v7704, %v7702
      %v7786 = vpack.c.bf16 %v7705, %v7703
      %v7789 = vunpack.c.l.b16 %v7783
      %v7790 = vunpack.c.l.b16 %v7784
      %v7791 = vpack.c.b16 %v7790, %v7789
      %v7793 = vsel %vm486, %v7791, 0
      %7795 = vmatprep.subr.bf16.mxu0 %v7786
      %7796 = vmatpush1.bf16.msra.mxu0 %v7785
      %7797 = vmatprep.subr.bf16.mxu0 0
      %7798 = vmatpush1.bf16.msra.mxu0 0
      %7799 = vmatprep.subr.bf16.mxu0 0
      %7800 = vmatpush1.bf16.msra.mxu0 0
      %7801 = vmatprep.subr.bf16.mxu0 0
      %7802 = vmatpush1.bf16.msra.mxu0 0
      %7803 = vmatprep.subr.bf16.mxu0 0
      %7804 = vmatpush1.bf16.msra.mxu0 0
      %7805 = vmatprep.subr.bf16.mxu0 0
      %7806 = vmatpush1.bf16.msra.mxu0 0
      %7807 = vmatprep.subr.bf16.mxu0 0
      %7808 = vmatpush1.bf16.msra.mxu0 0
      %7809 = vmatprep.subr.bf16.mxu0 0
      %7810 = vmatpush1.bf16.msra.mxu0 0
      %7811 = vmatprep.subr.bf16.mxu0 0
      %7812 = vmatpush1.bf16.msra.mxu0 0
      %7813 = vmatprep.subr.bf16.mxu0 0
      %7814 = vmatpush1.bf16.msra.mxu0 0
      %7815 = vmatprep.subr.bf16.mxu0 0
      %7816 = vmatpush1.bf16.msra.mxu0 0
      %7817 = vmatprep.subr.bf16.mxu0 0
      %7818 = vmatpush1.bf16.msra.mxu0 0
      %7819 = vmatprep.subr.bf16.mxu0 0
      %7820 = vmatpush1.bf16.msra.mxu0 0
      %7821 = vmatprep.subr.bf16.mxu0 0
      %7822 = vmatpush1.bf16.msra.mxu0 0
      %7823 = vmatprep.subr.bf16.mxu0 0
      %7824 = vmatpush1.bf16.msra.mxu0 0
      %7825 = vmatprep.subr.bf16.mxu0 0
      %7826 = vmatpush1.bf16.msra.mxu0 0
      %7827 = vmatprep.mubr.bf16.mxu0 0
      %7828 = vmatmul.mubr.bf16.gmra.mrb[0].mxu0 %v7793
      %v7829 = vpop.f32.mrb[0].mxu0
      %v7830 = vadd.f32 0.0, %v7829
      %v7831 = vpop.f32.mrb[0].mxu0
      %v7832 = vadd.f32 0.0, %v7831
      %v7833 = vpop.f32.mrb[0].mxu0
      %v7834 = vadd.f32 0.0, %v7833
      %v7835 = vpop.f32.mrb[0].mxu0
      %v7836 = vadd.f32 0.0, %v7835
      %7837 = vdwg.mxu0
      %v7838 = vadd.f32 %v7778, %v7830
      %v7839 = vadd.f32 %v7779, %v7832
      %v7840 = vadd.f32 %v7780, %v7834
      %v7841 = vadd.f32 %v7781, %v7836
      %7842 = vrot.lane.b32.xlu0 %v7702, 127
      %v7843 = vpop.permute.xlu0 %7842
      %7844 = vrot.lane.b32.xlu0 %v7704, 127
      %v7845 = vpop.permute.xlu0 %7844
      %7846 = vrot.lane.b32.xlu0 %v7703, 127
      %v7847 = vpop.permute.xlu0 %7846
      %7848 = vrot.lane.b32.xlu0 %v7705, 127
      %v7849 = vpop.permute.xlu0 %7848
      %v7850 = vsel %vm646, %v7843, %v7847
      %v7851 = vsel %vm646, %v7845, %v7849
      %v7852 = vsel %vm646, %v7847, %v7843
      %v7853 = vsel %vm646, %v7849, %v7845
      %v7854 = vsel %vm653, %v7702, %v7850
      %v7855 = vsel %vm654, %v7703, %v7852
      %v7856 = vsel %vm653, %v7704, %v7851
      %v7857 = vsel %vm654, %v7705, %v7853
      %s7858 = scalar_lea.vmem %s9, 64
      %v7859 = vld [vmem:[%s7858] sm:$0xf]
      %v7860 = vld [vmem:[%s7858 + $0x4] sm:$0xf]
      %v7861 = vpack.c.bf16 %v7856, %v7854
      %v7862 = vpack.c.bf16 %v7857, %v7855
      %v7865 = vunpack.c.l.b16 %v7859
      %v7866 = vunpack.c.l.b16 %v7860
      %v7867 = vpack.c.b16 %v7866, %v7865
      %v7869 = vsel %vm486, %v7867, 0
      %7871 = vmatprep.subr.bf16.mxu0 %v7862
      %7872 = vmatpush1.bf16.msra.mxu0 %v7861
      %7873 = vmatprep.subr.bf16.mxu0 0
      %7874 = vmatpush1.bf16.msra.mxu0 0
      %7875 = vmatprep.subr.bf16.mxu0 0
      %7876 = vmatpush1.bf16.msra.mxu0 0
      %7877 = vmatprep.subr.bf16.mxu0 0
      %7878 = vmatpush1.bf16.msra.mxu0 0
      %7879 = vmatprep.subr.bf16.mxu0 0
      %7880 = vmatpush1.bf16.msra.mxu0 0
      %7881 = vmatprep.subr.bf16.mxu0 0
      %7882 = vmatpush1.bf16.msra.mxu0 0
      %7883 = vmatprep.subr.bf16.mxu0 0
      %7884 = vmatpush1.bf16.msra.mxu0 0
      %7885 = vmatprep.subr.bf16.mxu0 0
      %7886 = vmatpush1.bf16.msra.mxu0 0
      %7887 = vmatprep.subr.bf16.mxu0 0
      %7888 = vmatpush1.bf16.msra.mxu0 0
      %7889 = vmatprep.subr.bf16.mxu0 0
      %7890 = vmatpush1.bf16.msra.mxu0 0
      %7891 = vmatprep.subr.bf16.mxu0 0
      %7892 = vmatpush1.bf16.msra.mxu0 0
      %7893 = vmatprep.subr.bf16.mxu0 0
      %7894 = vmatpush1.bf16.msra.mxu0 0
      %7895 = vmatprep.subr.bf16.mxu0 0
      %7896 = vmatpush1.bf16.msra.mxu0 0
      %7897 = vmatprep.subr.bf16.mxu0 0
      %7898 = vmatpush1.bf16.msra.mxu0 0
      %7899 = vmatprep.subr.bf16.mxu0 0
      %7900 = vmatpush1.bf16.msra.mxu0 0
      %7901 = vmatprep.subr.bf16.mxu0 0
      %7902 = vmatpush1.bf16.msra.mxu0 0
      %7903 = vmatprep.mubr.bf16.mxu0 0
      %7904 = vmatmul.mubr.bf16.gmra.mrb[0].mxu0 %v7869
      %v7905 = vpop.f32.mrb[0].mxu0
      %v7906 = vadd.f32 0.0, %v7905
      %v7907 = vpop.f32.mrb[0].mxu0
      %v7908 = vadd.f32 0.0, %v7907
      %v7909 = vpop.f32.mrb[0].mxu0
      %v7910 = vadd.f32 0.0, %v7909
      %v7911 = vpop.f32.mrb[0].mxu0
      %v7912 = vadd.f32 0.0, %v7911
      %7913 = vdwg.mxu0
      %v7914 = vadd.f32 %v7838, %v7906
      %v7915 = vadd.f32 %v7839, %v7908
      %v7916 = vadd.f32 %v7840, %v7910
      %v7917 = vadd.f32 %v7841, %v7912
      %v7918 = vmax.f32 %v7914, 0.0
      %v7919 = vmax.f32 %v7915, 0.0
      %v7920 = vmax.f32 %v7916, 0.0
      %v7921 = vmax.f32 %v7917, 0.0
      %7922 = vst [vmem:[%s386] sm:$0xff] %v7918
      %7923 = vst [vmem:[%s386 + $0x8] sm:$0xff] %v7919
      %7924 = vst [vmem:[%s386 + $0x10] sm:$0xff] %v7920
      %7925 = vst [vmem:[%s386 + $0x18] sm:$0xff] %v7921
      %p7926 = scmp.lt.s32.totalorder %s22, 1
      %s7927 = scalar_select %p7926, %s22, 1
      %s7928 = smul.addr %s7927, 4
      %s7929 = smul.addr %s7928, 8
      %s7930 = scalar_lea.vmem %s11, %s7929
      // Predicated region
      $region65: #{cnn_forward.1} parent=63 // pred_check
        %p7931 = pneg %p276
      $region66: #{cnn_forward.1} parent=63 // pred_check_branch
        %7933 = sbr.rel (%p7931) target = $region68
      $region67: #{cnn_forward.1} parent=63 // pred_region
        _
      $region68: #{cnn_forward.1} parent=63 // pred_fallthru
        _
    $region64: #{cnn_forward.1} parent=5 // pred_fallthru
      _
    %p7934 = scmp.le.s32.totalorder 2, %s17
    // Predicated region
    $region69: #{cnn_forward.1} parent=5 // pred_check
      %p7935 = pneg %p7934
    $region70: #{cnn_forward.1} parent=5 // pred_check_branch
      %7937 = sbr.rel (%p7935) target = $region72
    $region71: #{cnn_forward.1} parent=5 // pred_region
      %s7938 = ssub.s32 %s17, 2
      // Predicated region
      $region73: #{cnn_forward.1} parent=71 // pred_check
        %p7939 = pneg %p282
      $region74: #{cnn_forward.1} parent=71 // pred_check_branch
        %7941 = sbr.rel (%p7939) target = $region76
      $region75: #{cnn_forward.1} parent=71 // pred_region
        %p7942 = scmp.lt.s32.totalorder %s23, 1
        %s7943 = scalar_select %p7942, %s23, 1
        %s7944 = smul.addr %s7943, 4
        %s7945 = smul.addr %s7944, 8
        %s7946 = scalar_lea.vmem %s11, %s7945
      $region76: #{cnn_forward.1} parent=71 // pred_fallthru
        _
    $region72: #{cnn_forward.1} parent=5 // pred_fallthru
      _
  $region6: #{cnn_forward.1} parent=0 // loop_footer
    %s21 = sadd.s32 1, %s17
  $region7: #{cnn_forward.1} parent=0 // loop_footer_branch
    %16 = sbr.rel target = $region3
  $region8: #{cnn_forward.1} parent=0 // loop_exit
    _

</llo_original>
